<compile_context>
chip_gen: v7x
topology: tpu7x:2x2x1
jax: 0.10.0
libtpu: 0.0.40
codegen_flags: <defaults>
</compile_context>

<pallas_src>
import math

import jax
import jax.numpy as jnp
from jax.experimental import pallas as pl
from jax.experimental.pallas import tpu as pltpu


def _make_kernel(nhead: int, fused_heads: bool, eps: float = 1e-5):
    def kernel(x_ref,
               wqkv_ref, bqkv_ref,          # in_proj   (D, 3D) bf16, (1, 3D) f32 (Q cols pre-scaled)
               wo_ref, bo_ref,              # out_proj  (D, D)  bf16, (1, D)  f32
               ln1w_ref, ln1b_ref,          # norm1     (1, D),  (1, D)  f32
               w1_ref, b1_ref,              # linear1   (D, F)  bf16, (1, F)  f32
               w2_ref, b2_ref,              # linear2   (F, D)  bf16, (1, D)  f32
               ln2w_ref, ln2b_ref,          # norm2     (1, D),  (1, D)  f32
               wl_ref, bl_ref,              # classifier(D, Lpad) bf16, (1, Lpad) f32
               out_ref):                    # (bt*S, Lpad)
        bt, S, D = x_ref.shape
        dh = D // nhead
        N = bt * S

        x2d = x_ref[...].astype(jnp.float32).reshape(N, D)     # residual/LN in f32

        def mm(a, w_ref_, b_ref_):
            # bf16 operands into the MXU, f32 accumulation, f32 bias add.
            return (jnp.dot(a.astype(jnp.bfloat16), w_ref_[...],
                            preferred_element_type=jnp.float32)
                    + b_ref_[...])

        # ---- QKV projection over all bt*S rows (scale already folded in) ----
        qkv = mm(x2d, wqkv_ref, bqkv_ref)                      # (N, 3D) f32
        q2d, k2d, v2d = qkv[:, :D], qkv[:, D:2 * D], qkv[:, 2 * D:]

        # ---- Multi-head attention: heads stacked on one leading batch axis --
        if fused_heads:
            def split_heads(t2d):          # (N, D) -> (bt*nhead, S, dh), batch-major
                t = t2d.reshape(bt, S, nhead, dh)
                t = jnp.transpose(t, (0, 2, 1, 3))             # minor dim unchanged
                return t.reshape(bt * nhead, S, dh).astype(jnp.bfloat16)
        else:
            def split_heads(t2d):          # fallback: lane slices + concat (head-major)
                t = t2d.reshape(bt, S, D)
                return jnp.concatenate(
                    [t[:, :, h * dh:(h + 1) * dh] for h in range(nhead)],
                    axis=0).astype(jnp.bfloat16)

        qh, kh, vh = split_heads(q2d), split_heads(k2d), split_heads(v2d)

        s = jnp.einsum('nqd,nkd->nqk', qh, kh,
                       preferred_element_type=jnp.float32)     # (H*bt, S, S) f32
        s = s - jnp.max(s, axis=-1, keepdims=True)
        p = jnp.exp(s)
        # approx reciprocal (EUP slot): ~1e-3 rel. error vs exact softmax.
        p = p * pl.reciprocal(jnp.sum(p, axis=-1, keepdims=True), approx=True)
        ctx_h = jnp.einsum('nqk,nkd->nqd', p.astype(jnp.bfloat16), vh,
                           preferred_element_type=jnp.float32)  # (H*bt, S, dh) f32

        if fused_heads:
            ctx2d = jnp.transpose(ctx_h.reshape(bt, nhead, S, dh),
                                  (0, 2, 1, 3)).reshape(N, D)
        else:
            ctx2d = jnp.concatenate(
                [ctx_h[h * bt:(h + 1) * bt] for h in range(nhead)],
                axis=-1).reshape(N, D)

        attn = mm(ctx2d, wo_ref, bo_ref)                       # (N, D)

        # ---- Residual + LayerNorm (f32 on the VPU) --------------------------
        def layer_norm(t, w_ref_, b_ref_):
            mu = jnp.mean(t, axis=-1, keepdims=True)
            var = jnp.mean((t - mu) ** 2, axis=-1, keepdims=True)
            return (t - mu) * jax.lax.rsqrt(var + eps) * w_ref_[...] + b_ref_[...]

        x1 = layer_norm(x2d + attn, ln1w_ref, ln1b_ref)        # (N, D)

        # ---- Feed-forward (relu output kept bf16 to halve the (N,F) live set)
        hdn = jnp.maximum(mm(x1, w1_ref, b1_ref), 0.0).astype(jnp.bfloat16)
        ff = mm(hdn, w2_ref, b2_ref)                           # (N, D)
        x2 = layer_norm(x1 + ff, ln2w_ref, ln2b_ref)           # (N, D)

        # ---- Classifier (lane-dense padded output, unmasked vst) ------------
        logits = mm(x2, wl_ref, bl_ref)                        # (N, Lpad)
        out_ref[...] = logits.astype(out_ref.dtype)

    return kernel


def _auto_batch_tile(B: int, S: int, target_rows: int = 256) -> int:
    """Smallest divisor of B with bt*S >= target_rows: fills the MXU's M
    dimension (256 for v6e/v7x, over-fills v5e's 128) while maximizing the
    number of grid steps so ('parallel',) can shard across v7x's 2 TCs.
    Falls back to the whole batch when B*S is too small to reach the target."""
    for d in range(1, B + 1):
        if B % d == 0 and d * S >= target_rows:
            return d
    return B


def init_mrc_head_params(key, d_model, nhead, num_labels, dim_feedforward=2048):
    """Deterministic synthetic parameters, stored in PyTorch shape conventions."""
    ks = jax.random.split(key, 8)
    return {
        "in_proj_w": jax.random.normal(ks[0], (3 * d_model, d_model), jnp.float32) * 0.02,
        "in_proj_b": jax.random.normal(ks[1], (3 * d_model,), jnp.float32) * 0.02,
        "out_proj_w": jax.random.normal(ks[2], (d_model, d_model), jnp.float32) * 0.02,
        "out_proj_b": jnp.zeros((d_model,), jnp.float32),
        "ln1_w": jnp.ones((d_model,), jnp.float32),
        "ln1_b": jnp.zeros((d_model,), jnp.float32),
        "lin1_w": jax.random.normal(ks[3], (dim_feedforward, d_model), jnp.float32) * 0.02,
        "lin1_b": jax.random.normal(ks[4], (dim_feedforward,), jnp.float32) * 0.02,
        "lin2_w": jax.random.normal(ks[5], (d_model, dim_feedforward), jnp.float32) * 0.02,
        "lin2_b": jnp.zeros((d_model,), jnp.float32),
        "ln2_w": jnp.ones((d_model,), jnp.float32),
        "ln2_b": jnp.zeros((d_model,), jnp.float32),
        "cls_w": jax.random.normal(ks[6], (num_labels, d_model), jnp.float32) * 0.02,
        "cls_b": jax.random.normal(ks[7], (num_labels,), jnp.float32) * 0.02,
    }


def mrc_head_forward(hidden_states, params, nhead, *, batch_tile=None,
                     out_dtype=None, head_layout="auto"):
    """hidden_states: (S, B, D) — same axis convention as the PyTorch module."""
    S, B, D = hidden_states.shape
    F = params["lin1_w"].shape[0]
    L = params["cls_w"].shape[0]
    Lpad = ((L + 127) // 128) * 128                    # lane-dense output width
    # out_dtype=jnp.bfloat16 halves the HBM traffic of the padded logits slab
    # if downstream accepts bf16; default keeps the input dtype (f32 fidelity).
    out_dtype = hidden_states.dtype if out_dtype is None else out_dtype

    bt = _auto_batch_tile(B, S) if batch_tile is None else batch_tile
    assert B % bt == 0, "batch_tile must divide the batch size"
    n_tiles = B // bt

    x = jnp.transpose(hidden_states, (1, 0, 2))        # (B, S, D)

    w_dt = jnp.bfloat16                                # MXU operand dtype
    scale = 1.0 / math.sqrt(D // nhead)

    # Fold 1/sqrt(dh) into the Q rows of the (3D, D) torch in_proj weight/bias.
    w_in = params["in_proj_w"].astype(jnp.float32).at[:D, :].multiply(scale)
    b_in = params["in_proj_b"].astype(jnp.float32).at[:D].multiply(scale)
    wqkv = w_in.T.astype(w_dt)                         # (D, 3D)
    bqkv = b_in.reshape(1, 3 * D)

    wo = params["out_proj_w"].T.astype(w_dt)           # (D, D)
    bo = params["out_proj_b"].reshape(1, D).astype(jnp.float32)
    ln1w = params["ln1_w"].reshape(1, D).astype(jnp.float32)
    ln1b = params["ln1_b"].reshape(1, D).astype(jnp.float32)
    w1 = params["lin1_w"].T.astype(w_dt)               # (D, F)
    b1 = params["lin1_b"].reshape(1, F).astype(jnp.float32)
    w2 = params["lin2_w"].T.astype(w_dt)               # (F, D)
    b2 = params["lin2_b"].reshape(1, D).astype(jnp.float32)
    ln2w = params["ln2_w"].reshape(1, D).astype(jnp.float32)
    ln2b = params["ln2_b"].reshape(1, D).astype(jnp.float32)
    wl = jnp.zeros((D, Lpad), w_dt).at[:, :L].set(params["cls_w"].T.astype(w_dt))
    bl = jnp.zeros((1, Lpad), jnp.float32).at[:, :L].set(params["cls_b"])

    weights = (wqkv, bqkv, wo, bo, ln1w, ln1b, w1, b1, w2, b2, ln2w, ln2b, wl, bl)
    big = {0, 2, 6, 8, 12}   # wqkv, wo, w1, w2, wl → single-buffer candidates

    # Explicit VMEM budget: single-buffered weight set + double-buffered
    # activations, capped at 64 MiB so it is safe on v7x (64 MiB physical);
    # raise toward ~110 MiB on v5e/v6e (128 MiB) when growing bt further.
    wbytes = sum(int(w.size) * w.dtype.itemsize for w in weights)
    abytes = bt * S * (3 * D + 8 * D + F + Lpad) * 4
    vmem_limit = int(min(max(2 * wbytes + 2 * abytes + (2 << 20), 32 << 20),
                         64 << 20))
    # TODO(synk): at very large D/F on v7x, additionally tile w1/w2 over F with
    # an 'arbitrary' reduction grid axis (or pltpu.emit_pipeline) if the
    # single-buffered weight set still exceeds 64 MiB.

    def _const_index_map(nd):
        def imap(i):
            return (0,) * nd
        return imap

    def run(fused_heads, single_buffer_weights):
        def w_spec(shape, single):
            kw = {}
            if single and hasattr(pl, "Buffered"):
                kw["pipeline_mode"] = pl.Buffered(1)   # constant index_map: 1 buffer
            return pl.BlockSpec(shape, _const_index_map(len(shape)), **kw)

        in_specs = [pl.BlockSpec((bt, S, D), lambda i: (i, 0, 0))]
        in_specs += [w_spec(w.shape, single_buffer_weights and (j in big))
                     for j, w in enumerate(weights)]

        return pl.pallas_call(
            _make_kernel(nhead, fused_heads),
            out_shape=jax.ShapeDtypeStruct((B * S, Lpad), out_dtype),
            grid=(n_tiles,),
            in_specs=in_specs,
            out_specs=pl.BlockSpec((bt * S, Lpad), lambda i: (i, 0)),
            compiler_params=pltpu.CompilerParams(
                dimension_semantics=("parallel",),
                vmem_limit_bytes=vmem_limit),
        )(x, *weights)

    if head_layout == "auto":
        try:
            # Preferred path: fused reshape/transpose head layout + single-
            # buffered weights. Fall back to the known-good lane-slice layout
            # (and default buffering) if this Mosaic version rejects it.
            out = jax.block_until_ready(run(True, True))
        except Exception:
            out = run(False, False)
    else:
        out = run(head_layout == "fused", True)

    logits = out[:, :L].reshape(B, S, L)               # drop lane padding
    return jnp.transpose(logits, (1, 0, 2))            # (S, B, L)


def _reference_forward(hidden_states, params, nhead, eps=1e-5):
    """Pure-JAX f32 reference of the eval-mode PyTorch forward (for validation)."""
    S, B, D = hidden_states.shape
    dh = D // nhead
    x = hidden_states.astype(jnp.float32)

    qkv = jnp.einsum("sbd,ed->sbe", x, params["in_proj_w"]) + params["in_proj_b"]
    q, k, v = jnp.split(qkv, 3, axis=-1)

    def heads(t):  # (S,B,D) -> (B,H,S,dh)
        return t.reshape(S, B, nhead, dh).transpose(1, 2, 0, 3)

    qh, kh, vh = heads(q), heads(k), heads(v)
    scores = jnp.einsum("bhqd,bhkd->bhqk", qh, kh) / math.sqrt(dh)
    p = jax.nn.softmax(scores, axis=-1)
    ctx = jnp.einsum("bhqk,bhkd->bhqd", p, vh).transpose(2, 0, 1, 3).reshape(S, B, D)
    attn = jnp.einsum("sbd,ed->sbe", ctx, params["out_proj_w"]) + params["out_proj_b"]

    def layer_norm(t, w, b):
        mu = t.mean(-1, keepdims=True)
        var = ((t - mu) ** 2).mean(-1, keepdims=True)
        return (t - mu) / jnp.sqrt(var + eps) * w + b

    x1 = layer_norm(x + attn, params["ln1_w"], params["ln1_b"])
    h = jax.nn.relu(jnp.einsum("sbd,fd->sbf", x1, params["lin1_w"]) + params["lin1_b"])
    ff = jnp.einsum("sbf,df->sbd", h, params["lin2_w"]) + params["lin2_b"]
    x2 = layer_norm(x1 + ff, params["ln2_w"], params["ln2_b"])
    return jnp.einsum("sbd,ld->sbl", x2, params["cls_w"]) + params["cls_b"]


if __name__ == "__main__":
    # Small shapes consistent with the module: seq=8, batch=2, d_model=32, nhead=4.
    S, B, D, H, L = 8, 2, 32, 4, 6
    FF = 2048  # nn.TransformerEncoderLayer default dim_feedforward

    key = jax.random.PRNGKey(0)
    k_x, k_p = jax.random.split(key)
    hidden_states = jax.random.normal(k_x, (S, B, D), jnp.float32)
    params = init_mrc_head_params(k_p, D, H, L, dim_feedforward=FF)

    logits = mrc_head_forward(hidden_states, params, nhead=H)
    logits = jax.block_until_ready(logits)

    ref = _reference_forward(hidden_states, params, nhead=H)
    assert logits.shape == (S, B, L), logits.shape
    # bf16 MXU operands (f32 accumulation) + approx-reciprocal softmax vs an
    # all-f32 reference: the loose tolerance absorbs the bf16 quantization.
    max_err = float(jnp.max(jnp.abs(logits - ref)))
    assert jnp.allclose(logits, ref, atol=3e-2, rtol=3e-2), max_err

    # TODO(synk): training-mode CrossEntropyLoss branch not implemented (eval-mode forward only).
    # TODO(synk): src_mask / key_padding_mask of nn.TransformerEncoderLayer not supported.
    print("KERNEL_OK")
</pallas_src>

<mosaic_0001>
module attributes {stable_mosaic.version = 11 : i64} {
  func.func @kernel(%arg0: i32, %arg1: memref<2x8x32xf32, #tpu.memory_space<vmem>>, %arg2: memref<32x96xbf16, #tpu.memory_space<vmem>>, %arg3: memref<1x96xf32, #tpu.memory_space<vmem>>, %arg4: memref<32x32xbf16, #tpu.memory_space<vmem>>, %arg5: memref<1x32xf32, #tpu.memory_space<vmem>>, %arg6: memref<1x32xf32, #tpu.memory_space<vmem>>, %arg7: memref<1x32xf32, #tpu.memory_space<vmem>>, %arg8: memref<32x2048xbf16, #tpu.memory_space<vmem>>, %arg9: memref<1x2048xf32, #tpu.memory_space<vmem>>, %arg10: memref<2048x32xbf16, #tpu.memory_space<vmem>>, %arg11: memref<1x32xf32, #tpu.memory_space<vmem>>, %arg12: memref<1x32xf32, #tpu.memory_space<vmem>>, %arg13: memref<1x32xf32, #tpu.memory_space<vmem>>, %arg14: memref<32x128xbf16, #tpu.memory_space<vmem>>, %arg15: memref<1x128xf32, #tpu.memory_space<vmem>>, %arg16: memref<16x128xf32, #tpu.memory_space<vmem>>) attributes {dimension_semantics = [#tpu.dimension_semantics<parallel>], iteration_bounds = array<i64: 1>, scalar_prefetch = 0 : i64, scratch_operands = 0 : i64, tpu.core_type = #tpu.core_type<tc>, window_params = [{transform_indices = @transform_0, window_bounds = array<i64: 2, 8, 32>}, {pipeline_mode = #tpu.pipeline_mode<synchronous>, transform_indices = @transform_1, window_bounds = array<i64: 32, 96>}, {pipeline_mode = #tpu.pipeline_mode<synchronous>, transform_indices = @transform_2, window_bounds = array<i64: 1, 96>}, {pipeline_mode = #tpu.pipeline_mode<synchronous>, transform_indices = @transform_3, window_bounds = array<i64: 32, 32>}, {pipeline_mode = #tpu.pipeline_mode<synchronous>, transform_indices = @transform_4, window_bounds = array<i64: 1, 32>}, {pipeline_mode = #tpu.pipeline_mode<synchronous>, transform_indices = @transform_5, window_bounds = array<i64: 1, 32>}, {pipeline_mode = #tpu.pipeline_mode<synchronous>, transform_indices = @transform_6, window_bounds = array<i64: 1, 32>}, {pipeline_mode = #tpu.pipeline_mode<synchronous>, transform_indices = @transform_7, window_bounds = array<i64: 32, 2048>}, {pipeline_mode = #tpu.pipeline_mode<synchronous>, transform_indices = @transform_8, window_bounds = array<i64: 1, 2048>}, {pipeline_mode = #tpu.pipeline_mode<synchronous>, transform_indices = @transform_9, window_bounds = array<i64: 2048, 32>}, {pipeline_mode = #tpu.pipeline_mode<synchronous>, transform_indices = @transform_10, window_bounds = array<i64: 1, 32>}, {pipeline_mode = #tpu.pipeline_mode<synchronous>, transform_indices = @transform_11, window_bounds = array<i64: 1, 32>}, {pipeline_mode = #tpu.pipeline_mode<synchronous>, transform_indices = @transform_12, window_bounds = array<i64: 1, 32>}, {pipeline_mode = #tpu.pipeline_mode<synchronous>, transform_indices = @transform_13, window_bounds = array<i64: 32, 128>}, {pipeline_mode = #tpu.pipeline_mode<synchronous>, transform_indices = @transform_14, window_bounds = array<i64: 1, 128>}, {transform_indices = @transform_15, window_bounds = array<i64: 16, 128>}]} {
    %c0 = arith.constant 0 : index
    %c0_0 = arith.constant 0 : index
    %c0_1 = arith.constant 0 : index
    %0 = vector.load %arg1[%c0, %c0_0, %c0_1] : memref<2x8x32xf32, #tpu.memory_space<vmem>>, vector<2x8x32xf32>
    %1 = vector.shape_cast %0 : vector<2x8x32xf32> to vector<16x32xf32>
    %2 = arith.truncf %1 : vector<16x32xf32> to vector<16x32xbf16>
    %c0_2 = arith.constant 0 : index
    %c0_3 = arith.constant 0 : index
    %3 = vector.load %arg2[%c0_2, %c0_3] : memref<32x96xbf16, #tpu.memory_space<vmem>>, vector<32x96xbf16>
    %cst = arith.constant dense<0.000000e+00> : vector<16x96xf32>
    %4 = tpu.matmul %2, %3, %cst {dimension_numbers = #tpu.dot_dimension_numbers<[1], [0], [0], [1], [0, 0, 1, 1], [], []>} : vector<16x32xbf16>, vector<32x96xbf16>, vector<16x96xf32> -> vector<16x96xf32>
    %c0_4 = arith.constant 0 : index
    %c0_5 = arith.constant 0 : index
    %5 = vector.load %arg3[%c0_4, %c0_5] : memref<1x96xf32, #tpu.memory_space<vmem>>, vector<1x96xf32>
    %6 = vector.broadcast %5 : vector<1x96xf32> to vector<16x96xf32>
    %7 = arith.addf %4, %6 : vector<16x96xf32>
    %8 = vector.extract_strided_slice %7 {offsets = [0, 0], sizes = [16, 32], strides = [1, 1]} : vector<16x96xf32> to vector<16x32xf32>
    %9 = vector.extract_strided_slice %7 {offsets = [0, 32], sizes = [16, 32], strides = [1, 1]} : vector<16x96xf32> to vector<16x32xf32>
    %10 = vector.extract_strided_slice %7 {offsets = [0, 64], sizes = [16, 32], strides = [1, 1]} : vector<16x96xf32> to vector<16x32xf32>
    %11 = vector.shape_cast %8 : vector<16x32xf32> to vector<2x8x4x8xf32>
    %12 = tpu.transpose %11, [0, 2, 1, 3] : vector<2x8x4x8xf32> -> vector<2x4x8x8xf32>
    %13 = vector.shape_cast %12 : vector<2x4x8x8xf32> to vector<8x8x8xf32>
    %14 = arith.truncf %13 : vector<8x8x8xf32> to vector<8x8x8xbf16>
    %15 = vector.shape_cast %9 : vector<16x32xf32> to vector<2x8x4x8xf32>
    %16 = tpu.transpose %15, [0, 2, 1, 3] : vector<2x8x4x8xf32> -> vector<2x4x8x8xf32>
    %17 = vector.shape_cast %16 : vector<2x4x8x8xf32> to vector<8x8x8xf32>
    %18 = arith.truncf %17 : vector<8x8x8xf32> to vector<8x8x8xbf16>
    %19 = vector.shape_cast %10 : vector<16x32xf32> to vector<2x8x4x8xf32>
    %20 = tpu.transpose %19, [0, 2, 1, 3] : vector<2x8x4x8xf32> -> vector<2x4x8x8xf32>
    %21 = vector.shape_cast %20 : vector<2x4x8x8xf32> to vector<8x8x8xf32>
    %22 = arith.truncf %21 : vector<8x8x8xf32> to vector<8x8x8xbf16>
    "tpu.trace_start"() <{level = 10 : i32, message = "nqd,nkd->nqk"}> : () -> ()
    %cst_6 = arith.constant dense<0.000000e+00> : vector<8x8x8xf32>
    %23 = tpu.matmul %14, %18, %cst_6 {dimension_numbers = #tpu.dot_dimension_numbers<[2], [2], [1], [1], [0, 0, 0, 1, 1, 1], [0], [0]>} : vector<8x8x8xbf16>, vector<8x8x8xbf16>, vector<8x8x8xf32> -> vector<8x8x8xf32>
    "tpu.trace_stop"() : () -> ()
    %cst_7 = arith.constant dense<0xFF800000> : vector<8x8xf32>
    %24 = vector.multi_reduction <maximumf>, %23, %cst_7 [2] : vector<8x8x8xf32> to vector<8x8xf32>
    %25 = vector.shape_cast %24 : vector<8x8xf32> to vector<8x8x1xf32>
    %26 = vector.broadcast %25 : vector<8x8x1xf32> to vector<8x8x8xf32>
    %27 = arith.subf %23, %26 : vector<8x8x8xf32>
    %28 = math.exp %27 : vector<8x8x8xf32>
    %cst_8 = arith.constant dense<0.000000e+00> : vector<8x8xf32>
    %29 = vector.multi_reduction <add>, %28, %cst_8 [2] : vector<8x8x8xf32> to vector<8x8xf32>
    %30 = vector.shape_cast %29 : vector<8x8xf32> to vector<8x8x1xf32>
    %31 = tpu.reciprocal %30 {approx = true} : vector<8x8x1xf32> -> vector<8x8x1xf32>
    %32 = vector.broadcast %31 : vector<8x8x1xf32> to vector<8x8x8xf32>
    %33 = arith.mulf %28, %32 : vector<8x8x8xf32>
    %34 = arith.truncf %33 : vector<8x8x8xf32> to vector<8x8x8xbf16>
    "tpu.trace_start"() <{level = 10 : i32, message = "nqk,nkd->nqd"}> : () -> ()
    %cst_9 = arith.constant dense<0.000000e+00> : vector<8x8x8xf32>
    %35 = tpu.matmul %34, %22, %cst_9 {dimension_numbers = #tpu.dot_dimension_numbers<[2], [1], [1], [2], [0, 0, 0, 1, 1, 2], [0], [0]>} : vector<8x8x8xbf16>, vector<8x8x8xbf16>, vector<8x8x8xf32> -> vector<8x8x8xf32>
    "tpu.trace_stop"() : () -> ()
    %36 = vector.shape_cast %35 : vector<8x8x8xf32> to vector<2x4x8x8xf32>
    %37 = tpu.transpose %36, [0, 2, 1, 3] : vector<2x4x8x8xf32> -> vector<2x8x4x8xf32>
    %38 = vector.shape_cast %37 : vector<2x8x4x8xf32> to vector<16x32xf32>
    %39 = arith.truncf %38 : vector<16x32xf32> to vector<16x32xbf16>
    %c0_10 = arith.constant 0 : index
    %c0_11 = arith.constant 0 : index
    %40 = vector.load %arg4[%c0_10, %c0_11] : memref<32x32xbf16, #tpu.memory_space<vmem>>, vector<32x32xbf16>
    %cst_12 = arith.constant dense<0.000000e+00> : vector<16x32xf32>
    %41 = tpu.matmul %39, %40, %cst_12 {dimension_numbers = #tpu.dot_dimension_numbers<[1], [0], [0], [1], [0, 0, 1, 1], [], []>} : vector<16x32xbf16>, vector<32x32xbf16>, vector<16x32xf32> -> vector<16x32xf32>
    %c0_13 = arith.constant 0 : index
    %c0_14 = arith.constant 0 : index
    %42 = vector.load %arg5[%c0_13, %c0_14] : memref<1x32xf32, #tpu.memory_space<vmem>>, vector<1x32xf32>
    %43 = vector.broadcast %42 : vector<1x32xf32> to vector<16x32xf32>
    %44 = arith.addf %41, %43 : vector<16x32xf32>
    %45 = arith.addf %1, %44 : vector<16x32xf32>
    %cst_15 = arith.constant dense<0.000000e+00> : vector<16xf32>
    %46 = vector.multi_reduction <add>, %45, %cst_15 [1] : vector<16x32xf32> to vector<16xf32>
    %47 = vector.shape_cast %46 : vector<16xf32> to vector<16x1xf32>
    %cst_16 = arith.constant 3.200000e+01 : f32
    %48 = vector.broadcast %cst_16 : f32 to vector<16x1xf32>
    %49 = arith.divf %47, %48 : vector<16x1xf32>
    %50 = vector.broadcast %49 : vector<16x1xf32> to vector<16x32xf32>
    %51 = arith.subf %45, %50 : vector<16x32xf32>
    %52 = arith.mulf %51, %51 : vector<16x32xf32>
    %cst_17 = arith.constant dense<0.000000e+00> : vector<16xf32>
    %53 = vector.multi_reduction <add>, %52, %cst_17 [1] : vector<16x32xf32> to vector<16xf32>
    %54 = vector.shape_cast %53 : vector<16xf32> to vector<16x1xf32>
    %cst_18 = arith.constant 3.200000e+01 : f32
    %55 = vector.broadcast %cst_18 : f32 to vector<16x1xf32>
    %56 = arith.divf %54, %55 : vector<16x1xf32>
    %57 = vector.broadcast %49 : vector<16x1xf32> to vector<16x32xf32>
    %58 = arith.subf %45, %57 : vector<16x32xf32>
    %cst_19 = arith.constant 9.99999974E-6 : f32
    %59 = vector.broadcast %cst_19 : f32 to vector<16x1xf32>
    %60 = arith.addf %56, %59 : vector<16x1xf32>
    %61 = math.rsqrt %60 : vector<16x1xf32>
    %62 = vector.broadcast %61 : vector<16x1xf32> to vector<16x32xf32>
    %63 = arith.mulf %58, %62 : vector<16x32xf32>
    %c0_20 = arith.constant 0 : index
    %c0_21 = arith.constant 0 : index
    %64 = vector.load %arg6[%c0_20, %c0_21] : memref<1x32xf32, #tpu.memory_space<vmem>>, vector<1x32xf32>
    %65 = vector.broadcast %64 : vector<1x32xf32> to vector<16x32xf32>
    %66 = arith.mulf %63, %65 : vector<16x32xf32>
    %c0_22 = arith.constant 0 : index
    %c0_23 = arith.constant 0 : index
    %67 = vector.load %arg7[%c0_22, %c0_23] : memref<1x32xf32, #tpu.memory_space<vmem>>, vector<1x32xf32>
    %68 = vector.broadcast %67 : vector<1x32xf32> to vector<16x32xf32>
    %69 = arith.addf %66, %68 : vector<16x32xf32>
    %70 = arith.truncf %69 : vector<16x32xf32> to vector<16x32xbf16>
    %c0_24 = arith.constant 0 : index
    %c0_25 = arith.constant 0 : index
    %71 = vector.load %arg8[%c0_24, %c0_25] : memref<32x2048xbf16, #tpu.memory_space<vmem>>, vector<32x2048xbf16>
    %cst_26 = arith.constant dense<0.000000e+00> : vector<16x2048xf32>
    %72 = tpu.matmul %70, %71, %cst_26 {dimension_numbers = #tpu.dot_dimension_numbers<[1], [0], [0], [1], [0, 0, 1, 1], [], []>} : vector<16x32xbf16>, vector<32x2048xbf16>, vector<16x2048xf32> -> vector<16x2048xf32>
    %c0_27 = arith.constant 0 : index
    %c0_28 = arith.constant 0 : index
    %73 = vector.load %arg9[%c0_27, %c0_28] : memref<1x2048xf32, #tpu.memory_space<vmem>>, vector<1x2048xf32>
    %74 = vector.broadcast %73 : vector<1x2048xf32> to vector<16x2048xf32>
    %75 = arith.addf %72, %74 : vector<16x2048xf32>
    %cst_29 = arith.constant 0.000000e+00 : f32
    %76 = vector.broadcast %cst_29 : f32 to vector<16x2048xf32>
    %77 = arith.maximumf %75, %76 : vector<16x2048xf32>
    %78 = arith.truncf %77 : vector<16x2048xf32> to vector<16x2048xbf16>
    %c0_30 = arith.constant 0 : index
    %c0_31 = arith.constant 0 : index
    %79 = vector.load %arg10[%c0_30, %c0_31] : memref<2048x32xbf16, #tpu.memory_space<vmem>>, vector<2048x32xbf16>
    %cst_32 = arith.constant dense<0.000000e+00> : vector<16x32xf32>
    %80 = tpu.matmul %78, %79, %cst_32 {dimension_numbers = #tpu.dot_dimension_numbers<[1], [0], [0], [1], [0, 0, 1, 1], [], []>} : vector<16x2048xbf16>, vector<2048x32xbf16>, vector<16x32xf32> -> vector<16x32xf32>
    %c0_33 = arith.constant 0 : index
    %c0_34 = arith.constant 0 : index
    %81 = vector.load %arg11[%c0_33, %c0_34] : memref<1x32xf32, #tpu.memory_space<vmem>>, vector<1x32xf32>
    %82 = vector.broadcast %81 : vector<1x32xf32> to vector<16x32xf32>
    %83 = arith.addf %80, %82 : vector<16x32xf32>
    %84 = arith.addf %69, %83 : vector<16x32xf32>
    %cst_35 = arith.constant dense<0.000000e+00> : vector<16xf32>
    %85 = vector.multi_reduction <add>, %84, %cst_35 [1] : vector<16x32xf32> to vector<16xf32>
    %86 = vector.shape_cast %85 : vector<16xf32> to vector<16x1xf32>
    %cst_36 = arith.constant 3.200000e+01 : f32
    %87 = vector.broadcast %cst_36 : f32 to vector<16x1xf32>
    %88 = arith.divf %86, %87 : vector<16x1xf32>
    %89 = vector.broadcast %88 : vector<16x1xf32> to vector<16x32xf32>
    %90 = arith.subf %84, %89 : vector<16x32xf32>
    %91 = arith.mulf %90, %90 : vector<16x32xf32>
    %cst_37 = arith.constant dense<0.000000e+00> : vector<16xf32>
    %92 = vector.multi_reduction <add>, %91, %cst_37 [1] : vector<16x32xf32> to vector<16xf32>
    %93 = vector.shape_cast %92 : vector<16xf32> to vector<16x1xf32>
    %cst_38 = arith.constant 3.200000e+01 : f32
    %94 = vector.broadcast %cst_38 : f32 to vector<16x1xf32>
    %95 = arith.divf %93, %94 : vector<16x1xf32>
    %96 = vector.broadcast %88 : vector<16x1xf32> to vector<16x32xf32>
    %97 = arith.subf %84, %96 : vector<16x32xf32>
    %cst_39 = arith.constant 9.99999974E-6 : f32
    %98 = vector.broadcast %cst_39 : f32 to vector<16x1xf32>
    %99 = arith.addf %95, %98 : vector<16x1xf32>
    %100 = math.rsqrt %99 : vector<16x1xf32>
    %101 = vector.broadcast %100 : vector<16x1xf32> to vector<16x32xf32>
    %102 = arith.mulf %97, %101 : vector<16x32xf32>
    %c0_40 = arith.constant 0 : index
    %c0_41 = arith.constant 0 : index
    %103 = vector.load %arg12[%c0_40, %c0_41] : memref<1x32xf32, #tpu.memory_space<vmem>>, vector<1x32xf32>
    %104 = vector.broadcast %103 : vector<1x32xf32> to vector<16x32xf32>
    %105 = arith.mulf %102, %104 : vector<16x32xf32>
    %c0_42 = arith.constant 0 : index
    %c0_43 = arith.constant 0 : index
    %106 = vector.load %arg13[%c0_42, %c0_43] : memref<1x32xf32, #tpu.memory_space<vmem>>, vector<1x32xf32>
    %107 = vector.broadcast %106 : vector<1x32xf32> to vector<16x32xf32>
    %108 = arith.addf %105, %107 : vector<16x32xf32>
    %109 = arith.truncf %108 : vector<16x32xf32> to vector<16x32xbf16>
    %c0_44 = arith.constant 0 : index
    %c0_45 = arith.constant 0 : index
    %110 = vector.load %arg14[%c0_44, %c0_45] : memref<32x128xbf16, #tpu.memory_space<vmem>>, vector<32x128xbf16>
    %cst_46 = arith.constant dense<0.000000e+00> : vector<16x128xf32>
    %111 = tpu.matmul %109, %110, %cst_46 {dimension_numbers = #tpu.dot_dimension_numbers<[1], [0], [0], [1], [0, 0, 1, 1], [], []>} : vector<16x32xbf16>, vector<32x128xbf16>, vector<16x128xf32> -> vector<16x128xf32>
    %c0_47 = arith.constant 0 : index
    %c0_48 = arith.constant 0 : index
    %112 = vector.load %arg15[%c0_47, %c0_48] : memref<1x128xf32, #tpu.memory_space<vmem>>, vector<1x128xf32>
    %113 = vector.broadcast %112 : vector<1x128xf32> to vector<16x128xf32>
    %114 = arith.addf %111, %113 : vector<16x128xf32>
    %c0_49 = arith.constant 0 : index
    %c0_50 = arith.constant 0 : index
    %115 = vector.load %arg16[%c0_49, %c0_50] : memref<16x128xf32, #tpu.memory_space<vmem>>, vector<16x128xf32>
    tpu.vector_store %arg16[%c0_49, %c0_50], %114 {strides = array<i32>} : memref<16x128xf32, #tpu.memory_space<vmem>>, vector<16x128xf32>,
    return
  }
  func.func @transform_0(%arg0: i32) -> (i32, i32, i32) {
    %c0_i32 = arith.constant 0 : i32
    %c0_i32_0 = arith.constant 0 : i32
    %c0_i32_1 = arith.constant 0 : i32
    return %arg0, %c0_i32, %c0_i32_0 : i32, i32, i32
  }
  func.func @transform_1(%arg0: i32) -> (i32, i32) {
    %c0_i32 = arith.constant 0 : i32
    %c0_i32_0 = arith.constant 0 : i32
    %c0_i32_1 = arith.constant 0 : i32
    return %c0_i32, %c0_i32_0 : i32, i32
  }
  func.func @transform_2(%arg0: i32) -> (i32, i32) {
    %c0_i32 = arith.constant 0 : i32
    %c0_i32_0 = arith.constant 0 : i32
    %c0_i32_1 = arith.constant 0 : i32
    return %c0_i32, %c0_i32_0 : i32, i32
  }
  func.func @transform_3(%arg0: i32) -> (i32, i32) {
    %c0_i32 = arith.constant 0 : i32
    %c0_i32_0 = arith.constant 0 : i32
    %c0_i32_1 = arith.constant 0 : i32
    return %c0_i32, %c0_i32_0 : i32, i32
  }
  func.func @transform_4(%arg0: i32) -> (i32, i32) {
    %c0_i32 = arith.constant 0 : i32
    %c0_i32_0 = arith.constant 0 : i32
    %c0_i32_1 = arith.constant 0 : i32
    return %c0_i32, %c0_i32_0 : i32, i32
  }
  func.func @transform_5(%arg0: i32) -> (i32, i32) {
    %c0_i32 = arith.constant 0 : i32
    %c0_i32_0 = arith.constant 0 : i32
    %c0_i32_1 = arith.constant 0 : i32
    return %c0_i32, %c0_i32_0 : i32, i32
  }
  func.func @transform_6(%arg0: i32) -> (i32, i32) {
    %c0_i32 = arith.constant 0 : i32
    %c0_i32_0 = arith.constant 0 : i32
    %c0_i32_1 = arith.constant 0 : i32
    return %c0_i32, %c0_i32_0 : i32, i32
  }
  func.func @transform_7(%arg0: i32) -> (i32, i32) {
    %c0_i32 = arith.constant 0 : i32
    %c0_i32_0 = arith.constant 0 : i32
    %c0_i32_1 = arith.constant 0 : i32
    return %c0_i32, %c0_i32_0 : i32, i32
  }
  func.func @transform_8(%arg0: i32) -> (i32, i32) {
    %c0_i32 = arith.constant 0 : i32
    %c0_i32_0 = arith.constant 0 : i32
    %c0_i32_1 = arith.constant 0 : i32
    return %c0_i32, %c0_i32_0 : i32, i32
  }
  func.func @transform_9(%arg0: i32) -> (i32, i32) {
    %c0_i32 = arith.constant 0 : i32
    %c0_i32_0 = arith.constant 0 : i32
    %c0_i32_1 = arith.constant 0 : i32
    return %c0_i32, %c0_i32_0 : i32, i32
  }
  func.func @transform_10(%arg0: i32) -> (i32, i32) {
    %c0_i32 = arith.constant 0 : i32
    %c0_i32_0 = arith.constant 0 : i32
    %c0_i32_1 = arith.constant 0 : i32
    return %c0_i32, %c0_i32_0 : i32, i32
  }
  func.func @transform_11(%arg0: i32) -> (i32, i32) {
    %c0_i32 = arith.constant 0 : i32
    %c0_i32_0 = arith.constant 0 : i32
    %c0_i32_1 = arith.constant 0 : i32
    return %c0_i32, %c0_i32_0 : i32, i32
  }
  func.func @transform_12(%arg0: i32) -> (i32, i32) {
    %c0_i32 = arith.constant 0 : i32
    %c0_i32_0 = arith.constant 0 : i32
    %c0_i32_1 = arith.constant 0 : i32
    return %c0_i32, %c0_i32_0 : i32, i32
  }
  func.func @transform_13(%arg0: i32) -> (i32, i32) {
    %c0_i32 = arith.constant 0 : i32
    %c0_i32_0 = arith.constant 0 : i32
    %c0_i32_1 = arith.constant 0 : i32
    return %c0_i32, %c0_i32_0 : i32, i32
  }
  func.func @transform_14(%arg0: i32) -> (i32, i32) {
    %c0_i32 = arith.constant 0 : i32
    %c0_i32_0 = arith.constant 0 : i32
    %c0_i32_1 = arith.constant 0 : i32
    return %c0_i32, %c0_i32_0 : i32, i32
  }
  func.func @transform_15(%arg0: i32) -> (i32, i32) {
    %c0_i32 = arith.constant 0 : i32
    %c0_i32_0 = arith.constant 0 : i32
    return %arg0, %c0_i32 : i32, i32
  }
}

module attributes {stable_mosaic.version = 11 : i64} {
  func.func @kernel(%arg0: i32, %arg1: memref<2x8x32xf32, #tpu.memory_space<vmem>>, %arg2: memref<32x96xbf16, #tpu.memory_space<vmem>>, %arg3: memref<1x96xf32, #tpu.memory_space<vmem>>, %arg4: memref<32x32xbf16, #tpu.memory_space<vmem>>, %arg5: memref<1x32xf32, #tpu.memory_space<vmem>>, %arg6: memref<1x32xf32, #tpu.memory_space<vmem>>, %arg7: memref<1x32xf32, #tpu.memory_space<vmem>>, %arg8: memref<32x2048xbf16, #tpu.memory_space<vmem>>, %arg9: memref<1x2048xf32, #tpu.memory_space<vmem>>, %arg10: memref<2048x32xbf16, #tpu.memory_space<vmem>>, %arg11: memref<1x32xf32, #tpu.memory_space<vmem>>, %arg12: memref<1x32xf32, #tpu.memory_space<vmem>>, %arg13: memref<1x32xf32, #tpu.memory_space<vmem>>, %arg14: memref<32x128xbf16, #tpu.memory_space<vmem>>, %arg15: memref<1x128xf32, #tpu.memory_space<vmem>>, %arg16: memref<16x128xf32, #tpu.memory_space<vmem>>) attributes {dimension_semantics = [#tpu.dimension_semantics<parallel>], iteration_bounds = array<i64: 1>, scalar_prefetch = 0 : i64, scratch_operands = 0 : i64, tpu.core_type = #tpu.core_type<tc>, window_params = [{transform_indices = @transform_0, window_bounds = array<i64: 2, 8, 32>}, {pipeline_mode = #tpu.pipeline_mode<synchronous>, transform_indices = @transform_1, window_bounds = array<i64: 32, 96>}, {pipeline_mode = #tpu.pipeline_mode<synchronous>, transform_indices = @transform_2, window_bounds = array<i64: 1, 96>}, {pipeline_mode = #tpu.pipeline_mode<synchronous>, transform_indices = @transform_3, window_bounds = array<i64: 32, 32>}, {pipeline_mode = #tpu.pipeline_mode<synchronous>, transform_indices = @transform_4, window_bounds = array<i64: 1, 32>}, {pipeline_mode = #tpu.pipeline_mode<synchronous>, transform_indices = @transform_5, window_bounds = array<i64: 1, 32>}, {pipeline_mode = #tpu.pipeline_mode<synchronous>, transform_indices = @transform_6, window_bounds = array<i64: 1, 32>}, {pipeline_mode = #tpu.pipeline_mode<synchronous>, transform_indices = @transform_7, window_bounds = array<i64: 32, 2048>}, {pipeline_mode = #tpu.pipeline_mode<synchronous>, transform_indices = @transform_8, window_bounds = array<i64: 1, 2048>}, {pipeline_mode = #tpu.pipeline_mode<synchronous>, transform_indices = @transform_9, window_bounds = array<i64: 2048, 32>}, {pipeline_mode = #tpu.pipeline_mode<synchronous>, transform_indices = @transform_10, window_bounds = array<i64: 1, 32>}, {pipeline_mode = #tpu.pipeline_mode<synchronous>, transform_indices = @transform_11, window_bounds = array<i64: 1, 32>}, {pipeline_mode = #tpu.pipeline_mode<synchronous>, transform_indices = @transform_12, window_bounds = array<i64: 1, 32>}, {pipeline_mode = #tpu.pipeline_mode<synchronous>, transform_indices = @transform_13, window_bounds = array<i64: 32, 128>}, {pipeline_mode = #tpu.pipeline_mode<synchronous>, transform_indices = @transform_14, window_bounds = array<i64: 1, 128>}, {transform_indices = @transform_15, window_bounds = array<i64: 16, 128>}]} {
    %c0 = arith.constant 0 : index
    %c0_0 = arith.constant 0 : index
    %c0_1 = arith.constant 0 : index
    %0 = vector.load %arg1[%c0, %c0_0, %c0_1] : memref<2x8x32xf32, #tpu.memory_space<vmem>>, vector<2x8x32xf32>
    %1 = vector.shape_cast %0 : vector<2x8x32xf32> to vector<16x32xf32>
    %2 = arith.truncf %1 : vector<16x32xf32> to vector<16x32xbf16>
    %c0_2 = arith.constant 0 : index
    %c0_3 = arith.constant 0 : index
    %3 = vector.load %arg2[%c0_2, %c0_3] : memref<32x96xbf16, #tpu.memory_space<vmem>>, vector<32x96xbf16>
    %cst = arith.constant dense<0.000000e+00> : vector<16x96xf32>
    %4 = tpu.matmul %2, %3, %cst {dimension_numbers = #tpu.dot_dimension_numbers<[1], [0], [0], [1], [0, 0, 1, 1], [], []>} : vector<16x32xbf16>, vector<32x96xbf16>, vector<16x96xf32> -> vector<16x96xf32>
    %c0_4 = arith.constant 0 : index
    %c0_5 = arith.constant 0 : index
    %5 = vector.load %arg3[%c0_4, %c0_5] : memref<1x96xf32, #tpu.memory_space<vmem>>, vector<1x96xf32>
    %6 = vector.broadcast %5 : vector<1x96xf32> to vector<16x96xf32>
    %7 = arith.addf %4, %6 : vector<16x96xf32>
    %8 = vector.extract_strided_slice %7 {offsets = [0, 0], sizes = [16, 32], strides = [1, 1]} : vector<16x96xf32> to vector<16x32xf32>
    %9 = vector.extract_strided_slice %7 {offsets = [0, 32], sizes = [16, 32], strides = [1, 1]} : vector<16x96xf32> to vector<16x32xf32>
    %10 = vector.extract_strided_slice %7 {offsets = [0, 64], sizes = [16, 32], strides = [1, 1]} : vector<16x96xf32> to vector<16x32xf32>
    %11 = vector.shape_cast %8 : vector<16x32xf32> to vector<2x8x32xf32>
    %12 = vector.extract_strided_slice %11 {offsets = [0, 0, 0], sizes = [2, 8, 8], strides = [1, 1, 1]} : vector<2x8x32xf32> to vector<2x8x8xf32>
    %13 = vector.extract_strided_slice %11 {offsets = [0, 0, 8], sizes = [2, 8, 8], strides = [1, 1, 1]} : vector<2x8x32xf32> to vector<2x8x8xf32>
    %14 = vector.extract_strided_slice %11 {offsets = [0, 0, 16], sizes = [2, 8, 8], strides = [1, 1, 1]} : vector<2x8x32xf32> to vector<2x8x8xf32>
    %15 = vector.extract_strided_slice %11 {offsets = [0, 0, 24], sizes = [2, 8, 8], strides = [1, 1, 1]} : vector<2x8x32xf32> to vector<2x8x8xf32>
    %16 = tpu.concatenate %12, %13, %14, %15 in 0 : vector<2x8x8xf32>, vector<2x8x8xf32>, vector<2x8x8xf32>, vector<2x8x8xf32> -> vector<8x8x8xf32>
    %17 = arith.truncf %16 : vector<8x8x8xf32> to vector<8x8x8xbf16>
    %18 = vector.shape_cast %9 : vector<16x32xf32> to vector<2x8x32xf32>
    %19 = vector.extract_strided_slice %18 {offsets = [0, 0, 0], sizes = [2, 8, 8], strides = [1, 1, 1]} : vector<2x8x32xf32> to vector<2x8x8xf32>
    %20 = vector.extract_strided_slice %18 {offsets = [0, 0, 8], sizes = [2, 8, 8], strides = [1, 1, 1]} : vector<2x8x32xf32> to vector<2x8x8xf32>
    %21 = vector.extract_strided_slice %18 {offsets = [0, 0, 16], sizes = [2, 8, 8], strides = [1, 1, 1]} : vector<2x8x32xf32> to vector<2x8x8xf32>
    %22 = vector.extract_strided_slice %18 {offsets = [0, 0, 24], sizes = [2, 8, 8], strides = [1, 1, 1]} : vector<2x8x32xf32> to vector<2x8x8xf32>
    %23 = tpu.concatenate %19, %20, %21, %22 in 0 : vector<2x8x8xf32>, vector<2x8x8xf32>, vector<2x8x8xf32>, vector<2x8x8xf32> -> vector<8x8x8xf32>
    %24 = arith.truncf %23 : vector<8x8x8xf32> to vector<8x8x8xbf16>
    %25 = vector.shape_cast %10 : vector<16x32xf32> to vector<2x8x32xf32>
    %26 = vector.extract_strided_slice %25 {offsets = [0, 0, 0], sizes = [2, 8, 8], strides = [1, 1, 1]} : vector<2x8x32xf32> to vector<2x8x8xf32>
    %27 = vector.extract_strided_slice %25 {offsets = [0, 0, 8], sizes = [2, 8, 8], strides = [1, 1, 1]} : vector<2x8x32xf32> to vector<2x8x8xf32>
    %28 = vector.extract_strided_slice %25 {offsets = [0, 0, 16], sizes = [2, 8, 8], strides = [1, 1, 1]} : vector<2x8x32xf32> to vector<2x8x8xf32>
    %29 = vector.extract_strided_slice %25 {offsets = [0, 0, 24], sizes = [2, 8, 8], strides = [1, 1, 1]} : vector<2x8x32xf32> to vector<2x8x8xf32>
    %30 = tpu.concatenate %26, %27, %28, %29 in 0 : vector<2x8x8xf32>, vector<2x8x8xf32>, vector<2x8x8xf32>, vector<2x8x8xf32> -> vector<8x8x8xf32>
    %31 = arith.truncf %30 : vector<8x8x8xf32> to vector<8x8x8xbf16>
    "tpu.trace_start"() <{level = 10 : i32, message = "nqd,nkd->nqk"}> : () -> ()
    %cst_6 = arith.constant dense<0.000000e+00> : vector<8x8x8xf32>
    %32 = tpu.matmul %17, %24, %cst_6 {dimension_numbers = #tpu.dot_dimension_numbers<[2], [2], [1], [1], [0, 0, 0, 1, 1, 1], [0], [0]>} : vector<8x8x8xbf16>, vector<8x8x8xbf16>, vector<8x8x8xf32> -> vector<8x8x8xf32>
    "tpu.trace_stop"() : () -> ()
    %cst_7 = arith.constant dense<0xFF800000> : vector<8x8xf32>
    %33 = vector.multi_reduction <maximumf>, %32, %cst_7 [2] : vector<8x8x8xf32> to vector<8x8xf32>
    %34 = vector.shape_cast %33 : vector<8x8xf32> to vector<8x8x1xf32>
    %35 = vector.broadcast %34 : vector<8x8x1xf32> to vector<8x8x8xf32>
    %36 = arith.subf %32, %35 : vector<8x8x8xf32>
    %37 = math.exp %36 : vector<8x8x8xf32>
    %cst_8 = arith.constant dense<0.000000e+00> : vector<8x8xf32>
    %38 = vector.multi_reduction <add>, %37, %cst_8 [2] : vector<8x8x8xf32> to vector<8x8xf32>
    %39 = vector.shape_cast %38 : vector<8x8xf32> to vector<8x8x1xf32>
    %40 = tpu.reciprocal %39 {approx = true} : vector<8x8x1xf32> -> vector<8x8x1xf32>
    %41 = vector.broadcast %40 : vector<8x8x1xf32> to vector<8x8x8xf32>
    %42 = arith.mulf %37, %41 : vector<8x8x8xf32>
    %43 = arith.truncf %42 : vector<8x8x8xf32> to vector<8x8x8xbf16>
    "tpu.trace_start"() <{level = 10 : i32, message = "nqk,nkd->nqd"}> : () -> ()
    %cst_9 = arith.constant dense<0.000000e+00> : vector<8x8x8xf32>
    %44 = tpu.matmul %43, %31, %cst_9 {dimension_numbers = #tpu.dot_dimension_numbers<[2], [1], [1], [2], [0, 0, 0, 1, 1, 2], [0], [0]>} : vector<8x8x8xbf16>, vector<8x8x8xbf16>, vector<8x8x8xf32> -> vector<8x8x8xf32>
    "tpu.trace_stop"() : () -> ()
    %45 = vector.extract_strided_slice %44 {offsets = [0, 0, 0], sizes = [2, 8, 8], strides = [1, 1, 1]} : vector<8x8x8xf32> to vector<2x8x8xf32>
    %46 = vector.extract_strided_slice %44 {offsets = [2, 0, 0], sizes = [2, 8, 8], strides = [1, 1, 1]} : vector<8x8x8xf32> to vector<2x8x8xf32>
    %47 = vector.extract_strided_slice %44 {offsets = [4, 0, 0], sizes = [2, 8, 8], strides = [1, 1, 1]} : vector<8x8x8xf32> to vector<2x8x8xf32>
    %48 = vector.extract_strided_slice %44 {offsets = [6, 0, 0], sizes = [2, 8, 8], strides = [1, 1, 1]} : vector<8x8x8xf32> to vector<2x8x8xf32>
    %49 = tpu.concatenate %45, %46, %47, %48 in 2 : vector<2x8x8xf32>, vector<2x8x8xf32>, vector<2x8x8xf32>, vector<2x8x8xf32> -> vector<2x8x32xf32>
    %50 = vector.shape_cast %49 : vector<2x8x32xf32> to vector<16x32xf32>
    %51 = arith.truncf %50 : vector<16x32xf32> to vector<16x32xbf16>
    %c0_10 = arith.constant 0 : index
    %c0_11 = arith.constant 0 : index
    %52 = vector.load %arg4[%c0_10, %c0_11] : memref<32x32xbf16, #tpu.memory_space<vmem>>, vector<32x32xbf16>
    %cst_12 = arith.constant dense<0.000000e+00> : vector<16x32xf32>
    %53 = tpu.matmul %51, %52, %cst_12 {dimension_numbers = #tpu.dot_dimension_numbers<[1], [0], [0], [1], [0, 0, 1, 1], [], []>} : vector<16x32xbf16>, vector<32x32xbf16>, vector<16x32xf32> -> vector<16x32xf32>
    %c0_13 = arith.constant 0 : index
    %c0_14 = arith.constant 0 : index
    %54 = vector.load %arg5[%c0_13, %c0_14] : memref<1x32xf32, #tpu.memory_space<vmem>>, vector<1x32xf32>
    %55 = vector.broadcast %54 : vector<1x32xf32> to vector<16x32xf32>
    %56 = arith.addf %53, %55 : vector<16x32xf32>
    %57 = arith.addf %1, %56 : vector<16x32xf32>
    %cst_15 = arith.constant dense<0.000000e+00> : vector<16xf32>
    %58 = vector.multi_reduction <add>, %57, %cst_15 [1] : vector<16x32xf32> to vector<16xf32>
    %59 = vector.shape_cast %58 : vector<16xf32> to vector<16x1xf32>
    %cst_16 = arith.constant 3.200000e+01 : f32
    %60 = vector.broadcast %cst_16 : f32 to vector<16x1xf32>
    %61 = arith.divf %59, %60 : vector<16x1xf32>
    %62 = vector.broadcast %61 : vector<16x1xf32> to vector<16x32xf32>
    %63 = arith.subf %57, %62 : vector<16x32xf32>
    %64 = arith.mulf %63, %63 : vector<16x32xf32>
    %cst_17 = arith.constant dense<0.000000e+00> : vector<16xf32>
    %65 = vector.multi_reduction <add>, %64, %cst_17 [1] : vector<16x32xf32> to vector<16xf32>
    %66 = vector.shape_cast %65 : vector<16xf32> to vector<16x1xf32>
    %cst_18 = arith.constant 3.200000e+01 : f32
    %67 = vector.broadcast %cst_18 : f32 to vector<16x1xf32>
    %68 = arith.divf %66, %67 : vector<16x1xf32>
    %69 = vector.broadcast %61 : vector<16x1xf32> to vector<16x32xf32>
    %70 = arith.subf %57, %69 : vector<16x32xf32>
    %cst_19 = arith.constant 9.99999974E-6 : f32
    %71 = vector.broadcast %cst_19 : f32 to vector<16x1xf32>
    %72 = arith.addf %68, %71 : vector<16x1xf32>
    %73 = math.rsqrt %72 : vector<16x1xf32>
    %74 = vector.broadcast %73 : vector<16x1xf32> to vector<16x32xf32>
    %75 = arith.mulf %70, %74 : vector<16x32xf32>
    %c0_20 = arith.constant 0 : index
    %c0_21 = arith.constant 0 : index
    %76 = vector.load %arg6[%c0_20, %c0_21] : memref<1x32xf32, #tpu.memory_space<vmem>>, vector<1x32xf32>
    %77 = vector.broadcast %76 : vector<1x32xf32> to vector<16x32xf32>
    %78 = arith.mulf %75, %77 : vector<16x32xf32>
    %c0_22 = arith.constant 0 : index
    %c0_23 = arith.constant 0 : index
    %79 = vector.load %arg7[%c0_22, %c0_23] : memref<1x32xf32, #tpu.memory_space<vmem>>, vector<1x32xf32>
    %80 = vector.broadcast %79 : vector<1x32xf32> to vector<16x32xf32>
    %81 = arith.addf %78, %80 : vector<16x32xf32>
    %82 = arith.truncf %81 : vector<16x32xf32> to vector<16x32xbf16>
    %c0_24 = arith.constant 0 : index
    %c0_25 = arith.constant 0 : index
    %83 = vector.load %arg8[%c0_24, %c0_25] : memref<32x2048xbf16, #tpu.memory_space<vmem>>, vector<32x2048xbf16>
    %cst_26 = arith.constant dense<0.000000e+00> : vector<16x2048xf32>
    %84 = tpu.matmul %82, %83, %cst_26 {dimension_numbers = #tpu.dot_dimension_numbers<[1], [0], [0], [1], [0, 0, 1, 1], [], []>} : vector<16x32xbf16>, vector<32x2048xbf16>, vector<16x2048xf32> -> vector<16x2048xf32>
    %c0_27 = arith.constant 0 : index
    %c0_28 = arith.constant 0 : index
    %85 = vector.load %arg9[%c0_27, %c0_28] : memref<1x2048xf32, #tpu.memory_space<vmem>>, vector<1x2048xf32>
    %86 = vector.broadcast %85 : vector<1x2048xf32> to vector<16x2048xf32>
    %87 = arith.addf %84, %86 : vector<16x2048xf32>
    %cst_29 = arith.constant 0.000000e+00 : f32
    %88 = vector.broadcast %cst_29 : f32 to vector<16x2048xf32>
    %89 = arith.maximumf %87, %88 : vector<16x2048xf32>
    %90 = arith.truncf %89 : vector<16x2048xf32> to vector<16x2048xbf16>
    %c0_30 = arith.constant 0 : index
    %c0_31 = arith.constant 0 : index
    %91 = vector.load %arg10[%c0_30, %c0_31] : memref<2048x32xbf16, #tpu.memory_space<vmem>>, vector<2048x32xbf16>
    %cst_32 = arith.constant dense<0.000000e+00> : vector<16x32xf32>
    %92 = tpu.matmul %90, %91, %cst_32 {dimension_numbers = #tpu.dot_dimension_numbers<[1], [0], [0], [1], [0, 0, 1, 1], [], []>} : vector<16x2048xbf16>, vector<2048x32xbf16>, vector<16x32xf32> -> vector<16x32xf32>
    %c0_33 = arith.constant 0 : index
    %c0_34 = arith.constant 0 : index
    %93 = vector.load %arg11[%c0_33, %c0_34] : memref<1x32xf32, #tpu.memory_space<vmem>>, vector<1x32xf32>
    %94 = vector.broadcast %93 : vector<1x32xf32> to vector<16x32xf32>
    %95 = arith.addf %92, %94 : vector<16x32xf32>
    %96 = arith.addf %81, %95 : vector<16x32xf32>
    %cst_35 = arith.constant dense<0.000000e+00> : vector<16xf32>
    %97 = vector.multi_reduction <add>, %96, %cst_35 [1] : vector<16x32xf32> to vector<16xf32>
    %98 = vector.shape_cast %97 : vector<16xf32> to vector<16x1xf32>
    %cst_36 = arith.constant 3.200000e+01 : f32
    %99 = vector.broadcast %cst_36 : f32 to vector<16x1xf32>
    %100 = arith.divf %98, %99 : vector<16x1xf32>
    %101 = vector.broadcast %100 : vector<16x1xf32> to vector<16x32xf32>
    %102 = arith.subf %96, %101 : vector<16x32xf32>
    %103 = arith.mulf %102, %102 : vector<16x32xf32>
    %cst_37 = arith.constant dense<0.000000e+00> : vector<16xf32>
    %104 = vector.multi_reduction <add>, %103, %cst_37 [1] : vector<16x32xf32> to vector<16xf32>
    %105 = vector.shape_cast %104 : vector<16xf32> to vector<16x1xf32>
    %cst_38 = arith.constant 3.200000e+01 : f32
    %106 = vector.broadcast %cst_38 : f32 to vector<16x1xf32>
    %107 = arith.divf %105, %106 : vector<16x1xf32>
    %108 = vector.broadcast %100 : vector<16x1xf32> to vector<16x32xf32>
    %109 = arith.subf %96, %108 : vector<16x32xf32>
    %cst_39 = arith.constant 9.99999974E-6 : f32
    %110 = vector.broadcast %cst_39 : f32 to vector<16x1xf32>
    %111 = arith.addf %107, %110 : vector<16x1xf32>
    %112 = math.rsqrt %111 : vector<16x1xf32>
    %113 = vector.broadcast %112 : vector<16x1xf32> to vector<16x32xf32>
    %114 = arith.mulf %109, %113 : vector<16x32xf32>
    %c0_40 = arith.constant 0 : index
    %c0_41 = arith.constant 0 : index
    %115 = vector.load %arg12[%c0_40, %c0_41] : memref<1x32xf32, #tpu.memory_space<vmem>>, vector<1x32xf32>
    %116 = vector.broadcast %115 : vector<1x32xf32> to vector<16x32xf32>
    %117 = arith.mulf %114, %116 : vector<16x32xf32>
    %c0_42 = arith.constant 0 : index
    %c0_43 = arith.constant 0 : index
    %118 = vector.load %arg13[%c0_42, %c0_43] : memref<1x32xf32, #tpu.memory_space<vmem>>, vector<1x32xf32>
    %119 = vector.broadcast %118 : vector<1x32xf32> to vector<16x32xf32>
    %120 = arith.addf %117, %119 : vector<16x32xf32>
    %121 = arith.truncf %120 : vector<16x32xf32> to vector<16x32xbf16>
    %c0_44 = arith.constant 0 : index
    %c0_45 = arith.constant 0 : index
    %122 = vector.load %arg14[%c0_44, %c0_45] : memref<32x128xbf16, #tpu.memory_space<vmem>>, vector<32x128xbf16>
    %cst_46 = arith.constant dense<0.000000e+00> : vector<16x128xf32>
    %123 = tpu.matmul %121, %122, %cst_46 {dimension_numbers = #tpu.dot_dimension_numbers<[1], [0], [0], [1], [0, 0, 1, 1], [], []>} : vector<16x32xbf16>, vector<32x128xbf16>, vector<16x128xf32> -> vector<16x128xf32>
    %c0_47 = arith.constant 0 : index
    %c0_48 = arith.constant 0 : index
    %124 = vector.load %arg15[%c0_47, %c0_48] : memref<1x128xf32, #tpu.memory_space<vmem>>, vector<1x128xf32>
    %125 = vector.broadcast %124 : vector<1x128xf32> to vector<16x128xf32>
    %126 = arith.addf %123, %125 : vector<16x128xf32>
    %c0_49 = arith.constant 0 : index
    %c0_50 = arith.constant 0 : index
    %127 = vector.load %arg16[%c0_49, %c0_50] : memref<16x128xf32, #tpu.memory_space<vmem>>, vector<16x128xf32>
    tpu.vector_store %arg16[%c0_49, %c0_50], %126 {strides = array<i32>} : memref<16x128xf32, #tpu.memory_space<vmem>>, vector<16x128xf32>,
    return
  }
  func.func @transform_0(%arg0: i32) -> (i32, i32, i32) {
    %c0_i32 = arith.constant 0 : i32
    %c0_i32_0 = arith.constant 0 : i32
    %c0_i32_1 = arith.constant 0 : i32
    return %arg0, %c0_i32, %c0_i32_0 : i32, i32, i32
  }
  func.func @transform_1(%arg0: i32) -> (i32, i32) {
    %c0_i32 = arith.constant 0 : i32
    %c0_i32_0 = arith.constant 0 : i32
    %c0_i32_1 = arith.constant 0 : i32
    return %c0_i32, %c0_i32_0 : i32, i32
  }
  func.func @transform_2(%arg0: i32) -> (i32, i32) {
    %c0_i32 = arith.constant 0 : i32
    %c0_i32_0 = arith.constant 0 : i32
    %c0_i32_1 = arith.constant 0 : i32
    return %c0_i32, %c0_i32_0 : i32, i32
  }
  func.func @transform_3(%arg0: i32) -> (i32, i32) {
    %c0_i32 = arith.constant 0 : i32
    %c0_i32_0 = arith.constant 0 : i32
    %c0_i32_1 = arith.constant 0 : i32
    return %c0_i32, %c0_i32_0 : i32, i32
  }
  func.func @transform_4(%arg0: i32) -> (i32, i32) {
    %c0_i32 = arith.constant 0 : i32
    %c0_i32_0 = arith.constant 0 : i32
    %c0_i32_1 = arith.constant 0 : i32
    return %c0_i32, %c0_i32_0 : i32, i32
  }
  func.func @transform_5(%arg0: i32) -> (i32, i32) {
    %c0_i32 = arith.constant 0 : i32
    %c0_i32_0 = arith.constant 0 : i32
    %c0_i32_1 = arith.constant 0 : i32
    return %c0_i32, %c0_i32_0 : i32, i32
  }
  func.func @transform_6(%arg0: i32) -> (i32, i32) {
    %c0_i32 = arith.constant 0 : i32
    %c0_i32_0 = arith.constant 0 : i32
    %c0_i32_1 = arith.constant 0 : i32
    return %c0_i32, %c0_i32_0 : i32, i32
  }
  func.func @transform_7(%arg0: i32) -> (i32, i32) {
    %c0_i32 = arith.constant 0 : i32
    %c0_i32_0 = arith.constant 0 : i32
    %c0_i32_1 = arith.constant 0 : i32
    return %c0_i32, %c0_i32_0 : i32, i32
  }
  func.func @transform_8(%arg0: i32) -> (i32, i32) {
    %c0_i32 = arith.constant 0 : i32
    %c0_i32_0 = arith.constant 0 : i32
    %c0_i32_1 = arith.constant 0 : i32
    return %c0_i32, %c0_i32_0 : i32, i32
  }
  func.func @transform_9(%arg0: i32) -> (i32, i32) {
    %c0_i32 = arith.constant 0 : i32
    %c0_i32_0 = arith.constant 0 : i32
    %c0_i32_1 = arith.constant 0 : i32
    return %c0_i32, %c0_i32_0 : i32, i32
  }
  func.func @transform_10(%arg0: i32) -> (i32, i32) {
    %c0_i32 = arith.constant 0 : i32
    %c0_i32_0 = arith.constant 0 : i32
    %c0_i32_1 = arith.constant 0 : i32
    return %c0_i32, %c0_i32_0 : i32, i32
  }
  func.func @transform_11(%arg0: i32) -> (i32, i32) {
    %c0_i32 = arith.constant 0 : i32
    %c0_i32_0 = arith.constant 0 : i32
    %c0_i32_1 = arith.constant 0 : i32
    return %c0_i32, %c0_i32_0 : i32, i32
  }
  func.func @transform_12(%arg0: i32) -> (i32, i32) {
    %c0_i32 = arith.constant 0 : i32
    %c0_i32_0 = arith.constant 0 : i32
    %c0_i32_1 = arith.constant 0 : i32
    return %c0_i32, %c0_i32_0 : i32, i32
  }
  func.func @transform_13(%arg0: i32) -> (i32, i32) {
    %c0_i32 = arith.constant 0 : i32
    %c0_i32_0 = arith.constant 0 : i32
    %c0_i32_1 = arith.constant 0 : i32
    return %c0_i32, %c0_i32_0 : i32, i32
  }
  func.func @transform_14(%arg0: i32) -> (i32, i32) {
    %c0_i32 = arith.constant 0 : i32
    %c0_i32_0 = arith.constant 0 : i32
    %c0_i32_1 = arith.constant 0 : i32
    return %c0_i32, %c0_i32_0 : i32, i32
  }
  func.func @transform_15(%arg0: i32) -> (i32, i32) {
    %c0_i32 = arith.constant 0 : i32
    %c0_i32_0 = arith.constant 0 : i32
    return %arg0, %c0_i32 : i32, i32
  }
}

</mosaic_0001>

<llo_original>
// kernel: tpu_custom_call.1
$region0: #{tpu_custom_call.1}
  #allocation0 [shape = 'u32[]', space=smem, size = 0x4, offset = 0x4, fixed_abs, tag = 'smem constant byte address 0x4 - core index']
  #allocation1 [shape = 'u32[144,128]{1,0:T(1,128)}', space=vmem, size = 0x12000, scoped, tag = 'internal scratch']
  %s0 = inlined_call_operand.vmem [shape: f32[2,8,32], index: 0, kind: input, shape index: {}]
  %s1 = inlined_call_operand.vmem [shape: bf16[32,96], index: 1, kind: input, shape index: {}]
  %s2 = inlined_call_operand.vmem [shape: f32[1,96], index: 2, kind: input, shape index: {}]
  %s3 = inlined_call_operand.vmem [shape: bf16[32,32], index: 3, kind: input, shape index: {}]
  %s4 = inlined_call_operand.vmem [shape: f32[1,32], index: 4, kind: input, shape index: {}]
  %s5 = inlined_call_operand.vmem [shape: f32[1,32], index: 5, kind: input, shape index: {}]
  %s6 = inlined_call_operand.vmem [shape: f32[1,32], index: 6, kind: input, shape index: {}]
  %s7 = inlined_call_operand.vmem [shape: bf16[32,2048], index: 7, kind: input, shape index: {}]
  %s8 = inlined_call_operand.vmem [shape: f32[1,2048], index: 8, kind: input, shape index: {}]
  %s9 = inlined_call_operand.vmem [shape: bf16[2048,32], index: 9, kind: input, shape index: {}]
  %s10 = inlined_call_operand.vmem [shape: f32[1,32], index: 10, kind: input, shape index: {}]
  %s11 = inlined_call_operand.vmem [shape: f32[1,32], index: 11, kind: input, shape index: {}]
  %s12 = inlined_call_operand.vmem [shape: f32[1,32], index: 12, kind: input, shape index: {}]
  %s13 = inlined_call_operand.vmem [shape: bf16[32,128], index: 13, kind: input, shape index: {}]
  %s14 = inlined_call_operand.vmem [shape: f32[1,128], index: 14, kind: input, shape index: {}]
  %s15 = inlined_call_operand.hbm [shape: f32[16,128], index: 15, kind: output, shape index: {}]
  %s16 = sld [smem:[#allocation0]]
  $region70: #{tpu_custom_call.1} parent=0
    _
  %s18 = ssub.s32 1, %s16
  %s19 = scalar_select 0, %s18, %s16
  $region1: #{tpu_custom_call.1} parent=0
    #allocation2 [shape = 'u8[8192]{0}', space=vmem, size = 0x2000, scoped, tag = 'output window, operand 0, single buffered']
    #allocation3 [shape = 's32[1]{0}', space=sflag, size = 0x4, scoped, tag = 'scoped memory for tpu_custom_call.1']
    %20 = vsyncpa [#allocation3], 0
    // Predicated region
    $region2: #{tpu_custom_call.1} parent=1 // pred_check
      _
    $region3: #{tpu_custom_call.1} parent=1 // pred_check_branch
      %22 = sbr.rel (0) target = $region5
    $region4: #{tpu_custom_call.1} parent=1 // pred_region
      _
    $region5: #{tpu_custom_call.1} parent=1 // pred_fallthru
      _
    // Predicated region
    $region6: #{tpu_custom_call.1} parent=1 // pred_check
      _
    $region7: #{tpu_custom_call.1} parent=1 // pred_check_branch
      %24 = sbr.rel (0) target = $region9
    $region8: #{tpu_custom_call.1} parent=1 // pred_region
      _
    $region9: #{tpu_custom_call.1} parent=1 // pred_fallthru
      _
    // Predicated region
    $region10: #{tpu_custom_call.1} parent=1 // pred_check
      _
    $region11: #{tpu_custom_call.1} parent=1 // pred_check_branch
      %26 = sbr.rel (0) target = $region13
    $region12: #{tpu_custom_call.1} parent=1 // pred_region
      _
    $region13: #{tpu_custom_call.1} parent=1 // pred_fallthru
      _
    // Predicated region
    $region14: #{tpu_custom_call.1} parent=1 // pred_check
      _
    $region15: #{tpu_custom_call.1} parent=1 // pred_check_branch
      %28 = sbr.rel (0) target = $region17
    $region16: #{tpu_custom_call.1} parent=1 // pred_region
      _
    $region17: #{tpu_custom_call.1} parent=1 // pred_fallthru
      _
    // Predicated region
    $region18: #{tpu_custom_call.1} parent=1 // pred_check
      _
    $region19: #{tpu_custom_call.1} parent=1 // pred_check_branch
      %30 = sbr.rel (0) target = $region21
    $region20: #{tpu_custom_call.1} parent=1 // pred_region
      _
    $region21: #{tpu_custom_call.1} parent=1 // pred_fallthru
      _
    // Predicated region
    $region22: #{tpu_custom_call.1} parent=1 // pred_check
      _
    $region23: #{tpu_custom_call.1} parent=1 // pred_check_branch
      %32 = sbr.rel (0) target = $region25
    $region24: #{tpu_custom_call.1} parent=1 // pred_region
      _
    $region25: #{tpu_custom_call.1} parent=1 // pred_fallthru
      _
    // Predicated region
    $region26: #{tpu_custom_call.1} parent=1 // pred_check
      _
    $region27: #{tpu_custom_call.1} parent=1 // pred_check_branch
      %34 = sbr.rel (0) target = $region29
    $region28: #{tpu_custom_call.1} parent=1 // pred_region
      _
    $region29: #{tpu_custom_call.1} parent=1 // pred_fallthru
      _
    // Predicated region
    $region30: #{tpu_custom_call.1} parent=1 // pred_check
      _
    $region31: #{tpu_custom_call.1} parent=1 // pred_check_branch
      %36 = sbr.rel (0) target = $region33
    $region32: #{tpu_custom_call.1} parent=1 // pred_region
      _
    $region33: #{tpu_custom_call.1} parent=1 // pred_fallthru
      _
    // Predicated region
    $region34: #{tpu_custom_call.1} parent=1 // pred_check
      _
    $region35: #{tpu_custom_call.1} parent=1 // pred_check_branch
      %38 = sbr.rel (0) target = $region37
    $region36: #{tpu_custom_call.1} parent=1 // pred_region
      _
    $region37: #{tpu_custom_call.1} parent=1 // pred_fallthru
      _
    // Predicated region
    $region38: #{tpu_custom_call.1} parent=1 // pred_check
      _
    $region39: #{tpu_custom_call.1} parent=1 // pred_check_branch
      %40 = sbr.rel (0) target = $region41
    $region40: #{tpu_custom_call.1} parent=1 // pred_region
      _
    $region41: #{tpu_custom_call.1} parent=1 // pred_fallthru
      _
    // Predicated region
    $region42: #{tpu_custom_call.1} parent=1 // pred_check
      _
    $region43: #{tpu_custom_call.1} parent=1 // pred_check_branch
      %42 = sbr.rel (0) target = $region45
    $region44: #{tpu_custom_call.1} parent=1 // pred_region
      _
    $region45: #{tpu_custom_call.1} parent=1 // pred_fallthru
      _
    // Predicated region
    $region46: #{tpu_custom_call.1} parent=1 // pred_check
      _
    $region47: #{tpu_custom_call.1} parent=1 // pred_check_branch
      %44 = sbr.rel (0) target = $region49
    $region48: #{tpu_custom_call.1} parent=1 // pred_region
      _
    $region49: #{tpu_custom_call.1} parent=1 // pred_fallthru
      _
    // Predicated region
    $region50: #{tpu_custom_call.1} parent=1 // pred_check
      _
    $region51: #{tpu_custom_call.1} parent=1 // pred_check_branch
      %46 = sbr.rel (0) target = $region53
    $region52: #{tpu_custom_call.1} parent=1 // pred_region
      _
    $region53: #{tpu_custom_call.1} parent=1 // pred_fallthru
      _
    // Predicated region
    $region54: #{tpu_custom_call.1} parent=1 // pred_check
      _
    $region55: #{tpu_custom_call.1} parent=1 // pred_check_branch
      %48 = sbr.rel (0) target = $region57
    $region56: #{tpu_custom_call.1} parent=1 // pred_region
      _
    $region57: #{tpu_custom_call.1} parent=1 // pred_fallthru
      _
    // Predicated region
    $region58: #{tpu_custom_call.1} parent=1 // pred_check
      _
    $region59: #{tpu_custom_call.1} parent=1 // pred_check_branch
      %50 = sbr.rel (0) target = $region61
    $region60: #{tpu_custom_call.1} parent=1 // pred_region
      _
    $region61: #{tpu_custom_call.1} parent=1 // pred_fallthru
      _
    %v52 = vld [vmem:[%s0] sm:$0xff]
    %v53 = vld [vmem:[%s0 + $0x8] sm:$0xff]
    %v54 = vpack.c.bf16 %v53, %v52
    %v55 = vld [vmem:[%s1] sm:$0xf]
    %v56 = vld [vmem:[%s1 + $0x4] sm:$0xf]
    %v57 = vld [vmem:[%s1 + $0x8] sm:$0xf]
    %v58 = vld [vmem:[%s1 + $0xc] sm:$0xf]
    %v59 = vld [vmem:[%s2] sm:$0x1]
    %v61 = vlaneseq
    %v62 = vshrl.u32 %v61, 7
    %v63 = vsub.s32 0, %v62
    %v64 = vrot.slane %v59, %v63
    %v70 = vunpack.c.l.b16 %v55
    %v71 = vunpack.c.l.b16 %v56
    %v72 = vunpack.c.l.b16 %v57
    %v73 = vunpack.c.l.b16 %v58
    %v74 = vpack.c.b16 %v71, %v70
    %v75 = vpack.c.b16 %v73, %v72
    %vm78 = vcmask 261120
    %v80 = vsel %vm78, %v54, 0
    %82 = vmatprep.subr.bf16.mxu0 0
    %83 = vmatpush1.bf16.msra.mxu0 %v74
    %84 = vmatprep.subr.bf16.mxu0 0
    %85 = vmatpush1.bf16.msra.mxu0 %v75
    %86 = vmatprep.subr.bf16.mxu0 0
    %87 = vmatpush1.bf16.msra.mxu0 0
    %88 = vmatprep.subr.bf16.mxu0 0
    %89 = vmatpush1.bf16.msra.mxu0 0
    %90 = vmatprep.subr.bf16.mxu0 0
    %91 = vmatpush1.bf16.msra.mxu0 0
    %92 = vmatprep.subr.bf16.mxu0 0
    %93 = vmatpush1.bf16.msra.mxu0 0
    %94 = vmatprep.subr.bf16.mxu0 0
    %95 = vmatpush1.bf16.msra.mxu0 0
    %96 = vmatprep.subr.bf16.mxu0 0
    %97 = vmatpush1.bf16.msra.mxu0 0
    %98 = vmatprep.subr.bf16.mxu0 0
    %99 = vmatpush1.bf16.msra.mxu0 0
    %100 = vmatprep.subr.bf16.mxu0 0
    %101 = vmatpush1.bf16.msra.mxu0 0
    %102 = vmatprep.subr.bf16.mxu0 0
    %103 = vmatpush1.bf16.msra.mxu0 0
    %104 = vmatprep.subr.bf16.mxu0 0
    %105 = vmatpush1.bf16.msra.mxu0 0
    %106 = vmatprep.subr.bf16.mxu0 0
    %107 = vmatpush1.bf16.msra.mxu0 0
    %108 = vmatprep.subr.bf16.mxu0 0
    %109 = vmatpush1.bf16.msra.mxu0 0
    %110 = vmatprep.subr.bf16.mxu0 0
    %111 = vmatpush1.bf16.msra.mxu0 0
    %112 = vmatprep.subr.bf16.mxu0 0
    %113 = vmatpush1.bf16.msra.mxu0 0
    %114 = vmatprep.mubr.bf16.mxu0 0
    %115 = vmatmul.mubr.bf16.gmra.mrb[0].mxu0 %v80
    %v116 = vpop.f32.mrb[0].mxu0
    %v117 = vadd.f32 %v64, %v116
    %v118 = vpop.f32.mrb[0].mxu0
    %v119 = vpop.f32.mrb[0].mxu0
    %v120 = vadd.f32 %v64, %v119
    %v121 = vpop.f32.mrb[0].mxu0
    %122 = vdwg.mxu0
    %125 = vrot.lane.b32.xlu0 %v117, 120
    %v126 = vpop.permute.xlu0 %125
    %127 = vrot.lane.b32.xlu0 %v120, 120
    %v128 = vpop.permute.xlu0 %127
    %131 = vrot.lane.b32.xlu0 %v117, 112
    %v132 = vpop.permute.xlu0 %131
    %133 = vrot.lane.b32.xlu0 %v120, 112
    %v134 = vpop.permute.xlu0 %133
    %137 = vrot.lane.b32.xlu0 %v117, 104
    %v138 = vpop.permute.xlu0 %137
    %139 = vrot.lane.b32.xlu0 %v120, 104
    %v140 = vpop.permute.xlu0 %139
    %v143 = vcombine.low %v117, %v132
    %v144 = vcombine.high %v117, %v132
    %v146 = vunpack.c.l.s4 1983009808
    %v147 = vunpack.c.0.s8 %v146
    %v148 = vlaneseq
    %v149 = vshrl.u32 %v148, 7
    %v150 = vsub.s32 %v147, %v149
    %v151 = vrot.slane %v143, %v150
    %v153 = vunpack.c.l.s4 1983009808
    %v154 = vunpack.c.0.s8 %v153
    %v155 = vlaneseq
    %v156 = vshrl.u32 %v155, 7
    %v157 = vsub.s32 %v154, %v156
    %v158 = vrot.slane %v144, %v157
    %v159 = vcombine.low %v126, %v138
    %v160 = vcombine.high %v126, %v138
    %v162 = vunpack.c.l.s4 1983009808
    %v163 = vunpack.c.0.s8 %v162
    %v164 = vlaneseq
    %v165 = vshrl.u32 %v164, 7
    %v166 = vsub.s32 %v163, %v165
    %v167 = vrot.slane %v159, %v166
    %v169 = vunpack.c.l.s4 1983009808
    %v170 = vunpack.c.0.s8 %v169
    %v171 = vlaneseq
    %v172 = vshrl.u32 %v171, 7
    %v173 = vsub.s32 %v170, %v172
    %v174 = vrot.slane %v160, %v173
    %v175 = vcombine.low %v151, %v167
    %v176 = vcombine.high %v151, %v167
    %v178 = vunpack.c.l.s4 1934713408
    %v179 = vunpack.c.0.s8 %v178
    %v180 = vlaneseq
    %v181 = vshrl.u32 %v180, 7
    %v182 = vsub.s32 %v179, %v181
    %v183 = vrot.slane %v175, %v182
    %v185 = vunpack.c.l.s4 1934713408
    %v186 = vunpack.c.0.s8 %v185
    %v187 = vlaneseq
    %v188 = vshrl.u32 %v187, 7
    %v189 = vsub.s32 %v186, %v188
    %v190 = vrot.slane %v176, %v189
    %v191 = vcombine.low %v158, %v174
    %v192 = vcombine.high %v158, %v174
    %v194 = vunpack.c.l.s4 1934713408
    %v195 = vunpack.c.0.s8 %v194
    %v196 = vlaneseq
    %v197 = vshrl.u32 %v196, 7
    %v198 = vsub.s32 %v195, %v197
    %v199 = vrot.slane %v191, %v198
    %v201 = vunpack.c.l.s4 1934713408
    %v202 = vunpack.c.0.s8 %v201
    %v203 = vlaneseq
    %v204 = vshrl.u32 %v203, 7
    %v205 = vsub.s32 %v202, %v204
    %v206 = vrot.slane %v192, %v205
    %v207 = vcombine.high %v183, 0.0
    %v208 = vcombine.high %v190, 0.0
    %v209 = vcombine.high %v199, 0.0
    %v210 = vcombine.high %v206, 0.0
    %v211 = vcombine.low %v120, %v134
    %v212 = vcombine.high %v120, %v134
    %v214 = vunpack.c.l.s4 1983009808
    %v215 = vunpack.c.0.s8 %v214
    %v216 = vlaneseq
    %v217 = vshrl.u32 %v216, 7
    %v218 = vsub.s32 %v215, %v217
    %v219 = vrot.slane %v211, %v218
    %v221 = vunpack.c.l.s4 1983009808
    %v222 = vunpack.c.0.s8 %v221
    %v223 = vlaneseq
    %v224 = vshrl.u32 %v223, 7
    %v225 = vsub.s32 %v222, %v224
    %v226 = vrot.slane %v212, %v225
    %v227 = vcombine.low %v128, %v140
    %v228 = vcombine.high %v128, %v140
    %v230 = vunpack.c.l.s4 1983009808
    %v231 = vunpack.c.0.s8 %v230
    %v232 = vlaneseq
    %v233 = vshrl.u32 %v232, 7
    %v234 = vsub.s32 %v231, %v233
    %v235 = vrot.slane %v227, %v234
    %v237 = vunpack.c.l.s4 1983009808
    %v238 = vunpack.c.0.s8 %v237
    %v239 = vlaneseq
    %v240 = vshrl.u32 %v239, 7
    %v241 = vsub.s32 %v238, %v240
    %v242 = vrot.slane %v228, %v241
    %v243 = vcombine.low %v219, %v235
    %v244 = vcombine.high %v219, %v235
    %v246 = vunpack.c.l.s4 1934713408
    %v247 = vunpack.c.0.s8 %v246
    %v248 = vlaneseq
    %v249 = vshrl.u32 %v248, 7
    %v250 = vsub.s32 %v247, %v249
    %v251 = vrot.slane %v243, %v250
    %v253 = vunpack.c.l.s4 1934713408
    %v254 = vunpack.c.0.s8 %v253
    %v255 = vlaneseq
    %v256 = vshrl.u32 %v255, 7
    %v257 = vsub.s32 %v254, %v256
    %v258 = vrot.slane %v244, %v257
    %v259 = vcombine.low %v226, %v242
    %v260 = vcombine.high %v226, %v242
    %v262 = vunpack.c.l.s4 1934713408
    %v263 = vunpack.c.0.s8 %v262
    %v264 = vlaneseq
    %v265 = vshrl.u32 %v264, 7
    %v266 = vsub.s32 %v263, %v265
    %v267 = vrot.slane %v259, %v266
    %v269 = vunpack.c.l.s4 1934713408
    %v270 = vunpack.c.0.s8 %v269
    %v271 = vlaneseq
    %v272 = vshrl.u32 %v271, 7
    %v273 = vsub.s32 %v270, %v272
    %v274 = vrot.slane %v260, %v273
    %v275 = vcombine.high %v251, 0.0
    %v276 = vcombine.high %v258, 0.0
    %v277 = vcombine.high %v267, 0.0
    %v278 = vcombine.high %v274, 0.0
    %v279 = vcombine.low %v183, %v190
    %v281 = vunpack.c.l.s4 1983009808
    %v282 = vunpack.c.0.s8 %v281
    %v283 = vlaneseq
    %v284 = vshrl.u32 %v283, 7
    %v285 = vsub.s32 %v282, %v284
    %v286 = vrot.slane %v279, %v285
    %v287 = vcombine.low %v207, %v208
    %v289 = vunpack.c.l.s4 1983009808
    %v290 = vunpack.c.0.s8 %v289
    %v291 = vlaneseq
    %v292 = vshrl.u32 %v291, 7
    %v293 = vsub.s32 %v290, %v292
    %v294 = vrot.slane %v287, %v293
    %v295 = vcombine.low %v199, %v206
    %v297 = vunpack.c.l.s4 1983009808
    %v298 = vunpack.c.0.s8 %v297
    %v299 = vlaneseq
    %v300 = vshrl.u32 %v299, 7
    %v301 = vsub.s32 %v298, %v300
    %v302 = vrot.slane %v295, %v301
    %v303 = vcombine.low %v209, %v210
    %v305 = vunpack.c.l.s4 1983009808
    %v306 = vunpack.c.0.s8 %v305
    %v307 = vlaneseq
    %v308 = vshrl.u32 %v307, 7
    %v309 = vsub.s32 %v306, %v308
    %v310 = vrot.slane %v303, %v309
    %v311 = vcombine.low %v286, %v294
    %v312 = vcombine.high %v286, %v294
    %v314 = vunpack.c.l.s4 1934713408
    %v315 = vunpack.c.0.s8 %v314
    %v316 = vlaneseq
    %v317 = vshrl.u32 %v316, 7
    %v318 = vsub.s32 %v315, %v317
    %v319 = vrot.slane %v311, %v318
    %v321 = vunpack.c.l.s4 1934713408
    %v322 = vunpack.c.0.s8 %v321
    %v323 = vlaneseq
    %v324 = vshrl.u32 %v323, 7
    %v325 = vsub.s32 %v322, %v324
    %v326 = vrot.slane %v312, %v325
    %v327 = vcombine.low %v302, %v310
    %v328 = vcombine.high %v302, %v310
    %v330 = vunpack.c.l.s4 1934713408
    %v331 = vunpack.c.0.s8 %v330
    %v332 = vlaneseq
    %v333 = vshrl.u32 %v332, 7
    %v334 = vsub.s32 %v331, %v333
    %v335 = vrot.slane %v327, %v334
    %v337 = vunpack.c.l.s4 1934713408
    %v338 = vunpack.c.0.s8 %v337
    %v339 = vlaneseq
    %v340 = vshrl.u32 %v339, 7
    %v341 = vsub.s32 %v338, %v340
    %v342 = vrot.slane %v328, %v341
    %v343 = vcombine.low %v319, %v335
    %v344 = vcombine.high %v319, %v335
    %v345 = vcombine.low %v326, %v342
    %v346 = vcombine.high %v326, %v342
    %v347 = vcombine.low %v251, %v258
    %v349 = vunpack.c.l.s4 1983009808
    %v350 = vunpack.c.0.s8 %v349
    %v351 = vlaneseq
    %v352 = vshrl.u32 %v351, 7
    %v353 = vsub.s32 %v350, %v352
    %v354 = vrot.slane %v347, %v353
    %v355 = vcombine.low %v275, %v276
    %v357 = vunpack.c.l.s4 1983009808
    %v358 = vunpack.c.0.s8 %v357
    %v359 = vlaneseq
    %v360 = vshrl.u32 %v359, 7
    %v361 = vsub.s32 %v358, %v360
    %v362 = vrot.slane %v355, %v361
    %v363 = vcombine.low %v267, %v274
    %v365 = vunpack.c.l.s4 1983009808
    %v366 = vunpack.c.0.s8 %v365
    %v367 = vlaneseq
    %v368 = vshrl.u32 %v367, 7
    %v369 = vsub.s32 %v366, %v368
    %v370 = vrot.slane %v363, %v369
    %v371 = vcombine.low %v277, %v278
    %v373 = vunpack.c.l.s4 1983009808
    %v374 = vunpack.c.0.s8 %v373
    %v375 = vlaneseq
    %v376 = vshrl.u32 %v375, 7
    %v377 = vsub.s32 %v374, %v376
    %v378 = vrot.slane %v371, %v377
    %v379 = vcombine.low %v354, %v362
    %v380 = vcombine.high %v354, %v362
    %v382 = vunpack.c.l.s4 1934713408
    %v383 = vunpack.c.0.s8 %v382
    %v384 = vlaneseq
    %v385 = vshrl.u32 %v384, 7
    %v386 = vsub.s32 %v383, %v385
    %v387 = vrot.slane %v379, %v386
    %v389 = vunpack.c.l.s4 1934713408
    %v390 = vunpack.c.0.s8 %v389
    %v391 = vlaneseq
    %v392 = vshrl.u32 %v391, 7
    %v393 = vsub.s32 %v390, %v392
    %v394 = vrot.slane %v380, %v393
    %v395 = vcombine.low %v370, %v378
    %v396 = vcombine.high %v370, %v378
    %v398 = vunpack.c.l.s4 1934713408
    %v399 = vunpack.c.0.s8 %v398
    %v400 = vlaneseq
    %v401 = vshrl.u32 %v400, 7
    %v402 = vsub.s32 %v399, %v401
    %v403 = vrot.slane %v395, %v402
    %v405 = vunpack.c.l.s4 1934713408
    %v406 = vunpack.c.0.s8 %v405
    %v407 = vlaneseq
    %v408 = vshrl.u32 %v407, 7
    %v409 = vsub.s32 %v406, %v408
    %v410 = vrot.slane %v396, %v409
    %v411 = vcombine.low %v387, %v403
    %v412 = vcombine.high %v387, %v403
    %v413 = vcombine.low %v394, %v410
    %v414 = vcombine.high %v394, %v410
    %v415 = vpack.c.bf16 %v343, %v343
    %v416 = vpack.c.bf16 %v344, %v344
    %v417 = vpack.c.bf16 %v345, %v345
    %v418 = vpack.c.bf16 %v346, %v346
    %v419 = vpack.c.bf16 %v411, %v411
    %v420 = vpack.c.bf16 %v412, %v412
    %v421 = vpack.c.bf16 %v413, %v413
    %v422 = vpack.c.bf16 %v414, %v414
    %423 = vrot.lane.b32.xlu0 %v117, 96
    %v424 = vpop.permute.xlu0 %423
    %425 = vrot.lane.b32.xlu0 %v120, 96
    %v426 = vpop.permute.xlu0 %425
    %427 = vrot.lane.b32.xlu0 %v126, 96
    %v428 = vpop.permute.xlu0 %427
    %429 = vrot.lane.b32.xlu0 %v128, 96
    %v430 = vpop.permute.xlu0 %429
    %431 = vrot.lane.b32.xlu0 %v132, 96
    %v432 = vpop.permute.xlu0 %431
    %433 = vrot.lane.b32.xlu0 %v134, 96
    %v434 = vpop.permute.xlu0 %433
    %435 = vrot.lane.b32.xlu0 %v138, 96
    %v436 = vpop.permute.xlu0 %435
    %437 = vrot.lane.b32.xlu0 %v140, 96
    %v438 = vpop.permute.xlu0 %437
    %v447 = vcombine.low %v424, %v432
    %v448 = vcombine.high %v424, %v432
    %v450 = vunpack.c.l.s4 1983009808
    %v451 = vunpack.c.0.s8 %v450
    %v452 = vlaneseq
    %v453 = vshrl.u32 %v452, 7
    %v454 = vsub.s32 %v451, %v453
    %v455 = vrot.slane %v447, %v454
    %v457 = vunpack.c.l.s4 1983009808
    %v458 = vunpack.c.0.s8 %v457
    %v459 = vlaneseq
    %v460 = vshrl.u32 %v459, 7
    %v461 = vsub.s32 %v458, %v460
    %v462 = vrot.slane %v448, %v461
    %v463 = vcombine.low %v428, %v436
    %v464 = vcombine.high %v428, %v436
    %v466 = vunpack.c.l.s4 1983009808
    %v467 = vunpack.c.0.s8 %v466
    %v468 = vlaneseq
    %v469 = vshrl.u32 %v468, 7
    %v470 = vsub.s32 %v467, %v469
    %v471 = vrot.slane %v463, %v470
    %v473 = vunpack.c.l.s4 1983009808
    %v474 = vunpack.c.0.s8 %v473
    %v475 = vlaneseq
    %v476 = vshrl.u32 %v475, 7
    %v477 = vsub.s32 %v474, %v476
    %v478 = vrot.slane %v464, %v477
    %v479 = vcombine.low %v455, %v471
    %v480 = vcombine.high %v455, %v471
    %v482 = vunpack.c.l.s4 1934713408
    %v483 = vunpack.c.0.s8 %v482
    %v484 = vlaneseq
    %v485 = vshrl.u32 %v484, 7
    %v486 = vsub.s32 %v483, %v485
    %v487 = vrot.slane %v479, %v486
    %v489 = vunpack.c.l.s4 1934713408
    %v490 = vunpack.c.0.s8 %v489
    %v491 = vlaneseq
    %v492 = vshrl.u32 %v491, 7
    %v493 = vsub.s32 %v490, %v492
    %v494 = vrot.slane %v480, %v493
    %v495 = vcombine.low %v462, %v478
    %v496 = vcombine.high %v462, %v478
    %v498 = vunpack.c.l.s4 1934713408
    %v499 = vunpack.c.0.s8 %v498
    %v500 = vlaneseq
    %v501 = vshrl.u32 %v500, 7
    %v502 = vsub.s32 %v499, %v501
    %v503 = vrot.slane %v495, %v502
    %v505 = vunpack.c.l.s4 1934713408
    %v506 = vunpack.c.0.s8 %v505
    %v507 = vlaneseq
    %v508 = vshrl.u32 %v507, 7
    %v509 = vsub.s32 %v506, %v508
    %v510 = vrot.slane %v496, %v509
    %v511 = vcombine.high %v487, 0.0
    %v512 = vcombine.high %v494, 0.0
    %v513 = vcombine.high %v503, 0.0
    %v514 = vcombine.high %v510, 0.0
    %v515 = vcombine.low %v426, %v434
    %v516 = vcombine.high %v426, %v434
    %v518 = vunpack.c.l.s4 1983009808
    %v519 = vunpack.c.0.s8 %v518
    %v520 = vlaneseq
    %v521 = vshrl.u32 %v520, 7
    %v522 = vsub.s32 %v519, %v521
    %v523 = vrot.slane %v515, %v522
    %v525 = vunpack.c.l.s4 1983009808
    %v526 = vunpack.c.0.s8 %v525
    %v527 = vlaneseq
    %v528 = vshrl.u32 %v527, 7
    %v529 = vsub.s32 %v526, %v528
    %v530 = vrot.slane %v516, %v529
    %v531 = vcombine.low %v430, %v438
    %v532 = vcombine.high %v430, %v438
    %v534 = vunpack.c.l.s4 1983009808
    %v535 = vunpack.c.0.s8 %v534
    %v536 = vlaneseq
    %v537 = vshrl.u32 %v536, 7
    %v538 = vsub.s32 %v535, %v537
    %v539 = vrot.slane %v531, %v538
    %v541 = vunpack.c.l.s4 1983009808
    %v542 = vunpack.c.0.s8 %v541
    %v543 = vlaneseq
    %v544 = vshrl.u32 %v543, 7
    %v545 = vsub.s32 %v542, %v544
    %v546 = vrot.slane %v532, %v545
    %v547 = vcombine.low %v523, %v539
    %v548 = vcombine.high %v523, %v539
    %v550 = vunpack.c.l.s4 1934713408
    %v551 = vunpack.c.0.s8 %v550
    %v552 = vlaneseq
    %v553 = vshrl.u32 %v552, 7
    %v554 = vsub.s32 %v551, %v553
    %v555 = vrot.slane %v547, %v554
    %v557 = vunpack.c.l.s4 1934713408
    %v558 = vunpack.c.0.s8 %v557
    %v559 = vlaneseq
    %v560 = vshrl.u32 %v559, 7
    %v561 = vsub.s32 %v558, %v560
    %v562 = vrot.slane %v548, %v561
    %v563 = vcombine.low %v530, %v546
    %v564 = vcombine.high %v530, %v546
    %v566 = vunpack.c.l.s4 1934713408
    %v567 = vunpack.c.0.s8 %v566
    %v568 = vlaneseq
    %v569 = vshrl.u32 %v568, 7
    %v570 = vsub.s32 %v567, %v569
    %v571 = vrot.slane %v563, %v570
    %v573 = vunpack.c.l.s4 1934713408
    %v574 = vunpack.c.0.s8 %v573
    %v575 = vlaneseq
    %v576 = vshrl.u32 %v575, 7
    %v577 = vsub.s32 %v574, %v576
    %v578 = vrot.slane %v564, %v577
    %v579 = vcombine.high %v555, 0.0
    %v580 = vcombine.high %v562, 0.0
    %v581 = vcombine.high %v571, 0.0
    %v582 = vcombine.high %v578, 0.0
    %v583 = vcombine.low %v487, %v494
    %v585 = vunpack.c.l.s4 1983009808
    %v586 = vunpack.c.0.s8 %v585
    %v587 = vlaneseq
    %v588 = vshrl.u32 %v587, 7
    %v589 = vsub.s32 %v586, %v588
    %v590 = vrot.slane %v583, %v589
    %v591 = vcombine.low %v511, %v512
    %v593 = vunpack.c.l.s4 1983009808
    %v594 = vunpack.c.0.s8 %v593
    %v595 = vlaneseq
    %v596 = vshrl.u32 %v595, 7
    %v597 = vsub.s32 %v594, %v596
    %v598 = vrot.slane %v591, %v597
    %v599 = vcombine.low %v503, %v510
    %v601 = vunpack.c.l.s4 1983009808
    %v602 = vunpack.c.0.s8 %v601
    %v603 = vlaneseq
    %v604 = vshrl.u32 %v603, 7
    %v605 = vsub.s32 %v602, %v604
    %v606 = vrot.slane %v599, %v605
    %v607 = vcombine.low %v513, %v514
    %v609 = vunpack.c.l.s4 1983009808
    %v610 = vunpack.c.0.s8 %v609
    %v611 = vlaneseq
    %v612 = vshrl.u32 %v611, 7
    %v613 = vsub.s32 %v610, %v612
    %v614 = vrot.slane %v607, %v613
    %v615 = vcombine.low %v590, %v598
    %v616 = vcombine.high %v590, %v598
    %v618 = vunpack.c.l.s4 1934713408
    %v619 = vunpack.c.0.s8 %v618
    %v620 = vlaneseq
    %v621 = vshrl.u32 %v620, 7
    %v622 = vsub.s32 %v619, %v621
    %v623 = vrot.slane %v615, %v622
    %v625 = vunpack.c.l.s4 1934713408
    %v626 = vunpack.c.0.s8 %v625
    %v627 = vlaneseq
    %v628 = vshrl.u32 %v627, 7
    %v629 = vsub.s32 %v626, %v628
    %v630 = vrot.slane %v616, %v629
    %v631 = vcombine.low %v606, %v614
    %v632 = vcombine.high %v606, %v614
    %v634 = vunpack.c.l.s4 1934713408
    %v635 = vunpack.c.0.s8 %v634
    %v636 = vlaneseq
    %v637 = vshrl.u32 %v636, 7
    %v638 = vsub.s32 %v635, %v637
    %v639 = vrot.slane %v631, %v638
    %v641 = vunpack.c.l.s4 1934713408
    %v642 = vunpack.c.0.s8 %v641
    %v643 = vlaneseq
    %v644 = vshrl.u32 %v643, 7
    %v645 = vsub.s32 %v642, %v644
    %v646 = vrot.slane %v632, %v645
    %v647 = vcombine.low %v623, %v639
    %v648 = vcombine.high %v623, %v639
    %v649 = vcombine.low %v630, %v646
    %v650 = vcombine.high %v630, %v646
    %v651 = vcombine.low %v555, %v562
    %v653 = vunpack.c.l.s4 1983009808
    %v654 = vunpack.c.0.s8 %v653
    %v655 = vlaneseq
    %v656 = vshrl.u32 %v655, 7
    %v657 = vsub.s32 %v654, %v656
    %v658 = vrot.slane %v651, %v657
    %v659 = vcombine.low %v579, %v580
    %v661 = vunpack.c.l.s4 1983009808
    %v662 = vunpack.c.0.s8 %v661
    %v663 = vlaneseq
    %v664 = vshrl.u32 %v663, 7
    %v665 = vsub.s32 %v662, %v664
    %v666 = vrot.slane %v659, %v665
    %v667 = vcombine.low %v571, %v578
    %v669 = vunpack.c.l.s4 1983009808
    %v670 = vunpack.c.0.s8 %v669
    %v671 = vlaneseq
    %v672 = vshrl.u32 %v671, 7
    %v673 = vsub.s32 %v670, %v672
    %v674 = vrot.slane %v667, %v673
    %v675 = vcombine.low %v581, %v582
    %v677 = vunpack.c.l.s4 1983009808
    %v678 = vunpack.c.0.s8 %v677
    %v679 = vlaneseq
    %v680 = vshrl.u32 %v679, 7
    %v681 = vsub.s32 %v678, %v680
    %v682 = vrot.slane %v675, %v681
    %v683 = vcombine.low %v658, %v666
    %v684 = vcombine.high %v658, %v666
    %v686 = vunpack.c.l.s4 1934713408
    %v687 = vunpack.c.0.s8 %v686
    %v688 = vlaneseq
    %v689 = vshrl.u32 %v688, 7
    %v690 = vsub.s32 %v687, %v689
    %v691 = vrot.slane %v683, %v690
    %v693 = vunpack.c.l.s4 1934713408
    %v694 = vunpack.c.0.s8 %v693
    %v695 = vlaneseq
    %v696 = vshrl.u32 %v695, 7
    %v697 = vsub.s32 %v694, %v696
    %v698 = vrot.slane %v684, %v697
    %v699 = vcombine.low %v674, %v682
    %v700 = vcombine.high %v674, %v682
    %v702 = vunpack.c.l.s4 1934713408
    %v703 = vunpack.c.0.s8 %v702
    %v704 = vlaneseq
    %v705 = vshrl.u32 %v704, 7
    %v706 = vsub.s32 %v703, %v705
    %v707 = vrot.slane %v699, %v706
    %v709 = vunpack.c.l.s4 1934713408
    %v710 = vunpack.c.0.s8 %v709
    %v711 = vlaneseq
    %v712 = vshrl.u32 %v711, 7
    %v713 = vsub.s32 %v710, %v712
    %v714 = vrot.slane %v700, %v713
    %v715 = vcombine.low %v691, %v707
    %v716 = vcombine.high %v691, %v707
    %v717 = vcombine.low %v698, %v714
    %v718 = vcombine.high %v698, %v714
    %v719 = vpack.c.bf16 %v647, %v647
    %v720 = vpack.c.bf16 %v648, %v648
    %v721 = vpack.c.bf16 %v649, %v649
    %v722 = vpack.c.bf16 %v650, %v650
    %v723 = vpack.c.bf16 %v715, %v715
    %v724 = vpack.c.bf16 %v716, %v716
    %v725 = vpack.c.bf16 %v717, %v717
    %v726 = vpack.c.bf16 %v718, %v718
    %727 = vrot.lane.b32.xlu0 %v117, 64
    %v728 = vpop.permute.xlu0 %727
    %729 = vrot.lane.b32.xlu0 %v120, 64
    %v730 = vpop.permute.xlu0 %729
    %731 = vrot.lane.b32.xlu0 %v126, 64
    %v732 = vpop.permute.xlu0 %731
    %733 = vrot.lane.b32.xlu0 %v128, 64
    %v734 = vpop.permute.xlu0 %733
    %735 = vrot.lane.b32.xlu0 %v132, 64
    %v736 = vpop.permute.xlu0 %735
    %737 = vrot.lane.b32.xlu0 %v134, 64
    %v738 = vpop.permute.xlu0 %737
    %739 = vrot.lane.b32.xlu0 %v138, 64
    %v740 = vpop.permute.xlu0 %739
    %741 = vrot.lane.b32.xlu0 %v140, 64
    %v742 = vpop.permute.xlu0 %741
    %v751 = vcombine.low %v728, %v736
    %v752 = vcombine.high %v728, %v736
    %v754 = vunpack.c.l.s4 1983009808
    %v755 = vunpack.c.0.s8 %v754
    %v756 = vlaneseq
    %v757 = vshrl.u32 %v756, 7
    %v758 = vsub.s32 %v755, %v757
    %v759 = vrot.slane %v751, %v758
    %v761 = vunpack.c.l.s4 1983009808
    %v762 = vunpack.c.0.s8 %v761
    %v763 = vlaneseq
    %v764 = vshrl.u32 %v763, 7
    %v765 = vsub.s32 %v762, %v764
    %v766 = vrot.slane %v752, %v765
    %v767 = vcombine.low %v732, %v740
    %v768 = vcombine.high %v732, %v740
    %v770 = vunpack.c.l.s4 1983009808
    %v771 = vunpack.c.0.s8 %v770
    %v772 = vlaneseq
    %v773 = vshrl.u32 %v772, 7
    %v774 = vsub.s32 %v771, %v773
    %v775 = vrot.slane %v767, %v774
    %v777 = vunpack.c.l.s4 1983009808
    %v778 = vunpack.c.0.s8 %v777
    %v779 = vlaneseq
    %v780 = vshrl.u32 %v779, 7
    %v781 = vsub.s32 %v778, %v780
    %v782 = vrot.slane %v768, %v781
    %v783 = vcombine.low %v759, %v775
    %v784 = vcombine.high %v759, %v775
    %v786 = vunpack.c.l.s4 1934713408
    %v787 = vunpack.c.0.s8 %v786
    %v788 = vlaneseq
    %v789 = vshrl.u32 %v788, 7
    %v790 = vsub.s32 %v787, %v789
    %v791 = vrot.slane %v783, %v790
    %v793 = vunpack.c.l.s4 1934713408
    %v794 = vunpack.c.0.s8 %v793
    %v795 = vlaneseq
    %v796 = vshrl.u32 %v795, 7
    %v797 = vsub.s32 %v794, %v796
    %v798 = vrot.slane %v784, %v797
    %v799 = vcombine.low %v766, %v782
    %v800 = vcombine.high %v766, %v782
    %v802 = vunpack.c.l.s4 1934713408
    %v803 = vunpack.c.0.s8 %v802
    %v804 = vlaneseq
    %v805 = vshrl.u32 %v804, 7
    %v806 = vsub.s32 %v803, %v805
    %v807 = vrot.slane %v799, %v806
    %v809 = vunpack.c.l.s4 1934713408
    %v810 = vunpack.c.0.s8 %v809
    %v811 = vlaneseq
    %v812 = vshrl.u32 %v811, 7
    %v813 = vsub.s32 %v810, %v812
    %v814 = vrot.slane %v800, %v813
    %v815 = vcombine.high %v791, 0.0
    %v816 = vcombine.high %v798, 0.0
    %v817 = vcombine.high %v807, 0.0
    %v818 = vcombine.high %v814, 0.0
    %v819 = vcombine.low %v730, %v738
    %v820 = vcombine.high %v730, %v738
    %v822 = vunpack.c.l.s4 1983009808
    %v823 = vunpack.c.0.s8 %v822
    %v824 = vlaneseq
    %v825 = vshrl.u32 %v824, 7
    %v826 = vsub.s32 %v823, %v825
    %v827 = vrot.slane %v819, %v826
    %v829 = vunpack.c.l.s4 1983009808
    %v830 = vunpack.c.0.s8 %v829
    %v831 = vlaneseq
    %v832 = vshrl.u32 %v831, 7
    %v833 = vsub.s32 %v830, %v832
    %v834 = vrot.slane %v820, %v833
    %v835 = vcombine.low %v734, %v742
    %v836 = vcombine.high %v734, %v742
    %v838 = vunpack.c.l.s4 1983009808
    %v839 = vunpack.c.0.s8 %v838
    %v840 = vlaneseq
    %v841 = vshrl.u32 %v840, 7
    %v842 = vsub.s32 %v839, %v841
    %v843 = vrot.slane %v835, %v842
    %v845 = vunpack.c.l.s4 1983009808
    %v846 = vunpack.c.0.s8 %v845
    %v847 = vlaneseq
    %v848 = vshrl.u32 %v847, 7
    %v849 = vsub.s32 %v846, %v848
    %v850 = vrot.slane %v836, %v849
    %v851 = vcombine.low %v827, %v843
    %v852 = vcombine.high %v827, %v843
    %v854 = vunpack.c.l.s4 1934713408
    %v855 = vunpack.c.0.s8 %v854
    %v856 = vlaneseq
    %v857 = vshrl.u32 %v856, 7
    %v858 = vsub.s32 %v855, %v857
    %v859 = vrot.slane %v851, %v858
    %v861 = vunpack.c.l.s4 1934713408
    %v862 = vunpack.c.0.s8 %v861
    %v863 = vlaneseq
    %v864 = vshrl.u32 %v863, 7
    %v865 = vsub.s32 %v862, %v864
    %v866 = vrot.slane %v852, %v865
    %v867 = vcombine.low %v834, %v850
    %v868 = vcombine.high %v834, %v850
    %v870 = vunpack.c.l.s4 1934713408
    %v871 = vunpack.c.0.s8 %v870
    %v872 = vlaneseq
    %v873 = vshrl.u32 %v872, 7
    %v874 = vsub.s32 %v871, %v873
    %v875 = vrot.slane %v867, %v874
    %v877 = vunpack.c.l.s4 1934713408
    %v878 = vunpack.c.0.s8 %v877
    %v879 = vlaneseq
    %v880 = vshrl.u32 %v879, 7
    %v881 = vsub.s32 %v878, %v880
    %v882 = vrot.slane %v868, %v881
    %v883 = vcombine.high %v859, 0.0
    %v884 = vcombine.high %v866, 0.0
    %v885 = vcombine.high %v875, 0.0
    %v886 = vcombine.high %v882, 0.0
    %v887 = vcombine.low %v791, %v798
    %v889 = vunpack.c.l.s4 1983009808
    %v890 = vunpack.c.0.s8 %v889
    %v891 = vlaneseq
    %v892 = vshrl.u32 %v891, 7
    %v893 = vsub.s32 %v890, %v892
    %v894 = vrot.slane %v887, %v893
    %v895 = vcombine.low %v815, %v816
    %v897 = vunpack.c.l.s4 1983009808
    %v898 = vunpack.c.0.s8 %v897
    %v899 = vlaneseq
    %v900 = vshrl.u32 %v899, 7
    %v901 = vsub.s32 %v898, %v900
    %v902 = vrot.slane %v895, %v901
    %v903 = vcombine.low %v807, %v814
    %v905 = vunpack.c.l.s4 1983009808
    %v906 = vunpack.c.0.s8 %v905
    %v907 = vlaneseq
    %v908 = vshrl.u32 %v907, 7
    %v909 = vsub.s32 %v906, %v908
    %v910 = vrot.slane %v903, %v909
    %v911 = vcombine.low %v817, %v818
    %v913 = vunpack.c.l.s4 1983009808
    %v914 = vunpack.c.0.s8 %v913
    %v915 = vlaneseq
    %v916 = vshrl.u32 %v915, 7
    %v917 = vsub.s32 %v914, %v916
    %v918 = vrot.slane %v911, %v917
    %v919 = vcombine.low %v894, %v902
    %v920 = vcombine.high %v894, %v902
    %v922 = vunpack.c.l.s4 1934713408
    %v923 = vunpack.c.0.s8 %v922
    %v924 = vlaneseq
    %v925 = vshrl.u32 %v924, 7
    %v926 = vsub.s32 %v923, %v925
    %v927 = vrot.slane %v919, %v926
    %v929 = vunpack.c.l.s4 1934713408
    %v930 = vunpack.c.0.s8 %v929
    %v931 = vlaneseq
    %v932 = vshrl.u32 %v931, 7
    %v933 = vsub.s32 %v930, %v932
    %v934 = vrot.slane %v920, %v933
    %v935 = vcombine.low %v910, %v918
    %v936 = vcombine.high %v910, %v918
    %v938 = vunpack.c.l.s4 1934713408
    %v939 = vunpack.c.0.s8 %v938
    %v940 = vlaneseq
    %v941 = vshrl.u32 %v940, 7
    %v942 = vsub.s32 %v939, %v941
    %v943 = vrot.slane %v935, %v942
    %v945 = vunpack.c.l.s4 1934713408
    %v946 = vunpack.c.0.s8 %v945
    %v947 = vlaneseq
    %v948 = vshrl.u32 %v947, 7
    %v949 = vsub.s32 %v946, %v948
    %v950 = vrot.slane %v936, %v949
    %v951 = vcombine.low %v927, %v943
    %v952 = vcombine.high %v927, %v943
    %v953 = vcombine.low %v934, %v950
    %v954 = vcombine.high %v934, %v950
    %v955 = vcombine.low %v859, %v866
    %v957 = vunpack.c.l.s4 1983009808
    %v958 = vunpack.c.0.s8 %v957
    %v959 = vlaneseq
    %v960 = vshrl.u32 %v959, 7
    %v961 = vsub.s32 %v958, %v960
    %v962 = vrot.slane %v955, %v961
    %v963 = vcombine.low %v883, %v884
    %v965 = vunpack.c.l.s4 1983009808
    %v966 = vunpack.c.0.s8 %v965
    %v967 = vlaneseq
    %v968 = vshrl.u32 %v967, 7
    %v969 = vsub.s32 %v966, %v968
    %v970 = vrot.slane %v963, %v969
    %v971 = vcombine.low %v875, %v882
    %v973 = vunpack.c.l.s4 1983009808
    %v974 = vunpack.c.0.s8 %v973
    %v975 = vlaneseq
    %v976 = vshrl.u32 %v975, 7
    %v977 = vsub.s32 %v974, %v976
    %v978 = vrot.slane %v971, %v977
    %v979 = vcombine.low %v885, %v886
    %v981 = vunpack.c.l.s4 1983009808
    %v982 = vunpack.c.0.s8 %v981
    %v983 = vlaneseq
    %v984 = vshrl.u32 %v983, 7
    %v985 = vsub.s32 %v982, %v984
    %v986 = vrot.slane %v979, %v985
    %v987 = vcombine.low %v962, %v970
    %v988 = vcombine.high %v962, %v970
    %v990 = vunpack.c.l.s4 1934713408
    %v991 = vunpack.c.0.s8 %v990
    %v992 = vlaneseq
    %v993 = vshrl.u32 %v992, 7
    %v994 = vsub.s32 %v991, %v993
    %v995 = vrot.slane %v987, %v994
    %v997 = vunpack.c.l.s4 1934713408
    %v998 = vunpack.c.0.s8 %v997
    %v999 = vlaneseq
    %v1000 = vshrl.u32 %v999, 7
    %v1001 = vsub.s32 %v998, %v1000
    %v1002 = vrot.slane %v988, %v1001
    %v1003 = vcombine.low %v978, %v986
    %v1004 = vcombine.high %v978, %v986
    %v1006 = vunpack.c.l.s4 1934713408
    %v1007 = vunpack.c.0.s8 %v1006
    %v1008 = vlaneseq
    %v1009 = vshrl.u32 %v1008, 7
    %v1010 = vsub.s32 %v1007, %v1009
    %v1011 = vrot.slane %v1003, %v1010
    %v1013 = vunpack.c.l.s4 1934713408
    %v1014 = vunpack.c.0.s8 %v1013
    %v1015 = vlaneseq
    %v1016 = vshrl.u32 %v1015, 7
    %v1017 = vsub.s32 %v1014, %v1016
    %v1018 = vrot.slane %v1004, %v1017
    %v1019 = vcombine.low %v995, %v1011
    %v1020 = vcombine.high %v995, %v1011
    %v1021 = vcombine.low %v1002, %v1018
    %v1022 = vcombine.high %v1002, %v1018
    %v1023 = vpack.c.bf16 %v951, %v951
    %v1024 = vpack.c.bf16 %v952, %v952
    %v1025 = vpack.c.bf16 %v953, %v953
    %v1026 = vpack.c.bf16 %v954, %v954
    %v1027 = vpack.c.bf16 %v1019, %v1019
    %v1028 = vpack.c.bf16 %v1020, %v1020
    %v1029 = vpack.c.bf16 %v1021, %v1021
    %v1030 = vpack.c.bf16 %v1022, %v1022
    %vm1031 = vcmask 64512
    %v1033 = vsel %vm1031, %v415, 0
    %v1036 = vsel %vm1031, %v719, 0
    %1038 = vmatprep.subr.bf16.mxu0 0
    %1039 = vmatpush1.bf16.xpose.msra.mxu0 %v1036
    %1040 = vmatprep.subr.bf16.mxu0 0
    %1041 = vmatpush1.bf16.xpose.msra.mxu0 0
    %1042 = vmatprep.subr.bf16.mxu0 0
    %1043 = vmatpush1.bf16.xpose.msra.mxu0 0
    %1044 = vmatprep.subr.bf16.mxu0 0
    %1045 = vmatpush1.bf16.xpose.msra.mxu0 0
    %1046 = vmatprep.subr.bf16.mxu0 0
    %1047 = vmatpush1.bf16.xpose.msra.mxu0 0
    %1048 = vmatprep.subr.bf16.mxu0 0
    %1049 = vmatpush1.bf16.xpose.msra.mxu0 0
    %1050 = vmatprep.subr.bf16.mxu0 0
    %1051 = vmatpush1.bf16.xpose.msra.mxu0 0
    %1052 = vmatprep.subr.bf16.mxu0 0
    %1053 = vmatpush1.bf16.xpose.msra.mxu0 0
    %1054 = vmatprep.subr.bf16.mxu0 0
    %1055 = vmatpush1.bf16.xpose.msra.mxu0 0
    %1056 = vmatprep.subr.bf16.mxu0 0
    %1057 = vmatpush1.bf16.xpose.msra.mxu0 0
    %1058 = vmatprep.subr.bf16.mxu0 0
    %1059 = vmatpush1.bf16.xpose.msra.mxu0 0
    %1060 = vmatprep.subr.bf16.mxu0 0
    %1061 = vmatpush1.bf16.xpose.msra.mxu0 0
    %1062 = vmatprep.subr.bf16.mxu0 0
    %1063 = vmatpush1.bf16.xpose.msra.mxu0 0
    %1064 = vmatprep.subr.bf16.mxu0 0
    %1065 = vmatpush1.bf16.xpose.msra.mxu0 0
    %1066 = vmatprep.subr.bf16.mxu0 0
    %1067 = vmatpush1.bf16.xpose.msra.mxu0 0
    %1068 = vmatprep.subr.bf16.mxu0 0
    %1069 = vmatpush1.bf16.xpose.msra.mxu0 0
    %1070 = vmatprep.mubr.bf16.mxu0 0
    %1071 = vmatmul.mubr.bf16.gmra.mrb[0].mxu0 %v1033
    %v1072 = vpop.f32.mrb[0].mxu0
    %v1073 = vadd.f32 0.0, %v1072
    %v1074 = vpop.f32.mrb[0].mxu0
    %v1075 = vpop.f32.mrb[0].mxu0
    %v1076 = vpop.f32.mrb[0].mxu0
    %1077 = vdwg.mxu0
    %v1079 = vsel %vm1031, %v416, 0
    %v1082 = vsel %vm1031, %v720, 0
    %1084 = vmatprep.subr.bf16.mxu0 0
    %1085 = vmatpush1.bf16.xpose.msra.mxu0 %v1082
    %1086 = vmatprep.subr.bf16.mxu0 0
    %1087 = vmatpush1.bf16.xpose.msra.mxu0 0
    %1088 = vmatprep.subr.bf16.mxu0 0
    %1089 = vmatpush1.bf16.xpose.msra.mxu0 0
    %1090 = vmatprep.subr.bf16.mxu0 0
    %1091 = vmatpush1.bf16.xpose.msra.mxu0 0
    %1092 = vmatprep.subr.bf16.mxu0 0
    %1093 = vmatpush1.bf16.xpose.msra.mxu0 0
    %1094 = vmatprep.subr.bf16.mxu0 0
    %1095 = vmatpush1.bf16.xpose.msra.mxu0 0
    %1096 = vmatprep.subr.bf16.mxu0 0
    %1097 = vmatpush1.bf16.xpose.msra.mxu0 0
    %1098 = vmatprep.subr.bf16.mxu0 0
    %1099 = vmatpush1.bf16.xpose.msra.mxu0 0
    %1100 = vmatprep.subr.bf16.mxu0 0
    %1101 = vmatpush1.bf16.xpose.msra.mxu0 0
    %1102 = vmatprep.subr.bf16.mxu0 0
    %1103 = vmatpush1.bf16.xpose.msra.mxu0 0
    %1104 = vmatprep.subr.bf16.mxu0 0
    %1105 = vmatpush1.bf16.xpose.msra.mxu0 0
    %1106 = vmatprep.subr.bf16.mxu0 0
    %1107 = vmatpush1.bf16.xpose.msra.mxu0 0
    %1108 = vmatprep.subr.bf16.mxu0 0
    %1109 = vmatpush1.bf16.xpose.msra.mxu0 0
    %1110 = vmatprep.subr.bf16.mxu0 0
    %1111 = vmatpush1.bf16.xpose.msra.mxu0 0
    %1112 = vmatprep.subr.bf16.mxu0 0
    %1113 = vmatpush1.bf16.xpose.msra.mxu0 0
    %1114 = vmatprep.subr.bf16.mxu0 0
    %1115 = vmatpush1.bf16.xpose.msra.mxu0 0
    %1116 = vmatprep.mubr.bf16.mxu0 0
    %1117 = vmatmul.mubr.bf16.gmra.mrb[0].mxu0 %v1079
    %v1118 = vpop.f32.mrb[0].mxu0
    %v1119 = vadd.f32 0.0, %v1118
    %v1120 = vpop.f32.mrb[0].mxu0
    %v1121 = vpop.f32.mrb[0].mxu0
    %v1122 = vpop.f32.mrb[0].mxu0
    %1123 = vdwg.mxu0
    %v1125 = vsel %vm1031, %v417, 0
    %v1128 = vsel %vm1031, %v721, 0
    %1130 = vmatprep.subr.bf16.mxu0 0
    %1131 = vmatpush1.bf16.xpose.msra.mxu0 %v1128
    %1132 = vmatprep.subr.bf16.mxu0 0
    %1133 = vmatpush1.bf16.xpose.msra.mxu0 0
    %1134 = vmatprep.subr.bf16.mxu0 0
    %1135 = vmatpush1.bf16.xpose.msra.mxu0 0
    %1136 = vmatprep.subr.bf16.mxu0 0
    %1137 = vmatpush1.bf16.xpose.msra.mxu0 0
    %1138 = vmatprep.subr.bf16.mxu0 0
    %1139 = vmatpush1.bf16.xpose.msra.mxu0 0
    %1140 = vmatprep.subr.bf16.mxu0 0
    %1141 = vmatpush1.bf16.xpose.msra.mxu0 0
    %1142 = vmatprep.subr.bf16.mxu0 0
    %1143 = vmatpush1.bf16.xpose.msra.mxu0 0
    %1144 = vmatprep.subr.bf16.mxu0 0
    %1145 = vmatpush1.bf16.xpose.msra.mxu0 0
    %1146 = vmatprep.subr.bf16.mxu0 0
    %1147 = vmatpush1.bf16.xpose.msra.mxu0 0
    %1148 = vmatprep.subr.bf16.mxu0 0
    %1149 = vmatpush1.bf16.xpose.msra.mxu0 0
    %1150 = vmatprep.subr.bf16.mxu0 0
    %1151 = vmatpush1.bf16.xpose.msra.mxu0 0
    %1152 = vmatprep.subr.bf16.mxu0 0
    %1153 = vmatpush1.bf16.xpose.msra.mxu0 0
    %1154 = vmatprep.subr.bf16.mxu0 0
    %1155 = vmatpush1.bf16.xpose.msra.mxu0 0
    %1156 = vmatprep.subr.bf16.mxu0 0
    %1157 = vmatpush1.bf16.xpose.msra.mxu0 0
    %1158 = vmatprep.subr.bf16.mxu0 0
    %1159 = vmatpush1.bf16.xpose.msra.mxu0 0
    %1160 = vmatprep.subr.bf16.mxu0 0
    %1161 = vmatpush1.bf16.xpose.msra.mxu0 0
    %1162 = vmatprep.mubr.bf16.mxu0 0
    %1163 = vmatmul.mubr.bf16.gmra.mrb[0].mxu0 %v1125
    %v1164 = vpop.f32.mrb[0].mxu0
    %v1165 = vadd.f32 0.0, %v1164
    %v1166 = vpop.f32.mrb[0].mxu0
    %v1167 = vpop.f32.mrb[0].mxu0
    %v1168 = vpop.f32.mrb[0].mxu0
    %1169 = vdwg.mxu0
    %v1171 = vsel %vm1031, %v418, 0
    %v1174 = vsel %vm1031, %v722, 0
    %1176 = vmatprep.subr.bf16.mxu0 0
    %1177 = vmatpush1.bf16.xpose.msra.mxu0 %v1174
    %1178 = vmatprep.subr.bf16.mxu0 0
    %1179 = vmatpush1.bf16.xpose.msra.mxu0 0
    %1180 = vmatprep.subr.bf16.mxu0 0
    %1181 = vmatpush1.bf16.xpose.msra.mxu0 0
    %1182 = vmatprep.subr.bf16.mxu0 0
    %1183 = vmatpush1.bf16.xpose.msra.mxu0 0
    %1184 = vmatprep.subr.bf16.mxu0 0
    %1185 = vmatpush1.bf16.xpose.msra.mxu0 0
    %1186 = vmatprep.subr.bf16.mxu0 0
    %1187 = vmatpush1.bf16.xpose.msra.mxu0 0
    %1188 = vmatprep.subr.bf16.mxu0 0
    %1189 = vmatpush1.bf16.xpose.msra.mxu0 0
    %1190 = vmatprep.subr.bf16.mxu0 0
    %1191 = vmatpush1.bf16.xpose.msra.mxu0 0
    %1192 = vmatprep.subr.bf16.mxu0 0
    %1193 = vmatpush1.bf16.xpose.msra.mxu0 0
    %1194 = vmatprep.subr.bf16.mxu0 0
    %1195 = vmatpush1.bf16.xpose.msra.mxu0 0
    %1196 = vmatprep.subr.bf16.mxu0 0
    %1197 = vmatpush1.bf16.xpose.msra.mxu0 0
    %1198 = vmatprep.subr.bf16.mxu0 0
    %1199 = vmatpush1.bf16.xpose.msra.mxu0 0
    %1200 = vmatprep.subr.bf16.mxu0 0
    %1201 = vmatpush1.bf16.xpose.msra.mxu0 0
    %1202 = vmatprep.subr.bf16.mxu0 0
    %1203 = vmatpush1.bf16.xpose.msra.mxu0 0
    %1204 = vmatprep.subr.bf16.mxu0 0
    %1205 = vmatpush1.bf16.xpose.msra.mxu0 0
    %1206 = vmatprep.subr.bf16.mxu0 0
    %1207 = vmatpush1.bf16.xpose.msra.mxu0 0
    %1208 = vmatprep.mubr.bf16.mxu0 0
    %1209 = vmatmul.mubr.bf16.gmra.mrb[0].mxu0 %v1171
    %v1210 = vpop.f32.mrb[0].mxu0
    %v1211 = vadd.f32 0.0, %v1210
    %v1212 = vpop.f32.mrb[0].mxu0
    %v1213 = vpop.f32.mrb[0].mxu0
    %v1214 = vpop.f32.mrb[0].mxu0
    %1215 = vdwg.mxu0
    %v1217 = vsel %vm1031, %v419, 0
    %v1220 = vsel %vm1031, %v723, 0
    %1222 = vmatprep.subr.bf16.mxu0 0
    %1223 = vmatpush1.bf16.xpose.msra.mxu0 %v1220
    %1224 = vmatprep.subr.bf16.mxu0 0
    %1225 = vmatpush1.bf16.xpose.msra.mxu0 0
    %1226 = vmatprep.subr.bf16.mxu0 0
    %1227 = vmatpush1.bf16.xpose.msra.mxu0 0
    %1228 = vmatprep.subr.bf16.mxu0 0
    %1229 = vmatpush1.bf16.xpose.msra.mxu0 0
    %1230 = vmatprep.subr.bf16.mxu0 0
    %1231 = vmatpush1.bf16.xpose.msra.mxu0 0
    %1232 = vmatprep.subr.bf16.mxu0 0
    %1233 = vmatpush1.bf16.xpose.msra.mxu0 0
    %1234 = vmatprep.subr.bf16.mxu0 0
    %1235 = vmatpush1.bf16.xpose.msra.mxu0 0
    %1236 = vmatprep.subr.bf16.mxu0 0
    %1237 = vmatpush1.bf16.xpose.msra.mxu0 0
    %1238 = vmatprep.subr.bf16.mxu0 0
    %1239 = vmatpush1.bf16.xpose.msra.mxu0 0
    %1240 = vmatprep.subr.bf16.mxu0 0
    %1241 = vmatpush1.bf16.xpose.msra.mxu0 0
    %1242 = vmatprep.subr.bf16.mxu0 0
    %1243 = vmatpush1.bf16.xpose.msra.mxu0 0
    %1244 = vmatprep.subr.bf16.mxu0 0
    %1245 = vmatpush1.bf16.xpose.msra.mxu0 0
    %1246 = vmatprep.subr.bf16.mxu0 0
    %1247 = vmatpush1.bf16.xpose.msra.mxu0 0
    %1248 = vmatprep.subr.bf16.mxu0 0
    %1249 = vmatpush1.bf16.xpose.msra.mxu0 0
    %1250 = vmatprep.subr.bf16.mxu0 0
    %1251 = vmatpush1.bf16.xpose.msra.mxu0 0
    %1252 = vmatprep.subr.bf16.mxu0 0
    %1253 = vmatpush1.bf16.xpose.msra.mxu0 0
    %1254 = vmatprep.mubr.bf16.mxu0 0
    %1255 = vmatmul.mubr.bf16.gmra.mrb[0].mxu0 %v1217
    %v1256 = vpop.f32.mrb[0].mxu0
    %v1257 = vadd.f32 0.0, %v1256
    %v1258 = vpop.f32.mrb[0].mxu0
    %v1259 = vpop.f32.mrb[0].mxu0
    %v1260 = vpop.f32.mrb[0].mxu0
    %1261 = vdwg.mxu0
    %v1263 = vsel %vm1031, %v420, 0
    %v1266 = vsel %vm1031, %v724, 0
    %1268 = vmatprep.subr.bf16.mxu0 0
    %1269 = vmatpush1.bf16.xpose.msra.mxu0 %v1266
    %1270 = vmatprep.subr.bf16.mxu0 0
    %1271 = vmatpush1.bf16.xpose.msra.mxu0 0
    %1272 = vmatprep.subr.bf16.mxu0 0
    %1273 = vmatpush1.bf16.xpose.msra.mxu0 0
    %1274 = vmatprep.subr.bf16.mxu0 0
    %1275 = vmatpush1.bf16.xpose.msra.mxu0 0
    %1276 = vmatprep.subr.bf16.mxu0 0
    %1277 = vmatpush1.bf16.xpose.msra.mxu0 0
    %1278 = vmatprep.subr.bf16.mxu0 0
    %1279 = vmatpush1.bf16.xpose.msra.mxu0 0
    %1280 = vmatprep.subr.bf16.mxu0 0
    %1281 = vmatpush1.bf16.xpose.msra.mxu0 0
    %1282 = vmatprep.subr.bf16.mxu0 0
    %1283 = vmatpush1.bf16.xpose.msra.mxu0 0
    %1284 = vmatprep.subr.bf16.mxu0 0
    %1285 = vmatpush1.bf16.xpose.msra.mxu0 0
    %1286 = vmatprep.subr.bf16.mxu0 0
    %1287 = vmatpush1.bf16.xpose.msra.mxu0 0
    %1288 = vmatprep.subr.bf16.mxu0 0
    %1289 = vmatpush1.bf16.xpose.msra.mxu0 0
    %1290 = vmatprep.subr.bf16.mxu0 0
    %1291 = vmatpush1.bf16.xpose.msra.mxu0 0
    %1292 = vmatprep.subr.bf16.mxu0 0
    %1293 = vmatpush1.bf16.xpose.msra.mxu0 0
    %1294 = vmatprep.subr.bf16.mxu0 0
    %1295 = vmatpush1.bf16.xpose.msra.mxu0 0
    %1296 = vmatprep.subr.bf16.mxu0 0
    %1297 = vmatpush1.bf16.xpose.msra.mxu0 0
    %1298 = vmatprep.subr.bf16.mxu0 0
    %1299 = vmatpush1.bf16.xpose.msra.mxu0 0
    %1300 = vmatprep.mubr.bf16.mxu0 0
    %1301 = vmatmul.mubr.bf16.gmra.mrb[0].mxu0 %v1263
    %v1302 = vpop.f32.mrb[0].mxu0
    %v1303 = vadd.f32 0.0, %v1302
    %v1304 = vpop.f32.mrb[0].mxu0
    %v1305 = vpop.f32.mrb[0].mxu0
    %v1306 = vpop.f32.mrb[0].mxu0
    %1307 = vdwg.mxu0
    %v1309 = vsel %vm1031, %v421, 0
    %v1312 = vsel %vm1031, %v725, 0
    %1314 = vmatprep.subr.bf16.mxu0 0
    %1315 = vmatpush1.bf16.xpose.msra.mxu0 %v1312
    %1316 = vmatprep.subr.bf16.mxu0 0
    %1317 = vmatpush1.bf16.xpose.msra.mxu0 0
    %1318 = vmatprep.subr.bf16.mxu0 0
    %1319 = vmatpush1.bf16.xpose.msra.mxu0 0
    %1320 = vmatprep.subr.bf16.mxu0 0
    %1321 = vmatpush1.bf16.xpose.msra.mxu0 0
    %1322 = vmatprep.subr.bf16.mxu0 0
    %1323 = vmatpush1.bf16.xpose.msra.mxu0 0
    %1324 = vmatprep.subr.bf16.mxu0 0
    %1325 = vmatpush1.bf16.xpose.msra.mxu0 0
    %1326 = vmatprep.subr.bf16.mxu0 0
    %1327 = vmatpush1.bf16.xpose.msra.mxu0 0
    %1328 = vmatprep.subr.bf16.mxu0 0
    %1329 = vmatpush1.bf16.xpose.msra.mxu0 0
    %1330 = vmatprep.subr.bf16.mxu0 0
    %1331 = vmatpush1.bf16.xpose.msra.mxu0 0
    %1332 = vmatprep.subr.bf16.mxu0 0
    %1333 = vmatpush1.bf16.xpose.msra.mxu0 0
    %1334 = vmatprep.subr.bf16.mxu0 0
    %1335 = vmatpush1.bf16.xpose.msra.mxu0 0
    %1336 = vmatprep.subr.bf16.mxu0 0
    %1337 = vmatpush1.bf16.xpose.msra.mxu0 0
    %1338 = vmatprep.subr.bf16.mxu0 0
    %1339 = vmatpush1.bf16.xpose.msra.mxu0 0
    %1340 = vmatprep.subr.bf16.mxu0 0
    %1341 = vmatpush1.bf16.xpose.msra.mxu0 0
    %1342 = vmatprep.subr.bf16.mxu0 0
    %1343 = vmatpush1.bf16.xpose.msra.mxu0 0
    %1344 = vmatprep.subr.bf16.mxu0 0
    %1345 = vmatpush1.bf16.xpose.msra.mxu0 0
    %1346 = vmatprep.mubr.bf16.mxu0 0
    %1347 = vmatmul.mubr.bf16.gmra.mrb[0].mxu0 %v1309
    %v1348 = vpop.f32.mrb[0].mxu0
    %v1349 = vadd.f32 0.0, %v1348
    %v1350 = vpop.f32.mrb[0].mxu0
    %v1351 = vpop.f32.mrb[0].mxu0
    %v1352 = vpop.f32.mrb[0].mxu0
    %1353 = vdwg.mxu0
    %v1355 = vsel %vm1031, %v422, 0
    %v1358 = vsel %vm1031, %v726, 0
    %1360 = vmatprep.subr.bf16.mxu0 0
    %1361 = vmatpush1.bf16.xpose.msra.mxu0 %v1358
    %1362 = vmatprep.subr.bf16.mxu0 0
    %1363 = vmatpush1.bf16.xpose.msra.mxu0 0
    %1364 = vmatprep.subr.bf16.mxu0 0
    %1365 = vmatpush1.bf16.xpose.msra.mxu0 0
    %1366 = vmatprep.subr.bf16.mxu0 0
    %1367 = vmatpush1.bf16.xpose.msra.mxu0 0
    %1368 = vmatprep.subr.bf16.mxu0 0
    %1369 = vmatpush1.bf16.xpose.msra.mxu0 0
    %1370 = vmatprep.subr.bf16.mxu0 0
    %1371 = vmatpush1.bf16.xpose.msra.mxu0 0
    %1372 = vmatprep.subr.bf16.mxu0 0
    %1373 = vmatpush1.bf16.xpose.msra.mxu0 0
    %1374 = vmatprep.subr.bf16.mxu0 0
    %1375 = vmatpush1.bf16.xpose.msra.mxu0 0
    %1376 = vmatprep.subr.bf16.mxu0 0
    %1377 = vmatpush1.bf16.xpose.msra.mxu0 0
    %1378 = vmatprep.subr.bf16.mxu0 0
    %1379 = vmatpush1.bf16.xpose.msra.mxu0 0
    %1380 = vmatprep.subr.bf16.mxu0 0
    %1381 = vmatpush1.bf16.xpose.msra.mxu0 0
    %1382 = vmatprep.subr.bf16.mxu0 0
    %1383 = vmatpush1.bf16.xpose.msra.mxu0 0
    %1384 = vmatprep.subr.bf16.mxu0 0
    %1385 = vmatpush1.bf16.xpose.msra.mxu0 0
    %1386 = vmatprep.subr.bf16.mxu0 0
    %1387 = vmatpush1.bf16.xpose.msra.mxu0 0
    %1388 = vmatprep.subr.bf16.mxu0 0
    %1389 = vmatpush1.bf16.xpose.msra.mxu0 0
    %1390 = vmatprep.subr.bf16.mxu0 0
    %1391 = vmatpush1.bf16.xpose.msra.mxu0 0
    %1392 = vmatprep.mubr.bf16.mxu0 0
    %1393 = vmatmul.mubr.bf16.gmra.mrb[0].mxu0 %v1355
    %v1394 = vpop.f32.mrb[0].mxu0
    %v1395 = vadd.f32 0.0, %v1394
    %v1396 = vpop.f32.mrb[0].mxu0
    %v1397 = vpop.f32.mrb[0].mxu0
    %v1398 = vpop.f32.mrb[0].mxu0
    %1399 = vdwg.mxu0
    %v1400 = vsel %vm1031, %v1073, -inf
    %1401 = vmax.xlane.f32.xlu0 %v1400
    %v1402 = vpop.xlane.xlu0 %1401
    %v1403 = vsel %vm1031, %v1119, -inf
    %1404 = vmax.xlane.f32.xlu0 %v1403
    %v1405 = vpop.xlane.xlu0 %1404
    %v1406 = vsel %vm1031, %v1165, -inf
    %1407 = vmax.xlane.f32.xlu0 %v1406
    %v1408 = vpop.xlane.xlu0 %1407
    %v1409 = vsel %vm1031, %v1211, -inf
    %1410 = vmax.xlane.f32.xlu0 %v1409
    %v1411 = vpop.xlane.xlu0 %1410
    %v1412 = vsel %vm1031, %v1257, -inf
    %1413 = vmax.xlane.f32.xlu0 %v1412
    %v1414 = vpop.xlane.xlu0 %1413
    %v1415 = vsel %vm1031, %v1303, -inf
    %1416 = vmax.xlane.f32.xlu0 %v1415
    %v1417 = vpop.xlane.xlu0 %1416
    %v1418 = vsel %vm1031, %v1349, -inf
    %1419 = vmax.xlane.f32.xlu0 %v1418
    %v1420 = vpop.xlane.xlu0 %1419
    %v1421 = vsel %vm1031, %v1395, -inf
    %1422 = vmax.xlane.f32.xlu0 %v1421
    %v1423 = vpop.xlane.xlu0 %1422
    %v1424 = vsub.f32 %v1073, %v1402
    %v1425 = vsub.f32 %v1119, %v1405
    %v1426 = vsub.f32 %v1165, %v1408
    %v1427 = vsub.f32 %v1211, %v1411
    %v1428 = vsub.f32 %v1257, %v1414
    %v1429 = vsub.f32 %v1303, %v1417
    %v1430 = vsub.f32 %v1349, %v1420
    %v1431 = vsub.f32 %v1395, %v1423
    %v1432 = vmul.f32 %v1424, 1.442695
    %v1433 = vpow.pop %v1432
    %v1434 = vmul.f32 %v1425, 1.442695
    %v1435 = vpow.pop %v1434
    %v1436 = vmul.f32 %v1426, 1.442695
    %v1437 = vpow.pop %v1436
    %v1438 = vmul.f32 %v1427, 1.442695
    %v1439 = vpow.pop %v1438
    %v1440 = vmul.f32 %v1428, 1.442695
    %v1441 = vpow.pop %v1440
    %v1442 = vmul.f32 %v1429, 1.442695
    %v1443 = vpow.pop %v1442
    %v1444 = vmul.f32 %v1430, 1.442695
    %v1445 = vpow.pop %v1444
    %v1446 = vmul.f32 %v1431, 1.442695
    %v1447 = vpow.pop %v1446
    %v1448 = vsel %vm1031, %v1433, 0.0
    %1449 = vadd.xlane.f32.xlu0 %v1448
    %v1450 = vpop.xlane.xlu0 %1449
    %v1451 = vsel %vm1031, %v1435, 0.0
    %1452 = vadd.xlane.f32.xlu0 %v1451
    %v1453 = vpop.xlane.xlu0 %1452
    %v1454 = vsel %vm1031, %v1437, 0.0
    %1455 = vadd.xlane.f32.xlu0 %v1454
    %v1456 = vpop.xlane.xlu0 %1455
    %v1457 = vsel %vm1031, %v1439, 0.0
    %1458 = vadd.xlane.f32.xlu0 %v1457
    %v1459 = vpop.xlane.xlu0 %1458
    %v1460 = vsel %vm1031, %v1441, 0.0
    %1461 = vadd.xlane.f32.xlu0 %v1460
    %v1462 = vpop.xlane.xlu0 %1461
    %v1463 = vsel %vm1031, %v1443, 0.0
    %1464 = vadd.xlane.f32.xlu0 %v1463
    %v1465 = vpop.xlane.xlu0 %1464
    %v1466 = vsel %vm1031, %v1445, 0.0
    %1467 = vadd.xlane.f32.xlu0 %v1466
    %v1468 = vpop.xlane.xlu0 %1467
    %v1469 = vsel %vm1031, %v1447, 0.0
    %1470 = vadd.xlane.f32.xlu0 %v1469
    %v1471 = vpop.xlane.xlu0 %1470
    %v1472 = vrcp.pop %v1450
    %v1473 = vrcp.pop %v1453
    %v1474 = vrcp.pop %v1456
    %v1475 = vrcp.pop %v1459
    %v1476 = vrcp.pop %v1462
    %v1477 = vrcp.pop %v1465
    %v1478 = vrcp.pop %v1468
    %v1479 = vrcp.pop %v1471
    %v1480 = vmul.f32 %v1433, %v1472
    %v1481 = vmul.f32 %v1435, %v1473
    %v1482 = vmul.f32 %v1437, %v1474
    %v1483 = vmul.f32 %v1439, %v1475
    %v1484 = vmul.f32 %v1441, %v1476
    %v1485 = vmul.f32 %v1443, %v1477
    %v1486 = vmul.f32 %v1445, %v1478
    %v1487 = vmul.f32 %v1447, %v1479
    %v1488 = vpack.c.bf16 %v1480, %v1480
    %v1489 = vpack.c.bf16 %v1481, %v1481
    %v1490 = vpack.c.bf16 %v1482, %v1482
    %v1491 = vpack.c.bf16 %v1483, %v1483
    %v1492 = vpack.c.bf16 %v1484, %v1484
    %v1493 = vpack.c.bf16 %v1485, %v1485
    %v1494 = vpack.c.bf16 %v1486, %v1486
    %v1495 = vpack.c.bf16 %v1487, %v1487
    %v1497 = vsel %vm1031, %v1488, 0
    %vm1499 = vcmask 1043456
    %v1501 = vsel %vm1499, %v1023, 0
    %1503 = vmatprep.subr.bf16.mxu0 0
    %1504 = vmatpush1.bf16.msra.mxu0 %v1501
    %1505 = vmatprep.subr.bf16.mxu0 0
    %1506 = vmatpush1.bf16.msra.mxu0 0
    %1507 = vmatprep.subr.bf16.mxu0 0
    %1508 = vmatpush1.bf16.msra.mxu0 0
    %1509 = vmatprep.subr.bf16.mxu0 0
    %1510 = vmatpush1.bf16.msra.mxu0 0
    %1511 = vmatprep.subr.bf16.mxu0 0
    %1512 = vmatpush1.bf16.msra.mxu0 0
    %1513 = vmatprep.subr.bf16.mxu0 0
    %1514 = vmatpush1.bf16.msra.mxu0 0
    %1515 = vmatprep.subr.bf16.mxu0 0
    %1516 = vmatpush1.bf16.msra.mxu0 0
    %1517 = vmatprep.subr.bf16.mxu0 0
    %1518 = vmatpush1.bf16.msra.mxu0 0
    %1519 = vmatprep.subr.bf16.mxu0 0
    %1520 = vmatpush1.bf16.msra.mxu0 0
    %1521 = vmatprep.subr.bf16.mxu0 0
    %1522 = vmatpush1.bf16.msra.mxu0 0
    %1523 = vmatprep.subr.bf16.mxu0 0
    %1524 = vmatpush1.bf16.msra.mxu0 0
    %1525 = vmatprep.subr.bf16.mxu0 0
    %1526 = vmatpush1.bf16.msra.mxu0 0
    %1527 = vmatprep.subr.bf16.mxu0 0
    %1528 = vmatpush1.bf16.msra.mxu0 0
    %1529 = vmatprep.subr.bf16.mxu0 0
    %1530 = vmatpush1.bf16.msra.mxu0 0
    %1531 = vmatprep.subr.bf16.mxu0 0
    %1532 = vmatpush1.bf16.msra.mxu0 0
    %1533 = vmatprep.subr.bf16.mxu0 0
    %1534 = vmatpush1.bf16.msra.mxu0 0
    %1535 = vmatprep.mubr.bf16.mxu0 0
    %1536 = vmatmul.mubr.bf16.gmra.mrb[0].mxu0 %v1497
    %v1537 = vpop.f32.mrb[0].mxu0
    %v1538 = vadd.f32 0.0, %v1537
    %v1539 = vpop.f32.mrb[0].mxu0
    %v1540 = vpop.f32.mrb[0].mxu0
    %v1541 = vpop.f32.mrb[0].mxu0
    %1542 = vdwg.mxu0
    %v1544 = vsel %vm1031, %v1489, 0
    %v1547 = vsel %vm1499, %v1024, 0
    %1549 = vmatprep.subr.bf16.mxu0 0
    %1550 = vmatpush1.bf16.msra.mxu0 %v1547
    %1551 = vmatprep.subr.bf16.mxu0 0
    %1552 = vmatpush1.bf16.msra.mxu0 0
    %1553 = vmatprep.subr.bf16.mxu0 0
    %1554 = vmatpush1.bf16.msra.mxu0 0
    %1555 = vmatprep.subr.bf16.mxu0 0
    %1556 = vmatpush1.bf16.msra.mxu0 0
    %1557 = vmatprep.subr.bf16.mxu0 0
    %1558 = vmatpush1.bf16.msra.mxu0 0
    %1559 = vmatprep.subr.bf16.mxu0 0
    %1560 = vmatpush1.bf16.msra.mxu0 0
    %1561 = vmatprep.subr.bf16.mxu0 0
    %1562 = vmatpush1.bf16.msra.mxu0 0
    %1563 = vmatprep.subr.bf16.mxu0 0
    %1564 = vmatpush1.bf16.msra.mxu0 0
    %1565 = vmatprep.subr.bf16.mxu0 0
    %1566 = vmatpush1.bf16.msra.mxu0 0
    %1567 = vmatprep.subr.bf16.mxu0 0
    %1568 = vmatpush1.bf16.msra.mxu0 0
    %1569 = vmatprep.subr.bf16.mxu0 0
    %1570 = vmatpush1.bf16.msra.mxu0 0
    %1571 = vmatprep.subr.bf16.mxu0 0
    %1572 = vmatpush1.bf16.msra.mxu0 0
    %1573 = vmatprep.subr.bf16.mxu0 0
    %1574 = vmatpush1.bf16.msra.mxu0 0
    %1575 = vmatprep.subr.bf16.mxu0 0
    %1576 = vmatpush1.bf16.msra.mxu0 0
    %1577 = vmatprep.subr.bf16.mxu0 0
    %1578 = vmatpush1.bf16.msra.mxu0 0
    %1579 = vmatprep.subr.bf16.mxu0 0
    %1580 = vmatpush1.bf16.msra.mxu0 0
    %1581 = vmatprep.mubr.bf16.mxu0 0
    %1582 = vmatmul.mubr.bf16.gmra.mrb[0].mxu0 %v1544
    %v1583 = vpop.f32.mrb[0].mxu0
    %v1584 = vadd.f32 0.0, %v1583
    %v1585 = vpop.f32.mrb[0].mxu0
    %v1586 = vpop.f32.mrb[0].mxu0
    %v1587 = vpop.f32.mrb[0].mxu0
    %1588 = vdwg.mxu0
    %v1590 = vsel %vm1031, %v1490, 0
    %v1593 = vsel %vm1499, %v1025, 0
    %1595 = vmatprep.subr.bf16.mxu0 0
    %1596 = vmatpush1.bf16.msra.mxu0 %v1593
    %1597 = vmatprep.subr.bf16.mxu0 0
    %1598 = vmatpush1.bf16.msra.mxu0 0
    %1599 = vmatprep.subr.bf16.mxu0 0
    %1600 = vmatpush1.bf16.msra.mxu0 0
    %1601 = vmatprep.subr.bf16.mxu0 0
    %1602 = vmatpush1.bf16.msra.mxu0 0
    %1603 = vmatprep.subr.bf16.mxu0 0
    %1604 = vmatpush1.bf16.msra.mxu0 0
    %1605 = vmatprep.subr.bf16.mxu0 0
    %1606 = vmatpush1.bf16.msra.mxu0 0
    %1607 = vmatprep.subr.bf16.mxu0 0
    %1608 = vmatpush1.bf16.msra.mxu0 0
    %1609 = vmatprep.subr.bf16.mxu0 0
    %1610 = vmatpush1.bf16.msra.mxu0 0
    %1611 = vmatprep.subr.bf16.mxu0 0
    %1612 = vmatpush1.bf16.msra.mxu0 0
    %1613 = vmatprep.subr.bf16.mxu0 0
    %1614 = vmatpush1.bf16.msra.mxu0 0
    %1615 = vmatprep.subr.bf16.mxu0 0
    %1616 = vmatpush1.bf16.msra.mxu0 0
    %1617 = vmatprep.subr.bf16.mxu0 0
    %1618 = vmatpush1.bf16.msra.mxu0 0
    %1619 = vmatprep.subr.bf16.mxu0 0
    %1620 = vmatpush1.bf16.msra.mxu0 0
    %1621 = vmatprep.subr.bf16.mxu0 0
    %1622 = vmatpush1.bf16.msra.mxu0 0
    %1623 = vmatprep.subr.bf16.mxu0 0
    %1624 = vmatpush1.bf16.msra.mxu0 0
    %1625 = vmatprep.subr.bf16.mxu0 0
    %1626 = vmatpush1.bf16.msra.mxu0 0
    %1627 = vmatprep.mubr.bf16.mxu0 0
    %1628 = vmatmul.mubr.bf16.gmra.mrb[0].mxu0 %v1590
    %v1629 = vpop.f32.mrb[0].mxu0
    %v1630 = vadd.f32 0.0, %v1629
    %v1631 = vpop.f32.mrb[0].mxu0
    %v1632 = vpop.f32.mrb[0].mxu0
    %v1633 = vpop.f32.mrb[0].mxu0
    %1634 = vdwg.mxu0
    %v1636 = vsel %vm1031, %v1491, 0
    %v1639 = vsel %vm1499, %v1026, 0
    %1641 = vmatprep.subr.bf16.mxu0 0
    %1642 = vmatpush1.bf16.msra.mxu0 %v1639
    %1643 = vmatprep.subr.bf16.mxu0 0
    %1644 = vmatpush1.bf16.msra.mxu0 0
    %1645 = vmatprep.subr.bf16.mxu0 0
    %1646 = vmatpush1.bf16.msra.mxu0 0
    %1647 = vmatprep.subr.bf16.mxu0 0
    %1648 = vmatpush1.bf16.msra.mxu0 0
    %1649 = vmatprep.subr.bf16.mxu0 0
    %1650 = vmatpush1.bf16.msra.mxu0 0
    %1651 = vmatprep.subr.bf16.mxu0 0
    %1652 = vmatpush1.bf16.msra.mxu0 0
    %1653 = vmatprep.subr.bf16.mxu0 0
    %1654 = vmatpush1.bf16.msra.mxu0 0
    %1655 = vmatprep.subr.bf16.mxu0 0
    %1656 = vmatpush1.bf16.msra.mxu0 0
    %1657 = vmatprep.subr.bf16.mxu0 0
    %1658 = vmatpush1.bf16.msra.mxu0 0
    %1659 = vmatprep.subr.bf16.mxu0 0
    %1660 = vmatpush1.bf16.msra.mxu0 0
    %1661 = vmatprep.subr.bf16.mxu0 0
    %1662 = vmatpush1.bf16.msra.mxu0 0
    %1663 = vmatprep.subr.bf16.mxu0 0
    %1664 = vmatpush1.bf16.msra.mxu0 0
    %1665 = vmatprep.subr.bf16.mxu0 0
    %1666 = vmatpush1.bf16.msra.mxu0 0
    %1667 = vmatprep.subr.bf16.mxu0 0
    %1668 = vmatpush1.bf16.msra.mxu0 0
    %1669 = vmatprep.subr.bf16.mxu0 0
    %1670 = vmatpush1.bf16.msra.mxu0 0
    %1671 = vmatprep.subr.bf16.mxu0 0
    %1672 = vmatpush1.bf16.msra.mxu0 0
    %1673 = vmatprep.mubr.bf16.mxu0 0
    %1674 = vmatmul.mubr.bf16.gmra.mrb[0].mxu0 %v1636
    %v1675 = vpop.f32.mrb[0].mxu0
    %v1676 = vadd.f32 0.0, %v1675
    %v1677 = vpop.f32.mrb[0].mxu0
    %v1678 = vpop.f32.mrb[0].mxu0
    %v1679 = vpop.f32.mrb[0].mxu0
    %1680 = vdwg.mxu0
    %v1682 = vsel %vm1031, %v1492, 0
    %v1685 = vsel %vm1499, %v1027, 0
    %1687 = vmatprep.subr.bf16.mxu0 0
    %1688 = vmatpush1.bf16.msra.mxu0 %v1685
    %1689 = vmatprep.subr.bf16.mxu0 0
    %1690 = vmatpush1.bf16.msra.mxu0 0
    %1691 = vmatprep.subr.bf16.mxu0 0
    %1692 = vmatpush1.bf16.msra.mxu0 0
    %1693 = vmatprep.subr.bf16.mxu0 0
    %1694 = vmatpush1.bf16.msra.mxu0 0
    %1695 = vmatprep.subr.bf16.mxu0 0
    %1696 = vmatpush1.bf16.msra.mxu0 0
    %1697 = vmatprep.subr.bf16.mxu0 0
    %1698 = vmatpush1.bf16.msra.mxu0 0
    %1699 = vmatprep.subr.bf16.mxu0 0
    %1700 = vmatpush1.bf16.msra.mxu0 0
    %1701 = vmatprep.subr.bf16.mxu0 0
    %1702 = vmatpush1.bf16.msra.mxu0 0
    %1703 = vmatprep.subr.bf16.mxu0 0
    %1704 = vmatpush1.bf16.msra.mxu0 0
    %1705 = vmatprep.subr.bf16.mxu0 0
    %1706 = vmatpush1.bf16.msra.mxu0 0
    %1707 = vmatprep.subr.bf16.mxu0 0
    %1708 = vmatpush1.bf16.msra.mxu0 0
    %1709 = vmatprep.subr.bf16.mxu0 0
    %1710 = vmatpush1.bf16.msra.mxu0 0
    %1711 = vmatprep.subr.bf16.mxu0 0
    %1712 = vmatpush1.bf16.msra.mxu0 0
    %1713 = vmatprep.subr.bf16.mxu0 0
    %1714 = vmatpush1.bf16.msra.mxu0 0
    %1715 = vmatprep.subr.bf16.mxu0 0
    %1716 = vmatpush1.bf16.msra.mxu0 0
    %1717 = vmatprep.subr.bf16.mxu0 0
    %1718 = vmatpush1.bf16.msra.mxu0 0
    %1719 = vmatprep.mubr.bf16.mxu0 0
    %1720 = vmatmul.mubr.bf16.gmra.mrb[0].mxu0 %v1682
    %v1721 = vpop.f32.mrb[0].mxu0
    %v1722 = vadd.f32 0.0, %v1721
    %v1723 = vpop.f32.mrb[0].mxu0
    %v1724 = vpop.f32.mrb[0].mxu0
    %v1725 = vpop.f32.mrb[0].mxu0
    %1726 = vdwg.mxu0
    %v1728 = vsel %vm1031, %v1493, 0
    %v1731 = vsel %vm1499, %v1028, 0
    %1733 = vmatprep.subr.bf16.mxu0 0
    %1734 = vmatpush1.bf16.msra.mxu0 %v1731
    %1735 = vmatprep.subr.bf16.mxu0 0
    %1736 = vmatpush1.bf16.msra.mxu0 0
    %1737 = vmatprep.subr.bf16.mxu0 0
    %1738 = vmatpush1.bf16.msra.mxu0 0
    %1739 = vmatprep.subr.bf16.mxu0 0
    %1740 = vmatpush1.bf16.msra.mxu0 0
    %1741 = vmatprep.subr.bf16.mxu0 0
    %1742 = vmatpush1.bf16.msra.mxu0 0
    %1743 = vmatprep.subr.bf16.mxu0 0
    %1744 = vmatpush1.bf16.msra.mxu0 0
    %1745 = vmatprep.subr.bf16.mxu0 0
    %1746 = vmatpush1.bf16.msra.mxu0 0
    %1747 = vmatprep.subr.bf16.mxu0 0
    %1748 = vmatpush1.bf16.msra.mxu0 0
    %1749 = vmatprep.subr.bf16.mxu0 0
    %1750 = vmatpush1.bf16.msra.mxu0 0
    %1751 = vmatprep.subr.bf16.mxu0 0
    %1752 = vmatpush1.bf16.msra.mxu0 0
    %1753 = vmatprep.subr.bf16.mxu0 0
    %1754 = vmatpush1.bf16.msra.mxu0 0
    %1755 = vmatprep.subr.bf16.mxu0 0
    %1756 = vmatpush1.bf16.msra.mxu0 0
    %1757 = vmatprep.subr.bf16.mxu0 0
    %1758 = vmatpush1.bf16.msra.mxu0 0
    %1759 = vmatprep.subr.bf16.mxu0 0
    %1760 = vmatpush1.bf16.msra.mxu0 0
    %1761 = vmatprep.subr.bf16.mxu0 0
    %1762 = vmatpush1.bf16.msra.mxu0 0
    %1763 = vmatprep.subr.bf16.mxu0 0
    %1764 = vmatpush1.bf16.msra.mxu0 0
    %1765 = vmatprep.mubr.bf16.mxu0 0
    %1766 = vmatmul.mubr.bf16.gmra.mrb[0].mxu0 %v1728
    %v1767 = vpop.f32.mrb[0].mxu0
    %v1768 = vadd.f32 0.0, %v1767
    %v1769 = vpop.f32.mrb[0].mxu0
    %v1770 = vpop.f32.mrb[0].mxu0
    %v1771 = vpop.f32.mrb[0].mxu0
    %1772 = vdwg.mxu0
    %v1774 = vsel %vm1031, %v1494, 0
    %v1777 = vsel %vm1499, %v1029, 0
    %1779 = vmatprep.subr.bf16.mxu0 0
    %1780 = vmatpush1.bf16.msra.mxu0 %v1777
    %1781 = vmatprep.subr.bf16.mxu0 0
    %1782 = vmatpush1.bf16.msra.mxu0 0
    %1783 = vmatprep.subr.bf16.mxu0 0
    %1784 = vmatpush1.bf16.msra.mxu0 0
    %1785 = vmatprep.subr.bf16.mxu0 0
    %1786 = vmatpush1.bf16.msra.mxu0 0
    %1787 = vmatprep.subr.bf16.mxu0 0
    %1788 = vmatpush1.bf16.msra.mxu0 0
    %1789 = vmatprep.subr.bf16.mxu0 0
    %1790 = vmatpush1.bf16.msra.mxu0 0
    %1791 = vmatprep.subr.bf16.mxu0 0
    %1792 = vmatpush1.bf16.msra.mxu0 0
    %1793 = vmatprep.subr.bf16.mxu0 0
    %1794 = vmatpush1.bf16.msra.mxu0 0
    %1795 = vmatprep.subr.bf16.mxu0 0
    %1796 = vmatpush1.bf16.msra.mxu0 0
    %1797 = vmatprep.subr.bf16.mxu0 0
    %1798 = vmatpush1.bf16.msra.mxu0 0
    %1799 = vmatprep.subr.bf16.mxu0 0
    %1800 = vmatpush1.bf16.msra.mxu0 0
    %1801 = vmatprep.subr.bf16.mxu0 0
    %1802 = vmatpush1.bf16.msra.mxu0 0
    %1803 = vmatprep.subr.bf16.mxu0 0
    %1804 = vmatpush1.bf16.msra.mxu0 0
    %1805 = vmatprep.subr.bf16.mxu0 0
    %1806 = vmatpush1.bf16.msra.mxu0 0
    %1807 = vmatprep.subr.bf16.mxu0 0
    %1808 = vmatpush1.bf16.msra.mxu0 0
    %1809 = vmatprep.subr.bf16.mxu0 0
    %1810 = vmatpush1.bf16.msra.mxu0 0
    %1811 = vmatprep.mubr.bf16.mxu0 0
    %1812 = vmatmul.mubr.bf16.gmra.mrb[0].mxu0 %v1774
    %v1813 = vpop.f32.mrb[0].mxu0
    %v1814 = vadd.f32 0.0, %v1813
    %v1815 = vpop.f32.mrb[0].mxu0
    %v1816 = vpop.f32.mrb[0].mxu0
    %v1817 = vpop.f32.mrb[0].mxu0
    %1818 = vdwg.mxu0
    %v1820 = vsel %vm1031, %v1495, 0
    %v1823 = vsel %vm1499, %v1030, 0
    %1825 = vmatprep.subr.bf16.mxu0 0
    %1826 = vmatpush1.bf16.msra.mxu0 %v1823
    %1827 = vmatprep.subr.bf16.mxu0 0
    %1828 = vmatpush1.bf16.msra.mxu0 0
    %1829 = vmatprep.subr.bf16.mxu0 0
    %1830 = vmatpush1.bf16.msra.mxu0 0
    %1831 = vmatprep.subr.bf16.mxu0 0
    %1832 = vmatpush1.bf16.msra.mxu0 0
    %1833 = vmatprep.subr.bf16.mxu0 0
    %1834 = vmatpush1.bf16.msra.mxu0 0
    %1835 = vmatprep.subr.bf16.mxu0 0
    %1836 = vmatpush1.bf16.msra.mxu0 0
    %1837 = vmatprep.subr.bf16.mxu0 0
    %1838 = vmatpush1.bf16.msra.mxu0 0
    %1839 = vmatprep.subr.bf16.mxu0 0
    %1840 = vmatpush1.bf16.msra.mxu0 0
    %1841 = vmatprep.subr.bf16.mxu0 0
    %1842 = vmatpush1.bf16.msra.mxu0 0
    %1843 = vmatprep.subr.bf16.mxu0 0
    %1844 = vmatpush1.bf16.msra.mxu0 0
    %1845 = vmatprep.subr.bf16.mxu0 0
    %1846 = vmatpush1.bf16.msra.mxu0 0
    %1847 = vmatprep.subr.bf16.mxu0 0
    %1848 = vmatpush1.bf16.msra.mxu0 0
    %1849 = vmatprep.subr.bf16.mxu0 0
    %1850 = vmatpush1.bf16.msra.mxu0 0
    %1851 = vmatprep.subr.bf16.mxu0 0
    %1852 = vmatpush1.bf16.msra.mxu0 0
    %1853 = vmatprep.subr.bf16.mxu0 0
    %1854 = vmatpush1.bf16.msra.mxu0 0
    %1855 = vmatprep.subr.bf16.mxu0 0
    %1856 = vmatpush1.bf16.msra.mxu0 0
    %1857 = vmatprep.mubr.bf16.mxu0 0
    %1858 = vmatmul.mubr.bf16.gmra.mrb[0].mxu0 %v1820
    %v1859 = vpop.f32.mrb[0].mxu0
    %v1860 = vadd.f32 0.0, %v1859
    %v1861 = vpop.f32.mrb[0].mxu0
    %v1862 = vpop.f32.mrb[0].mxu0
    %v1863 = vpop.f32.mrb[0].mxu0
    %1864 = vdwg.mxu0
    %v1865 = vcombine.low %v1538, %v1630
    %v1866 = vcombine.high %v1538, %v1630
    %v1868 = vunpack.c.l.s4 1983009808
    %v1869 = vunpack.c.0.s8 %v1868
    %v1870 = vlaneseq
    %v1871 = vshrl.u32 %v1870, 7
    %v1872 = vsub.s32 %v1869, %v1871
    %v1873 = vrot.slane %v1865, %v1872
    %v1875 = vunpack.c.l.s4 1983009808
    %v1876 = vunpack.c.0.s8 %v1875
    %v1877 = vlaneseq
    %v1878 = vshrl.u32 %v1877, 7
    %v1879 = vsub.s32 %v1876, %v1878
    %v1880 = vrot.slane %v1866, %v1879
    %v1881 = vcombine.low %v1584, %v1676
    %v1882 = vcombine.high %v1584, %v1676
    %v1884 = vunpack.c.l.s4 1983009808
    %v1885 = vunpack.c.0.s8 %v1884
    %v1886 = vlaneseq
    %v1887 = vshrl.u32 %v1886, 7
    %v1888 = vsub.s32 %v1885, %v1887
    %v1889 = vrot.slane %v1881, %v1888
    %v1891 = vunpack.c.l.s4 1983009808
    %v1892 = vunpack.c.0.s8 %v1891
    %v1893 = vlaneseq
    %v1894 = vshrl.u32 %v1893, 7
    %v1895 = vsub.s32 %v1892, %v1894
    %v1896 = vrot.slane %v1882, %v1895
    %v1897 = vcombine.low %v1873, %v1889
    %v1898 = vcombine.high %v1873, %v1889
    %v1900 = vunpack.c.l.s4 1934713408
    %v1901 = vunpack.c.0.s8 %v1900
    %v1902 = vlaneseq
    %v1903 = vshrl.u32 %v1902, 7
    %v1904 = vsub.s32 %v1901, %v1903
    %v1905 = vrot.slane %v1897, %v1904
    %v1907 = vunpack.c.l.s4 1934713408
    %v1908 = vunpack.c.0.s8 %v1907
    %v1909 = vlaneseq
    %v1910 = vshrl.u32 %v1909, 7
    %v1911 = vsub.s32 %v1908, %v1910
    %v1912 = vrot.slane %v1898, %v1911
    %v1913 = vcombine.low %v1880, %v1896
    %v1914 = vcombine.high %v1880, %v1896
    %v1916 = vunpack.c.l.s4 1934713408
    %v1917 = vunpack.c.0.s8 %v1916
    %v1918 = vlaneseq
    %v1919 = vshrl.u32 %v1918, 7
    %v1920 = vsub.s32 %v1917, %v1919
    %v1921 = vrot.slane %v1913, %v1920
    %v1923 = vunpack.c.l.s4 1934713408
    %v1924 = vunpack.c.0.s8 %v1923
    %v1925 = vlaneseq
    %v1926 = vshrl.u32 %v1925, 7
    %v1927 = vsub.s32 %v1924, %v1926
    %v1928 = vrot.slane %v1914, %v1927
    %v1929 = vcombine.high %v1905, 0.0
    %v1930 = vcombine.high %v1912, 0.0
    %v1931 = vcombine.high %v1921, 0.0
    %v1932 = vcombine.high %v1928, 0.0
    %v1933 = vcombine.low %v1722, %v1814
    %v1934 = vcombine.high %v1722, %v1814
    %v1936 = vunpack.c.l.s4 1983009808
    %v1937 = vunpack.c.0.s8 %v1936
    %v1938 = vlaneseq
    %v1939 = vshrl.u32 %v1938, 7
    %v1940 = vsub.s32 %v1937, %v1939
    %v1941 = vrot.slane %v1933, %v1940
    %v1943 = vunpack.c.l.s4 1983009808
    %v1944 = vunpack.c.0.s8 %v1943
    %v1945 = vlaneseq
    %v1946 = vshrl.u32 %v1945, 7
    %v1947 = vsub.s32 %v1944, %v1946
    %v1948 = vrot.slane %v1934, %v1947
    %v1949 = vcombine.low %v1768, %v1860
    %v1950 = vcombine.high %v1768, %v1860
    %v1952 = vunpack.c.l.s4 1983009808
    %v1953 = vunpack.c.0.s8 %v1952
    %v1954 = vlaneseq
    %v1955 = vshrl.u32 %v1954, 7
    %v1956 = vsub.s32 %v1953, %v1955
    %v1957 = vrot.slane %v1949, %v1956
    %v1959 = vunpack.c.l.s4 1983009808
    %v1960 = vunpack.c.0.s8 %v1959
    %v1961 = vlaneseq
    %v1962 = vshrl.u32 %v1961, 7
    %v1963 = vsub.s32 %v1960, %v1962
    %v1964 = vrot.slane %v1950, %v1963
    %v1965 = vcombine.low %v1941, %v1957
    %v1966 = vcombine.high %v1941, %v1957
    %v1968 = vunpack.c.l.s4 1934713408
    %v1969 = vunpack.c.0.s8 %v1968
    %v1970 = vlaneseq
    %v1971 = vshrl.u32 %v1970, 7
    %v1972 = vsub.s32 %v1969, %v1971
    %v1973 = vrot.slane %v1965, %v1972
    %v1975 = vunpack.c.l.s4 1934713408
    %v1976 = vunpack.c.0.s8 %v1975
    %v1977 = vlaneseq
    %v1978 = vshrl.u32 %v1977, 7
    %v1979 = vsub.s32 %v1976, %v1978
    %v1980 = vrot.slane %v1966, %v1979
    %v1981 = vcombine.low %v1948, %v1964
    %v1982 = vcombine.high %v1948, %v1964
    %v1984 = vunpack.c.l.s4 1934713408
    %v1985 = vunpack.c.0.s8 %v1984
    %v1986 = vlaneseq
    %v1987 = vshrl.u32 %v1986, 7
    %v1988 = vsub.s32 %v1985, %v1987
    %v1989 = vrot.slane %v1981, %v1988
    %v1991 = vunpack.c.l.s4 1934713408
    %v1992 = vunpack.c.0.s8 %v1991
    %v1993 = vlaneseq
    %v1994 = vshrl.u32 %v1993, 7
    %v1995 = vsub.s32 %v1992, %v1994
    %v1996 = vrot.slane %v1982, %v1995
    %v1997 = vcombine.high %v1973, 0.0
    %v1998 = vcombine.high %v1980, 0.0
    %v1999 = vcombine.high %v1989, 0.0
    %v2000 = vcombine.high %v1996, 0.0
    %v2001 = vcombine.low %v1905, %v1912
    %v2003 = vunpack.c.l.s4 1983009808
    %v2004 = vunpack.c.0.s8 %v2003
    %v2005 = vlaneseq
    %v2006 = vshrl.u32 %v2005, 7
    %v2007 = vsub.s32 %v2004, %v2006
    %v2008 = vrot.slane %v2001, %v2007
    %v2009 = vcombine.low %v1929, %v1930
    %v2011 = vunpack.c.l.s4 1983009808
    %v2012 = vunpack.c.0.s8 %v2011
    %v2013 = vlaneseq
    %v2014 = vshrl.u32 %v2013, 7
    %v2015 = vsub.s32 %v2012, %v2014
    %v2016 = vrot.slane %v2009, %v2015
    %v2017 = vcombine.low %v1921, %v1928
    %v2019 = vunpack.c.l.s4 1983009808
    %v2020 = vunpack.c.0.s8 %v2019
    %v2021 = vlaneseq
    %v2022 = vshrl.u32 %v2021, 7
    %v2023 = vsub.s32 %v2020, %v2022
    %v2024 = vrot.slane %v2017, %v2023
    %v2025 = vcombine.low %v1931, %v1932
    %v2027 = vunpack.c.l.s4 1983009808
    %v2028 = vunpack.c.0.s8 %v2027
    %v2029 = vlaneseq
    %v2030 = vshrl.u32 %v2029, 7
    %v2031 = vsub.s32 %v2028, %v2030
    %v2032 = vrot.slane %v2025, %v2031
    %v2033 = vcombine.low %v2008, %v2016
    %v2034 = vcombine.high %v2008, %v2016
    %v2036 = vunpack.c.l.s4 1934713408
    %v2037 = vunpack.c.0.s8 %v2036
    %v2038 = vlaneseq
    %v2039 = vshrl.u32 %v2038, 7
    %v2040 = vsub.s32 %v2037, %v2039
    %v2041 = vrot.slane %v2033, %v2040
    %v2043 = vunpack.c.l.s4 1934713408
    %v2044 = vunpack.c.0.s8 %v2043
    %v2045 = vlaneseq
    %v2046 = vshrl.u32 %v2045, 7
    %v2047 = vsub.s32 %v2044, %v2046
    %v2048 = vrot.slane %v2034, %v2047
    %v2049 = vcombine.low %v2024, %v2032
    %v2050 = vcombine.high %v2024, %v2032
    %v2052 = vunpack.c.l.s4 1934713408
    %v2053 = vunpack.c.0.s8 %v2052
    %v2054 = vlaneseq
    %v2055 = vshrl.u32 %v2054, 7
    %v2056 = vsub.s32 %v2053, %v2055
    %v2057 = vrot.slane %v2049, %v2056
    %v2059 = vunpack.c.l.s4 1934713408
    %v2060 = vunpack.c.0.s8 %v2059
    %v2061 = vlaneseq
    %v2062 = vshrl.u32 %v2061, 7
    %v2063 = vsub.s32 %v2060, %v2062
    %v2064 = vrot.slane %v2050, %v2063
    %v2065 = vcombine.low %v2041, %v2057
    %v2066 = vcombine.high %v2041, %v2057
    %v2067 = vcombine.low %v2048, %v2064
    %v2068 = vcombine.high %v2048, %v2064
    %v2069 = vcombine.low %v1973, %v1980
    %v2071 = vunpack.c.l.s4 1983009808
    %v2072 = vunpack.c.0.s8 %v2071
    %v2073 = vlaneseq
    %v2074 = vshrl.u32 %v2073, 7
    %v2075 = vsub.s32 %v2072, %v2074
    %v2076 = vrot.slane %v2069, %v2075
    %v2077 = vcombine.low %v1997, %v1998
    %v2079 = vunpack.c.l.s4 1983009808
    %v2080 = vunpack.c.0.s8 %v2079
    %v2081 = vlaneseq
    %v2082 = vshrl.u32 %v2081, 7
    %v2083 = vsub.s32 %v2080, %v2082
    %v2084 = vrot.slane %v2077, %v2083
    %v2085 = vcombine.low %v1989, %v1996
    %v2087 = vunpack.c.l.s4 1983009808
    %v2088 = vunpack.c.0.s8 %v2087
    %v2089 = vlaneseq
    %v2090 = vshrl.u32 %v2089, 7
    %v2091 = vsub.s32 %v2088, %v2090
    %v2092 = vrot.slane %v2085, %v2091
    %v2093 = vcombine.low %v1999, %v2000
    %v2095 = vunpack.c.l.s4 1983009808
    %v2096 = vunpack.c.0.s8 %v2095
    %v2097 = vlaneseq
    %v2098 = vshrl.u32 %v2097, 7
    %v2099 = vsub.s32 %v2096, %v2098
    %v2100 = vrot.slane %v2093, %v2099
    %v2101 = vcombine.low %v2076, %v2084
    %v2102 = vcombine.high %v2076, %v2084
    %v2104 = vunpack.c.l.s4 1934713408
    %v2105 = vunpack.c.0.s8 %v2104
    %v2106 = vlaneseq
    %v2107 = vshrl.u32 %v2106, 7
    %v2108 = vsub.s32 %v2105, %v2107
    %v2109 = vrot.slane %v2101, %v2108
    %v2111 = vunpack.c.l.s4 1934713408
    %v2112 = vunpack.c.0.s8 %v2111
    %v2113 = vlaneseq
    %v2114 = vshrl.u32 %v2113, 7
    %v2115 = vsub.s32 %v2112, %v2114
    %v2116 = vrot.slane %v2102, %v2115
    %v2117 = vcombine.low %v2092, %v2100
    %v2118 = vcombine.high %v2092, %v2100
    %v2120 = vunpack.c.l.s4 1934713408
    %v2121 = vunpack.c.0.s8 %v2120
    %v2122 = vlaneseq
    %v2123 = vshrl.u32 %v2122, 7
    %v2124 = vsub.s32 %v2121, %v2123
    %v2125 = vrot.slane %v2117, %v2124
    %v2127 = vunpack.c.l.s4 1934713408
    %v2128 = vunpack.c.0.s8 %v2127
    %v2129 = vlaneseq
    %v2130 = vshrl.u32 %v2129, 7
    %v2131 = vsub.s32 %v2128, %v2130
    %v2132 = vrot.slane %v2118, %v2131
    %v2133 = vcombine.low %v2109, %v2125
    %v2134 = vcombine.high %v2109, %v2125
    %v2135 = vcombine.low %v2116, %v2132
    %v2136 = vcombine.high %v2116, %v2132
    %2139 = vrot.lane.b32.xlu0 %v2066, 8
    %v2140 = vpop.permute.xlu0 %2139
    %2141 = vrot.lane.b32.xlu0 %v2134, 8
    %v2142 = vpop.permute.xlu0 %2141
    %2147 = vrot.lane.b32.xlu0 %v2067, 16
    %v2148 = vpop.permute.xlu0 %2147
    %2149 = vrot.lane.b32.xlu0 %v2135, 16
    %v2150 = vpop.permute.xlu0 %2149
    %2155 = vrot.lane.b32.xlu0 %v2068, 24
    %v2156 = vpop.permute.xlu0 %2155
    %2157 = vrot.lane.b32.xlu0 %v2136, 24
    %v2158 = vpop.permute.xlu0 %2157
    %v2161 = vsel %vm1031, %v2065, %v2140
    %v2162 = vsel %vm1031, %v2133, %v2142
    %vm2163 = vcmask 130048
    %v2164 = vsel %vm2163, %v2161, %v2148
    %v2165 = vsel %vm2163, %v2162, %v2150
    %vm2166 = vcmask 195584
    %v2167 = vsel %vm2166, %v2164, %v2156
    %v2168 = vsel %vm2166, %v2165, %v2158
    %v2169 = vpack.c.bf16 %v2168, %v2167
    %v2170 = vld [vmem:[%s3] sm:$0xf]
    %v2171 = vld [vmem:[%s3 + $0x4] sm:$0xf]
    %v2172 = vld [vmem:[%s3 + $0x8] sm:$0xf]
    %v2173 = vld [vmem:[%s3 + $0xc] sm:$0xf]
    %v2174 = vld [vmem:[%s4] sm:$0x1]
    %v2176 = vlaneseq
    %v2177 = vshrl.u32 %v2176, 7
    %v2178 = vsub.s32 0, %v2177
    %v2179 = vrot.slane %v2174, %v2178
    %v2185 = vunpack.c.l.b16 %v2170
    %v2186 = vunpack.c.l.b16 %v2171
    %v2187 = vunpack.c.l.b16 %v2172
    %v2188 = vunpack.c.l.b16 %v2173
    %v2189 = vpack.c.b16 %v2186, %v2185
    %v2190 = vpack.c.b16 %v2188, %v2187
    %v2194 = vsel %vm78, %v2169, 0
    %2196 = vmatprep.subr.bf16.mxu0 0
    %2197 = vmatpush1.bf16.msra.mxu0 %v2189
    %2198 = vmatprep.subr.bf16.mxu0 0
    %2199 = vmatpush1.bf16.msra.mxu0 %v2190
    %2200 = vmatprep.subr.bf16.mxu0 0
    %2201 = vmatpush1.bf16.msra.mxu0 0
    %2202 = vmatprep.subr.bf16.mxu0 0
    %2203 = vmatpush1.bf16.msra.mxu0 0
    %2204 = vmatprep.subr.bf16.mxu0 0
    %2205 = vmatpush1.bf16.msra.mxu0 0
    %2206 = vmatprep.subr.bf16.mxu0 0
    %2207 = vmatpush1.bf16.msra.mxu0 0
    %2208 = vmatprep.subr.bf16.mxu0 0
    %2209 = vmatpush1.bf16.msra.mxu0 0
    %2210 = vmatprep.subr.bf16.mxu0 0
    %2211 = vmatpush1.bf16.msra.mxu0 0
    %2212 = vmatprep.subr.bf16.mxu0 0
    %2213 = vmatpush1.bf16.msra.mxu0 0
    %2214 = vmatprep.subr.bf16.mxu0 0
    %2215 = vmatpush1.bf16.msra.mxu0 0
    %2216 = vmatprep.subr.bf16.mxu0 0
    %2217 = vmatpush1.bf16.msra.mxu0 0
    %2218 = vmatprep.subr.bf16.mxu0 0
    %2219 = vmatpush1.bf16.msra.mxu0 0
    %2220 = vmatprep.subr.bf16.mxu0 0
    %2221 = vmatpush1.bf16.msra.mxu0 0
    %2222 = vmatprep.subr.bf16.mxu0 0
    %2223 = vmatpush1.bf16.msra.mxu0 0
    %2224 = vmatprep.subr.bf16.mxu0 0
    %2225 = vmatpush1.bf16.msra.mxu0 0
    %2226 = vmatprep.subr.bf16.mxu0 0
    %2227 = vmatpush1.bf16.msra.mxu0 0
    %2228 = vmatprep.mubr.bf16.mxu0 0
    %2229 = vmatmul.mubr.bf16.gmra.mrb[0].mxu0 %v2194
    %v2230 = vpop.f32.mrb[0].mxu0
    %v2231 = vadd.f32 %v2179, %v2230
    %v2232 = vpop.f32.mrb[0].mxu0
    %v2233 = vpop.f32.mrb[0].mxu0
    %v2234 = vadd.f32 %v2179, %v2233
    %v2235 = vpop.f32.mrb[0].mxu0
    %2236 = vdwg.mxu0
    %v2237 = vadd.f32 %v52, %v2231
    %v2238 = vadd.f32 %v53, %v2234
    %v2239 = vsel %vm78, %v2237, 0.0
    %2240 = vadd.xlane.f32.xlu0 %v2239
    %v2241 = vpop.xlane.xlu0 %2240
    %v2242 = vsel %vm78, %v2238, 0.0
    %2243 = vadd.xlane.f32.xlu0 %v2242
    %v2244 = vpop.xlane.xlu0 %2243
    %v2245 = vrcp.pop 32.0
    %v2246 = vmul.f32 %v2241, %v2245
    %v2247 = vmul.f32 %v2244, %v2245
    %v2248 = vsub.f32 %v2237, %v2246
    %v2249 = vsub.f32 %v2238, %v2247
    %v2250 = vmul.f32 %v2248, %v2248
    %v2251 = vmul.f32 %v2249, %v2249
    %v2252 = vsel %vm78, %v2250, 0.0
    %2253 = vadd.xlane.f32.xlu0 %v2252
    %v2254 = vpop.xlane.xlu0 %2253
    %v2255 = vsel %vm78, %v2251, 0.0
    %2256 = vadd.xlane.f32.xlu0 %v2255
    %v2257 = vpop.xlane.xlu0 %2256
    %v2258 = vmul.f32 %v2254, %v2245
    %v2259 = vmul.f32 %v2257, %v2245
    %v2260 = vadd.f32 %v2258, 1e-05
    %v2261 = vadd.f32 %v2259, 1e-05
    %v2262 = vrsqrt.pop %v2260
    %v2263 = vrsqrt.pop %v2261
    %v2264 = vmul.f32 %v2248, %v2262
    %v2265 = vmul.f32 %v2249, %v2263
    %v2266 = vld [vmem:[%s5] sm:$0x1]
    %v2268 = vlaneseq
    %v2269 = vshrl.u32 %v2268, 7
    %v2270 = vsub.s32 0, %v2269
    %v2271 = vrot.slane %v2266, %v2270
    %v2273 = vmul.f32 %v2264, %v2271
    %v2274 = vmul.f32 %v2265, %v2271
    %v2275 = vld [vmem:[%s6] sm:$0x1]
    %v2277 = vlaneseq
    %v2278 = vshrl.u32 %v2277, 7
    %v2279 = vsub.s32 0, %v2278
    %v2280 = vrot.slane %v2275, %v2279
    %v2282 = vadd.f32 %v2273, %v2280
    %v2283 = vadd.f32 %v2274, %v2280
    %v2284 = vpack.c.bf16 %v2283, %v2282
    %v2285 = vld [vmem:[%s7] sm:$0xff]
    %v2286 = vld [vmem:[%s7 + $0x8] sm:$0xff]
    %v2287 = vld [vmem:[%s7 + $0x10] sm:$0xff]
    %v2288 = vld [vmem:[%s7 + $0x18] sm:$0xff]
    %v2289 = vld [vmem:[%s7 + $0x20] sm:$0xff]
    %v2290 = vld [vmem:[%s7 + $0x28] sm:$0xff]
    %v2291 = vld [vmem:[%s7 + $0x30] sm:$0xff]
    %v2292 = vld [vmem:[%s7 + $0x38] sm:$0xff]
    %v2293 = vld [vmem:[%s7 + $0x40] sm:$0xff]
    %v2294 = vld [vmem:[%s7 + $0x48] sm:$0xff]
    %v2295 = vld [vmem:[%s7 + $0x50] sm:$0xff]
    %v2296 = vld [vmem:[%s7 + $0x58] sm:$0xff]
    %v2297 = vld [vmem:[%s7 + $0x60] sm:$0xff]
    %v2298 = vld [vmem:[%s7 + $0x68] sm:$0xff]
    %v2299 = vld [vmem:[%s7 + $0x70] sm:$0xff]
    %v2300 = vld [vmem:[%s7 + $0x78] sm:$0xff]
    %v2301 = vld [vmem:[%s7 + $0x80] sm:$0xff]
    %v2302 = vld [vmem:[%s7 + $0x88] sm:$0xff]
    %v2303 = vld [vmem:[%s7 + $0x90] sm:$0xff]
    %v2304 = vld [vmem:[%s7 + $0x98] sm:$0xff]
    %v2305 = vld [vmem:[%s7 + $0xa0] sm:$0xff]
    %v2306 = vld [vmem:[%s7 + $0xa8] sm:$0xff]
    %v2307 = vld [vmem:[%s7 + $0xb0] sm:$0xff]
    %v2308 = vld [vmem:[%s7 + $0xb8] sm:$0xff]
    %v2309 = vld [vmem:[%s7 + $0xc0] sm:$0xff]
    %v2310 = vld [vmem:[%s7 + $0xc8] sm:$0xff]
    %v2311 = vld [vmem:[%s7 + $0xd0] sm:$0xff]
    %v2312 = vld [vmem:[%s7 + $0xd8] sm:$0xff]
    %v2313 = vld [vmem:[%s7 + $0xe0] sm:$0xff]
    %v2314 = vld [vmem:[%s7 + $0xe8] sm:$0xff]
    %v2315 = vld [vmem:[%s7 + $0xf0] sm:$0xff]
    %v2316 = vld [vmem:[%s7 + $0xf8] sm:$0xff]
    %v2317 = vld [vmem:[%s8] sm:$0xff]
    %v2318 = vld [vmem:[%s8 + $0x8] sm:$0xff]
    %v2321 = vlaneseq
    %v2322 = vshrl.u32 %v2321, 7
    %v2323 = vsub.s32 0, %v2322
    %v2324 = vrot.slane %v2317, %v2323
    %v2325 = vlaneseq
    %v2326 = vshrl.u32 %v2325, 7
    %v2327 = vsub.s32 1, %v2326
    %v2328 = vrot.slane %v2317, %v2327
    %v2329 = vlaneseq
    %v2330 = vshrl.u32 %v2329, 7
    %v2331 = vsub.s32 2, %v2330
    %v2332 = vrot.slane %v2317, %v2331
    %v2333 = vlaneseq
    %v2334 = vshrl.u32 %v2333, 7
    %v2335 = vsub.s32 3, %v2334
    %v2336 = vrot.slane %v2317, %v2335
    %v2337 = vlaneseq
    %v2338 = vshrl.u32 %v2337, 7
    %v2339 = vsub.s32 4, %v2338
    %v2340 = vrot.slane %v2317, %v2339
    %v2341 = vlaneseq
    %v2342 = vshrl.u32 %v2341, 7
    %v2343 = vsub.s32 5, %v2342
    %v2344 = vrot.slane %v2317, %v2343
    %v2345 = vlaneseq
    %v2346 = vshrl.u32 %v2345, 7
    %v2347 = vsub.s32 6, %v2346
    %v2348 = vrot.slane %v2317, %v2347
    %v2349 = vlaneseq
    %v2350 = vshrl.u32 %v2349, 7
    %v2351 = vsub.s32 7, %v2350
    %v2352 = vrot.slane %v2317, %v2351
    %v2353 = vlaneseq
    %v2354 = vshrl.u32 %v2353, 7
    %v2355 = vsub.s32 0, %v2354
    %v2356 = vrot.slane %v2318, %v2355
    %v2357 = vlaneseq
    %v2358 = vshrl.u32 %v2357, 7
    %v2359 = vsub.s32 1, %v2358
    %v2360 = vrot.slane %v2318, %v2359
    %v2361 = vlaneseq
    %v2362 = vshrl.u32 %v2361, 7
    %v2363 = vsub.s32 2, %v2362
    %v2364 = vrot.slane %v2318, %v2363
    %v2365 = vlaneseq
    %v2366 = vshrl.u32 %v2365, 7
    %v2367 = vsub.s32 3, %v2366
    %v2368 = vrot.slane %v2318, %v2367
    %v2369 = vlaneseq
    %v2370 = vshrl.u32 %v2369, 7
    %v2371 = vsub.s32 4, %v2370
    %v2372 = vrot.slane %v2318, %v2371
    %v2373 = vlaneseq
    %v2374 = vshrl.u32 %v2373, 7
    %v2375 = vsub.s32 5, %v2374
    %v2376 = vrot.slane %v2318, %v2375
    %v2377 = vlaneseq
    %v2378 = vshrl.u32 %v2377, 7
    %v2379 = vsub.s32 6, %v2378
    %v2380 = vrot.slane %v2318, %v2379
    %v2381 = vlaneseq
    %v2382 = vshrl.u32 %v2381, 7
    %v2383 = vsub.s32 7, %v2382
    %v2384 = vrot.slane %v2318, %v2383
    %v2433 = vunpack.c.l.b16 %v2285
    %v2434 = vunpack.c.h.b16 %v2285
    %v2435 = vunpack.c.l.b16 %v2286
    %v2436 = vunpack.c.h.b16 %v2286
    %v2437 = vunpack.c.l.b16 %v2287
    %v2438 = vunpack.c.h.b16 %v2287
    %v2439 = vunpack.c.l.b16 %v2288
    %v2440 = vunpack.c.h.b16 %v2288
    %v2441 = vunpack.c.l.b16 %v2289
    %v2442 = vunpack.c.h.b16 %v2289
    %v2443 = vunpack.c.l.b16 %v2290
    %v2444 = vunpack.c.h.b16 %v2290
    %v2445 = vunpack.c.l.b16 %v2291
    %v2446 = vunpack.c.h.b16 %v2291
    %v2447 = vunpack.c.l.b16 %v2292
    %v2448 = vunpack.c.h.b16 %v2292
    %v2449 = vunpack.c.l.b16 %v2293
    %v2450 = vunpack.c.h.b16 %v2293
    %v2451 = vunpack.c.l.b16 %v2294
    %v2452 = vunpack.c.h.b16 %v2294
    %v2453 = vunpack.c.l.b16 %v2295
    %v2454 = vunpack.c.h.b16 %v2295
    %v2455 = vunpack.c.l.b16 %v2296
    %v2456 = vunpack.c.h.b16 %v2296
    %v2457 = vunpack.c.l.b16 %v2297
    %v2458 = vunpack.c.h.b16 %v2297
    %v2459 = vunpack.c.l.b16 %v2298
    %v2460 = vunpack.c.h.b16 %v2298
    %v2461 = vunpack.c.l.b16 %v2299
    %v2462 = vunpack.c.h.b16 %v2299
    %v2463 = vunpack.c.l.b16 %v2300
    %v2464 = vunpack.c.h.b16 %v2300
    %v2465 = vunpack.c.l.b16 %v2301
    %v2466 = vunpack.c.h.b16 %v2301
    %v2467 = vunpack.c.l.b16 %v2302
    %v2468 = vunpack.c.h.b16 %v2302
    %v2469 = vunpack.c.l.b16 %v2303
    %v2470 = vunpack.c.h.b16 %v2303
    %v2471 = vunpack.c.l.b16 %v2304
    %v2472 = vunpack.c.h.b16 %v2304
    %v2473 = vunpack.c.l.b16 %v2305
    %v2474 = vunpack.c.h.b16 %v2305
    %v2475 = vunpack.c.l.b16 %v2306
    %v2476 = vunpack.c.h.b16 %v2306
    %v2477 = vunpack.c.l.b16 %v2307
    %v2478 = vunpack.c.h.b16 %v2307
    %v2479 = vunpack.c.l.b16 %v2308
    %v2480 = vunpack.c.h.b16 %v2308
    %v2481 = vunpack.c.l.b16 %v2309
    %v2482 = vunpack.c.h.b16 %v2309
    %v2483 = vunpack.c.l.b16 %v2310
    %v2484 = vunpack.c.h.b16 %v2310
    %v2485 = vunpack.c.l.b16 %v2311
    %v2486 = vunpack.c.h.b16 %v2311
    %v2487 = vunpack.c.l.b16 %v2312
    %v2488 = vunpack.c.h.b16 %v2312
    %v2489 = vunpack.c.l.b16 %v2313
    %v2490 = vunpack.c.h.b16 %v2313
    %v2491 = vunpack.c.l.b16 %v2314
    %v2492 = vunpack.c.h.b16 %v2314
    %v2493 = vunpack.c.l.b16 %v2315
    %v2494 = vunpack.c.h.b16 %v2315
    %v2495 = vunpack.c.l.b16 %v2316
    %v2496 = vunpack.c.h.b16 %v2316
    %v2497 = vpack.c.b16 %v2449, %v2433
    %v2498 = vpack.c.b16 %v2450, %v2434
    %v2499 = vpack.c.b16 %v2451, %v2435
    %v2500 = vpack.c.b16 %v2452, %v2436
    %v2501 = vpack.c.b16 %v2453, %v2437
    %v2502 = vpack.c.b16 %v2454, %v2438
    %v2503 = vpack.c.b16 %v2455, %v2439
    %v2504 = vpack.c.b16 %v2456, %v2440
    %v2505 = vpack.c.b16 %v2457, %v2441
    %v2506 = vpack.c.b16 %v2458, %v2442
    %v2507 = vpack.c.b16 %v2459, %v2443
    %v2508 = vpack.c.b16 %v2460, %v2444
    %v2509 = vpack.c.b16 %v2461, %v2445
    %v2510 = vpack.c.b16 %v2462, %v2446
    %v2511 = vpack.c.b16 %v2463, %v2447
    %v2512 = vpack.c.b16 %v2464, %v2448
    %v2513 = vpack.c.b16 %v2481, %v2465
    %v2514 = vpack.c.b16 %v2482, %v2466
    %v2515 = vpack.c.b16 %v2483, %v2467
    %v2516 = vpack.c.b16 %v2484, %v2468
    %v2517 = vpack.c.b16 %v2485, %v2469
    %v2518 = vpack.c.b16 %v2486, %v2470
    %v2519 = vpack.c.b16 %v2487, %v2471
    %v2520 = vpack.c.b16 %v2488, %v2472
    %v2521 = vpack.c.b16 %v2489, %v2473
    %v2522 = vpack.c.b16 %v2490, %v2474
    %v2523 = vpack.c.b16 %v2491, %v2475
    %v2524 = vpack.c.b16 %v2492, %v2476
    %v2525 = vpack.c.b16 %v2493, %v2477
    %v2526 = vpack.c.b16 %v2494, %v2478
    %v2527 = vpack.c.b16 %v2495, %v2479
    %v2528 = vpack.c.b16 %v2496, %v2480
    %v2562 = vsel %vm78, %v2284, 0
    %2564 = vmatprep.subr.bf16.mxu0 %v2498
    %2565 = vmatpush1.bf16.msra.mxu0 %v2497
    %2566 = vmatprep.subr.bf16.mxu0 %v2514
    %2567 = vmatpush1.bf16.msra.mxu0 %v2513
    %2568 = vmatprep.subr.bf16.mxu0 0
    %2569 = vmatpush1.bf16.msra.mxu0 0
    %2570 = vmatprep.subr.bf16.mxu0 0
    %2571 = vmatpush1.bf16.msra.mxu0 0
    %2572 = vmatprep.subr.bf16.mxu0 0
    %2573 = vmatpush1.bf16.msra.mxu0 0
    %2574 = vmatprep.subr.bf16.mxu0 0
    %2575 = vmatpush1.bf16.msra.mxu0 0
    %2576 = vmatprep.subr.bf16.mxu0 0
    %2577 = vmatpush1.bf16.msra.mxu0 0
    %2578 = vmatprep.subr.bf16.mxu0 0
    %2579 = vmatpush1.bf16.msra.mxu0 0
    %2580 = vmatprep.subr.bf16.mxu0 0
    %2581 = vmatpush1.bf16.msra.mxu0 0
    %2582 = vmatprep.subr.bf16.mxu0 0
    %2583 = vmatpush1.bf16.msra.mxu0 0
    %2584 = vmatprep.subr.bf16.mxu0 0
    %2585 = vmatpush1.bf16.msra.mxu0 0
    %2586 = vmatprep.subr.bf16.mxu0 0
    %2587 = vmatpush1.bf16.msra.mxu0 0
    %2588 = vmatprep.subr.bf16.mxu0 0
    %2589 = vmatpush1.bf16.msra.mxu0 0
    %2590 = vmatprep.subr.bf16.mxu0 0
    %2591 = vmatpush1.bf16.msra.mxu0 0
    %2592 = vmatprep.subr.bf16.mxu0 0
    %2593 = vmatpush1.bf16.msra.mxu0 0
    %2594 = vmatprep.subr.bf16.mxu0 0
    %2595 = vmatpush1.bf16.msra.mxu0 0
    %2596 = vmatprep.mubr.bf16.mxu0 0
    %2597 = vmatmul.mubr.bf16.gmra.mrb[0].mxu0 %v2562
    %v2598 = vpop.f32.mrb[0].mxu0
    %v2599 = vadd.f32 %v2324, %v2598
    %v2600 = vpop.f32.mrb[0].mxu0
    %v2601 = vadd.f32 %v2328, %v2600
    %v2602 = vpop.f32.mrb[0].mxu0
    %v2603 = vadd.f32 %v2324, %v2602
    %v2604 = vpop.f32.mrb[0].mxu0
    %v2605 = vadd.f32 %v2328, %v2604
    %2606 = vdwg.mxu0
    %2607 = vmatprep.subr.bf16.mxu0 %v2500
    %2608 = vmatpush1.bf16.msra.mxu0 %v2499
    %2609 = vmatprep.subr.bf16.mxu0 %v2516
    %2610 = vmatpush1.bf16.msra.mxu0 %v2515
    %2611 = vmatprep.subr.bf16.mxu0 0
    %2612 = vmatpush1.bf16.msra.mxu0 0
    %2613 = vmatprep.subr.bf16.mxu0 0
    %2614 = vmatpush1.bf16.msra.mxu0 0
    %2615 = vmatprep.subr.bf16.mxu0 0
    %2616 = vmatpush1.bf16.msra.mxu0 0
    %2617 = vmatprep.subr.bf16.mxu0 0
    %2618 = vmatpush1.bf16.msra.mxu0 0
    %2619 = vmatprep.subr.bf16.mxu0 0
    %2620 = vmatpush1.bf16.msra.mxu0 0
    %2621 = vmatprep.subr.bf16.mxu0 0
    %2622 = vmatpush1.bf16.msra.mxu0 0
    %2623 = vmatprep.subr.bf16.mxu0 0
    %2624 = vmatpush1.bf16.msra.mxu0 0
    %2625 = vmatprep.subr.bf16.mxu0 0
    %2626 = vmatpush1.bf16.msra.mxu0 0
    %2627 = vmatprep.subr.bf16.mxu0 0
    %2628 = vmatpush1.bf16.msra.mxu0 0
    %2629 = vmatprep.subr.bf16.mxu0 0
    %2630 = vmatpush1.bf16.msra.mxu0 0
    %2631 = vmatprep.subr.bf16.mxu0 0
    %2632 = vmatpush1.bf16.msra.mxu0 0
    %2633 = vmatprep.subr.bf16.mxu0 0
    %2634 = vmatpush1.bf16.msra.mxu0 0
    %2635 = vmatprep.subr.bf16.mxu0 0
    %2636 = vmatpush1.bf16.msra.mxu0 0
    %2637 = vmatprep.subr.bf16.mxu0 0
    %2638 = vmatpush1.bf16.msra.mxu0 0
    %2639 = vmatprep.mubr.bf16.mxu0 0
    %2640 = vmatmul.mubr.bf16.gmra.mrb[0].mxu0 %v2562
    %v2641 = vpop.f32.mrb[0].mxu0
    %v2642 = vadd.f32 %v2332, %v2641
    %v2643 = vpop.f32.mrb[0].mxu0
    %v2644 = vadd.f32 %v2336, %v2643
    %v2645 = vpop.f32.mrb[0].mxu0
    %v2646 = vadd.f32 %v2332, %v2645
    %v2647 = vpop.f32.mrb[0].mxu0
    %v2648 = vadd.f32 %v2336, %v2647
    %2649 = vdwg.mxu0
    %2650 = vmatprep.subr.bf16.mxu0 %v2502
    %2651 = vmatpush1.bf16.msra.mxu0 %v2501
    %2652 = vmatprep.subr.bf16.mxu0 %v2518
    %2653 = vmatpush1.bf16.msra.mxu0 %v2517
    %2654 = vmatprep.subr.bf16.mxu0 0
    %2655 = vmatpush1.bf16.msra.mxu0 0
    %2656 = vmatprep.subr.bf16.mxu0 0
    %2657 = vmatpush1.bf16.msra.mxu0 0
    %2658 = vmatprep.subr.bf16.mxu0 0
    %2659 = vmatpush1.bf16.msra.mxu0 0
    %2660 = vmatprep.subr.bf16.mxu0 0
    %2661 = vmatpush1.bf16.msra.mxu0 0
    %2662 = vmatprep.subr.bf16.mxu0 0
    %2663 = vmatpush1.bf16.msra.mxu0 0
    %2664 = vmatprep.subr.bf16.mxu0 0
    %2665 = vmatpush1.bf16.msra.mxu0 0
    %2666 = vmatprep.subr.bf16.mxu0 0
    %2667 = vmatpush1.bf16.msra.mxu0 0
    %2668 = vmatprep.subr.bf16.mxu0 0
    %2669 = vmatpush1.bf16.msra.mxu0 0
    %2670 = vmatprep.subr.bf16.mxu0 0
    %2671 = vmatpush1.bf16.msra.mxu0 0
    %2672 = vmatprep.subr.bf16.mxu0 0
    %2673 = vmatpush1.bf16.msra.mxu0 0
    %2674 = vmatprep.subr.bf16.mxu0 0
    %2675 = vmatpush1.bf16.msra.mxu0 0
    %2676 = vmatprep.subr.bf16.mxu0 0
    %2677 = vmatpush1.bf16.msra.mxu0 0
    %2678 = vmatprep.subr.bf16.mxu0 0
    %2679 = vmatpush1.bf16.msra.mxu0 0
    %2680 = vmatprep.subr.bf16.mxu0 0
    %2681 = vmatpush1.bf16.msra.mxu0 0
    %2682 = vmatprep.mubr.bf16.mxu0 0
    %2683 = vmatmul.mubr.bf16.gmra.mrb[0].mxu0 %v2562
    %v2684 = vpop.f32.mrb[0].mxu0
    %v2685 = vadd.f32 %v2340, %v2684
    %v2686 = vpop.f32.mrb[0].mxu0
    %v2687 = vadd.f32 %v2344, %v2686
    %v2688 = vpop.f32.mrb[0].mxu0
    %v2689 = vadd.f32 %v2340, %v2688
    %v2690 = vpop.f32.mrb[0].mxu0
    %v2691 = vadd.f32 %v2344, %v2690
    %2692 = vdwg.mxu0
    %2693 = vmatprep.subr.bf16.mxu0 %v2504
    %2694 = vmatpush1.bf16.msra.mxu0 %v2503
    %2695 = vmatprep.subr.bf16.mxu0 %v2520
    %2696 = vmatpush1.bf16.msra.mxu0 %v2519
    %2697 = vmatprep.subr.bf16.mxu0 0
    %2698 = vmatpush1.bf16.msra.mxu0 0
    %2699 = vmatprep.subr.bf16.mxu0 0
    %2700 = vmatpush1.bf16.msra.mxu0 0
    %2701 = vmatprep.subr.bf16.mxu0 0
    %2702 = vmatpush1.bf16.msra.mxu0 0
    %2703 = vmatprep.subr.bf16.mxu0 0
    %2704 = vmatpush1.bf16.msra.mxu0 0
    %2705 = vmatprep.subr.bf16.mxu0 0
    %2706 = vmatpush1.bf16.msra.mxu0 0
    %2707 = vmatprep.subr.bf16.mxu0 0
    %2708 = vmatpush1.bf16.msra.mxu0 0
    %2709 = vmatprep.subr.bf16.mxu0 0
    %2710 = vmatpush1.bf16.msra.mxu0 0
    %2711 = vmatprep.subr.bf16.mxu0 0
    %2712 = vmatpush1.bf16.msra.mxu0 0
    %2713 = vmatprep.subr.bf16.mxu0 0
    %2714 = vmatpush1.bf16.msra.mxu0 0
    %2715 = vmatprep.subr.bf16.mxu0 0
    %2716 = vmatpush1.bf16.msra.mxu0 0
    %2717 = vmatprep.subr.bf16.mxu0 0
    %2718 = vmatpush1.bf16.msra.mxu0 0
    %2719 = vmatprep.subr.bf16.mxu0 0
    %2720 = vmatpush1.bf16.msra.mxu0 0
    %2721 = vmatprep.subr.bf16.mxu0 0
    %2722 = vmatpush1.bf16.msra.mxu0 0
    %2723 = vmatprep.subr.bf16.mxu0 0
    %2724 = vmatpush1.bf16.msra.mxu0 0
    %2725 = vmatprep.mubr.bf16.mxu0 0
    %2726 = vmatmul.mubr.bf16.gmra.mrb[0].mxu0 %v2562
    %v2727 = vpop.f32.mrb[0].mxu0
    %v2728 = vadd.f32 %v2348, %v2727
    %v2729 = vpop.f32.mrb[0].mxu0
    %v2730 = vadd.f32 %v2352, %v2729
    %v2731 = vpop.f32.mrb[0].mxu0
    %v2732 = vadd.f32 %v2348, %v2731
    %v2733 = vpop.f32.mrb[0].mxu0
    %v2734 = vadd.f32 %v2352, %v2733
    %2735 = vdwg.mxu0
    %2736 = vmatprep.subr.bf16.mxu0 %v2506
    %2737 = vmatpush1.bf16.msra.mxu0 %v2505
    %2738 = vmatprep.subr.bf16.mxu0 %v2522
    %2739 = vmatpush1.bf16.msra.mxu0 %v2521
    %2740 = vmatprep.subr.bf16.mxu0 0
    %2741 = vmatpush1.bf16.msra.mxu0 0
    %2742 = vmatprep.subr.bf16.mxu0 0
    %2743 = vmatpush1.bf16.msra.mxu0 0
    %2744 = vmatprep.subr.bf16.mxu0 0
    %2745 = vmatpush1.bf16.msra.mxu0 0
    %2746 = vmatprep.subr.bf16.mxu0 0
    %2747 = vmatpush1.bf16.msra.mxu0 0
    %2748 = vmatprep.subr.bf16.mxu0 0
    %2749 = vmatpush1.bf16.msra.mxu0 0
    %2750 = vmatprep.subr.bf16.mxu0 0
    %2751 = vmatpush1.bf16.msra.mxu0 0
    %2752 = vmatprep.subr.bf16.mxu0 0
    %2753 = vmatpush1.bf16.msra.mxu0 0
    %2754 = vmatprep.subr.bf16.mxu0 0
    %2755 = vmatpush1.bf16.msra.mxu0 0
    %2756 = vmatprep.subr.bf16.mxu0 0
    %2757 = vmatpush1.bf16.msra.mxu0 0
    %2758 = vmatprep.subr.bf16.mxu0 0
    %2759 = vmatpush1.bf16.msra.mxu0 0
    %2760 = vmatprep.subr.bf16.mxu0 0
    %2761 = vmatpush1.bf16.msra.mxu0 0
    %2762 = vmatprep.subr.bf16.mxu0 0
    %2763 = vmatpush1.bf16.msra.mxu0 0
    %2764 = vmatprep.subr.bf16.mxu0 0
    %2765 = vmatpush1.bf16.msra.mxu0 0
    %2766 = vmatprep.subr.bf16.mxu0 0
    %2767 = vmatpush1.bf16.msra.mxu0 0
    %2768 = vmatprep.mubr.bf16.mxu0 0
    %2769 = vmatmul.mubr.bf16.gmra.mrb[0].mxu0 %v2562
    %v2770 = vpop.f32.mrb[0].mxu0
    %v2771 = vadd.f32 %v2356, %v2770
    %v2772 = vpop.f32.mrb[0].mxu0
    %v2773 = vadd.f32 %v2360, %v2772
    %v2774 = vpop.f32.mrb[0].mxu0
    %v2775 = vadd.f32 %v2356, %v2774
    %v2776 = vpop.f32.mrb[0].mxu0
    %v2777 = vadd.f32 %v2360, %v2776
    %2778 = vdwg.mxu0
    %2779 = vmatprep.subr.bf16.mxu0 %v2508
    %2780 = vmatpush1.bf16.msra.mxu0 %v2507
    %2781 = vmatprep.subr.bf16.mxu0 %v2524
    %2782 = vmatpush1.bf16.msra.mxu0 %v2523
    %2783 = vmatprep.subr.bf16.mxu0 0
    %2784 = vmatpush1.bf16.msra.mxu0 0
    %2785 = vmatprep.subr.bf16.mxu0 0
    %2786 = vmatpush1.bf16.msra.mxu0 0
    %2787 = vmatprep.subr.bf16.mxu0 0
    %2788 = vmatpush1.bf16.msra.mxu0 0
    %2789 = vmatprep.subr.bf16.mxu0 0
    %2790 = vmatpush1.bf16.msra.mxu0 0
    %2791 = vmatprep.subr.bf16.mxu0 0
    %2792 = vmatpush1.bf16.msra.mxu0 0
    %2793 = vmatprep.subr.bf16.mxu0 0
    %2794 = vmatpush1.bf16.msra.mxu0 0
    %2795 = vmatprep.subr.bf16.mxu0 0
    %2796 = vmatpush1.bf16.msra.mxu0 0
    %2797 = vmatprep.subr.bf16.mxu0 0
    %2798 = vmatpush1.bf16.msra.mxu0 0
    %2799 = vmatprep.subr.bf16.mxu0 0
    %2800 = vmatpush1.bf16.msra.mxu0 0
    %2801 = vmatprep.subr.bf16.mxu0 0
    %2802 = vmatpush1.bf16.msra.mxu0 0
    %2803 = vmatprep.subr.bf16.mxu0 0
    %2804 = vmatpush1.bf16.msra.mxu0 0
    %2805 = vmatprep.subr.bf16.mxu0 0
    %2806 = vmatpush1.bf16.msra.mxu0 0
    %2807 = vmatprep.subr.bf16.mxu0 0
    %2808 = vmatpush1.bf16.msra.mxu0 0
    %2809 = vmatprep.subr.bf16.mxu0 0
    %2810 = vmatpush1.bf16.msra.mxu0 0
    %2811 = vmatprep.mubr.bf16.mxu0 0
    %2812 = vmatmul.mubr.bf16.gmra.mrb[0].mxu0 %v2562
    %v2813 = vpop.f32.mrb[0].mxu0
    %v2814 = vadd.f32 %v2364, %v2813
    %v2815 = vpop.f32.mrb[0].mxu0
    %v2816 = vadd.f32 %v2368, %v2815
    %v2817 = vpop.f32.mrb[0].mxu0
    %v2818 = vadd.f32 %v2364, %v2817
    %v2819 = vpop.f32.mrb[0].mxu0
    %v2820 = vadd.f32 %v2368, %v2819
    %2821 = vdwg.mxu0
    %2822 = vmatprep.subr.bf16.mxu0 %v2510
    %2823 = vmatpush1.bf16.msra.mxu0 %v2509
    %2824 = vmatprep.subr.bf16.mxu0 %v2526
    %2825 = vmatpush1.bf16.msra.mxu0 %v2525
    %2826 = vmatprep.subr.bf16.mxu0 0
    %2827 = vmatpush1.bf16.msra.mxu0 0
    %2828 = vmatprep.subr.bf16.mxu0 0
    %2829 = vmatpush1.bf16.msra.mxu0 0
    %2830 = vmatprep.subr.bf16.mxu0 0
    %2831 = vmatpush1.bf16.msra.mxu0 0
    %2832 = vmatprep.subr.bf16.mxu0 0
    %2833 = vmatpush1.bf16.msra.mxu0 0
    %2834 = vmatprep.subr.bf16.mxu0 0
    %2835 = vmatpush1.bf16.msra.mxu0 0
    %2836 = vmatprep.subr.bf16.mxu0 0
    %2837 = vmatpush1.bf16.msra.mxu0 0
    %2838 = vmatprep.subr.bf16.mxu0 0
    %2839 = vmatpush1.bf16.msra.mxu0 0
    %2840 = vmatprep.subr.bf16.mxu0 0
    %2841 = vmatpush1.bf16.msra.mxu0 0
    %2842 = vmatprep.subr.bf16.mxu0 0
    %2843 = vmatpush1.bf16.msra.mxu0 0
    %2844 = vmatprep.subr.bf16.mxu0 0
    %2845 = vmatpush1.bf16.msra.mxu0 0
    %2846 = vmatprep.subr.bf16.mxu0 0
    %2847 = vmatpush1.bf16.msra.mxu0 0
    %2848 = vmatprep.subr.bf16.mxu0 0
    %2849 = vmatpush1.bf16.msra.mxu0 0
    %2850 = vmatprep.subr.bf16.mxu0 0
    %2851 = vmatpush1.bf16.msra.mxu0 0
    %2852 = vmatprep.subr.bf16.mxu0 0
    %2853 = vmatpush1.bf16.msra.mxu0 0
    %2854 = vmatprep.mubr.bf16.mxu0 0
    %2855 = vmatmul.mubr.bf16.gmra.mrb[0].mxu0 %v2562
    %v2856 = vpop.f32.mrb[0].mxu0
    %v2857 = vadd.f32 %v2372, %v2856
    %v2858 = vpop.f32.mrb[0].mxu0
    %v2859 = vadd.f32 %v2376, %v2858
    %v2860 = vpop.f32.mrb[0].mxu0
    %v2861 = vadd.f32 %v2372, %v2860
    %v2862 = vpop.f32.mrb[0].mxu0
    %v2863 = vadd.f32 %v2376, %v2862
    %2864 = vdwg.mxu0
    %2865 = vmatprep.subr.bf16.mxu0 %v2512
    %2866 = vmatpush1.bf16.msra.mxu0 %v2511
    %2867 = vmatprep.subr.bf16.mxu0 %v2528
    %2868 = vmatpush1.bf16.msra.mxu0 %v2527
    %2869 = vmatprep.subr.bf16.mxu0 0
    %2870 = vmatpush1.bf16.msra.mxu0 0
    %2871 = vmatprep.subr.bf16.mxu0 0
    %2872 = vmatpush1.bf16.msra.mxu0 0
    %2873 = vmatprep.subr.bf16.mxu0 0
    %2874 = vmatpush1.bf16.msra.mxu0 0
    %2875 = vmatprep.subr.bf16.mxu0 0
    %2876 = vmatpush1.bf16.msra.mxu0 0
    %2877 = vmatprep.subr.bf16.mxu0 0
    %2878 = vmatpush1.bf16.msra.mxu0 0
    %2879 = vmatprep.subr.bf16.mxu0 0
    %2880 = vmatpush1.bf16.msra.mxu0 0
    %2881 = vmatprep.subr.bf16.mxu0 0
    %2882 = vmatpush1.bf16.msra.mxu0 0
    %2883 = vmatprep.subr.bf16.mxu0 0
    %2884 = vmatpush1.bf16.msra.mxu0 0
    %2885 = vmatprep.subr.bf16.mxu0 0
    %2886 = vmatpush1.bf16.msra.mxu0 0
    %2887 = vmatprep.subr.bf16.mxu0 0
    %2888 = vmatpush1.bf16.msra.mxu0 0
    %2889 = vmatprep.subr.bf16.mxu0 0
    %2890 = vmatpush1.bf16.msra.mxu0 0
    %2891 = vmatprep.subr.bf16.mxu0 0
    %2892 = vmatpush1.bf16.msra.mxu0 0
    %2893 = vmatprep.subr.bf16.mxu0 0
    %2894 = vmatpush1.bf16.msra.mxu0 0
    %2895 = vmatprep.subr.bf16.mxu0 0
    %2896 = vmatpush1.bf16.msra.mxu0 0
    %2897 = vmatprep.mubr.bf16.mxu0 0
    %2898 = vmatmul.mubr.bf16.gmra.mrb[0].mxu0 %v2562
    %v2899 = vpop.f32.mrb[0].mxu0
    %v2900 = vadd.f32 %v2380, %v2899
    %v2901 = vpop.f32.mrb[0].mxu0
    %v2902 = vadd.f32 %v2384, %v2901
    %v2903 = vpop.f32.mrb[0].mxu0
    %v2904 = vadd.f32 %v2380, %v2903
    %v2905 = vpop.f32.mrb[0].mxu0
    %v2906 = vadd.f32 %v2384, %v2905
    %2907 = vdwg.mxu0
    %v2908 = vmax.f32 %v2599, 0.0
    %v2909 = vmax.f32 %v2601, 0.0
    %v2910 = vmax.f32 %v2642, 0.0
    %v2911 = vmax.f32 %v2644, 0.0
    %v2912 = vmax.f32 %v2685, 0.0
    %v2913 = vmax.f32 %v2687, 0.0
    %v2914 = vmax.f32 %v2728, 0.0
    %v2915 = vmax.f32 %v2730, 0.0
    %v2916 = vmax.f32 %v2771, 0.0
    %v2917 = vmax.f32 %v2773, 0.0
    %v2918 = vmax.f32 %v2814, 0.0
    %v2919 = vmax.f32 %v2816, 0.0
    %v2920 = vmax.f32 %v2857, 0.0
    %v2921 = vmax.f32 %v2859, 0.0
    %v2922 = vmax.f32 %v2900, 0.0
    %v2923 = vmax.f32 %v2902, 0.0
    %v2924 = vmax.f32 %v2603, 0.0
    %v2925 = vmax.f32 %v2605, 0.0
    %v2926 = vmax.f32 %v2646, 0.0
    %v2927 = vmax.f32 %v2648, 0.0
    %v2928 = vmax.f32 %v2689, 0.0
    %v2929 = vmax.f32 %v2691, 0.0
    %v2930 = vmax.f32 %v2732, 0.0
    %v2931 = vmax.f32 %v2734, 0.0
    %v2932 = vmax.f32 %v2775, 0.0
    %v2933 = vmax.f32 %v2777, 0.0
    %v2934 = vmax.f32 %v2818, 0.0
    %v2935 = vmax.f32 %v2820, 0.0
    %v2936 = vmax.f32 %v2861, 0.0
    %v2937 = vmax.f32 %v2863, 0.0
    %v2938 = vmax.f32 %v2904, 0.0
    %v2939 = vmax.f32 %v2906, 0.0
    %v2940 = vpack.c.bf16 %v2924, %v2908
    %v2941 = vpack.c.bf16 %v2925, %v2909
    %v2942 = vpack.c.bf16 %v2926, %v2910
    %v2943 = vpack.c.bf16 %v2927, %v2911
    %v2944 = vpack.c.bf16 %v2928, %v2912
    %v2945 = vpack.c.bf16 %v2929, %v2913
    %v2946 = vpack.c.bf16 %v2930, %v2914
    %v2947 = vpack.c.bf16 %v2931, %v2915
    %v2948 = vpack.c.bf16 %v2932, %v2916
    %v2949 = vpack.c.bf16 %v2933, %v2917
    %v2950 = vpack.c.bf16 %v2934, %v2918
    %v2951 = vpack.c.bf16 %v2935, %v2919
    %v2952 = vpack.c.bf16 %v2936, %v2920
    %v2953 = vpack.c.bf16 %v2937, %v2921
    %v2954 = vpack.c.bf16 %v2938, %v2922
    %v2955 = vpack.c.bf16 %v2939, %v2923
    %v2956 = vld [vmem:[%s9] sm:$0xf]
    %v2957 = vld [vmem:[%s9 + $0x4] sm:$0xf]
    %v2958 = vld [vmem:[%s9 + $0x8] sm:$0xf]
    %v2959 = vld [vmem:[%s9 + $0xc] sm:$0xf]
    %v2960 = vld [vmem:[%s9 + $0x10] sm:$0xf]
    %v2961 = vld [vmem:[%s9 + $0x14] sm:$0xf]
    %v2962 = vld [vmem:[%s9 + $0x18] sm:$0xf]
    %v2963 = vld [vmem:[%s9 + $0x1c] sm:$0xf]
    %v2964 = vld [vmem:[%s9 + $0x20] sm:$0xf]
    %v2965 = vld [vmem:[%s9 + $0x24] sm:$0xf]
    %v2966 = vld [vmem:[%s9 + $0x28] sm:$0xf]
    %v2967 = vld [vmem:[%s9 + $0x2c] sm:$0xf]
    %v2968 = vld [vmem:[%s9 + $0x30] sm:$0xf]
    %v2969 = vld [vmem:[%s9 + $0x34] sm:$0xf]
    %v2970 = vld [vmem:[%s9 + $0x38] sm:$0xf]
    %v2971 = vld [vmem:[%s9 + $0x3c] sm:$0xf]
    %v2972 = vld [vmem:[%s9 + $0x40] sm:$0xf]
    %v2973 = vld [vmem:[%s9 + $0x44] sm:$0xf]
    %v2974 = vld [vmem:[%s9 + $0x48] sm:$0xf]
    %v2975 = vld [vmem:[%s9 + $0x4c] sm:$0xf]
    %v2976 = vld [vmem:[%s9 + $0x50] sm:$0xf]
    %v2977 = vld [vmem:[%s9 + $0x54] sm:$0xf]
    %v2978 = vld [vmem:[%s9 + $0x58] sm:$0xf]
    %v2979 = vld [vmem:[%s9 + $0x5c] sm:$0xf]
    %v2980 = vld [vmem:[%s9 + $0x60] sm:$0xf]
    %v2981 = vld [vmem:[%s9 + $0x64] sm:$0xf]
    %v2982 = vld [vmem:[%s9 + $0x68] sm:$0xf]
    %v2983 = vld [vmem:[%s9 + $0x6c] sm:$0xf]
    %v2984 = vld [vmem:[%s9 + $0x70] sm:$0xf]
    %v2985 = vld [vmem:[%s9 + $0x74] sm:$0xf]
    %v2986 = vld [vmem:[%s9 + $0x78] sm:$0xf]
    %v2987 = vld [vmem:[%s9 + $0x7c] sm:$0xf]
    %v2988 = vld [vmem:[%s9 + $0x80] sm:$0xf]
    %v2989 = vld [vmem:[%s9 + $0x84] sm:$0xf]
    %v2990 = vld [vmem:[%s9 + $0x88] sm:$0xf]
    %v2991 = vld [vmem:[%s9 + $0x8c] sm:$0xf]
    %v2992 = vld [vmem:[%s9 + $0x90] sm:$0xf]
    %v2993 = vld [vmem:[%s9 + $0x94] sm:$0xf]
    %v2994 = vld [vmem:[%s9 + $0x98] sm:$0xf]
    %v2995 = vld [vmem:[%s9 + $0x9c] sm:$0xf]
    %v2996 = vld [vmem:[%s9 + $0xa0] sm:$0xf]
    %v2997 = vld [vmem:[%s9 + $0xa4] sm:$0xf]
    %v2998 = vld [vmem:[%s9 + $0xa8] sm:$0xf]
    %v2999 = vld [vmem:[%s9 + $0xac] sm:$0xf]
    %v3000 = vld [vmem:[%s9 + $0xb0] sm:$0xf]
    %v3001 = vld [vmem:[%s9 + $0xb4] sm:$0xf]
    %v3002 = vld [vmem:[%s9 + $0xb8] sm:$0xf]
    %v3003 = vld [vmem:[%s9 + $0xbc] sm:$0xf]
    %v3004 = vld [vmem:[%s9 + $0xc0] sm:$0xf]
    %v3005 = vld [vmem:[%s9 + $0xc4] sm:$0xf]
    %v3006 = vld [vmem:[%s9 + $0xc8] sm:$0xf]
    %v3007 = vld [vmem:[%s9 + $0xcc] sm:$0xf]
    %v3008 = vld [vmem:[%s9 + $0xd0] sm:$0xf]
    %v3009 = vld [vmem:[%s9 + $0xd4] sm:$0xf]
    %v3010 = vld [vmem:[%s9 + $0xd8] sm:$0xf]
    %v3011 = vld [vmem:[%s9 + $0xdc] sm:$0xf]
    %v3012 = vld [vmem:[%s9 + $0xe0] sm:$0xf]
    %v3013 = vld [vmem:[%s9 + $0xe4] sm:$0xf]
    %v3014 = vld [vmem:[%s9 + $0xe8] sm:$0xf]
    %v3015 = vld [vmem:[%s9 + $0xec] sm:$0xf]
    %v3016 = vld [vmem:[%s9 + $0xf0] sm:$0xf]
    %v3017 = vld [vmem:[%s9 + $0xf4] sm:$0xf]
    %v3018 = vld [vmem:[%s9 + $0xf8] sm:$0xf]
    %v3019 = vld [vmem:[%s9 + $0xfc] sm:$0xf]
    %v3020 = vld [vmem:[%s9 + $0x100] sm:$0xf]
    %v3021 = vld [vmem:[%s9 + $0x104] sm:$0xf]
    %v3022 = vld [vmem:[%s9 + $0x108] sm:$0xf]
    %v3023 = vld [vmem:[%s9 + $0x10c] sm:$0xf]
    %v3024 = vld [vmem:[%s9 + $0x110] sm:$0xf]
    %v3025 = vld [vmem:[%s9 + $0x114] sm:$0xf]
    %v3026 = vld [vmem:[%s9 + $0x118] sm:$0xf]
    %v3027 = vld [vmem:[%s9 + $0x11c] sm:$0xf]
    %v3028 = vld [vmem:[%s9 + $0x120] sm:$0xf]
    %v3029 = vld [vmem:[%s9 + $0x124] sm:$0xf]
    %v3030 = vld [vmem:[%s9 + $0x128] sm:$0xf]
    %v3031 = vld [vmem:[%s9 + $0x12c] sm:$0xf]
    %v3032 = vld [vmem:[%s9 + $0x130] sm:$0xf]
    %v3033 = vld [vmem:[%s9 + $0x134] sm:$0xf]
    %v3034 = vld [vmem:[%s9 + $0x138] sm:$0xf]
    %v3035 = vld [vmem:[%s9 + $0x13c] sm:$0xf]
    %v3036 = vld [vmem:[%s9 + $0x140] sm:$0xf]
    %v3037 = vld [vmem:[%s9 + $0x144] sm:$0xf]
    %v3038 = vld [vmem:[%s9 + $0x148] sm:$0xf]
    %v3039 = vld [vmem:[%s9 + $0x14c] sm:$0xf]
    %v3040 = vld [vmem:[%s9 + $0x150] sm:$0xf]
    %v3041 = vld [vmem:[%s9 + $0x154] sm:$0xf]
    %v3042 = vld [vmem:[%s9 + $0x158] sm:$0xf]
    %v3043 = vld [vmem:[%s9 + $0x15c] sm:$0xf]
    %v3044 = vld [vmem:[%s9 + $0x160] sm:$0xf]
    %v3045 = vld [vmem:[%s9 + $0x164] sm:$0xf]
    %v3046 = vld [vmem:[%s9 + $0x168] sm:$0xf]
    %v3047 = vld [vmem:[%s9 + $0x16c] sm:$0xf]
    %v3048 = vld [vmem:[%s9 + $0x170] sm:$0xf]
    %v3049 = vld [vmem:[%s9 + $0x174] sm:$0xf]
    %v3050 = vld [vmem:[%s9 + $0x178] sm:$0xf]
    %v3051 = vld [vmem:[%s9 + $0x17c] sm:$0xf]
    %v3052 = vld [vmem:[%s9 + $0x180] sm:$0xf]
    %v3053 = vld [vmem:[%s9 + $0x184] sm:$0xf]
    %v3054 = vld [vmem:[%s9 + $0x188] sm:$0xf]
    %v3055 = vld [vmem:[%s9 + $0x18c] sm:$0xf]
    %v3056 = vld [vmem:[%s9 + $0x190] sm:$0xf]
    %v3057 = vld [vmem:[%s9 + $0x194] sm:$0xf]
    %v3058 = vld [vmem:[%s9 + $0x198] sm:$0xf]
    %v3059 = vld [vmem:[%s9 + $0x19c] sm:$0xf]
    %v3060 = vld [vmem:[%s9 + $0x1a0] sm:$0xf]
    %v3061 = vld [vmem:[%s9 + $0x1a4] sm:$0xf]
    %v3062 = vld [vmem:[%s9 + $0x1a8] sm:$0xf]
    %v3063 = vld [vmem:[%s9 + $0x1ac] sm:$0xf]
    %v3064 = vld [vmem:[%s9 + $0x1b0] sm:$0xf]
    %v3065 = vld [vmem:[%s9 + $0x1b4] sm:$0xf]
    %v3066 = vld [vmem:[%s9 + $0x1b8] sm:$0xf]
    %v3067 = vld [vmem:[%s9 + $0x1bc] sm:$0xf]
    %v3068 = vld [vmem:[%s9 + $0x1c0] sm:$0xf]
    %v3069 = vld [vmem:[%s9 + $0x1c4] sm:$0xf]
    %v3070 = vld [vmem:[%s9 + $0x1c8] sm:$0xf]
    %v3071 = vld [vmem:[%s9 + $0x1cc] sm:$0xf]
    %v3072 = vld [vmem:[%s9 + $0x1d0] sm:$0xf]
    %v3073 = vld [vmem:[%s9 + $0x1d4] sm:$0xf]
    %v3074 = vld [vmem:[%s9 + $0x1d8] sm:$0xf]
    %v3075 = vld [vmem:[%s9 + $0x1dc] sm:$0xf]
    %v3076 = vld [vmem:[%s9 + $0x1e0] sm:$0xf]
    %v3077 = vld [vmem:[%s9 + $0x1e4] sm:$0xf]
    %v3078 = vld [vmem:[%s9 + $0x1e8] sm:$0xf]
    %v3079 = vld [vmem:[%s9 + $0x1ec] sm:$0xf]
    %v3080 = vld [vmem:[%s9 + $0x1f0] sm:$0xf]
    %v3081 = vld [vmem:[%s9 + $0x1f4] sm:$0xf]
    %v3082 = vld [vmem:[%s9 + $0x1f8] sm:$0xf]
    %v3083 = vld [vmem:[%s9 + $0x1fc] sm:$0xf]
    %v3084 = vld [vmem:[%s9 + $0x200] sm:$0xf]
    %v3085 = vld [vmem:[%s9 + $0x204] sm:$0xf]
    %v3086 = vld [vmem:[%s9 + $0x208] sm:$0xf]
    %v3087 = vld [vmem:[%s9 + $0x20c] sm:$0xf]
    %v3088 = vld [vmem:[%s9 + $0x210] sm:$0xf]
    %v3089 = vld [vmem:[%s9 + $0x214] sm:$0xf]
    %v3090 = vld [vmem:[%s9 + $0x218] sm:$0xf]
    %v3091 = vld [vmem:[%s9 + $0x21c] sm:$0xf]
    %v3092 = vld [vmem:[%s9 + $0x220] sm:$0xf]
    %v3093 = vld [vmem:[%s9 + $0x224] sm:$0xf]
    %v3094 = vld [vmem:[%s9 + $0x228] sm:$0xf]
    %v3095 = vld [vmem:[%s9 + $0x22c] sm:$0xf]
    %v3096 = vld [vmem:[%s9 + $0x230] sm:$0xf]
    %v3097 = vld [vmem:[%s9 + $0x234] sm:$0xf]
    %v3098 = vld [vmem:[%s9 + $0x238] sm:$0xf]
    %v3099 = vld [vmem:[%s9 + $0x23c] sm:$0xf]
    %v3100 = vld [vmem:[%s9 + $0x240] sm:$0xf]
    %v3101 = vld [vmem:[%s9 + $0x244] sm:$0xf]
    %v3102 = vld [vmem:[%s9 + $0x248] sm:$0xf]
    %v3103 = vld [vmem:[%s9 + $0x24c] sm:$0xf]
    %v3104 = vld [vmem:[%s9 + $0x250] sm:$0xf]
    %v3105 = vld [vmem:[%s9 + $0x254] sm:$0xf]
    %v3106 = vld [vmem:[%s9 + $0x258] sm:$0xf]
    %v3107 = vld [vmem:[%s9 + $0x25c] sm:$0xf]
    %v3108 = vld [vmem:[%s9 + $0x260] sm:$0xf]
    %v3109 = vld [vmem:[%s9 + $0x264] sm:$0xf]
    %v3110 = vld [vmem:[%s9 + $0x268] sm:$0xf]
    %v3111 = vld [vmem:[%s9 + $0x26c] sm:$0xf]
    %v3112 = vld [vmem:[%s9 + $0x270] sm:$0xf]
    %v3113 = vld [vmem:[%s9 + $0x274] sm:$0xf]
    %v3114 = vld [vmem:[%s9 + $0x278] sm:$0xf]
    %v3115 = vld [vmem:[%s9 + $0x27c] sm:$0xf]
    %v3116 = vld [vmem:[%s9 + $0x280] sm:$0xf]
    %v3117 = vld [vmem:[%s9 + $0x284] sm:$0xf]
    %v3118 = vld [vmem:[%s9 + $0x288] sm:$0xf]
    %v3119 = vld [vmem:[%s9 + $0x28c] sm:$0xf]
    %v3120 = vld [vmem:[%s9 + $0x290] sm:$0xf]
    %v3121 = vld [vmem:[%s9 + $0x294] sm:$0xf]
    %v3122 = vld [vmem:[%s9 + $0x298] sm:$0xf]
    %v3123 = vld [vmem:[%s9 + $0x29c] sm:$0xf]
    %v3124 = vld [vmem:[%s9 + $0x2a0] sm:$0xf]
    %v3125 = vld [vmem:[%s9 + $0x2a4] sm:$0xf]
    %v3126 = vld [vmem:[%s9 + $0x2a8] sm:$0xf]
    %v3127 = vld [vmem:[%s9 + $0x2ac] sm:$0xf]
    %v3128 = vld [vmem:[%s9 + $0x2b0] sm:$0xf]
    %v3129 = vld [vmem:[%s9 + $0x2b4] sm:$0xf]
    %v3130 = vld [vmem:[%s9 + $0x2b8] sm:$0xf]
    %v3131 = vld [vmem:[%s9 + $0x2bc] sm:$0xf]
    %v3132 = vld [vmem:[%s9 + $0x2c0] sm:$0xf]
    %v3133 = vld [vmem:[%s9 + $0x2c4] sm:$0xf]
    %v3134 = vld [vmem:[%s9 + $0x2c8] sm:$0xf]
    %v3135 = vld [vmem:[%s9 + $0x2cc] sm:$0xf]
    %v3136 = vld [vmem:[%s9 + $0x2d0] sm:$0xf]
    %v3137 = vld [vmem:[%s9 + $0x2d4] sm:$0xf]
    %v3138 = vld [vmem:[%s9 + $0x2d8] sm:$0xf]
    %v3139 = vld [vmem:[%s9 + $0x2dc] sm:$0xf]
    %v3140 = vld [vmem:[%s9 + $0x2e0] sm:$0xf]
    %v3141 = vld [vmem:[%s9 + $0x2e4] sm:$0xf]
    %v3142 = vld [vmem:[%s9 + $0x2e8] sm:$0xf]
    %v3143 = vld [vmem:[%s9 + $0x2ec] sm:$0xf]
    %v3144 = vld [vmem:[%s9 + $0x2f0] sm:$0xf]
    %v3145 = vld [vmem:[%s9 + $0x2f4] sm:$0xf]
    %v3146 = vld [vmem:[%s9 + $0x2f8] sm:$0xf]
    %v3147 = vld [vmem:[%s9 + $0x2fc] sm:$0xf]
    %v3148 = vld [vmem:[%s9 + $0x300] sm:$0xf]
    %v3149 = vld [vmem:[%s9 + $0x304] sm:$0xf]
    %v3150 = vld [vmem:[%s9 + $0x308] sm:$0xf]
    %v3151 = vld [vmem:[%s9 + $0x30c] sm:$0xf]
    %v3152 = vld [vmem:[%s9 + $0x310] sm:$0xf]
    %v3153 = vld [vmem:[%s9 + $0x314] sm:$0xf]
    %v3154 = vld [vmem:[%s9 + $0x318] sm:$0xf]
    %v3155 = vld [vmem:[%s9 + $0x31c] sm:$0xf]
    %v3156 = vld [vmem:[%s9 + $0x320] sm:$0xf]
    %v3157 = vld [vmem:[%s9 + $0x324] sm:$0xf]
    %v3158 = vld [vmem:[%s9 + $0x328] sm:$0xf]
    %v3159 = vld [vmem:[%s9 + $0x32c] sm:$0xf]
    %v3160 = vld [vmem:[%s9 + $0x330] sm:$0xf]
    %v3161 = vld [vmem:[%s9 + $0x334] sm:$0xf]
    %v3162 = vld [vmem:[%s9 + $0x338] sm:$0xf]
    %v3163 = vld [vmem:[%s9 + $0x33c] sm:$0xf]
    %v3164 = vld [vmem:[%s9 + $0x340] sm:$0xf]
    %v3165 = vld [vmem:[%s9 + $0x344] sm:$0xf]
    %v3166 = vld [vmem:[%s9 + $0x348] sm:$0xf]
    %v3167 = vld [vmem:[%s9 + $0x34c] sm:$0xf]
    %v3168 = vld [vmem:[%s9 + $0x350] sm:$0xf]
    %v3169 = vld [vmem:[%s9 + $0x354] sm:$0xf]
    %v3170 = vld [vmem:[%s9 + $0x358] sm:$0xf]
    %v3171 = vld [vmem:[%s9 + $0x35c] sm:$0xf]
    %v3172 = vld [vmem:[%s9 + $0x360] sm:$0xf]
    %v3173 = vld [vmem:[%s9 + $0x364] sm:$0xf]
    %v3174 = vld [vmem:[%s9 + $0x368] sm:$0xf]
    %v3175 = vld [vmem:[%s9 + $0x36c] sm:$0xf]
    %v3176 = vld [vmem:[%s9 + $0x370] sm:$0xf]
    %v3177 = vld [vmem:[%s9 + $0x374] sm:$0xf]
    %v3178 = vld [vmem:[%s9 + $0x378] sm:$0xf]
    %v3179 = vld [vmem:[%s9 + $0x37c] sm:$0xf]
    %v3180 = vld [vmem:[%s9 + $0x380] sm:$0xf]
    %v3181 = vld [vmem:[%s9 + $0x384] sm:$0xf]
    %v3182 = vld [vmem:[%s9 + $0x388] sm:$0xf]
    %v3183 = vld [vmem:[%s9 + $0x38c] sm:$0xf]
    %v3184 = vld [vmem:[%s9 + $0x390] sm:$0xf]
    %v3185 = vld [vmem:[%s9 + $0x394] sm:$0xf]
    %v3186 = vld [vmem:[%s9 + $0x398] sm:$0xf]
    %v3187 = vld [vmem:[%s9 + $0x39c] sm:$0xf]
    %v3188 = vld [vmem:[%s9 + $0x3a0] sm:$0xf]
    %v3189 = vld [vmem:[%s9 + $0x3a4] sm:$0xf]
    %v3190 = vld [vmem:[%s9 + $0x3a8] sm:$0xf]
    %v3191 = vld [vmem:[%s9 + $0x3ac] sm:$0xf]
    %v3192 = vld [vmem:[%s9 + $0x3b0] sm:$0xf]
    %v3193 = vld [vmem:[%s9 + $0x3b4] sm:$0xf]
    %v3194 = vld [vmem:[%s9 + $0x3b8] sm:$0xf]
    %v3195 = vld [vmem:[%s9 + $0x3bc] sm:$0xf]
    %v3196 = vld [vmem:[%s9 + $0x3c0] sm:$0xf]
    %v3197 = vld [vmem:[%s9 + $0x3c4] sm:$0xf]
    %v3198 = vld [vmem:[%s9 + $0x3c8] sm:$0xf]
    %v3199 = vld [vmem:[%s9 + $0x3cc] sm:$0xf]
    %v3200 = vld [vmem:[%s9 + $0x3d0] sm:$0xf]
    %v3201 = vld [vmem:[%s9 + $0x3d4] sm:$0xf]
    %v3202 = vld [vmem:[%s9 + $0x3d8] sm:$0xf]
    %v3203 = vld [vmem:[%s9 + $0x3dc] sm:$0xf]
    %v3204 = vld [vmem:[%s9 + $0x3e0] sm:$0xf]
    %v3205 = vld [vmem:[%s9 + $0x3e4] sm:$0xf]
    %v3206 = vld [vmem:[%s9 + $0x3e8] sm:$0xf]
    %v3207 = vld [vmem:[%s9 + $0x3ec] sm:$0xf]
    %v3208 = vld [vmem:[%s9 + $0x3f0] sm:$0xf]
    %v3209 = vld [vmem:[%s9 + $0x3f4] sm:$0xf]
    %v3210 = vld [vmem:[%s9 + $0x3f8] sm:$0xf]
    %v3211 = vld [vmem:[%s9 + $0x3fc] sm:$0xf]
    %v3212 = vld [vmem:[%s10] sm:$0x1]
    %v3214 = vlaneseq
    %v3215 = vshrl.u32 %v3214, 7
    %v3216 = vsub.s32 0, %v3215
    %v3217 = vrot.slane %v3212, %v3216
    %v3475 = vunpack.c.l.b16 %v2956
    %v3476 = vunpack.c.l.b16 %v2957
    %v3477 = vunpack.c.l.b16 %v2958
    %v3478 = vunpack.c.l.b16 %v2959
    %v3479 = vunpack.c.l.b16 %v2960
    %v3480 = vunpack.c.l.b16 %v2961
    %v3481 = vunpack.c.l.b16 %v2962
    %v3482 = vunpack.c.l.b16 %v2963
    %v3483 = vunpack.c.l.b16 %v2964
    %v3484 = vunpack.c.l.b16 %v2965
    %v3485 = vunpack.c.l.b16 %v2966
    %v3486 = vunpack.c.l.b16 %v2967
    %v3487 = vunpack.c.l.b16 %v2968
    %v3488 = vunpack.c.l.b16 %v2969
    %v3489 = vunpack.c.l.b16 %v2970
    %v3490 = vunpack.c.l.b16 %v2971
    %v3491 = vunpack.c.l.b16 %v2972
    %v3492 = vunpack.c.l.b16 %v2973
    %v3493 = vunpack.c.l.b16 %v2974
    %v3494 = vunpack.c.l.b16 %v2975
    %v3495 = vunpack.c.l.b16 %v2976
    %v3496 = vunpack.c.l.b16 %v2977
    %v3497 = vunpack.c.l.b16 %v2978
    %v3498 = vunpack.c.l.b16 %v2979
    %v3499 = vunpack.c.l.b16 %v2980
    %v3500 = vunpack.c.l.b16 %v2981
    %v3501 = vunpack.c.l.b16 %v2982
    %v3502 = vunpack.c.l.b16 %v2983
    %v3503 = vunpack.c.l.b16 %v2984
    %v3504 = vunpack.c.l.b16 %v2985
    %v3505 = vunpack.c.l.b16 %v2986
    %v3506 = vunpack.c.l.b16 %v2987
    %v3507 = vunpack.c.l.b16 %v2988
    %v3508 = vunpack.c.l.b16 %v2989
    %v3509 = vunpack.c.l.b16 %v2990
    %v3510 = vunpack.c.l.b16 %v2991
    %v3511 = vunpack.c.l.b16 %v2992
    %v3512 = vunpack.c.l.b16 %v2993
    %v3513 = vunpack.c.l.b16 %v2994
    %v3514 = vunpack.c.l.b16 %v2995
    %v3515 = vunpack.c.l.b16 %v2996
    %v3516 = vunpack.c.l.b16 %v2997
    %v3517 = vunpack.c.l.b16 %v2998
    %v3518 = vunpack.c.l.b16 %v2999
    %v3519 = vunpack.c.l.b16 %v3000
    %v3520 = vunpack.c.l.b16 %v3001
    %v3521 = vunpack.c.l.b16 %v3002
    %v3522 = vunpack.c.l.b16 %v3003
    %v3523 = vunpack.c.l.b16 %v3004
    %v3524 = vunpack.c.l.b16 %v3005
    %v3525 = vunpack.c.l.b16 %v3006
    %v3526 = vunpack.c.l.b16 %v3007
    %v3527 = vunpack.c.l.b16 %v3008
    %v3528 = vunpack.c.l.b16 %v3009
    %v3529 = vunpack.c.l.b16 %v3010
    %v3530 = vunpack.c.l.b16 %v3011
    %v3531 = vunpack.c.l.b16 %v3012
    %v3532 = vunpack.c.l.b16 %v3013
    %v3533 = vunpack.c.l.b16 %v3014
    %v3534 = vunpack.c.l.b16 %v3015
    %v3535 = vunpack.c.l.b16 %v3016
    %v3536 = vunpack.c.l.b16 %v3017
    %v3537 = vunpack.c.l.b16 %v3018
    %v3538 = vunpack.c.l.b16 %v3019
    %v3539 = vunpack.c.l.b16 %v3020
    %v3540 = vunpack.c.l.b16 %v3021
    %v3541 = vunpack.c.l.b16 %v3022
    %v3542 = vunpack.c.l.b16 %v3023
    %v3543 = vunpack.c.l.b16 %v3024
    %v3544 = vunpack.c.l.b16 %v3025
    %v3545 = vunpack.c.l.b16 %v3026
    %v3546 = vunpack.c.l.b16 %v3027
    %v3547 = vunpack.c.l.b16 %v3028
    %v3548 = vunpack.c.l.b16 %v3029
    %v3549 = vunpack.c.l.b16 %v3030
    %v3550 = vunpack.c.l.b16 %v3031
    %v3551 = vunpack.c.l.b16 %v3032
    %v3552 = vunpack.c.l.b16 %v3033
    %v3553 = vunpack.c.l.b16 %v3034
    %v3554 = vunpack.c.l.b16 %v3035
    %v3555 = vunpack.c.l.b16 %v3036
    %v3556 = vunpack.c.l.b16 %v3037
    %v3557 = vunpack.c.l.b16 %v3038
    %v3558 = vunpack.c.l.b16 %v3039
    %v3559 = vunpack.c.l.b16 %v3040
    %v3560 = vunpack.c.l.b16 %v3041
    %v3561 = vunpack.c.l.b16 %v3042
    %v3562 = vunpack.c.l.b16 %v3043
    %v3563 = vunpack.c.l.b16 %v3044
    %v3564 = vunpack.c.l.b16 %v3045
    %v3565 = vunpack.c.l.b16 %v3046
    %v3566 = vunpack.c.l.b16 %v3047
    %v3567 = vunpack.c.l.b16 %v3048
    %v3568 = vunpack.c.l.b16 %v3049
    %v3569 = vunpack.c.l.b16 %v3050
    %v3570 = vunpack.c.l.b16 %v3051
    %v3571 = vunpack.c.l.b16 %v3052
    %v3572 = vunpack.c.l.b16 %v3053
    %v3573 = vunpack.c.l.b16 %v3054
    %v3574 = vunpack.c.l.b16 %v3055
    %v3575 = vunpack.c.l.b16 %v3056
    %v3576 = vunpack.c.l.b16 %v3057
    %v3577 = vunpack.c.l.b16 %v3058
    %v3578 = vunpack.c.l.b16 %v3059
    %v3579 = vunpack.c.l.b16 %v3060
    %v3580 = vunpack.c.l.b16 %v3061
    %v3581 = vunpack.c.l.b16 %v3062
    %v3582 = vunpack.c.l.b16 %v3063
    %v3583 = vunpack.c.l.b16 %v3064
    %v3584 = vunpack.c.l.b16 %v3065
    %v3585 = vunpack.c.l.b16 %v3066
    %v3586 = vunpack.c.l.b16 %v3067
    %v3587 = vunpack.c.l.b16 %v3068
    %v3588 = vunpack.c.l.b16 %v3069
    %v3589 = vunpack.c.l.b16 %v3070
    %v3590 = vunpack.c.l.b16 %v3071
    %v3591 = vunpack.c.l.b16 %v3072
    %v3592 = vunpack.c.l.b16 %v3073
    %v3593 = vunpack.c.l.b16 %v3074
    %v3594 = vunpack.c.l.b16 %v3075
    %v3595 = vunpack.c.l.b16 %v3076
    %v3596 = vunpack.c.l.b16 %v3077
    %v3597 = vunpack.c.l.b16 %v3078
    %v3598 = vunpack.c.l.b16 %v3079
    %v3599 = vunpack.c.l.b16 %v3080
    %v3600 = vunpack.c.l.b16 %v3081
    %v3601 = vunpack.c.l.b16 %v3082
    %v3602 = vunpack.c.l.b16 %v3083
    %v3603 = vunpack.c.l.b16 %v3084
    %v3604 = vunpack.c.l.b16 %v3085
    %v3605 = vunpack.c.l.b16 %v3086
    %v3606 = vunpack.c.l.b16 %v3087
    %v3607 = vunpack.c.l.b16 %v3088
    %v3608 = vunpack.c.l.b16 %v3089
    %v3609 = vunpack.c.l.b16 %v3090
    %v3610 = vunpack.c.l.b16 %v3091
    %v3611 = vunpack.c.l.b16 %v3092
    %v3612 = vunpack.c.l.b16 %v3093
    %v3613 = vunpack.c.l.b16 %v3094
    %v3614 = vunpack.c.l.b16 %v3095
    %v3615 = vunpack.c.l.b16 %v3096
    %v3616 = vunpack.c.l.b16 %v3097
    %v3617 = vunpack.c.l.b16 %v3098
    %v3618 = vunpack.c.l.b16 %v3099
    %v3619 = vunpack.c.l.b16 %v3100
    %v3620 = vunpack.c.l.b16 %v3101
    %v3621 = vunpack.c.l.b16 %v3102
    %v3622 = vunpack.c.l.b16 %v3103
    %v3623 = vunpack.c.l.b16 %v3104
    %v3624 = vunpack.c.l.b16 %v3105
    %v3625 = vunpack.c.l.b16 %v3106
    %v3626 = vunpack.c.l.b16 %v3107
    %v3627 = vunpack.c.l.b16 %v3108
    %v3628 = vunpack.c.l.b16 %v3109
    %v3629 = vunpack.c.l.b16 %v3110
    %v3630 = vunpack.c.l.b16 %v3111
    %v3631 = vunpack.c.l.b16 %v3112
    %v3632 = vunpack.c.l.b16 %v3113
    %v3633 = vunpack.c.l.b16 %v3114
    %v3634 = vunpack.c.l.b16 %v3115
    %v3635 = vunpack.c.l.b16 %v3116
    %v3636 = vunpack.c.l.b16 %v3117
    %v3637 = vunpack.c.l.b16 %v3118
    %v3638 = vunpack.c.l.b16 %v3119
    %v3639 = vunpack.c.l.b16 %v3120
    %v3640 = vunpack.c.l.b16 %v3121
    %v3641 = vunpack.c.l.b16 %v3122
    %v3642 = vunpack.c.l.b16 %v3123
    %v3643 = vunpack.c.l.b16 %v3124
    %v3644 = vunpack.c.l.b16 %v3125
    %v3645 = vunpack.c.l.b16 %v3126
    %v3646 = vunpack.c.l.b16 %v3127
    %v3647 = vunpack.c.l.b16 %v3128
    %v3648 = vunpack.c.l.b16 %v3129
    %v3649 = vunpack.c.l.b16 %v3130
    %v3650 = vunpack.c.l.b16 %v3131
    %v3651 = vunpack.c.l.b16 %v3132
    %v3652 = vunpack.c.l.b16 %v3133
    %v3653 = vunpack.c.l.b16 %v3134
    %v3654 = vunpack.c.l.b16 %v3135
    %v3655 = vunpack.c.l.b16 %v3136
    %v3656 = vunpack.c.l.b16 %v3137
    %v3657 = vunpack.c.l.b16 %v3138
    %v3658 = vunpack.c.l.b16 %v3139
    %v3659 = vunpack.c.l.b16 %v3140
    %v3660 = vunpack.c.l.b16 %v3141
    %v3661 = vunpack.c.l.b16 %v3142
    %v3662 = vunpack.c.l.b16 %v3143
    %v3663 = vunpack.c.l.b16 %v3144
    %v3664 = vunpack.c.l.b16 %v3145
    %v3665 = vunpack.c.l.b16 %v3146
    %v3666 = vunpack.c.l.b16 %v3147
    %v3667 = vunpack.c.l.b16 %v3148
    %v3668 = vunpack.c.l.b16 %v3149
    %v3669 = vunpack.c.l.b16 %v3150
    %v3670 = vunpack.c.l.b16 %v3151
    %v3671 = vunpack.c.l.b16 %v3152
    %v3672 = vunpack.c.l.b16 %v3153
    %v3673 = vunpack.c.l.b16 %v3154
    %v3674 = vunpack.c.l.b16 %v3155
    %v3675 = vunpack.c.l.b16 %v3156
    %v3676 = vunpack.c.l.b16 %v3157
    %v3677 = vunpack.c.l.b16 %v3158
    %v3678 = vunpack.c.l.b16 %v3159
    %v3679 = vunpack.c.l.b16 %v3160
    %v3680 = vunpack.c.l.b16 %v3161
    %v3681 = vunpack.c.l.b16 %v3162
    %v3682 = vunpack.c.l.b16 %v3163
    %v3683 = vunpack.c.l.b16 %v3164
    %v3684 = vunpack.c.l.b16 %v3165
    %v3685 = vunpack.c.l.b16 %v3166
    %v3686 = vunpack.c.l.b16 %v3167
    %v3687 = vunpack.c.l.b16 %v3168
    %v3688 = vunpack.c.l.b16 %v3169
    %v3689 = vunpack.c.l.b16 %v3170
    %v3690 = vunpack.c.l.b16 %v3171
    %v3691 = vunpack.c.l.b16 %v3172
    %v3692 = vunpack.c.l.b16 %v3173
    %v3693 = vunpack.c.l.b16 %v3174
    %v3694 = vunpack.c.l.b16 %v3175
    %v3695 = vunpack.c.l.b16 %v3176
    %v3696 = vunpack.c.l.b16 %v3177
    %v3697 = vunpack.c.l.b16 %v3178
    %v3698 = vunpack.c.l.b16 %v3179
    %v3699 = vunpack.c.l.b16 %v3180
    %v3700 = vunpack.c.l.b16 %v3181
    %v3701 = vunpack.c.l.b16 %v3182
    %v3702 = vunpack.c.l.b16 %v3183
    %v3703 = vunpack.c.l.b16 %v3184
    %v3704 = vunpack.c.l.b16 %v3185
    %v3705 = vunpack.c.l.b16 %v3186
    %v3706 = vunpack.c.l.b16 %v3187
    %v3707 = vunpack.c.l.b16 %v3188
    %v3708 = vunpack.c.l.b16 %v3189
    %v3709 = vunpack.c.l.b16 %v3190
    %v3710 = vunpack.c.l.b16 %v3191
    %v3711 = vunpack.c.l.b16 %v3192
    %v3712 = vunpack.c.l.b16 %v3193
    %v3713 = vunpack.c.l.b16 %v3194
    %v3714 = vunpack.c.l.b16 %v3195
    %v3715 = vunpack.c.l.b16 %v3196
    %v3716 = vunpack.c.l.b16 %v3197
    %v3717 = vunpack.c.l.b16 %v3198
    %v3718 = vunpack.c.l.b16 %v3199
    %v3719 = vunpack.c.l.b16 %v3200
    %v3720 = vunpack.c.l.b16 %v3201
    %v3721 = vunpack.c.l.b16 %v3202
    %v3722 = vunpack.c.l.b16 %v3203
    %v3723 = vunpack.c.l.b16 %v3204
    %v3724 = vunpack.c.l.b16 %v3205
    %v3725 = vunpack.c.l.b16 %v3206
    %v3726 = vunpack.c.l.b16 %v3207
    %v3727 = vunpack.c.l.b16 %v3208
    %v3728 = vunpack.c.l.b16 %v3209
    %v3729 = vunpack.c.l.b16 %v3210
    %v3730 = vunpack.c.l.b16 %v3211
    %v3731 = vpack.c.b16 %v3476, %v3475
    %v3732 = vpack.c.b16 %v3478, %v3477
    %v3733 = vpack.c.b16 %v3480, %v3479
    %v3734 = vpack.c.b16 %v3482, %v3481
    %v3735 = vpack.c.b16 %v3484, %v3483
    %v3736 = vpack.c.b16 %v3486, %v3485
    %v3737 = vpack.c.b16 %v3488, %v3487
    %v3738 = vpack.c.b16 %v3490, %v3489
    %v3739 = vpack.c.b16 %v3492, %v3491
    %v3740 = vpack.c.b16 %v3494, %v3493
    %v3741 = vpack.c.b16 %v3496, %v3495
    %v3742 = vpack.c.b16 %v3498, %v3497
    %v3743 = vpack.c.b16 %v3500, %v3499
    %v3744 = vpack.c.b16 %v3502, %v3501
    %v3745 = vpack.c.b16 %v3504, %v3503
    %v3746 = vpack.c.b16 %v3506, %v3505
    %v3747 = vpack.c.b16 %v3508, %v3507
    %v3748 = vpack.c.b16 %v3510, %v3509
    %v3749 = vpack.c.b16 %v3512, %v3511
    %v3750 = vpack.c.b16 %v3514, %v3513
    %v3751 = vpack.c.b16 %v3516, %v3515
    %v3752 = vpack.c.b16 %v3518, %v3517
    %v3753 = vpack.c.b16 %v3520, %v3519
    %v3754 = vpack.c.b16 %v3522, %v3521
    %v3755 = vpack.c.b16 %v3524, %v3523
    %v3756 = vpack.c.b16 %v3526, %v3525
    %v3757 = vpack.c.b16 %v3528, %v3527
    %v3758 = vpack.c.b16 %v3530, %v3529
    %v3759 = vpack.c.b16 %v3532, %v3531
    %v3760 = vpack.c.b16 %v3534, %v3533
    %v3761 = vpack.c.b16 %v3536, %v3535
    %v3762 = vpack.c.b16 %v3538, %v3537
    %v3763 = vpack.c.b16 %v3540, %v3539
    %v3764 = vpack.c.b16 %v3542, %v3541
    %v3765 = vpack.c.b16 %v3544, %v3543
    %v3766 = vpack.c.b16 %v3546, %v3545
    %v3767 = vpack.c.b16 %v3548, %v3547
    %v3768 = vpack.c.b16 %v3550, %v3549
    %v3769 = vpack.c.b16 %v3552, %v3551
    %v3770 = vpack.c.b16 %v3554, %v3553
    %v3771 = vpack.c.b16 %v3556, %v3555
    %v3772 = vpack.c.b16 %v3558, %v3557
    %v3773 = vpack.c.b16 %v3560, %v3559
    %v3774 = vpack.c.b16 %v3562, %v3561
    %v3775 = vpack.c.b16 %v3564, %v3563
    %v3776 = vpack.c.b16 %v3566, %v3565
    %v3777 = vpack.c.b16 %v3568, %v3567
    %v3778 = vpack.c.b16 %v3570, %v3569
    %v3779 = vpack.c.b16 %v3572, %v3571
    %v3780 = vpack.c.b16 %v3574, %v3573
    %v3781 = vpack.c.b16 %v3576, %v3575
    %v3782 = vpack.c.b16 %v3578, %v3577
    %v3783 = vpack.c.b16 %v3580, %v3579
    %v3784 = vpack.c.b16 %v3582, %v3581
    %v3785 = vpack.c.b16 %v3584, %v3583
    %v3786 = vpack.c.b16 %v3586, %v3585
    %v3787 = vpack.c.b16 %v3588, %v3587
    %v3788 = vpack.c.b16 %v3590, %v3589
    %v3789 = vpack.c.b16 %v3592, %v3591
    %v3790 = vpack.c.b16 %v3594, %v3593
    %v3791 = vpack.c.b16 %v3596, %v3595
    %v3792 = vpack.c.b16 %v3598, %v3597
    %v3793 = vpack.c.b16 %v3600, %v3599
    %v3794 = vpack.c.b16 %v3602, %v3601
    %v3795 = vpack.c.b16 %v3604, %v3603
    %v3796 = vpack.c.b16 %v3606, %v3605
    %v3797 = vpack.c.b16 %v3608, %v3607
    %v3798 = vpack.c.b16 %v3610, %v3609
    %v3799 = vpack.c.b16 %v3612, %v3611
    %v3800 = vpack.c.b16 %v3614, %v3613
    %v3801 = vpack.c.b16 %v3616, %v3615
    %v3802 = vpack.c.b16 %v3618, %v3617
    %v3803 = vpack.c.b16 %v3620, %v3619
    %v3804 = vpack.c.b16 %v3622, %v3621
    %v3805 = vpack.c.b16 %v3624, %v3623
    %v3806 = vpack.c.b16 %v3626, %v3625
    %v3807 = vpack.c.b16 %v3628, %v3627
    %v3808 = vpack.c.b16 %v3630, %v3629
    %v3809 = vpack.c.b16 %v3632, %v3631
    %v3810 = vpack.c.b16 %v3634, %v3633
    %v3811 = vpack.c.b16 %v3636, %v3635
    %v3812 = vpack.c.b16 %v3638, %v3637
    %v3813 = vpack.c.b16 %v3640, %v3639
    %v3814 = vpack.c.b16 %v3642, %v3641
    %v3815 = vpack.c.b16 %v3644, %v3643
    %v3816 = vpack.c.b16 %v3646, %v3645
    %v3817 = vpack.c.b16 %v3648, %v3647
    %v3818 = vpack.c.b16 %v3650, %v3649
    %v3819 = vpack.c.b16 %v3652, %v3651
    %v3820 = vpack.c.b16 %v3654, %v3653
    %v3821 = vpack.c.b16 %v3656, %v3655
    %v3822 = vpack.c.b16 %v3658, %v3657
    %v3823 = vpack.c.b16 %v3660, %v3659
    %v3824 = vpack.c.b16 %v3662, %v3661
    %v3825 = vpack.c.b16 %v3664, %v3663
    %v3826 = vpack.c.b16 %v3666, %v3665
    %v3827 = vpack.c.b16 %v3668, %v3667
    %v3828 = vpack.c.b16 %v3670, %v3669
    %v3829 = vpack.c.b16 %v3672, %v3671
    %v3830 = vpack.c.b16 %v3674, %v3673
    %v3831 = vpack.c.b16 %v3676, %v3675
    %v3832 = vpack.c.b16 %v3678, %v3677
    %v3833 = vpack.c.b16 %v3680, %v3679
    %v3834 = vpack.c.b16 %v3682, %v3681
    %v3835 = vpack.c.b16 %v3684, %v3683
    %v3836 = vpack.c.b16 %v3686, %v3685
    %v3837 = vpack.c.b16 %v3688, %v3687
    %v3838 = vpack.c.b16 %v3690, %v3689
    %v3839 = vpack.c.b16 %v3692, %v3691
    %v3840 = vpack.c.b16 %v3694, %v3693
    %v3841 = vpack.c.b16 %v3696, %v3695
    %v3842 = vpack.c.b16 %v3698, %v3697
    %v3843 = vpack.c.b16 %v3700, %v3699
    %v3844 = vpack.c.b16 %v3702, %v3701
    %v3845 = vpack.c.b16 %v3704, %v3703
    %v3846 = vpack.c.b16 %v3706, %v3705
    %v3847 = vpack.c.b16 %v3708, %v3707
    %v3848 = vpack.c.b16 %v3710, %v3709
    %v3849 = vpack.c.b16 %v3712, %v3711
    %v3850 = vpack.c.b16 %v3714, %v3713
    %v3851 = vpack.c.b16 %v3716, %v3715
    %v3852 = vpack.c.b16 %v3718, %v3717
    %v3853 = vpack.c.b16 %v3720, %v3719
    %v3854 = vpack.c.b16 %v3722, %v3721
    %v3855 = vpack.c.b16 %v3724, %v3723
    %v3856 = vpack.c.b16 %v3726, %v3725
    %v3857 = vpack.c.b16 %v3728, %v3727
    %v3858 = vpack.c.b16 %v3730, %v3729
    %3987 = vmatprep.subr.bf16.mxu0 0
    %3988 = vmatpush1.bf16.msra.mxu0 %v3731
    %3989 = vmatprep.subr.bf16.mxu0 0
    %3990 = vmatpush1.bf16.msra.mxu0 %v3732
    %3991 = vmatprep.subr.bf16.mxu0 0
    %3992 = vmatpush1.bf16.msra.mxu0 %v3733
    %3993 = vmatprep.subr.bf16.mxu0 0
    %3994 = vmatpush1.bf16.msra.mxu0 %v3734
    %3995 = vmatprep.subr.bf16.mxu0 0
    %3996 = vmatpush1.bf16.msra.mxu0 %v3735
    %3997 = vmatprep.subr.bf16.mxu0 0
    %3998 = vmatpush1.bf16.msra.mxu0 %v3736
    %3999 = vmatprep.subr.bf16.mxu0 0
    %4000 = vmatpush1.bf16.msra.mxu0 %v3737
    %4001 = vmatprep.subr.bf16.mxu0 0
    %4002 = vmatpush1.bf16.msra.mxu0 %v3738
    %4003 = vmatprep.subr.bf16.mxu0 0
    %4004 = vmatpush1.bf16.msra.mxu0 %v3739
    %4005 = vmatprep.subr.bf16.mxu0 0
    %4006 = vmatpush1.bf16.msra.mxu0 %v3740
    %4007 = vmatprep.subr.bf16.mxu0 0
    %4008 = vmatpush1.bf16.msra.mxu0 %v3741
    %4009 = vmatprep.subr.bf16.mxu0 0
    %4010 = vmatpush1.bf16.msra.mxu0 %v3742
    %4011 = vmatprep.subr.bf16.mxu0 0
    %4012 = vmatpush1.bf16.msra.mxu0 %v3743
    %4013 = vmatprep.subr.bf16.mxu0 0
    %4014 = vmatpush1.bf16.msra.mxu0 %v3744
    %4015 = vmatprep.subr.bf16.mxu0 0
    %4016 = vmatpush1.bf16.msra.mxu0 %v3745
    %4017 = vmatprep.subr.bf16.mxu0 0
    %4018 = vmatpush1.bf16.msra.mxu0 %v3746
    %4019 = vmatprep.mubr.bf16.mxu0 %v2941
    %4020 = vmatmul.mubr.bf16.gmra.mrb[0].mxu0 %v2940
    %v4021 = vpop.f32.mrb[0].mxu0
    %v4022 = vadd.f32 %v3217, %v4021
    %v4023 = vpop.f32.mrb[0].mxu0
    %v4024 = vpop.f32.mrb[0].mxu0
    %v4025 = vadd.f32 %v3217, %v4024
    %v4026 = vpop.f32.mrb[0].mxu0
    %4027 = vdwg.mxu0
    %4028 = vmatprep.subr.bf16.mxu0 0
    %4029 = vmatpush1.bf16.msra.mxu0 %v3747
    %4030 = vmatprep.subr.bf16.mxu0 0
    %4031 = vmatpush1.bf16.msra.mxu0 %v3748
    %4032 = vmatprep.subr.bf16.mxu0 0
    %4033 = vmatpush1.bf16.msra.mxu0 %v3749
    %4034 = vmatprep.subr.bf16.mxu0 0
    %4035 = vmatpush1.bf16.msra.mxu0 %v3750
    %4036 = vmatprep.subr.bf16.mxu0 0
    %4037 = vmatpush1.bf16.msra.mxu0 %v3751
    %4038 = vmatprep.subr.bf16.mxu0 0
    %4039 = vmatpush1.bf16.msra.mxu0 %v3752
    %4040 = vmatprep.subr.bf16.mxu0 0
    %4041 = vmatpush1.bf16.msra.mxu0 %v3753
    %4042 = vmatprep.subr.bf16.mxu0 0
    %4043 = vmatpush1.bf16.msra.mxu0 %v3754
    %4044 = vmatprep.subr.bf16.mxu0 0
    %4045 = vmatpush1.bf16.msra.mxu0 %v3755
    %4046 = vmatprep.subr.bf16.mxu0 0
    %4047 = vmatpush1.bf16.msra.mxu0 %v3756
    %4048 = vmatprep.subr.bf16.mxu0 0
    %4049 = vmatpush1.bf16.msra.mxu0 %v3757
    %4050 = vmatprep.subr.bf16.mxu0 0
    %4051 = vmatpush1.bf16.msra.mxu0 %v3758
    %4052 = vmatprep.subr.bf16.mxu0 0
    %4053 = vmatpush1.bf16.msra.mxu0 %v3759
    %4054 = vmatprep.subr.bf16.mxu0 0
    %4055 = vmatpush1.bf16.msra.mxu0 %v3760
    %4056 = vmatprep.subr.bf16.mxu0 0
    %4057 = vmatpush1.bf16.msra.mxu0 %v3761
    %4058 = vmatprep.subr.bf16.mxu0 0
    %4059 = vmatpush1.bf16.msra.mxu0 %v3762
    %4060 = vmatprep.mubr.bf16.mxu0 %v2943
    %4061 = vmatmul.mubr.bf16.gmra.mrb[0].mxu0 %v2942
    %v4062 = vpop.f32.mrb[0].mxu0
    %v4063 = vadd.f32 %v4022, %v4062
    %v4064 = vpop.f32.mrb[0].mxu0
    %v4065 = vpop.f32.mrb[0].mxu0
    %v4066 = vadd.f32 %v4025, %v4065
    %v4067 = vpop.f32.mrb[0].mxu0
    %4068 = vdwg.mxu0
    %4069 = vmatprep.subr.bf16.mxu0 0
    %4070 = vmatpush1.bf16.msra.mxu0 %v3763
    %4071 = vmatprep.subr.bf16.mxu0 0
    %4072 = vmatpush1.bf16.msra.mxu0 %v3764
    %4073 = vmatprep.subr.bf16.mxu0 0
    %4074 = vmatpush1.bf16.msra.mxu0 %v3765
    %4075 = vmatprep.subr.bf16.mxu0 0
    %4076 = vmatpush1.bf16.msra.mxu0 %v3766
    %4077 = vmatprep.subr.bf16.mxu0 0
    %4078 = vmatpush1.bf16.msra.mxu0 %v3767
    %4079 = vmatprep.subr.bf16.mxu0 0
    %4080 = vmatpush1.bf16.msra.mxu0 %v3768
    %4081 = vmatprep.subr.bf16.mxu0 0
    %4082 = vmatpush1.bf16.msra.mxu0 %v3769
    %4083 = vmatprep.subr.bf16.mxu0 0
    %4084 = vmatpush1.bf16.msra.mxu0 %v3770
    %4085 = vmatprep.subr.bf16.mxu0 0
    %4086 = vmatpush1.bf16.msra.mxu0 %v3771
    %4087 = vmatprep.subr.bf16.mxu0 0
    %4088 = vmatpush1.bf16.msra.mxu0 %v3772
    %4089 = vmatprep.subr.bf16.mxu0 0
    %4090 = vmatpush1.bf16.msra.mxu0 %v3773
    %4091 = vmatprep.subr.bf16.mxu0 0
    %4092 = vmatpush1.bf16.msra.mxu0 %v3774
    %4093 = vmatprep.subr.bf16.mxu0 0
    %4094 = vmatpush1.bf16.msra.mxu0 %v3775
    %4095 = vmatprep.subr.bf16.mxu0 0
    %4096 = vmatpush1.bf16.msra.mxu0 %v3776
    %4097 = vmatprep.subr.bf16.mxu0 0
    %4098 = vmatpush1.bf16.msra.mxu0 %v3777
    %4099 = vmatprep.subr.bf16.mxu0 0
    %4100 = vmatpush1.bf16.msra.mxu0 %v3778
    %4101 = vmatprep.mubr.bf16.mxu0 %v2945
    %4102 = vmatmul.mubr.bf16.gmra.mrb[0].mxu0 %v2944
    %v4103 = vpop.f32.mrb[0].mxu0
    %v4104 = vadd.f32 %v4063, %v4103
    %v4105 = vpop.f32.mrb[0].mxu0
    %v4106 = vpop.f32.mrb[0].mxu0
    %v4107 = vadd.f32 %v4066, %v4106
    %v4108 = vpop.f32.mrb[0].mxu0
    %4109 = vdwg.mxu0
    %4110 = vmatprep.subr.bf16.mxu0 0
    %4111 = vmatpush1.bf16.msra.mxu0 %v3779
    %4112 = vmatprep.subr.bf16.mxu0 0
    %4113 = vmatpush1.bf16.msra.mxu0 %v3780
    %4114 = vmatprep.subr.bf16.mxu0 0
    %4115 = vmatpush1.bf16.msra.mxu0 %v3781
    %4116 = vmatprep.subr.bf16.mxu0 0
    %4117 = vmatpush1.bf16.msra.mxu0 %v3782
    %4118 = vmatprep.subr.bf16.mxu0 0
    %4119 = vmatpush1.bf16.msra.mxu0 %v3783
    %4120 = vmatprep.subr.bf16.mxu0 0
    %4121 = vmatpush1.bf16.msra.mxu0 %v3784
    %4122 = vmatprep.subr.bf16.mxu0 0
    %4123 = vmatpush1.bf16.msra.mxu0 %v3785
    %4124 = vmatprep.subr.bf16.mxu0 0
    %4125 = vmatpush1.bf16.msra.mxu0 %v3786
    %4126 = vmatprep.subr.bf16.mxu0 0
    %4127 = vmatpush1.bf16.msra.mxu0 %v3787
    %4128 = vmatprep.subr.bf16.mxu0 0
    %4129 = vmatpush1.bf16.msra.mxu0 %v3788
    %4130 = vmatprep.subr.bf16.mxu0 0
    %4131 = vmatpush1.bf16.msra.mxu0 %v3789
    %4132 = vmatprep.subr.bf16.mxu0 0
    %4133 = vmatpush1.bf16.msra.mxu0 %v3790
    %4134 = vmatprep.subr.bf16.mxu0 0
    %4135 = vmatpush1.bf16.msra.mxu0 %v3791
    %4136 = vmatprep.subr.bf16.mxu0 0
    %4137 = vmatpush1.bf16.msra.mxu0 %v3792
    %4138 = vmatprep.subr.bf16.mxu0 0
    %4139 = vmatpush1.bf16.msra.mxu0 %v3793
    %4140 = vmatprep.subr.bf16.mxu0 0
    %4141 = vmatpush1.bf16.msra.mxu0 %v3794
    %4142 = vmatprep.mubr.bf16.mxu0 %v2947
    %4143 = vmatmul.mubr.bf16.gmra.mrb[0].mxu0 %v2946
    %v4144 = vpop.f32.mrb[0].mxu0
    %v4145 = vadd.f32 %v4104, %v4144
    %v4146 = vpop.f32.mrb[0].mxu0
    %v4147 = vpop.f32.mrb[0].mxu0
    %v4148 = vadd.f32 %v4107, %v4147
    %v4149 = vpop.f32.mrb[0].mxu0
    %4150 = vdwg.mxu0
    %4151 = vmatprep.subr.bf16.mxu0 0
    %4152 = vmatpush1.bf16.msra.mxu0 %v3795
    %4153 = vmatprep.subr.bf16.mxu0 0
    %4154 = vmatpush1.bf16.msra.mxu0 %v3796
    %4155 = vmatprep.subr.bf16.mxu0 0
    %4156 = vmatpush1.bf16.msra.mxu0 %v3797
    %4157 = vmatprep.subr.bf16.mxu0 0
    %4158 = vmatpush1.bf16.msra.mxu0 %v3798
    %4159 = vmatprep.subr.bf16.mxu0 0
    %4160 = vmatpush1.bf16.msra.mxu0 %v3799
    %4161 = vmatprep.subr.bf16.mxu0 0
    %4162 = vmatpush1.bf16.msra.mxu0 %v3800
    %4163 = vmatprep.subr.bf16.mxu0 0
    %4164 = vmatpush1.bf16.msra.mxu0 %v3801
    %4165 = vmatprep.subr.bf16.mxu0 0
    %4166 = vmatpush1.bf16.msra.mxu0 %v3802
    %4167 = vmatprep.subr.bf16.mxu0 0
    %4168 = vmatpush1.bf16.msra.mxu0 %v3803
    %4169 = vmatprep.subr.bf16.mxu0 0
    %4170 = vmatpush1.bf16.msra.mxu0 %v3804
    %4171 = vmatprep.subr.bf16.mxu0 0
    %4172 = vmatpush1.bf16.msra.mxu0 %v3805
    %4173 = vmatprep.subr.bf16.mxu0 0
    %4174 = vmatpush1.bf16.msra.mxu0 %v3806
    %4175 = vmatprep.subr.bf16.mxu0 0
    %4176 = vmatpush1.bf16.msra.mxu0 %v3807
    %4177 = vmatprep.subr.bf16.mxu0 0
    %4178 = vmatpush1.bf16.msra.mxu0 %v3808
    %4179 = vmatprep.subr.bf16.mxu0 0
    %4180 = vmatpush1.bf16.msra.mxu0 %v3809
    %4181 = vmatprep.subr.bf16.mxu0 0
    %4182 = vmatpush1.bf16.msra.mxu0 %v3810
    %4183 = vmatprep.mubr.bf16.mxu0 %v2949
    %4184 = vmatmul.mubr.bf16.gmra.mrb[0].mxu0 %v2948
    %v4185 = vpop.f32.mrb[0].mxu0
    %v4186 = vadd.f32 %v4145, %v4185
    %v4187 = vpop.f32.mrb[0].mxu0
    %v4188 = vpop.f32.mrb[0].mxu0
    %v4189 = vadd.f32 %v4148, %v4188
    %v4190 = vpop.f32.mrb[0].mxu0
    %4191 = vdwg.mxu0
    %4192 = vmatprep.subr.bf16.mxu0 0
    %4193 = vmatpush1.bf16.msra.mxu0 %v3811
    %4194 = vmatprep.subr.bf16.mxu0 0
    %4195 = vmatpush1.bf16.msra.mxu0 %v3812
    %4196 = vmatprep.subr.bf16.mxu0 0
    %4197 = vmatpush1.bf16.msra.mxu0 %v3813
    %4198 = vmatprep.subr.bf16.mxu0 0
    %4199 = vmatpush1.bf16.msra.mxu0 %v3814
    %4200 = vmatprep.subr.bf16.mxu0 0
    %4201 = vmatpush1.bf16.msra.mxu0 %v3815
    %4202 = vmatprep.subr.bf16.mxu0 0
    %4203 = vmatpush1.bf16.msra.mxu0 %v3816
    %4204 = vmatprep.subr.bf16.mxu0 0
    %4205 = vmatpush1.bf16.msra.mxu0 %v3817
    %4206 = vmatprep.subr.bf16.mxu0 0
    %4207 = vmatpush1.bf16.msra.mxu0 %v3818
    %4208 = vmatprep.subr.bf16.mxu0 0
    %4209 = vmatpush1.bf16.msra.mxu0 %v3819
    %4210 = vmatprep.subr.bf16.mxu0 0
    %4211 = vmatpush1.bf16.msra.mxu0 %v3820
    %4212 = vmatprep.subr.bf16.mxu0 0
    %4213 = vmatpush1.bf16.msra.mxu0 %v3821
    %4214 = vmatprep.subr.bf16.mxu0 0
    %4215 = vmatpush1.bf16.msra.mxu0 %v3822
    %4216 = vmatprep.subr.bf16.mxu0 0
    %4217 = vmatpush1.bf16.msra.mxu0 %v3823
    %4218 = vmatprep.subr.bf16.mxu0 0
    %4219 = vmatpush1.bf16.msra.mxu0 %v3824
    %4220 = vmatprep.subr.bf16.mxu0 0
    %4221 = vmatpush1.bf16.msra.mxu0 %v3825
    %4222 = vmatprep.subr.bf16.mxu0 0
    %4223 = vmatpush1.bf16.msra.mxu0 %v3826
    %4224 = vmatprep.mubr.bf16.mxu0 %v2951
    %4225 = vmatmul.mubr.bf16.gmra.mrb[0].mxu0 %v2950
    %v4226 = vpop.f32.mrb[0].mxu0
    %v4227 = vadd.f32 %v4186, %v4226
    %v4228 = vpop.f32.mrb[0].mxu0
    %v4229 = vpop.f32.mrb[0].mxu0
    %v4230 = vadd.f32 %v4189, %v4229
    %v4231 = vpop.f32.mrb[0].mxu0
    %4232 = vdwg.mxu0
    %4233 = vmatprep.subr.bf16.mxu0 0
    %4234 = vmatpush1.bf16.msra.mxu0 %v3827
    %4235 = vmatprep.subr.bf16.mxu0 0
    %4236 = vmatpush1.bf16.msra.mxu0 %v3828
    %4237 = vmatprep.subr.bf16.mxu0 0
    %4238 = vmatpush1.bf16.msra.mxu0 %v3829
    %4239 = vmatprep.subr.bf16.mxu0 0
    %4240 = vmatpush1.bf16.msra.mxu0 %v3830
    %4241 = vmatprep.subr.bf16.mxu0 0
    %4242 = vmatpush1.bf16.msra.mxu0 %v3831
    %4243 = vmatprep.subr.bf16.mxu0 0
    %4244 = vmatpush1.bf16.msra.mxu0 %v3832
    %4245 = vmatprep.subr.bf16.mxu0 0
    %4246 = vmatpush1.bf16.msra.mxu0 %v3833
    %4247 = vmatprep.subr.bf16.mxu0 0
    %4248 = vmatpush1.bf16.msra.mxu0 %v3834
    %4249 = vmatprep.subr.bf16.mxu0 0
    %4250 = vmatpush1.bf16.msra.mxu0 %v3835
    %4251 = vmatprep.subr.bf16.mxu0 0
    %4252 = vmatpush1.bf16.msra.mxu0 %v3836
    %4253 = vmatprep.subr.bf16.mxu0 0
    %4254 = vmatpush1.bf16.msra.mxu0 %v3837
    %4255 = vmatprep.subr.bf16.mxu0 0
    %4256 = vmatpush1.bf16.msra.mxu0 %v3838
    %4257 = vmatprep.subr.bf16.mxu0 0
    %4258 = vmatpush1.bf16.msra.mxu0 %v3839
    %4259 = vmatprep.subr.bf16.mxu0 0
    %4260 = vmatpush1.bf16.msra.mxu0 %v3840
    %4261 = vmatprep.subr.bf16.mxu0 0
    %4262 = vmatpush1.bf16.msra.mxu0 %v3841
    %4263 = vmatprep.subr.bf16.mxu0 0
    %4264 = vmatpush1.bf16.msra.mxu0 %v3842
    %4265 = vmatprep.mubr.bf16.mxu0 %v2953
    %4266 = vmatmul.mubr.bf16.gmra.mrb[0].mxu0 %v2952
    %v4267 = vpop.f32.mrb[0].mxu0
    %v4268 = vadd.f32 %v4227, %v4267
    %v4269 = vpop.f32.mrb[0].mxu0
    %v4270 = vpop.f32.mrb[0].mxu0
    %v4271 = vadd.f32 %v4230, %v4270
    %v4272 = vpop.f32.mrb[0].mxu0
    %4273 = vdwg.mxu0
    %4274 = vmatprep.subr.bf16.mxu0 0
    %4275 = vmatpush1.bf16.msra.mxu0 %v3843
    %4276 = vmatprep.subr.bf16.mxu0 0
    %4277 = vmatpush1.bf16.msra.mxu0 %v3844
    %4278 = vmatprep.subr.bf16.mxu0 0
    %4279 = vmatpush1.bf16.msra.mxu0 %v3845
    %4280 = vmatprep.subr.bf16.mxu0 0
    %4281 = vmatpush1.bf16.msra.mxu0 %v3846
    %4282 = vmatprep.subr.bf16.mxu0 0
    %4283 = vmatpush1.bf16.msra.mxu0 %v3847
    %4284 = vmatprep.subr.bf16.mxu0 0
    %4285 = vmatpush1.bf16.msra.mxu0 %v3848
    %4286 = vmatprep.subr.bf16.mxu0 0
    %4287 = vmatpush1.bf16.msra.mxu0 %v3849
    %4288 = vmatprep.subr.bf16.mxu0 0
    %4289 = vmatpush1.bf16.msra.mxu0 %v3850
    %4290 = vmatprep.subr.bf16.mxu0 0
    %4291 = vmatpush1.bf16.msra.mxu0 %v3851
    %4292 = vmatprep.subr.bf16.mxu0 0
    %4293 = vmatpush1.bf16.msra.mxu0 %v3852
    %4294 = vmatprep.subr.bf16.mxu0 0
    %4295 = vmatpush1.bf16.msra.mxu0 %v3853
    %4296 = vmatprep.subr.bf16.mxu0 0
    %4297 = vmatpush1.bf16.msra.mxu0 %v3854
    %4298 = vmatprep.subr.bf16.mxu0 0
    %4299 = vmatpush1.bf16.msra.mxu0 %v3855
    %4300 = vmatprep.subr.bf16.mxu0 0
    %4301 = vmatpush1.bf16.msra.mxu0 %v3856
    %4302 = vmatprep.subr.bf16.mxu0 0
    %4303 = vmatpush1.bf16.msra.mxu0 %v3857
    %4304 = vmatprep.subr.bf16.mxu0 0
    %4305 = vmatpush1.bf16.msra.mxu0 %v3858
    %4306 = vmatprep.mubr.bf16.mxu0 %v2955
    %4307 = vmatmul.mubr.bf16.gmra.mrb[0].mxu0 %v2954
    %v4308 = vpop.f32.mrb[0].mxu0
    %v4309 = vadd.f32 %v4268, %v4308
    %v4310 = vpop.f32.mrb[0].mxu0
    %v4311 = vpop.f32.mrb[0].mxu0
    %v4312 = vadd.f32 %v4271, %v4311
    %v4313 = vpop.f32.mrb[0].mxu0
    %4314 = vdwg.mxu0
    %v4315 = vadd.f32 %v2282, %v4309
    %v4316 = vadd.f32 %v2283, %v4312
    %v4317 = vsel %vm78, %v4315, 0.0
    %4318 = vadd.xlane.f32.xlu0 %v4317
    %v4319 = vpop.xlane.xlu0 %4318
    %v4320 = vsel %vm78, %v4316, 0.0
    %4321 = vadd.xlane.f32.xlu0 %v4320
    %v4322 = vpop.xlane.xlu0 %4321
    %v4323 = vmul.f32 %v4319, %v2245
    %v4324 = vmul.f32 %v4322, %v2245
    %v4325 = vsub.f32 %v4315, %v4323
    %v4326 = vsub.f32 %v4316, %v4324
    %v4327 = vmul.f32 %v4325, %v4325
    %v4328 = vmul.f32 %v4326, %v4326
    %v4329 = vsel %vm78, %v4327, 0.0
    %4330 = vadd.xlane.f32.xlu0 %v4329
    %v4331 = vpop.xlane.xlu0 %4330
    %v4332 = vsel %vm78, %v4328, 0.0
    %4333 = vadd.xlane.f32.xlu0 %v4332
    %v4334 = vpop.xlane.xlu0 %4333
    %v4335 = vmul.f32 %v4331, %v2245
    %v4336 = vmul.f32 %v4334, %v2245
    %v4337 = vadd.f32 %v4335, 1e-05
    %v4338 = vadd.f32 %v4336, 1e-05
    %v4339 = vrsqrt.pop %v4337
    %v4340 = vrsqrt.pop %v4338
    %v4341 = vmul.f32 %v4325, %v4339
    %v4342 = vmul.f32 %v4326, %v4340
    %v4343 = vld [vmem:[%s11] sm:$0x1]
    %v4345 = vlaneseq
    %v4346 = vshrl.u32 %v4345, 7
    %v4347 = vsub.s32 0, %v4346
    %v4348 = vrot.slane %v4343, %v4347
    %v4350 = vmul.f32 %v4341, %v4348
    %v4351 = vmul.f32 %v4342, %v4348
    %v4352 = vld [vmem:[%s12] sm:$0x1]
    %v4354 = vlaneseq
    %v4355 = vshrl.u32 %v4354, 7
    %v4356 = vsub.s32 0, %v4355
    %v4357 = vrot.slane %v4352, %v4356
    %v4359 = vadd.f32 %v4350, %v4357
    %v4360 = vadd.f32 %v4351, %v4357
    %v4361 = vpack.c.bf16 %v4360, %v4359
    %v4362 = vld [vmem:[%s13] sm:$0xf]
    %v4363 = vld [vmem:[%s13 + $0x4] sm:$0xf]
    %v4364 = vld [vmem:[%s13 + $0x8] sm:$0xf]
    %v4365 = vld [vmem:[%s13 + $0xc] sm:$0xf]
    %v4366 = vld [vmem:[%s14] sm:$0x1]
    %v4368 = vlaneseq
    %v4369 = vshrl.u32 %v4368, 7
    %v4370 = vsub.s32 0, %v4369
    %v4371 = vrot.slane %v4366, %v4370
    %v4377 = vunpack.c.l.b16 %v4362
    %v4378 = vunpack.c.l.b16 %v4363
    %v4379 = vunpack.c.l.b16 %v4364
    %v4380 = vunpack.c.l.b16 %v4365
    %v4381 = vpack.c.b16 %v4378, %v4377
    %v4382 = vpack.c.b16 %v4380, %v4379
    %v4386 = vsel %vm78, %v4361, 0
    %4388 = vmatprep.subr.bf16.mxu0 0
    %4389 = vmatpush1.bf16.msra.mxu0 %v4381
    %4390 = vmatprep.subr.bf16.mxu0 0
    %4391 = vmatpush1.bf16.msra.mxu0 %v4382
    %4392 = vmatprep.subr.bf16.mxu0 0
    %4393 = vmatpush1.bf16.msra.mxu0 0
    %4394 = vmatprep.subr.bf16.mxu0 0
    %4395 = vmatpush1.bf16.msra.mxu0 0
    %4396 = vmatprep.subr.bf16.mxu0 0
    %4397 = vmatpush1.bf16.msra.mxu0 0
    %4398 = vmatprep.subr.bf16.mxu0 0
    %4399 = vmatpush1.bf16.msra.mxu0 0
    %4400 = vmatprep.subr.bf16.mxu0 0
    %4401 = vmatpush1.bf16.msra.mxu0 0
    %4402 = vmatprep.subr.bf16.mxu0 0
    %4403 = vmatpush1.bf16.msra.mxu0 0
    %4404 = vmatprep.subr.bf16.mxu0 0
    %4405 = vmatpush1.bf16.msra.mxu0 0
    %4406 = vmatprep.subr.bf16.mxu0 0
    %4407 = vmatpush1.bf16.msra.mxu0 0
    %4408 = vmatprep.subr.bf16.mxu0 0
    %4409 = vmatpush1.bf16.msra.mxu0 0
    %4410 = vmatprep.subr.bf16.mxu0 0
    %4411 = vmatpush1.bf16.msra.mxu0 0
    %4412 = vmatprep.subr.bf16.mxu0 0
    %4413 = vmatpush1.bf16.msra.mxu0 0
    %4414 = vmatprep.subr.bf16.mxu0 0
    %4415 = vmatpush1.bf16.msra.mxu0 0
    %4416 = vmatprep.subr.bf16.mxu0 0
    %4417 = vmatpush1.bf16.msra.mxu0 0
    %4418 = vmatprep.subr.bf16.mxu0 0
    %4419 = vmatpush1.bf16.msra.mxu0 0
    %4420 = vmatprep.mubr.bf16.mxu0 0
    %4421 = vmatmul.mubr.bf16.gmra.mrb[0].mxu0 %v4386
    %v4422 = vpop.f32.mrb[0].mxu0
    %v4423 = vadd.f32 %v4371, %v4422
    %v4424 = vpop.f32.mrb[0].mxu0
    %v4425 = vpop.f32.mrb[0].mxu0
    %v4426 = vadd.f32 %v4371, %v4425
    %v4427 = vpop.f32.mrb[0].mxu0
    %4428 = vdwg.mxu0
    %4429 = vst [vmem:[#allocation2] sm:$0xff] %v4423
    %4430 = vst [vmem:[#allocation2 + $0x8] sm:$0xff] %v4426
    // Predicated region
    $region62: #{tpu_custom_call.1} parent=1 // pred_check
      _
    $region63: #{tpu_custom_call.1} parent=1 // pred_check_branch
      %4432 = sbr.rel (0) target = $region65
    $region64: #{tpu_custom_call.1} parent=1 // pred_region
      %s4434 = ssub.s32 256, 256
      %4435 = vsyncadd [#allocation3], %s4434
      %s4436 = sshll.u32 [#allocation2], 4
      %s4437 = int_to_ptr.vmem [resolvable:$true] %s4436
      %4442 = dma.vmem_to_hbm [thread:$0]  %s4437, 256, %s15, [#allocation3], 128, 128, 8
    $region65: #{tpu_custom_call.1} parent=1 // pred_fallthru
      _
    // Predicated region
    $region66: #{tpu_custom_call.1} parent=1 // pred_check
      _
    $region67: #{tpu_custom_call.1} parent=1 // pred_check_branch
      %4444 = sbr.rel (0) target = $region69
    $region68: #{tpu_custom_call.1} parent=1 // pred_region
      %4445 = dma.done [#allocation3], 256
    $region69: #{tpu_custom_call.1} parent=1 // pred_fallthru
      _
    %4446 = vsyncpa [#allocation3], 1

// kernel: tpu_custom_call.1
$region0: #{tpu_custom_call.1}
  #allocation0 [shape = 'u32[]', space=smem, size = 0x4, offset = 0x4, fixed_abs, tag = 'smem constant byte address 0x4 - core index']
  #allocation1 [shape = 'u32[144,128]{1,0:T(1,128)}', space=vmem, size = 0x12000, scoped, tag = 'internal scratch']
  %s0 = inlined_call_operand.vmem [shape: f32[2,8,32], index: 0, kind: input, shape index: {}]
  %s1 = inlined_call_operand.vmem [shape: bf16[32,96], index: 1, kind: input, shape index: {}]
  %s2 = inlined_call_operand.vmem [shape: f32[1,96], index: 2, kind: input, shape index: {}]
  %s3 = inlined_call_operand.vmem [shape: bf16[32,32], index: 3, kind: input, shape index: {}]
  %s4 = inlined_call_operand.vmem [shape: f32[1,32], index: 4, kind: input, shape index: {}]
  %s5 = inlined_call_operand.vmem [shape: f32[1,32], index: 5, kind: input, shape index: {}]
  %s6 = inlined_call_operand.vmem [shape: f32[1,32], index: 6, kind: input, shape index: {}]
  %s7 = inlined_call_operand.vmem [shape: bf16[32,2048], index: 7, kind: input, shape index: {}]
  %s8 = inlined_call_operand.vmem [shape: f32[1,2048], index: 8, kind: input, shape index: {}]
  %s9 = inlined_call_operand.vmem [shape: bf16[2048,32], index: 9, kind: input, shape index: {}]
  %s10 = inlined_call_operand.vmem [shape: f32[1,32], index: 10, kind: input, shape index: {}]
  %s11 = inlined_call_operand.vmem [shape: f32[1,32], index: 11, kind: input, shape index: {}]
  %s12 = inlined_call_operand.vmem [shape: f32[1,32], index: 12, kind: input, shape index: {}]
  %s13 = inlined_call_operand.vmem [shape: bf16[32,128], index: 13, kind: input, shape index: {}]
  %s14 = inlined_call_operand.vmem [shape: f32[1,128], index: 14, kind: input, shape index: {}]
  %s15 = inlined_call_operand.hbm [shape: f32[16,128], index: 15, kind: output, shape index: {}]
  %s16 = sld [smem:[#allocation0]]
  $region70: #{tpu_custom_call.1} parent=0
    _
  %s18 = ssub.s32 1, %s16
  %s19 = scalar_select 0, %s18, %s16
  $region1: #{tpu_custom_call.1} parent=0
    #allocation2 [shape = 'u8[8192]{0}', space=vmem, size = 0x2000, scoped, tag = 'output window, operand 0, single buffered']
    #allocation3 [shape = 's32[1]{0}', space=sflag, size = 0x4, scoped, tag = 'scoped memory for tpu_custom_call.1']
    %20 = vsyncpa [#allocation3], 0
    // Predicated region
    $region2: #{tpu_custom_call.1} parent=1 // pred_check
      _
    $region3: #{tpu_custom_call.1} parent=1 // pred_check_branch
      %22 = sbr.rel (0) target = $region5
    $region4: #{tpu_custom_call.1} parent=1 // pred_region
      _
    $region5: #{tpu_custom_call.1} parent=1 // pred_fallthru
      _
    // Predicated region
    $region6: #{tpu_custom_call.1} parent=1 // pred_check
      _
    $region7: #{tpu_custom_call.1} parent=1 // pred_check_branch
      %24 = sbr.rel (0) target = $region9
    $region8: #{tpu_custom_call.1} parent=1 // pred_region
      _
    $region9: #{tpu_custom_call.1} parent=1 // pred_fallthru
      _
    // Predicated region
    $region10: #{tpu_custom_call.1} parent=1 // pred_check
      _
    $region11: #{tpu_custom_call.1} parent=1 // pred_check_branch
      %26 = sbr.rel (0) target = $region13
    $region12: #{tpu_custom_call.1} parent=1 // pred_region
      _
    $region13: #{tpu_custom_call.1} parent=1 // pred_fallthru
      _
    // Predicated region
    $region14: #{tpu_custom_call.1} parent=1 // pred_check
      _
    $region15: #{tpu_custom_call.1} parent=1 // pred_check_branch
      %28 = sbr.rel (0) target = $region17
    $region16: #{tpu_custom_call.1} parent=1 // pred_region
      _
    $region17: #{tpu_custom_call.1} parent=1 // pred_fallthru
      _
    // Predicated region
    $region18: #{tpu_custom_call.1} parent=1 // pred_check
      _
    $region19: #{tpu_custom_call.1} parent=1 // pred_check_branch
      %30 = sbr.rel (0) target = $region21
    $region20: #{tpu_custom_call.1} parent=1 // pred_region
      _
    $region21: #{tpu_custom_call.1} parent=1 // pred_fallthru
      _
    // Predicated region
    $region22: #{tpu_custom_call.1} parent=1 // pred_check
      _
    $region23: #{tpu_custom_call.1} parent=1 // pred_check_branch
      %32 = sbr.rel (0) target = $region25
    $region24: #{tpu_custom_call.1} parent=1 // pred_region
      _
    $region25: #{tpu_custom_call.1} parent=1 // pred_fallthru
      _
    // Predicated region
    $region26: #{tpu_custom_call.1} parent=1 // pred_check
      _
    $region27: #{tpu_custom_call.1} parent=1 // pred_check_branch
      %34 = sbr.rel (0) target = $region29
    $region28: #{tpu_custom_call.1} parent=1 // pred_region
      _
    $region29: #{tpu_custom_call.1} parent=1 // pred_fallthru
      _
    // Predicated region
    $region30: #{tpu_custom_call.1} parent=1 // pred_check
      _
    $region31: #{tpu_custom_call.1} parent=1 // pred_check_branch
      %36 = sbr.rel (0) target = $region33
    $region32: #{tpu_custom_call.1} parent=1 // pred_region
      _
    $region33: #{tpu_custom_call.1} parent=1 // pred_fallthru
      _
    // Predicated region
    $region34: #{tpu_custom_call.1} parent=1 // pred_check
      _
    $region35: #{tpu_custom_call.1} parent=1 // pred_check_branch
      %38 = sbr.rel (0) target = $region37
    $region36: #{tpu_custom_call.1} parent=1 // pred_region
      _
    $region37: #{tpu_custom_call.1} parent=1 // pred_fallthru
      _
    // Predicated region
    $region38: #{tpu_custom_call.1} parent=1 // pred_check
      _
    $region39: #{tpu_custom_call.1} parent=1 // pred_check_branch
      %40 = sbr.rel (0) target = $region41
    $region40: #{tpu_custom_call.1} parent=1 // pred_region
      _
    $region41: #{tpu_custom_call.1} parent=1 // pred_fallthru
      _
    // Predicated region
    $region42: #{tpu_custom_call.1} parent=1 // pred_check
      _
    $region43: #{tpu_custom_call.1} parent=1 // pred_check_branch
      %42 = sbr.rel (0) target = $region45
    $region44: #{tpu_custom_call.1} parent=1 // pred_region
      _
    $region45: #{tpu_custom_call.1} parent=1 // pred_fallthru
      _
    // Predicated region
    $region46: #{tpu_custom_call.1} parent=1 // pred_check
      _
    $region47: #{tpu_custom_call.1} parent=1 // pred_check_branch
      %44 = sbr.rel (0) target = $region49
    $region48: #{tpu_custom_call.1} parent=1 // pred_region
      _
    $region49: #{tpu_custom_call.1} parent=1 // pred_fallthru
      _
    // Predicated region
    $region50: #{tpu_custom_call.1} parent=1 // pred_check
      _
    $region51: #{tpu_custom_call.1} parent=1 // pred_check_branch
      %46 = sbr.rel (0) target = $region53
    $region52: #{tpu_custom_call.1} parent=1 // pred_region
      _
    $region53: #{tpu_custom_call.1} parent=1 // pred_fallthru
      _
    // Predicated region
    $region54: #{tpu_custom_call.1} parent=1 // pred_check
      _
    $region55: #{tpu_custom_call.1} parent=1 // pred_check_branch
      %48 = sbr.rel (0) target = $region57
    $region56: #{tpu_custom_call.1} parent=1 // pred_region
      _
    $region57: #{tpu_custom_call.1} parent=1 // pred_fallthru
      _
    // Predicated region
    $region58: #{tpu_custom_call.1} parent=1 // pred_check
      _
    $region59: #{tpu_custom_call.1} parent=1 // pred_check_branch
      %50 = sbr.rel (0) target = $region61
    $region60: #{tpu_custom_call.1} parent=1 // pred_region
      _
    $region61: #{tpu_custom_call.1} parent=1 // pred_fallthru
      _
    %v52 = vld [vmem:[%s0] sm:$0xff]
    %v53 = vld [vmem:[%s0 + $0x8] sm:$0xff]
    %v54 = vpack.c.bf16 %v53, %v52
    %v55 = vld [vmem:[%s1] sm:$0xf]
    %v56 = vld [vmem:[%s1 + $0x4] sm:$0xf]
    %v57 = vld [vmem:[%s1 + $0x8] sm:$0xf]
    %v58 = vld [vmem:[%s1 + $0xc] sm:$0xf]
    %v59 = vld [vmem:[%s2] sm:$0x1]
    %v61 = vlaneseq
    %v62 = vshrl.u32 %v61, 7
    %v63 = vsub.s32 0, %v62
    %v64 = vrot.slane %v59, %v63
    %v70 = vunpack.c.l.b16 %v55
    %v71 = vunpack.c.l.b16 %v56
    %v72 = vunpack.c.l.b16 %v57
    %v73 = vunpack.c.l.b16 %v58
    %v74 = vpack.c.b16 %v71, %v70
    %v75 = vpack.c.b16 %v73, %v72
    %vm78 = vcmask 261120
    %v80 = vsel %vm78, %v54, 0
    %82 = vmatprep.subr.bf16.mxu0 0
    %83 = vmatpush1.bf16.msra.mxu0 %v74
    %84 = vmatprep.subr.bf16.mxu0 0
    %85 = vmatpush1.bf16.msra.mxu0 %v75
    %86 = vmatprep.subr.bf16.mxu0 0
    %87 = vmatpush1.bf16.msra.mxu0 0
    %88 = vmatprep.subr.bf16.mxu0 0
    %89 = vmatpush1.bf16.msra.mxu0 0
    %90 = vmatprep.subr.bf16.mxu0 0
    %91 = vmatpush1.bf16.msra.mxu0 0
    %92 = vmatprep.subr.bf16.mxu0 0
    %93 = vmatpush1.bf16.msra.mxu0 0
    %94 = vmatprep.subr.bf16.mxu0 0
    %95 = vmatpush1.bf16.msra.mxu0 0
    %96 = vmatprep.subr.bf16.mxu0 0
    %97 = vmatpush1.bf16.msra.mxu0 0
    %98 = vmatprep.subr.bf16.mxu0 0
    %99 = vmatpush1.bf16.msra.mxu0 0
    %100 = vmatprep.subr.bf16.mxu0 0
    %101 = vmatpush1.bf16.msra.mxu0 0
    %102 = vmatprep.subr.bf16.mxu0 0
    %103 = vmatpush1.bf16.msra.mxu0 0
    %104 = vmatprep.subr.bf16.mxu0 0
    %105 = vmatpush1.bf16.msra.mxu0 0
    %106 = vmatprep.subr.bf16.mxu0 0
    %107 = vmatpush1.bf16.msra.mxu0 0
    %108 = vmatprep.subr.bf16.mxu0 0
    %109 = vmatpush1.bf16.msra.mxu0 0
    %110 = vmatprep.subr.bf16.mxu0 0
    %111 = vmatpush1.bf16.msra.mxu0 0
    %112 = vmatprep.subr.bf16.mxu0 0
    %113 = vmatpush1.bf16.msra.mxu0 0
    %114 = vmatprep.mubr.bf16.mxu0 0
    %115 = vmatmul.mubr.bf16.gmra.mrb[0].mxu0 %v80
    %v116 = vpop.f32.mrb[0].mxu0
    %v117 = vadd.f32 %v64, %v116
    %v118 = vpop.f32.mrb[0].mxu0
    %v119 = vpop.f32.mrb[0].mxu0
    %v120 = vadd.f32 %v64, %v119
    %v121 = vpop.f32.mrb[0].mxu0
    %122 = vdwg.mxu0
    %125 = vrot.lane.b32.xlu0 %v117, 120
    %v126 = vpop.permute.xlu0 %125
    %127 = vrot.lane.b32.xlu0 %v120, 120
    %v128 = vpop.permute.xlu0 %127
    %131 = vrot.lane.b32.xlu0 %v117, 112
    %v132 = vpop.permute.xlu0 %131
    %133 = vrot.lane.b32.xlu0 %v120, 112
    %v134 = vpop.permute.xlu0 %133
    %137 = vrot.lane.b32.xlu0 %v117, 104
    %v138 = vpop.permute.xlu0 %137
    %139 = vrot.lane.b32.xlu0 %v120, 104
    %v140 = vpop.permute.xlu0 %139
    %v143 = vpack.c.bf16 %v117, %v117
    %v144 = vpack.c.bf16 %v120, %v120
    %v145 = vpack.c.bf16 %v126, %v126
    %v146 = vpack.c.bf16 %v128, %v128
    %v147 = vpack.c.bf16 %v132, %v132
    %v148 = vpack.c.bf16 %v134, %v134
    %v149 = vpack.c.bf16 %v138, %v138
    %v150 = vpack.c.bf16 %v140, %v140
    %152 = vrot.lane.b32.xlu0 %v143, 96
    %v153 = vpop.permute.xlu0 %152
    %vm154 = vcmask 64512
    %v156 = vsel %vm154, %v143, 0
    %v159 = vsel %vm154, %v153, 0
    %161 = vmatprep.subr.bf16.mxu0 0
    %162 = vmatpush1.bf16.xpose.msra.mxu0 %v159
    %163 = vmatprep.subr.bf16.mxu0 0
    %164 = vmatpush1.bf16.xpose.msra.mxu0 0
    %165 = vmatprep.subr.bf16.mxu0 0
    %166 = vmatpush1.bf16.xpose.msra.mxu0 0
    %167 = vmatprep.subr.bf16.mxu0 0
    %168 = vmatpush1.bf16.xpose.msra.mxu0 0
    %169 = vmatprep.subr.bf16.mxu0 0
    %170 = vmatpush1.bf16.xpose.msra.mxu0 0
    %171 = vmatprep.subr.bf16.mxu0 0
    %172 = vmatpush1.bf16.xpose.msra.mxu0 0
    %173 = vmatprep.subr.bf16.mxu0 0
    %174 = vmatpush1.bf16.xpose.msra.mxu0 0
    %175 = vmatprep.subr.bf16.mxu0 0
    %176 = vmatpush1.bf16.xpose.msra.mxu0 0
    %177 = vmatprep.subr.bf16.mxu0 0
    %178 = vmatpush1.bf16.xpose.msra.mxu0 0
    %179 = vmatprep.subr.bf16.mxu0 0
    %180 = vmatpush1.bf16.xpose.msra.mxu0 0
    %181 = vmatprep.subr.bf16.mxu0 0
    %182 = vmatpush1.bf16.xpose.msra.mxu0 0
    %183 = vmatprep.subr.bf16.mxu0 0
    %184 = vmatpush1.bf16.xpose.msra.mxu0 0
    %185 = vmatprep.subr.bf16.mxu0 0
    %186 = vmatpush1.bf16.xpose.msra.mxu0 0
    %187 = vmatprep.subr.bf16.mxu0 0
    %188 = vmatpush1.bf16.xpose.msra.mxu0 0
    %189 = vmatprep.subr.bf16.mxu0 0
    %190 = vmatpush1.bf16.xpose.msra.mxu0 0
    %191 = vmatprep.subr.bf16.mxu0 0
    %192 = vmatpush1.bf16.xpose.msra.mxu0 0
    %193 = vmatprep.mubr.bf16.mxu0 0
    %194 = vmatmul.mubr.bf16.gmra.mrb[0].mxu0 %v156
    %v195 = vpop.f32.mrb[0].mxu0
    %v196 = vadd.f32 0.0, %v195
    %v197 = vpop.f32.mrb[0].mxu0
    %v198 = vpop.f32.mrb[0].mxu0
    %v199 = vpop.f32.mrb[0].mxu0
    %200 = vdwg.mxu0
    %202 = vrot.lane.b32.xlu0 %v144, 96
    %v203 = vpop.permute.xlu0 %202
    %v205 = vsel %vm154, %v144, 0
    %v208 = vsel %vm154, %v203, 0
    %210 = vmatprep.subr.bf16.mxu0 0
    %211 = vmatpush1.bf16.xpose.msra.mxu0 %v208
    %212 = vmatprep.subr.bf16.mxu0 0
    %213 = vmatpush1.bf16.xpose.msra.mxu0 0
    %214 = vmatprep.subr.bf16.mxu0 0
    %215 = vmatpush1.bf16.xpose.msra.mxu0 0
    %216 = vmatprep.subr.bf16.mxu0 0
    %217 = vmatpush1.bf16.xpose.msra.mxu0 0
    %218 = vmatprep.subr.bf16.mxu0 0
    %219 = vmatpush1.bf16.xpose.msra.mxu0 0
    %220 = vmatprep.subr.bf16.mxu0 0
    %221 = vmatpush1.bf16.xpose.msra.mxu0 0
    %222 = vmatprep.subr.bf16.mxu0 0
    %223 = vmatpush1.bf16.xpose.msra.mxu0 0
    %224 = vmatprep.subr.bf16.mxu0 0
    %225 = vmatpush1.bf16.xpose.msra.mxu0 0
    %226 = vmatprep.subr.bf16.mxu0 0
    %227 = vmatpush1.bf16.xpose.msra.mxu0 0
    %228 = vmatprep.subr.bf16.mxu0 0
    %229 = vmatpush1.bf16.xpose.msra.mxu0 0
    %230 = vmatprep.subr.bf16.mxu0 0
    %231 = vmatpush1.bf16.xpose.msra.mxu0 0
    %232 = vmatprep.subr.bf16.mxu0 0
    %233 = vmatpush1.bf16.xpose.msra.mxu0 0
    %234 = vmatprep.subr.bf16.mxu0 0
    %235 = vmatpush1.bf16.xpose.msra.mxu0 0
    %236 = vmatprep.subr.bf16.mxu0 0
    %237 = vmatpush1.bf16.xpose.msra.mxu0 0
    %238 = vmatprep.subr.bf16.mxu0 0
    %239 = vmatpush1.bf16.xpose.msra.mxu0 0
    %240 = vmatprep.subr.bf16.mxu0 0
    %241 = vmatpush1.bf16.xpose.msra.mxu0 0
    %242 = vmatprep.mubr.bf16.mxu0 0
    %243 = vmatmul.mubr.bf16.gmra.mrb[0].mxu0 %v205
    %v244 = vpop.f32.mrb[0].mxu0
    %v245 = vadd.f32 0.0, %v244
    %v246 = vpop.f32.mrb[0].mxu0
    %v247 = vpop.f32.mrb[0].mxu0
    %v248 = vpop.f32.mrb[0].mxu0
    %249 = vdwg.mxu0
    %251 = vrot.lane.b32.xlu0 %v145, 96
    %v252 = vpop.permute.xlu0 %251
    %v254 = vsel %vm154, %v145, 0
    %v257 = vsel %vm154, %v252, 0
    %259 = vmatprep.subr.bf16.mxu0 0
    %260 = vmatpush1.bf16.xpose.msra.mxu0 %v257
    %261 = vmatprep.subr.bf16.mxu0 0
    %262 = vmatpush1.bf16.xpose.msra.mxu0 0
    %263 = vmatprep.subr.bf16.mxu0 0
    %264 = vmatpush1.bf16.xpose.msra.mxu0 0
    %265 = vmatprep.subr.bf16.mxu0 0
    %266 = vmatpush1.bf16.xpose.msra.mxu0 0
    %267 = vmatprep.subr.bf16.mxu0 0
    %268 = vmatpush1.bf16.xpose.msra.mxu0 0
    %269 = vmatprep.subr.bf16.mxu0 0
    %270 = vmatpush1.bf16.xpose.msra.mxu0 0
    %271 = vmatprep.subr.bf16.mxu0 0
    %272 = vmatpush1.bf16.xpose.msra.mxu0 0
    %273 = vmatprep.subr.bf16.mxu0 0
    %274 = vmatpush1.bf16.xpose.msra.mxu0 0
    %275 = vmatprep.subr.bf16.mxu0 0
    %276 = vmatpush1.bf16.xpose.msra.mxu0 0
    %277 = vmatprep.subr.bf16.mxu0 0
    %278 = vmatpush1.bf16.xpose.msra.mxu0 0
    %279 = vmatprep.subr.bf16.mxu0 0
    %280 = vmatpush1.bf16.xpose.msra.mxu0 0
    %281 = vmatprep.subr.bf16.mxu0 0
    %282 = vmatpush1.bf16.xpose.msra.mxu0 0
    %283 = vmatprep.subr.bf16.mxu0 0
    %284 = vmatpush1.bf16.xpose.msra.mxu0 0
    %285 = vmatprep.subr.bf16.mxu0 0
    %286 = vmatpush1.bf16.xpose.msra.mxu0 0
    %287 = vmatprep.subr.bf16.mxu0 0
    %288 = vmatpush1.bf16.xpose.msra.mxu0 0
    %289 = vmatprep.subr.bf16.mxu0 0
    %290 = vmatpush1.bf16.xpose.msra.mxu0 0
    %291 = vmatprep.mubr.bf16.mxu0 0
    %292 = vmatmul.mubr.bf16.gmra.mrb[0].mxu0 %v254
    %v293 = vpop.f32.mrb[0].mxu0
    %v294 = vadd.f32 0.0, %v293
    %v295 = vpop.f32.mrb[0].mxu0
    %v296 = vpop.f32.mrb[0].mxu0
    %v297 = vpop.f32.mrb[0].mxu0
    %298 = vdwg.mxu0
    %300 = vrot.lane.b32.xlu0 %v146, 96
    %v301 = vpop.permute.xlu0 %300
    %v303 = vsel %vm154, %v146, 0
    %v306 = vsel %vm154, %v301, 0
    %308 = vmatprep.subr.bf16.mxu0 0
    %309 = vmatpush1.bf16.xpose.msra.mxu0 %v306
    %310 = vmatprep.subr.bf16.mxu0 0
    %311 = vmatpush1.bf16.xpose.msra.mxu0 0
    %312 = vmatprep.subr.bf16.mxu0 0
    %313 = vmatpush1.bf16.xpose.msra.mxu0 0
    %314 = vmatprep.subr.bf16.mxu0 0
    %315 = vmatpush1.bf16.xpose.msra.mxu0 0
    %316 = vmatprep.subr.bf16.mxu0 0
    %317 = vmatpush1.bf16.xpose.msra.mxu0 0
    %318 = vmatprep.subr.bf16.mxu0 0
    %319 = vmatpush1.bf16.xpose.msra.mxu0 0
    %320 = vmatprep.subr.bf16.mxu0 0
    %321 = vmatpush1.bf16.xpose.msra.mxu0 0
    %322 = vmatprep.subr.bf16.mxu0 0
    %323 = vmatpush1.bf16.xpose.msra.mxu0 0
    %324 = vmatprep.subr.bf16.mxu0 0
    %325 = vmatpush1.bf16.xpose.msra.mxu0 0
    %326 = vmatprep.subr.bf16.mxu0 0
    %327 = vmatpush1.bf16.xpose.msra.mxu0 0
    %328 = vmatprep.subr.bf16.mxu0 0
    %329 = vmatpush1.bf16.xpose.msra.mxu0 0
    %330 = vmatprep.subr.bf16.mxu0 0
    %331 = vmatpush1.bf16.xpose.msra.mxu0 0
    %332 = vmatprep.subr.bf16.mxu0 0
    %333 = vmatpush1.bf16.xpose.msra.mxu0 0
    %334 = vmatprep.subr.bf16.mxu0 0
    %335 = vmatpush1.bf16.xpose.msra.mxu0 0
    %336 = vmatprep.subr.bf16.mxu0 0
    %337 = vmatpush1.bf16.xpose.msra.mxu0 0
    %338 = vmatprep.subr.bf16.mxu0 0
    %339 = vmatpush1.bf16.xpose.msra.mxu0 0
    %340 = vmatprep.mubr.bf16.mxu0 0
    %341 = vmatmul.mubr.bf16.gmra.mrb[0].mxu0 %v303
    %v342 = vpop.f32.mrb[0].mxu0
    %v343 = vadd.f32 0.0, %v342
    %v344 = vpop.f32.mrb[0].mxu0
    %v345 = vpop.f32.mrb[0].mxu0
    %v346 = vpop.f32.mrb[0].mxu0
    %347 = vdwg.mxu0
    %349 = vrot.lane.b32.xlu0 %v147, 96
    %v350 = vpop.permute.xlu0 %349
    %v352 = vsel %vm154, %v147, 0
    %v355 = vsel %vm154, %v350, 0
    %357 = vmatprep.subr.bf16.mxu0 0
    %358 = vmatpush1.bf16.xpose.msra.mxu0 %v355
    %359 = vmatprep.subr.bf16.mxu0 0
    %360 = vmatpush1.bf16.xpose.msra.mxu0 0
    %361 = vmatprep.subr.bf16.mxu0 0
    %362 = vmatpush1.bf16.xpose.msra.mxu0 0
    %363 = vmatprep.subr.bf16.mxu0 0
    %364 = vmatpush1.bf16.xpose.msra.mxu0 0
    %365 = vmatprep.subr.bf16.mxu0 0
    %366 = vmatpush1.bf16.xpose.msra.mxu0 0
    %367 = vmatprep.subr.bf16.mxu0 0
    %368 = vmatpush1.bf16.xpose.msra.mxu0 0
    %369 = vmatprep.subr.bf16.mxu0 0
    %370 = vmatpush1.bf16.xpose.msra.mxu0 0
    %371 = vmatprep.subr.bf16.mxu0 0
    %372 = vmatpush1.bf16.xpose.msra.mxu0 0
    %373 = vmatprep.subr.bf16.mxu0 0
    %374 = vmatpush1.bf16.xpose.msra.mxu0 0
    %375 = vmatprep.subr.bf16.mxu0 0
    %376 = vmatpush1.bf16.xpose.msra.mxu0 0
    %377 = vmatprep.subr.bf16.mxu0 0
    %378 = vmatpush1.bf16.xpose.msra.mxu0 0
    %379 = vmatprep.subr.bf16.mxu0 0
    %380 = vmatpush1.bf16.xpose.msra.mxu0 0
    %381 = vmatprep.subr.bf16.mxu0 0
    %382 = vmatpush1.bf16.xpose.msra.mxu0 0
    %383 = vmatprep.subr.bf16.mxu0 0
    %384 = vmatpush1.bf16.xpose.msra.mxu0 0
    %385 = vmatprep.subr.bf16.mxu0 0
    %386 = vmatpush1.bf16.xpose.msra.mxu0 0
    %387 = vmatprep.subr.bf16.mxu0 0
    %388 = vmatpush1.bf16.xpose.msra.mxu0 0
    %389 = vmatprep.mubr.bf16.mxu0 0
    %390 = vmatmul.mubr.bf16.gmra.mrb[0].mxu0 %v352
    %v391 = vpop.f32.mrb[0].mxu0
    %v392 = vadd.f32 0.0, %v391
    %v393 = vpop.f32.mrb[0].mxu0
    %v394 = vpop.f32.mrb[0].mxu0
    %v395 = vpop.f32.mrb[0].mxu0
    %396 = vdwg.mxu0
    %398 = vrot.lane.b32.xlu0 %v148, 96
    %v399 = vpop.permute.xlu0 %398
    %v401 = vsel %vm154, %v148, 0
    %v404 = vsel %vm154, %v399, 0
    %406 = vmatprep.subr.bf16.mxu0 0
    %407 = vmatpush1.bf16.xpose.msra.mxu0 %v404
    %408 = vmatprep.subr.bf16.mxu0 0
    %409 = vmatpush1.bf16.xpose.msra.mxu0 0
    %410 = vmatprep.subr.bf16.mxu0 0
    %411 = vmatpush1.bf16.xpose.msra.mxu0 0
    %412 = vmatprep.subr.bf16.mxu0 0
    %413 = vmatpush1.bf16.xpose.msra.mxu0 0
    %414 = vmatprep.subr.bf16.mxu0 0
    %415 = vmatpush1.bf16.xpose.msra.mxu0 0
    %416 = vmatprep.subr.bf16.mxu0 0
    %417 = vmatpush1.bf16.xpose.msra.mxu0 0
    %418 = vmatprep.subr.bf16.mxu0 0
    %419 = vmatpush1.bf16.xpose.msra.mxu0 0
    %420 = vmatprep.subr.bf16.mxu0 0
    %421 = vmatpush1.bf16.xpose.msra.mxu0 0
    %422 = vmatprep.subr.bf16.mxu0 0
    %423 = vmatpush1.bf16.xpose.msra.mxu0 0
    %424 = vmatprep.subr.bf16.mxu0 0
    %425 = vmatpush1.bf16.xpose.msra.mxu0 0
    %426 = vmatprep.subr.bf16.mxu0 0
    %427 = vmatpush1.bf16.xpose.msra.mxu0 0
    %428 = vmatprep.subr.bf16.mxu0 0
    %429 = vmatpush1.bf16.xpose.msra.mxu0 0
    %430 = vmatprep.subr.bf16.mxu0 0
    %431 = vmatpush1.bf16.xpose.msra.mxu0 0
    %432 = vmatprep.subr.bf16.mxu0 0
    %433 = vmatpush1.bf16.xpose.msra.mxu0 0
    %434 = vmatprep.subr.bf16.mxu0 0
    %435 = vmatpush1.bf16.xpose.msra.mxu0 0
    %436 = vmatprep.subr.bf16.mxu0 0
    %437 = vmatpush1.bf16.xpose.msra.mxu0 0
    %438 = vmatprep.mubr.bf16.mxu0 0
    %439 = vmatmul.mubr.bf16.gmra.mrb[0].mxu0 %v401
    %v440 = vpop.f32.mrb[0].mxu0
    %v441 = vadd.f32 0.0, %v440
    %v442 = vpop.f32.mrb[0].mxu0
    %v443 = vpop.f32.mrb[0].mxu0
    %v444 = vpop.f32.mrb[0].mxu0
    %445 = vdwg.mxu0
    %447 = vrot.lane.b32.xlu0 %v149, 96
    %v448 = vpop.permute.xlu0 %447
    %v450 = vsel %vm154, %v149, 0
    %v453 = vsel %vm154, %v448, 0
    %455 = vmatprep.subr.bf16.mxu0 0
    %456 = vmatpush1.bf16.xpose.msra.mxu0 %v453
    %457 = vmatprep.subr.bf16.mxu0 0
    %458 = vmatpush1.bf16.xpose.msra.mxu0 0
    %459 = vmatprep.subr.bf16.mxu0 0
    %460 = vmatpush1.bf16.xpose.msra.mxu0 0
    %461 = vmatprep.subr.bf16.mxu0 0
    %462 = vmatpush1.bf16.xpose.msra.mxu0 0
    %463 = vmatprep.subr.bf16.mxu0 0
    %464 = vmatpush1.bf16.xpose.msra.mxu0 0
    %465 = vmatprep.subr.bf16.mxu0 0
    %466 = vmatpush1.bf16.xpose.msra.mxu0 0
    %467 = vmatprep.subr.bf16.mxu0 0
    %468 = vmatpush1.bf16.xpose.msra.mxu0 0
    %469 = vmatprep.subr.bf16.mxu0 0
    %470 = vmatpush1.bf16.xpose.msra.mxu0 0
    %471 = vmatprep.subr.bf16.mxu0 0
    %472 = vmatpush1.bf16.xpose.msra.mxu0 0
    %473 = vmatprep.subr.bf16.mxu0 0
    %474 = vmatpush1.bf16.xpose.msra.mxu0 0
    %475 = vmatprep.subr.bf16.mxu0 0
    %476 = vmatpush1.bf16.xpose.msra.mxu0 0
    %477 = vmatprep.subr.bf16.mxu0 0
    %478 = vmatpush1.bf16.xpose.msra.mxu0 0
    %479 = vmatprep.subr.bf16.mxu0 0
    %480 = vmatpush1.bf16.xpose.msra.mxu0 0
    %481 = vmatprep.subr.bf16.mxu0 0
    %482 = vmatpush1.bf16.xpose.msra.mxu0 0
    %483 = vmatprep.subr.bf16.mxu0 0
    %484 = vmatpush1.bf16.xpose.msra.mxu0 0
    %485 = vmatprep.subr.bf16.mxu0 0
    %486 = vmatpush1.bf16.xpose.msra.mxu0 0
    %487 = vmatprep.mubr.bf16.mxu0 0
    %488 = vmatmul.mubr.bf16.gmra.mrb[0].mxu0 %v450
    %v489 = vpop.f32.mrb[0].mxu0
    %v490 = vadd.f32 0.0, %v489
    %v491 = vpop.f32.mrb[0].mxu0
    %v492 = vpop.f32.mrb[0].mxu0
    %v493 = vpop.f32.mrb[0].mxu0
    %494 = vdwg.mxu0
    %496 = vrot.lane.b32.xlu0 %v150, 96
    %v497 = vpop.permute.xlu0 %496
    %v499 = vsel %vm154, %v150, 0
    %v502 = vsel %vm154, %v497, 0
    %504 = vmatprep.subr.bf16.mxu0 0
    %505 = vmatpush1.bf16.xpose.msra.mxu0 %v502
    %506 = vmatprep.subr.bf16.mxu0 0
    %507 = vmatpush1.bf16.xpose.msra.mxu0 0
    %508 = vmatprep.subr.bf16.mxu0 0
    %509 = vmatpush1.bf16.xpose.msra.mxu0 0
    %510 = vmatprep.subr.bf16.mxu0 0
    %511 = vmatpush1.bf16.xpose.msra.mxu0 0
    %512 = vmatprep.subr.bf16.mxu0 0
    %513 = vmatpush1.bf16.xpose.msra.mxu0 0
    %514 = vmatprep.subr.bf16.mxu0 0
    %515 = vmatpush1.bf16.xpose.msra.mxu0 0
    %516 = vmatprep.subr.bf16.mxu0 0
    %517 = vmatpush1.bf16.xpose.msra.mxu0 0
    %518 = vmatprep.subr.bf16.mxu0 0
    %519 = vmatpush1.bf16.xpose.msra.mxu0 0
    %520 = vmatprep.subr.bf16.mxu0 0
    %521 = vmatpush1.bf16.xpose.msra.mxu0 0
    %522 = vmatprep.subr.bf16.mxu0 0
    %523 = vmatpush1.bf16.xpose.msra.mxu0 0
    %524 = vmatprep.subr.bf16.mxu0 0
    %525 = vmatpush1.bf16.xpose.msra.mxu0 0
    %526 = vmatprep.subr.bf16.mxu0 0
    %527 = vmatpush1.bf16.xpose.msra.mxu0 0
    %528 = vmatprep.subr.bf16.mxu0 0
    %529 = vmatpush1.bf16.xpose.msra.mxu0 0
    %530 = vmatprep.subr.bf16.mxu0 0
    %531 = vmatpush1.bf16.xpose.msra.mxu0 0
    %532 = vmatprep.subr.bf16.mxu0 0
    %533 = vmatpush1.bf16.xpose.msra.mxu0 0
    %534 = vmatprep.subr.bf16.mxu0 0
    %535 = vmatpush1.bf16.xpose.msra.mxu0 0
    %536 = vmatprep.mubr.bf16.mxu0 0
    %537 = vmatmul.mubr.bf16.gmra.mrb[0].mxu0 %v499
    %v538 = vpop.f32.mrb[0].mxu0
    %v539 = vadd.f32 0.0, %v538
    %v540 = vpop.f32.mrb[0].mxu0
    %v541 = vpop.f32.mrb[0].mxu0
    %v542 = vpop.f32.mrb[0].mxu0
    %543 = vdwg.mxu0
    %v544 = vsel %vm154, %v196, -inf
    %545 = vmax.xlane.f32.xlu0 %v544
    %v546 = vpop.xlane.xlu0 %545
    %v547 = vsel %vm154, %v245, -inf
    %548 = vmax.xlane.f32.xlu0 %v547
    %v549 = vpop.xlane.xlu0 %548
    %v550 = vsel %vm154, %v294, -inf
    %551 = vmax.xlane.f32.xlu0 %v550
    %v552 = vpop.xlane.xlu0 %551
    %v553 = vsel %vm154, %v343, -inf
    %554 = vmax.xlane.f32.xlu0 %v553
    %v555 = vpop.xlane.xlu0 %554
    %v556 = vsel %vm154, %v392, -inf
    %557 = vmax.xlane.f32.xlu0 %v556
    %v558 = vpop.xlane.xlu0 %557
    %v559 = vsel %vm154, %v441, -inf
    %560 = vmax.xlane.f32.xlu0 %v559
    %v561 = vpop.xlane.xlu0 %560
    %v562 = vsel %vm154, %v490, -inf
    %563 = vmax.xlane.f32.xlu0 %v562
    %v564 = vpop.xlane.xlu0 %563
    %v565 = vsel %vm154, %v539, -inf
    %566 = vmax.xlane.f32.xlu0 %v565
    %v567 = vpop.xlane.xlu0 %566
    %v568 = vsub.f32 %v196, %v546
    %v569 = vsub.f32 %v245, %v549
    %v570 = vsub.f32 %v294, %v552
    %v571 = vsub.f32 %v343, %v555
    %v572 = vsub.f32 %v392, %v558
    %v573 = vsub.f32 %v441, %v561
    %v574 = vsub.f32 %v490, %v564
    %v575 = vsub.f32 %v539, %v567
    %v576 = vmul.f32 %v568, 1.442695
    %v577 = vpow.pop %v576
    %v578 = vmul.f32 %v569, 1.442695
    %v579 = vpow.pop %v578
    %v580 = vmul.f32 %v570, 1.442695
    %v581 = vpow.pop %v580
    %v582 = vmul.f32 %v571, 1.442695
    %v583 = vpow.pop %v582
    %v584 = vmul.f32 %v572, 1.442695
    %v585 = vpow.pop %v584
    %v586 = vmul.f32 %v573, 1.442695
    %v587 = vpow.pop %v586
    %v588 = vmul.f32 %v574, 1.442695
    %v589 = vpow.pop %v588
    %v590 = vmul.f32 %v575, 1.442695
    %v591 = vpow.pop %v590
    %v592 = vsel %vm154, %v577, 0.0
    %593 = vadd.xlane.f32.xlu0 %v592
    %v594 = vpop.xlane.xlu0 %593
    %v595 = vsel %vm154, %v579, 0.0
    %596 = vadd.xlane.f32.xlu0 %v595
    %v597 = vpop.xlane.xlu0 %596
    %v598 = vsel %vm154, %v581, 0.0
    %599 = vadd.xlane.f32.xlu0 %v598
    %v600 = vpop.xlane.xlu0 %599
    %v601 = vsel %vm154, %v583, 0.0
    %602 = vadd.xlane.f32.xlu0 %v601
    %v603 = vpop.xlane.xlu0 %602
    %v604 = vsel %vm154, %v585, 0.0
    %605 = vadd.xlane.f32.xlu0 %v604
    %v606 = vpop.xlane.xlu0 %605
    %v607 = vsel %vm154, %v587, 0.0
    %608 = vadd.xlane.f32.xlu0 %v607
    %v609 = vpop.xlane.xlu0 %608
    %v610 = vsel %vm154, %v589, 0.0
    %611 = vadd.xlane.f32.xlu0 %v610
    %v612 = vpop.xlane.xlu0 %611
    %v613 = vsel %vm154, %v591, 0.0
    %614 = vadd.xlane.f32.xlu0 %v613
    %v615 = vpop.xlane.xlu0 %614
    %v616 = vrcp.pop %v594
    %v617 = vrcp.pop %v597
    %v618 = vrcp.pop %v600
    %v619 = vrcp.pop %v603
    %v620 = vrcp.pop %v606
    %v621 = vrcp.pop %v609
    %v622 = vrcp.pop %v612
    %v623 = vrcp.pop %v615
    %v624 = vmul.f32 %v577, %v616
    %v625 = vmul.f32 %v579, %v617
    %v626 = vmul.f32 %v581, %v618
    %v627 = vmul.f32 %v583, %v619
    %v628 = vmul.f32 %v585, %v620
    %v629 = vmul.f32 %v587, %v621
    %v630 = vmul.f32 %v589, %v622
    %v631 = vmul.f32 %v591, %v623
    %v632 = vpack.c.bf16 %v624, %v624
    %v633 = vpack.c.bf16 %v625, %v625
    %v634 = vpack.c.bf16 %v626, %v626
    %v635 = vpack.c.bf16 %v627, %v627
    %v636 = vpack.c.bf16 %v628, %v628
    %v637 = vpack.c.bf16 %v629, %v629
    %v638 = vpack.c.bf16 %v630, %v630
    %v639 = vpack.c.bf16 %v631, %v631
    %640 = vrot.lane.b32.xlu0 %v143, 64
    %v641 = vpop.permute.xlu0 %640
    %v643 = vsel %vm154, %v632, 0
    %vm645 = vcmask 1043456
    %v647 = vsel %vm645, %v641, 0
    %649 = vmatprep.subr.bf16.mxu0 0
    %650 = vmatpush1.bf16.msra.mxu0 %v647
    %651 = vmatprep.subr.bf16.mxu0 0
    %652 = vmatpush1.bf16.msra.mxu0 0
    %653 = vmatprep.subr.bf16.mxu0 0
    %654 = vmatpush1.bf16.msra.mxu0 0
    %655 = vmatprep.subr.bf16.mxu0 0
    %656 = vmatpush1.bf16.msra.mxu0 0
    %657 = vmatprep.subr.bf16.mxu0 0
    %658 = vmatpush1.bf16.msra.mxu0 0
    %659 = vmatprep.subr.bf16.mxu0 0
    %660 = vmatpush1.bf16.msra.mxu0 0
    %661 = vmatprep.subr.bf16.mxu0 0
    %662 = vmatpush1.bf16.msra.mxu0 0
    %663 = vmatprep.subr.bf16.mxu0 0
    %664 = vmatpush1.bf16.msra.mxu0 0
    %665 = vmatprep.subr.bf16.mxu0 0
    %666 = vmatpush1.bf16.msra.mxu0 0
    %667 = vmatprep.subr.bf16.mxu0 0
    %668 = vmatpush1.bf16.msra.mxu0 0
    %669 = vmatprep.subr.bf16.mxu0 0
    %670 = vmatpush1.bf16.msra.mxu0 0
    %671 = vmatprep.subr.bf16.mxu0 0
    %672 = vmatpush1.bf16.msra.mxu0 0
    %673 = vmatprep.subr.bf16.mxu0 0
    %674 = vmatpush1.bf16.msra.mxu0 0
    %675 = vmatprep.subr.bf16.mxu0 0
    %676 = vmatpush1.bf16.msra.mxu0 0
    %677 = vmatprep.subr.bf16.mxu0 0
    %678 = vmatpush1.bf16.msra.mxu0 0
    %679 = vmatprep.subr.bf16.mxu0 0
    %680 = vmatpush1.bf16.msra.mxu0 0
    %681 = vmatprep.mubr.bf16.mxu0 0
    %682 = vmatmul.mubr.bf16.gmra.mrb[0].mxu0 %v643
    %v683 = vpop.f32.mrb[0].mxu0
    %v684 = vadd.f32 0.0, %v683
    %v685 = vpop.f32.mrb[0].mxu0
    %v686 = vpop.f32.mrb[0].mxu0
    %v687 = vpop.f32.mrb[0].mxu0
    %688 = vdwg.mxu0
    %689 = vrot.lane.b32.xlu0 %v144, 64
    %v690 = vpop.permute.xlu0 %689
    %v692 = vsel %vm154, %v633, 0
    %v695 = vsel %vm645, %v690, 0
    %697 = vmatprep.subr.bf16.mxu0 0
    %698 = vmatpush1.bf16.msra.mxu0 %v695
    %699 = vmatprep.subr.bf16.mxu0 0
    %700 = vmatpush1.bf16.msra.mxu0 0
    %701 = vmatprep.subr.bf16.mxu0 0
    %702 = vmatpush1.bf16.msra.mxu0 0
    %703 = vmatprep.subr.bf16.mxu0 0
    %704 = vmatpush1.bf16.msra.mxu0 0
    %705 = vmatprep.subr.bf16.mxu0 0
    %706 = vmatpush1.bf16.msra.mxu0 0
    %707 = vmatprep.subr.bf16.mxu0 0
    %708 = vmatpush1.bf16.msra.mxu0 0
    %709 = vmatprep.subr.bf16.mxu0 0
    %710 = vmatpush1.bf16.msra.mxu0 0
    %711 = vmatprep.subr.bf16.mxu0 0
    %712 = vmatpush1.bf16.msra.mxu0 0
    %713 = vmatprep.subr.bf16.mxu0 0
    %714 = vmatpush1.bf16.msra.mxu0 0
    %715 = vmatprep.subr.bf16.mxu0 0
    %716 = vmatpush1.bf16.msra.mxu0 0
    %717 = vmatprep.subr.bf16.mxu0 0
    %718 = vmatpush1.bf16.msra.mxu0 0
    %719 = vmatprep.subr.bf16.mxu0 0
    %720 = vmatpush1.bf16.msra.mxu0 0
    %721 = vmatprep.subr.bf16.mxu0 0
    %722 = vmatpush1.bf16.msra.mxu0 0
    %723 = vmatprep.subr.bf16.mxu0 0
    %724 = vmatpush1.bf16.msra.mxu0 0
    %725 = vmatprep.subr.bf16.mxu0 0
    %726 = vmatpush1.bf16.msra.mxu0 0
    %727 = vmatprep.subr.bf16.mxu0 0
    %728 = vmatpush1.bf16.msra.mxu0 0
    %729 = vmatprep.mubr.bf16.mxu0 0
    %730 = vmatmul.mubr.bf16.gmra.mrb[0].mxu0 %v692
    %v731 = vpop.f32.mrb[0].mxu0
    %v732 = vadd.f32 0.0, %v731
    %v733 = vpop.f32.mrb[0].mxu0
    %v734 = vpop.f32.mrb[0].mxu0
    %v735 = vpop.f32.mrb[0].mxu0
    %736 = vdwg.mxu0
    %737 = vrot.lane.b32.xlu0 %v145, 64
    %v738 = vpop.permute.xlu0 %737
    %v740 = vsel %vm154, %v634, 0
    %v743 = vsel %vm645, %v738, 0
    %745 = vmatprep.subr.bf16.mxu0 0
    %746 = vmatpush1.bf16.msra.mxu0 %v743
    %747 = vmatprep.subr.bf16.mxu0 0
    %748 = vmatpush1.bf16.msra.mxu0 0
    %749 = vmatprep.subr.bf16.mxu0 0
    %750 = vmatpush1.bf16.msra.mxu0 0
    %751 = vmatprep.subr.bf16.mxu0 0
    %752 = vmatpush1.bf16.msra.mxu0 0
    %753 = vmatprep.subr.bf16.mxu0 0
    %754 = vmatpush1.bf16.msra.mxu0 0
    %755 = vmatprep.subr.bf16.mxu0 0
    %756 = vmatpush1.bf16.msra.mxu0 0
    %757 = vmatprep.subr.bf16.mxu0 0
    %758 = vmatpush1.bf16.msra.mxu0 0
    %759 = vmatprep.subr.bf16.mxu0 0
    %760 = vmatpush1.bf16.msra.mxu0 0
    %761 = vmatprep.subr.bf16.mxu0 0
    %762 = vmatpush1.bf16.msra.mxu0 0
    %763 = vmatprep.subr.bf16.mxu0 0
    %764 = vmatpush1.bf16.msra.mxu0 0
    %765 = vmatprep.subr.bf16.mxu0 0
    %766 = vmatpush1.bf16.msra.mxu0 0
    %767 = vmatprep.subr.bf16.mxu0 0
    %768 = vmatpush1.bf16.msra.mxu0 0
    %769 = vmatprep.subr.bf16.mxu0 0
    %770 = vmatpush1.bf16.msra.mxu0 0
    %771 = vmatprep.subr.bf16.mxu0 0
    %772 = vmatpush1.bf16.msra.mxu0 0
    %773 = vmatprep.subr.bf16.mxu0 0
    %774 = vmatpush1.bf16.msra.mxu0 0
    %775 = vmatprep.subr.bf16.mxu0 0
    %776 = vmatpush1.bf16.msra.mxu0 0
    %777 = vmatprep.mubr.bf16.mxu0 0
    %778 = vmatmul.mubr.bf16.gmra.mrb[0].mxu0 %v740
    %v779 = vpop.f32.mrb[0].mxu0
    %v780 = vadd.f32 0.0, %v779
    %v781 = vpop.f32.mrb[0].mxu0
    %v782 = vpop.f32.mrb[0].mxu0
    %v783 = vpop.f32.mrb[0].mxu0
    %784 = vdwg.mxu0
    %785 = vrot.lane.b32.xlu0 %v146, 64
    %v786 = vpop.permute.xlu0 %785
    %v788 = vsel %vm154, %v635, 0
    %v791 = vsel %vm645, %v786, 0
    %793 = vmatprep.subr.bf16.mxu0 0
    %794 = vmatpush1.bf16.msra.mxu0 %v791
    %795 = vmatprep.subr.bf16.mxu0 0
    %796 = vmatpush1.bf16.msra.mxu0 0
    %797 = vmatprep.subr.bf16.mxu0 0
    %798 = vmatpush1.bf16.msra.mxu0 0
    %799 = vmatprep.subr.bf16.mxu0 0
    %800 = vmatpush1.bf16.msra.mxu0 0
    %801 = vmatprep.subr.bf16.mxu0 0
    %802 = vmatpush1.bf16.msra.mxu0 0
    %803 = vmatprep.subr.bf16.mxu0 0
    %804 = vmatpush1.bf16.msra.mxu0 0
    %805 = vmatprep.subr.bf16.mxu0 0
    %806 = vmatpush1.bf16.msra.mxu0 0
    %807 = vmatprep.subr.bf16.mxu0 0
    %808 = vmatpush1.bf16.msra.mxu0 0
    %809 = vmatprep.subr.bf16.mxu0 0
    %810 = vmatpush1.bf16.msra.mxu0 0
    %811 = vmatprep.subr.bf16.mxu0 0
    %812 = vmatpush1.bf16.msra.mxu0 0
    %813 = vmatprep.subr.bf16.mxu0 0
    %814 = vmatpush1.bf16.msra.mxu0 0
    %815 = vmatprep.subr.bf16.mxu0 0
    %816 = vmatpush1.bf16.msra.mxu0 0
    %817 = vmatprep.subr.bf16.mxu0 0
    %818 = vmatpush1.bf16.msra.mxu0 0
    %819 = vmatprep.subr.bf16.mxu0 0
    %820 = vmatpush1.bf16.msra.mxu0 0
    %821 = vmatprep.subr.bf16.mxu0 0
    %822 = vmatpush1.bf16.msra.mxu0 0
    %823 = vmatprep.subr.bf16.mxu0 0
    %824 = vmatpush1.bf16.msra.mxu0 0
    %825 = vmatprep.mubr.bf16.mxu0 0
    %826 = vmatmul.mubr.bf16.gmra.mrb[0].mxu0 %v788
    %v827 = vpop.f32.mrb[0].mxu0
    %v828 = vadd.f32 0.0, %v827
    %v829 = vpop.f32.mrb[0].mxu0
    %v830 = vpop.f32.mrb[0].mxu0
    %v831 = vpop.f32.mrb[0].mxu0
    %832 = vdwg.mxu0
    %833 = vrot.lane.b32.xlu0 %v147, 64
    %v834 = vpop.permute.xlu0 %833
    %v836 = vsel %vm154, %v636, 0
    %v839 = vsel %vm645, %v834, 0
    %841 = vmatprep.subr.bf16.mxu0 0
    %842 = vmatpush1.bf16.msra.mxu0 %v839
    %843 = vmatprep.subr.bf16.mxu0 0
    %844 = vmatpush1.bf16.msra.mxu0 0
    %845 = vmatprep.subr.bf16.mxu0 0
    %846 = vmatpush1.bf16.msra.mxu0 0
    %847 = vmatprep.subr.bf16.mxu0 0
    %848 = vmatpush1.bf16.msra.mxu0 0
    %849 = vmatprep.subr.bf16.mxu0 0
    %850 = vmatpush1.bf16.msra.mxu0 0
    %851 = vmatprep.subr.bf16.mxu0 0
    %852 = vmatpush1.bf16.msra.mxu0 0
    %853 = vmatprep.subr.bf16.mxu0 0
    %854 = vmatpush1.bf16.msra.mxu0 0
    %855 = vmatprep.subr.bf16.mxu0 0
    %856 = vmatpush1.bf16.msra.mxu0 0
    %857 = vmatprep.subr.bf16.mxu0 0
    %858 = vmatpush1.bf16.msra.mxu0 0
    %859 = vmatprep.subr.bf16.mxu0 0
    %860 = vmatpush1.bf16.msra.mxu0 0
    %861 = vmatprep.subr.bf16.mxu0 0
    %862 = vmatpush1.bf16.msra.mxu0 0
    %863 = vmatprep.subr.bf16.mxu0 0
    %864 = vmatpush1.bf16.msra.mxu0 0
    %865 = vmatprep.subr.bf16.mxu0 0
    %866 = vmatpush1.bf16.msra.mxu0 0
    %867 = vmatprep.subr.bf16.mxu0 0
    %868 = vmatpush1.bf16.msra.mxu0 0
    %869 = vmatprep.subr.bf16.mxu0 0
    %870 = vmatpush1.bf16.msra.mxu0 0
    %871 = vmatprep.subr.bf16.mxu0 0
    %872 = vmatpush1.bf16.msra.mxu0 0
    %873 = vmatprep.mubr.bf16.mxu0 0
    %874 = vmatmul.mubr.bf16.gmra.mrb[0].mxu0 %v836
    %v875 = vpop.f32.mrb[0].mxu0
    %v876 = vadd.f32 0.0, %v875
    %v877 = vpop.f32.mrb[0].mxu0
    %v878 = vpop.f32.mrb[0].mxu0
    %v879 = vpop.f32.mrb[0].mxu0
    %880 = vdwg.mxu0
    %881 = vrot.lane.b32.xlu0 %v148, 64
    %v882 = vpop.permute.xlu0 %881
    %v884 = vsel %vm154, %v637, 0
    %v887 = vsel %vm645, %v882, 0
    %889 = vmatprep.subr.bf16.mxu0 0
    %890 = vmatpush1.bf16.msra.mxu0 %v887
    %891 = vmatprep.subr.bf16.mxu0 0
    %892 = vmatpush1.bf16.msra.mxu0 0
    %893 = vmatprep.subr.bf16.mxu0 0
    %894 = vmatpush1.bf16.msra.mxu0 0
    %895 = vmatprep.subr.bf16.mxu0 0
    %896 = vmatpush1.bf16.msra.mxu0 0
    %897 = vmatprep.subr.bf16.mxu0 0
    %898 = vmatpush1.bf16.msra.mxu0 0
    %899 = vmatprep.subr.bf16.mxu0 0
    %900 = vmatpush1.bf16.msra.mxu0 0
    %901 = vmatprep.subr.bf16.mxu0 0
    %902 = vmatpush1.bf16.msra.mxu0 0
    %903 = vmatprep.subr.bf16.mxu0 0
    %904 = vmatpush1.bf16.msra.mxu0 0
    %905 = vmatprep.subr.bf16.mxu0 0
    %906 = vmatpush1.bf16.msra.mxu0 0
    %907 = vmatprep.subr.bf16.mxu0 0
    %908 = vmatpush1.bf16.msra.mxu0 0
    %909 = vmatprep.subr.bf16.mxu0 0
    %910 = vmatpush1.bf16.msra.mxu0 0
    %911 = vmatprep.subr.bf16.mxu0 0
    %912 = vmatpush1.bf16.msra.mxu0 0
    %913 = vmatprep.subr.bf16.mxu0 0
    %914 = vmatpush1.bf16.msra.mxu0 0
    %915 = vmatprep.subr.bf16.mxu0 0
    %916 = vmatpush1.bf16.msra.mxu0 0
    %917 = vmatprep.subr.bf16.mxu0 0
    %918 = vmatpush1.bf16.msra.mxu0 0
    %919 = vmatprep.subr.bf16.mxu0 0
    %920 = vmatpush1.bf16.msra.mxu0 0
    %921 = vmatprep.mubr.bf16.mxu0 0
    %922 = vmatmul.mubr.bf16.gmra.mrb[0].mxu0 %v884
    %v923 = vpop.f32.mrb[0].mxu0
    %v924 = vadd.f32 0.0, %v923
    %v925 = vpop.f32.mrb[0].mxu0
    %v926 = vpop.f32.mrb[0].mxu0
    %v927 = vpop.f32.mrb[0].mxu0
    %928 = vdwg.mxu0
    %929 = vrot.lane.b32.xlu0 %v149, 64
    %v930 = vpop.permute.xlu0 %929
    %v932 = vsel %vm154, %v638, 0
    %v935 = vsel %vm645, %v930, 0
    %937 = vmatprep.subr.bf16.mxu0 0
    %938 = vmatpush1.bf16.msra.mxu0 %v935
    %939 = vmatprep.subr.bf16.mxu0 0
    %940 = vmatpush1.bf16.msra.mxu0 0
    %941 = vmatprep.subr.bf16.mxu0 0
    %942 = vmatpush1.bf16.msra.mxu0 0
    %943 = vmatprep.subr.bf16.mxu0 0
    %944 = vmatpush1.bf16.msra.mxu0 0
    %945 = vmatprep.subr.bf16.mxu0 0
    %946 = vmatpush1.bf16.msra.mxu0 0
    %947 = vmatprep.subr.bf16.mxu0 0
    %948 = vmatpush1.bf16.msra.mxu0 0
    %949 = vmatprep.subr.bf16.mxu0 0
    %950 = vmatpush1.bf16.msra.mxu0 0
    %951 = vmatprep.subr.bf16.mxu0 0
    %952 = vmatpush1.bf16.msra.mxu0 0
    %953 = vmatprep.subr.bf16.mxu0 0
    %954 = vmatpush1.bf16.msra.mxu0 0
    %955 = vmatprep.subr.bf16.mxu0 0
    %956 = vmatpush1.bf16.msra.mxu0 0
    %957 = vmatprep.subr.bf16.mxu0 0
    %958 = vmatpush1.bf16.msra.mxu0 0
    %959 = vmatprep.subr.bf16.mxu0 0
    %960 = vmatpush1.bf16.msra.mxu0 0
    %961 = vmatprep.subr.bf16.mxu0 0
    %962 = vmatpush1.bf16.msra.mxu0 0
    %963 = vmatprep.subr.bf16.mxu0 0
    %964 = vmatpush1.bf16.msra.mxu0 0
    %965 = vmatprep.subr.bf16.mxu0 0
    %966 = vmatpush1.bf16.msra.mxu0 0
    %967 = vmatprep.subr.bf16.mxu0 0
    %968 = vmatpush1.bf16.msra.mxu0 0
    %969 = vmatprep.mubr.bf16.mxu0 0
    %970 = vmatmul.mubr.bf16.gmra.mrb[0].mxu0 %v932
    %v971 = vpop.f32.mrb[0].mxu0
    %v972 = vadd.f32 0.0, %v971
    %v973 = vpop.f32.mrb[0].mxu0
    %v974 = vpop.f32.mrb[0].mxu0
    %v975 = vpop.f32.mrb[0].mxu0
    %976 = vdwg.mxu0
    %977 = vrot.lane.b32.xlu0 %v150, 64
    %v978 = vpop.permute.xlu0 %977
    %v980 = vsel %vm154, %v639, 0
    %v983 = vsel %vm645, %v978, 0
    %985 = vmatprep.subr.bf16.mxu0 0
    %986 = vmatpush1.bf16.msra.mxu0 %v983
    %987 = vmatprep.subr.bf16.mxu0 0
    %988 = vmatpush1.bf16.msra.mxu0 0
    %989 = vmatprep.subr.bf16.mxu0 0
    %990 = vmatpush1.bf16.msra.mxu0 0
    %991 = vmatprep.subr.bf16.mxu0 0
    %992 = vmatpush1.bf16.msra.mxu0 0
    %993 = vmatprep.subr.bf16.mxu0 0
    %994 = vmatpush1.bf16.msra.mxu0 0
    %995 = vmatprep.subr.bf16.mxu0 0
    %996 = vmatpush1.bf16.msra.mxu0 0
    %997 = vmatprep.subr.bf16.mxu0 0
    %998 = vmatpush1.bf16.msra.mxu0 0
    %999 = vmatprep.subr.bf16.mxu0 0
    %1000 = vmatpush1.bf16.msra.mxu0 0
    %1001 = vmatprep.subr.bf16.mxu0 0
    %1002 = vmatpush1.bf16.msra.mxu0 0
    %1003 = vmatprep.subr.bf16.mxu0 0
    %1004 = vmatpush1.bf16.msra.mxu0 0
    %1005 = vmatprep.subr.bf16.mxu0 0
    %1006 = vmatpush1.bf16.msra.mxu0 0
    %1007 = vmatprep.subr.bf16.mxu0 0
    %1008 = vmatpush1.bf16.msra.mxu0 0
    %1009 = vmatprep.subr.bf16.mxu0 0
    %1010 = vmatpush1.bf16.msra.mxu0 0
    %1011 = vmatprep.subr.bf16.mxu0 0
    %1012 = vmatpush1.bf16.msra.mxu0 0
    %1013 = vmatprep.subr.bf16.mxu0 0
    %1014 = vmatpush1.bf16.msra.mxu0 0
    %1015 = vmatprep.subr.bf16.mxu0 0
    %1016 = vmatpush1.bf16.msra.mxu0 0
    %1017 = vmatprep.mubr.bf16.mxu0 0
    %1018 = vmatmul.mubr.bf16.gmra.mrb[0].mxu0 %v980
    %v1019 = vpop.f32.mrb[0].mxu0
    %v1020 = vadd.f32 0.0, %v1019
    %v1021 = vpop.f32.mrb[0].mxu0
    %v1022 = vpop.f32.mrb[0].mxu0
    %v1023 = vpop.f32.mrb[0].mxu0
    %1024 = vdwg.mxu0
    %1027 = vrot.lane.b32.xlu0 %v780, 8
    %v1028 = vpop.permute.xlu0 %1027
    %1029 = vrot.lane.b32.xlu0 %v828, 8
    %v1030 = vpop.permute.xlu0 %1029
    %1035 = vrot.lane.b32.xlu0 %v876, 16
    %v1036 = vpop.permute.xlu0 %1035
    %1037 = vrot.lane.b32.xlu0 %v924, 16
    %v1038 = vpop.permute.xlu0 %1037
    %1043 = vrot.lane.b32.xlu0 %v972, 24
    %v1044 = vpop.permute.xlu0 %1043
    %1045 = vrot.lane.b32.xlu0 %v1020, 24
    %v1046 = vpop.permute.xlu0 %1045
    %v1049 = vsel %vm154, %v684, %v1028
    %v1050 = vsel %vm154, %v732, %v1030
    %vm1051 = vcmask 130048
    %v1052 = vsel %vm1051, %v1049, %v1036
    %v1053 = vsel %vm1051, %v1050, %v1038
    %vm1054 = vcmask 195584
    %v1055 = vsel %vm1054, %v1052, %v1044
    %v1056 = vsel %vm1054, %v1053, %v1046
    %v1057 = vpack.c.bf16 %v1056, %v1055
    %v1058 = vld [vmem:[%s3] sm:$0xf]
    %v1059 = vld [vmem:[%s3 + $0x4] sm:$0xf]
    %v1060 = vld [vmem:[%s3 + $0x8] sm:$0xf]
    %v1061 = vld [vmem:[%s3 + $0xc] sm:$0xf]
    %v1062 = vld [vmem:[%s4] sm:$0x1]
    %v1064 = vlaneseq
    %v1065 = vshrl.u32 %v1064, 7
    %v1066 = vsub.s32 0, %v1065
    %v1067 = vrot.slane %v1062, %v1066
    %v1073 = vunpack.c.l.b16 %v1058
    %v1074 = vunpack.c.l.b16 %v1059
    %v1075 = vunpack.c.l.b16 %v1060
    %v1076 = vunpack.c.l.b16 %v1061
    %v1077 = vpack.c.b16 %v1074, %v1073
    %v1078 = vpack.c.b16 %v1076, %v1075
    %v1082 = vsel %vm78, %v1057, 0
    %1084 = vmatprep.subr.bf16.mxu0 0
    %1085 = vmatpush1.bf16.msra.mxu0 %v1077
    %1086 = vmatprep.subr.bf16.mxu0 0
    %1087 = vmatpush1.bf16.msra.mxu0 %v1078
    %1088 = vmatprep.subr.bf16.mxu0 0
    %1089 = vmatpush1.bf16.msra.mxu0 0
    %1090 = vmatprep.subr.bf16.mxu0 0
    %1091 = vmatpush1.bf16.msra.mxu0 0
    %1092 = vmatprep.subr.bf16.mxu0 0
    %1093 = vmatpush1.bf16.msra.mxu0 0
    %1094 = vmatprep.subr.bf16.mxu0 0
    %1095 = vmatpush1.bf16.msra.mxu0 0
    %1096 = vmatprep.subr.bf16.mxu0 0
    %1097 = vmatpush1.bf16.msra.mxu0 0
    %1098 = vmatprep.subr.bf16.mxu0 0
    %1099 = vmatpush1.bf16.msra.mxu0 0
    %1100 = vmatprep.subr.bf16.mxu0 0
    %1101 = vmatpush1.bf16.msra.mxu0 0
    %1102 = vmatprep.subr.bf16.mxu0 0
    %1103 = vmatpush1.bf16.msra.mxu0 0
    %1104 = vmatprep.subr.bf16.mxu0 0
    %1105 = vmatpush1.bf16.msra.mxu0 0
    %1106 = vmatprep.subr.bf16.mxu0 0
    %1107 = vmatpush1.bf16.msra.mxu0 0
    %1108 = vmatprep.subr.bf16.mxu0 0
    %1109 = vmatpush1.bf16.msra.mxu0 0
    %1110 = vmatprep.subr.bf16.mxu0 0
    %1111 = vmatpush1.bf16.msra.mxu0 0
    %1112 = vmatprep.subr.bf16.mxu0 0
    %1113 = vmatpush1.bf16.msra.mxu0 0
    %1114 = vmatprep.subr.bf16.mxu0 0
    %1115 = vmatpush1.bf16.msra.mxu0 0
    %1116 = vmatprep.mubr.bf16.mxu0 0
    %1117 = vmatmul.mubr.bf16.gmra.mrb[0].mxu0 %v1082
    %v1118 = vpop.f32.mrb[0].mxu0
    %v1119 = vadd.f32 %v1067, %v1118
    %v1120 = vpop.f32.mrb[0].mxu0
    %v1121 = vpop.f32.mrb[0].mxu0
    %v1122 = vadd.f32 %v1067, %v1121
    %v1123 = vpop.f32.mrb[0].mxu0
    %1124 = vdwg.mxu0
    %v1125 = vadd.f32 %v52, %v1119
    %v1126 = vadd.f32 %v53, %v1122
    %v1127 = vsel %vm78, %v1125, 0.0
    %1128 = vadd.xlane.f32.xlu0 %v1127
    %v1129 = vpop.xlane.xlu0 %1128
    %v1130 = vsel %vm78, %v1126, 0.0
    %1131 = vadd.xlane.f32.xlu0 %v1130
    %v1132 = vpop.xlane.xlu0 %1131
    %v1133 = vrcp.pop 32.0
    %v1134 = vmul.f32 %v1129, %v1133
    %v1135 = vmul.f32 %v1132, %v1133
    %v1136 = vsub.f32 %v1125, %v1134
    %v1137 = vsub.f32 %v1126, %v1135
    %v1138 = vmul.f32 %v1136, %v1136
    %v1139 = vmul.f32 %v1137, %v1137
    %v1140 = vsel %vm78, %v1138, 0.0
    %1141 = vadd.xlane.f32.xlu0 %v1140
    %v1142 = vpop.xlane.xlu0 %1141
    %v1143 = vsel %vm78, %v1139, 0.0
    %1144 = vadd.xlane.f32.xlu0 %v1143
    %v1145 = vpop.xlane.xlu0 %1144
    %v1146 = vmul.f32 %v1142, %v1133
    %v1147 = vmul.f32 %v1145, %v1133
    %v1148 = vadd.f32 %v1146, 1e-05
    %v1149 = vadd.f32 %v1147, 1e-05
    %v1150 = vrsqrt.pop %v1148
    %v1151 = vrsqrt.pop %v1149
    %v1152 = vmul.f32 %v1136, %v1150
    %v1153 = vmul.f32 %v1137, %v1151
    %v1154 = vld [vmem:[%s5] sm:$0x1]
    %v1156 = vlaneseq
    %v1157 = vshrl.u32 %v1156, 7
    %v1158 = vsub.s32 0, %v1157
    %v1159 = vrot.slane %v1154, %v1158
    %v1161 = vmul.f32 %v1152, %v1159
    %v1162 = vmul.f32 %v1153, %v1159
    %v1163 = vld [vmem:[%s6] sm:$0x1]
    %v1165 = vlaneseq
    %v1166 = vshrl.u32 %v1165, 7
    %v1167 = vsub.s32 0, %v1166
    %v1168 = vrot.slane %v1163, %v1167
    %v1170 = vadd.f32 %v1161, %v1168
    %v1171 = vadd.f32 %v1162, %v1168
    %v1172 = vpack.c.bf16 %v1171, %v1170
    %v1173 = vld [vmem:[%s7] sm:$0xff]
    %v1174 = vld [vmem:[%s7 + $0x8] sm:$0xff]
    %v1175 = vld [vmem:[%s7 + $0x10] sm:$0xff]
    %v1176 = vld [vmem:[%s7 + $0x18] sm:$0xff]
    %v1177 = vld [vmem:[%s7 + $0x20] sm:$0xff]
    %v1178 = vld [vmem:[%s7 + $0x28] sm:$0xff]
    %v1179 = vld [vmem:[%s7 + $0x30] sm:$0xff]
    %v1180 = vld [vmem:[%s7 + $0x38] sm:$0xff]
    %v1181 = vld [vmem:[%s7 + $0x40] sm:$0xff]
    %v1182 = vld [vmem:[%s7 + $0x48] sm:$0xff]
    %v1183 = vld [vmem:[%s7 + $0x50] sm:$0xff]
    %v1184 = vld [vmem:[%s7 + $0x58] sm:$0xff]
    %v1185 = vld [vmem:[%s7 + $0x60] sm:$0xff]
    %v1186 = vld [vmem:[%s7 + $0x68] sm:$0xff]
    %v1187 = vld [vmem:[%s7 + $0x70] sm:$0xff]
    %v1188 = vld [vmem:[%s7 + $0x78] sm:$0xff]
    %v1189 = vld [vmem:[%s7 + $0x80] sm:$0xff]
    %v1190 = vld [vmem:[%s7 + $0x88] sm:$0xff]
    %v1191 = vld [vmem:[%s7 + $0x90] sm:$0xff]
    %v1192 = vld [vmem:[%s7 + $0x98] sm:$0xff]
    %v1193 = vld [vmem:[%s7 + $0xa0] sm:$0xff]
    %v1194 = vld [vmem:[%s7 + $0xa8] sm:$0xff]
    %v1195 = vld [vmem:[%s7 + $0xb0] sm:$0xff]
    %v1196 = vld [vmem:[%s7 + $0xb8] sm:$0xff]
    %v1197 = vld [vmem:[%s7 + $0xc0] sm:$0xff]
    %v1198 = vld [vmem:[%s7 + $0xc8] sm:$0xff]
    %v1199 = vld [vmem:[%s7 + $0xd0] sm:$0xff]
    %v1200 = vld [vmem:[%s7 + $0xd8] sm:$0xff]
    %v1201 = vld [vmem:[%s7 + $0xe0] sm:$0xff]
    %v1202 = vld [vmem:[%s7 + $0xe8] sm:$0xff]
    %v1203 = vld [vmem:[%s7 + $0xf0] sm:$0xff]
    %v1204 = vld [vmem:[%s7 + $0xf8] sm:$0xff]
    %v1205 = vld [vmem:[%s8] sm:$0xff]
    %v1206 = vld [vmem:[%s8 + $0x8] sm:$0xff]
    %v1209 = vlaneseq
    %v1210 = vshrl.u32 %v1209, 7
    %v1211 = vsub.s32 0, %v1210
    %v1212 = vrot.slane %v1205, %v1211
    %v1213 = vlaneseq
    %v1214 = vshrl.u32 %v1213, 7
    %v1215 = vsub.s32 1, %v1214
    %v1216 = vrot.slane %v1205, %v1215
    %v1217 = vlaneseq
    %v1218 = vshrl.u32 %v1217, 7
    %v1219 = vsub.s32 2, %v1218
    %v1220 = vrot.slane %v1205, %v1219
    %v1221 = vlaneseq
    %v1222 = vshrl.u32 %v1221, 7
    %v1223 = vsub.s32 3, %v1222
    %v1224 = vrot.slane %v1205, %v1223
    %v1225 = vlaneseq
    %v1226 = vshrl.u32 %v1225, 7
    %v1227 = vsub.s32 4, %v1226
    %v1228 = vrot.slane %v1205, %v1227
    %v1229 = vlaneseq
    %v1230 = vshrl.u32 %v1229, 7
    %v1231 = vsub.s32 5, %v1230
    %v1232 = vrot.slane %v1205, %v1231
    %v1233 = vlaneseq
    %v1234 = vshrl.u32 %v1233, 7
    %v1235 = vsub.s32 6, %v1234
    %v1236 = vrot.slane %v1205, %v1235
    %v1237 = vlaneseq
    %v1238 = vshrl.u32 %v1237, 7
    %v1239 = vsub.s32 7, %v1238
    %v1240 = vrot.slane %v1205, %v1239
    %v1241 = vlaneseq
    %v1242 = vshrl.u32 %v1241, 7
    %v1243 = vsub.s32 0, %v1242
    %v1244 = vrot.slane %v1206, %v1243
    %v1245 = vlaneseq
    %v1246 = vshrl.u32 %v1245, 7
    %v1247 = vsub.s32 1, %v1246
    %v1248 = vrot.slane %v1206, %v1247
    %v1249 = vlaneseq
    %v1250 = vshrl.u32 %v1249, 7
    %v1251 = vsub.s32 2, %v1250
    %v1252 = vrot.slane %v1206, %v1251
    %v1253 = vlaneseq
    %v1254 = vshrl.u32 %v1253, 7
    %v1255 = vsub.s32 3, %v1254
    %v1256 = vrot.slane %v1206, %v1255
    %v1257 = vlaneseq
    %v1258 = vshrl.u32 %v1257, 7
    %v1259 = vsub.s32 4, %v1258
    %v1260 = vrot.slane %v1206, %v1259
    %v1261 = vlaneseq
    %v1262 = vshrl.u32 %v1261, 7
    %v1263 = vsub.s32 5, %v1262
    %v1264 = vrot.slane %v1206, %v1263
    %v1265 = vlaneseq
    %v1266 = vshrl.u32 %v1265, 7
    %v1267 = vsub.s32 6, %v1266
    %v1268 = vrot.slane %v1206, %v1267
    %v1269 = vlaneseq
    %v1270 = vshrl.u32 %v1269, 7
    %v1271 = vsub.s32 7, %v1270
    %v1272 = vrot.slane %v1206, %v1271
    %v1321 = vunpack.c.l.b16 %v1173
    %v1322 = vunpack.c.h.b16 %v1173
    %v1323 = vunpack.c.l.b16 %v1174
    %v1324 = vunpack.c.h.b16 %v1174
    %v1325 = vunpack.c.l.b16 %v1175
    %v1326 = vunpack.c.h.b16 %v1175
    %v1327 = vunpack.c.l.b16 %v1176
    %v1328 = vunpack.c.h.b16 %v1176
    %v1329 = vunpack.c.l.b16 %v1177
    %v1330 = vunpack.c.h.b16 %v1177
    %v1331 = vunpack.c.l.b16 %v1178
    %v1332 = vunpack.c.h.b16 %v1178
    %v1333 = vunpack.c.l.b16 %v1179
    %v1334 = vunpack.c.h.b16 %v1179
    %v1335 = vunpack.c.l.b16 %v1180
    %v1336 = vunpack.c.h.b16 %v1180
    %v1337 = vunpack.c.l.b16 %v1181
    %v1338 = vunpack.c.h.b16 %v1181
    %v1339 = vunpack.c.l.b16 %v1182
    %v1340 = vunpack.c.h.b16 %v1182
    %v1341 = vunpack.c.l.b16 %v1183
    %v1342 = vunpack.c.h.b16 %v1183
    %v1343 = vunpack.c.l.b16 %v1184
    %v1344 = vunpack.c.h.b16 %v1184
    %v1345 = vunpack.c.l.b16 %v1185
    %v1346 = vunpack.c.h.b16 %v1185
    %v1347 = vunpack.c.l.b16 %v1186
    %v1348 = vunpack.c.h.b16 %v1186
    %v1349 = vunpack.c.l.b16 %v1187
    %v1350 = vunpack.c.h.b16 %v1187
    %v1351 = vunpack.c.l.b16 %v1188
    %v1352 = vunpack.c.h.b16 %v1188
    %v1353 = vunpack.c.l.b16 %v1189
    %v1354 = vunpack.c.h.b16 %v1189
    %v1355 = vunpack.c.l.b16 %v1190
    %v1356 = vunpack.c.h.b16 %v1190
    %v1357 = vunpack.c.l.b16 %v1191
    %v1358 = vunpack.c.h.b16 %v1191
    %v1359 = vunpack.c.l.b16 %v1192
    %v1360 = vunpack.c.h.b16 %v1192
    %v1361 = vunpack.c.l.b16 %v1193
    %v1362 = vunpack.c.h.b16 %v1193
    %v1363 = vunpack.c.l.b16 %v1194
    %v1364 = vunpack.c.h.b16 %v1194
    %v1365 = vunpack.c.l.b16 %v1195
    %v1366 = vunpack.c.h.b16 %v1195
    %v1367 = vunpack.c.l.b16 %v1196
    %v1368 = vunpack.c.h.b16 %v1196
    %v1369 = vunpack.c.l.b16 %v1197
    %v1370 = vunpack.c.h.b16 %v1197
    %v1371 = vunpack.c.l.b16 %v1198
    %v1372 = vunpack.c.h.b16 %v1198
    %v1373 = vunpack.c.l.b16 %v1199
    %v1374 = vunpack.c.h.b16 %v1199
    %v1375 = vunpack.c.l.b16 %v1200
    %v1376 = vunpack.c.h.b16 %v1200
    %v1377 = vunpack.c.l.b16 %v1201
    %v1378 = vunpack.c.h.b16 %v1201
    %v1379 = vunpack.c.l.b16 %v1202
    %v1380 = vunpack.c.h.b16 %v1202
    %v1381 = vunpack.c.l.b16 %v1203
    %v1382 = vunpack.c.h.b16 %v1203
    %v1383 = vunpack.c.l.b16 %v1204
    %v1384 = vunpack.c.h.b16 %v1204
    %v1385 = vpack.c.b16 %v1337, %v1321
    %v1386 = vpack.c.b16 %v1338, %v1322
    %v1387 = vpack.c.b16 %v1339, %v1323
    %v1388 = vpack.c.b16 %v1340, %v1324
    %v1389 = vpack.c.b16 %v1341, %v1325
    %v1390 = vpack.c.b16 %v1342, %v1326
    %v1391 = vpack.c.b16 %v1343, %v1327
    %v1392 = vpack.c.b16 %v1344, %v1328
    %v1393 = vpack.c.b16 %v1345, %v1329
    %v1394 = vpack.c.b16 %v1346, %v1330
    %v1395 = vpack.c.b16 %v1347, %v1331
    %v1396 = vpack.c.b16 %v1348, %v1332
    %v1397 = vpack.c.b16 %v1349, %v1333
    %v1398 = vpack.c.b16 %v1350, %v1334
    %v1399 = vpack.c.b16 %v1351, %v1335
    %v1400 = vpack.c.b16 %v1352, %v1336
    %v1401 = vpack.c.b16 %v1369, %v1353
    %v1402 = vpack.c.b16 %v1370, %v1354
    %v1403 = vpack.c.b16 %v1371, %v1355
    %v1404 = vpack.c.b16 %v1372, %v1356
    %v1405 = vpack.c.b16 %v1373, %v1357
    %v1406 = vpack.c.b16 %v1374, %v1358
    %v1407 = vpack.c.b16 %v1375, %v1359
    %v1408 = vpack.c.b16 %v1376, %v1360
    %v1409 = vpack.c.b16 %v1377, %v1361
    %v1410 = vpack.c.b16 %v1378, %v1362
    %v1411 = vpack.c.b16 %v1379, %v1363
    %v1412 = vpack.c.b16 %v1380, %v1364
    %v1413 = vpack.c.b16 %v1381, %v1365
    %v1414 = vpack.c.b16 %v1382, %v1366
    %v1415 = vpack.c.b16 %v1383, %v1367
    %v1416 = vpack.c.b16 %v1384, %v1368
    %v1450 = vsel %vm78, %v1172, 0
    %1452 = vmatprep.subr.bf16.mxu0 %v1386
    %1453 = vmatpush1.bf16.msra.mxu0 %v1385
    %1454 = vmatprep.subr.bf16.mxu0 %v1402
    %1455 = vmatpush1.bf16.msra.mxu0 %v1401
    %1456 = vmatprep.subr.bf16.mxu0 0
    %1457 = vmatpush1.bf16.msra.mxu0 0
    %1458 = vmatprep.subr.bf16.mxu0 0
    %1459 = vmatpush1.bf16.msra.mxu0 0
    %1460 = vmatprep.subr.bf16.mxu0 0
    %1461 = vmatpush1.bf16.msra.mxu0 0
    %1462 = vmatprep.subr.bf16.mxu0 0
    %1463 = vmatpush1.bf16.msra.mxu0 0
    %1464 = vmatprep.subr.bf16.mxu0 0
    %1465 = vmatpush1.bf16.msra.mxu0 0
    %1466 = vmatprep.subr.bf16.mxu0 0
    %1467 = vmatpush1.bf16.msra.mxu0 0
    %1468 = vmatprep.subr.bf16.mxu0 0
    %1469 = vmatpush1.bf16.msra.mxu0 0
    %1470 = vmatprep.subr.bf16.mxu0 0
    %1471 = vmatpush1.bf16.msra.mxu0 0
    %1472 = vmatprep.subr.bf16.mxu0 0
    %1473 = vmatpush1.bf16.msra.mxu0 0
    %1474 = vmatprep.subr.bf16.mxu0 0
    %1475 = vmatpush1.bf16.msra.mxu0 0
    %1476 = vmatprep.subr.bf16.mxu0 0
    %1477 = vmatpush1.bf16.msra.mxu0 0
    %1478 = vmatprep.subr.bf16.mxu0 0
    %1479 = vmatpush1.bf16.msra.mxu0 0
    %1480 = vmatprep.subr.bf16.mxu0 0
    %1481 = vmatpush1.bf16.msra.mxu0 0
    %1482 = vmatprep.subr.bf16.mxu0 0
    %1483 = vmatpush1.bf16.msra.mxu0 0
    %1484 = vmatprep.mubr.bf16.mxu0 0
    %1485 = vmatmul.mubr.bf16.gmra.mrb[0].mxu0 %v1450
    %v1486 = vpop.f32.mrb[0].mxu0
    %v1487 = vadd.f32 %v1212, %v1486
    %v1488 = vpop.f32.mrb[0].mxu0
    %v1489 = vadd.f32 %v1216, %v1488
    %v1490 = vpop.f32.mrb[0].mxu0
    %v1491 = vadd.f32 %v1212, %v1490
    %v1492 = vpop.f32.mrb[0].mxu0
    %v1493 = vadd.f32 %v1216, %v1492
    %1494 = vdwg.mxu0
    %1495 = vmatprep.subr.bf16.mxu0 %v1388
    %1496 = vmatpush1.bf16.msra.mxu0 %v1387
    %1497 = vmatprep.subr.bf16.mxu0 %v1404
    %1498 = vmatpush1.bf16.msra.mxu0 %v1403
    %1499 = vmatprep.subr.bf16.mxu0 0
    %1500 = vmatpush1.bf16.msra.mxu0 0
    %1501 = vmatprep.subr.bf16.mxu0 0
    %1502 = vmatpush1.bf16.msra.mxu0 0
    %1503 = vmatprep.subr.bf16.mxu0 0
    %1504 = vmatpush1.bf16.msra.mxu0 0
    %1505 = vmatprep.subr.bf16.mxu0 0
    %1506 = vmatpush1.bf16.msra.mxu0 0
    %1507 = vmatprep.subr.bf16.mxu0 0
    %1508 = vmatpush1.bf16.msra.mxu0 0
    %1509 = vmatprep.subr.bf16.mxu0 0
    %1510 = vmatpush1.bf16.msra.mxu0 0
    %1511 = vmatprep.subr.bf16.mxu0 0
    %1512 = vmatpush1.bf16.msra.mxu0 0
    %1513 = vmatprep.subr.bf16.mxu0 0
    %1514 = vmatpush1.bf16.msra.mxu0 0
    %1515 = vmatprep.subr.bf16.mxu0 0
    %1516 = vmatpush1.bf16.msra.mxu0 0
    %1517 = vmatprep.subr.bf16.mxu0 0
    %1518 = vmatpush1.bf16.msra.mxu0 0
    %1519 = vmatprep.subr.bf16.mxu0 0
    %1520 = vmatpush1.bf16.msra.mxu0 0
    %1521 = vmatprep.subr.bf16.mxu0 0
    %1522 = vmatpush1.bf16.msra.mxu0 0
    %1523 = vmatprep.subr.bf16.mxu0 0
    %1524 = vmatpush1.bf16.msra.mxu0 0
    %1525 = vmatprep.subr.bf16.mxu0 0
    %1526 = vmatpush1.bf16.msra.mxu0 0
    %1527 = vmatprep.mubr.bf16.mxu0 0
    %1528 = vmatmul.mubr.bf16.gmra.mrb[0].mxu0 %v1450
    %v1529 = vpop.f32.mrb[0].mxu0
    %v1530 = vadd.f32 %v1220, %v1529
    %v1531 = vpop.f32.mrb[0].mxu0
    %v1532 = vadd.f32 %v1224, %v1531
    %v1533 = vpop.f32.mrb[0].mxu0
    %v1534 = vadd.f32 %v1220, %v1533
    %v1535 = vpop.f32.mrb[0].mxu0
    %v1536 = vadd.f32 %v1224, %v1535
    %1537 = vdwg.mxu0
    %1538 = vmatprep.subr.bf16.mxu0 %v1390
    %1539 = vmatpush1.bf16.msra.mxu0 %v1389
    %1540 = vmatprep.subr.bf16.mxu0 %v1406
    %1541 = vmatpush1.bf16.msra.mxu0 %v1405
    %1542 = vmatprep.subr.bf16.mxu0 0
    %1543 = vmatpush1.bf16.msra.mxu0 0
    %1544 = vmatprep.subr.bf16.mxu0 0
    %1545 = vmatpush1.bf16.msra.mxu0 0
    %1546 = vmatprep.subr.bf16.mxu0 0
    %1547 = vmatpush1.bf16.msra.mxu0 0
    %1548 = vmatprep.subr.bf16.mxu0 0
    %1549 = vmatpush1.bf16.msra.mxu0 0
    %1550 = vmatprep.subr.bf16.mxu0 0
    %1551 = vmatpush1.bf16.msra.mxu0 0
    %1552 = vmatprep.subr.bf16.mxu0 0
    %1553 = vmatpush1.bf16.msra.mxu0 0
    %1554 = vmatprep.subr.bf16.mxu0 0
    %1555 = vmatpush1.bf16.msra.mxu0 0
    %1556 = vmatprep.subr.bf16.mxu0 0
    %1557 = vmatpush1.bf16.msra.mxu0 0
    %1558 = vmatprep.subr.bf16.mxu0 0
    %1559 = vmatpush1.bf16.msra.mxu0 0
    %1560 = vmatprep.subr.bf16.mxu0 0
    %1561 = vmatpush1.bf16.msra.mxu0 0
    %1562 = vmatprep.subr.bf16.mxu0 0
    %1563 = vmatpush1.bf16.msra.mxu0 0
    %1564 = vmatprep.subr.bf16.mxu0 0
    %1565 = vmatpush1.bf16.msra.mxu0 0
    %1566 = vmatprep.subr.bf16.mxu0 0
    %1567 = vmatpush1.bf16.msra.mxu0 0
    %1568 = vmatprep.subr.bf16.mxu0 0
    %1569 = vmatpush1.bf16.msra.mxu0 0
    %1570 = vmatprep.mubr.bf16.mxu0 0
    %1571 = vmatmul.mubr.bf16.gmra.mrb[0].mxu0 %v1450
    %v1572 = vpop.f32.mrb[0].mxu0
    %v1573 = vadd.f32 %v1228, %v1572
    %v1574 = vpop.f32.mrb[0].mxu0
    %v1575 = vadd.f32 %v1232, %v1574
    %v1576 = vpop.f32.mrb[0].mxu0
    %v1577 = vadd.f32 %v1228, %v1576
    %v1578 = vpop.f32.mrb[0].mxu0
    %v1579 = vadd.f32 %v1232, %v1578
    %1580 = vdwg.mxu0
    %1581 = vmatprep.subr.bf16.mxu0 %v1392
    %1582 = vmatpush1.bf16.msra.mxu0 %v1391
    %1583 = vmatprep.subr.bf16.mxu0 %v1408
    %1584 = vmatpush1.bf16.msra.mxu0 %v1407
    %1585 = vmatprep.subr.bf16.mxu0 0
    %1586 = vmatpush1.bf16.msra.mxu0 0
    %1587 = vmatprep.subr.bf16.mxu0 0
    %1588 = vmatpush1.bf16.msra.mxu0 0
    %1589 = vmatprep.subr.bf16.mxu0 0
    %1590 = vmatpush1.bf16.msra.mxu0 0
    %1591 = vmatprep.subr.bf16.mxu0 0
    %1592 = vmatpush1.bf16.msra.mxu0 0
    %1593 = vmatprep.subr.bf16.mxu0 0
    %1594 = vmatpush1.bf16.msra.mxu0 0
    %1595 = vmatprep.subr.bf16.mxu0 0
    %1596 = vmatpush1.bf16.msra.mxu0 0
    %1597 = vmatprep.subr.bf16.mxu0 0
    %1598 = vmatpush1.bf16.msra.mxu0 0
    %1599 = vmatprep.subr.bf16.mxu0 0
    %1600 = vmatpush1.bf16.msra.mxu0 0
    %1601 = vmatprep.subr.bf16.mxu0 0
    %1602 = vmatpush1.bf16.msra.mxu0 0
    %1603 = vmatprep.subr.bf16.mxu0 0
    %1604 = vmatpush1.bf16.msra.mxu0 0
    %1605 = vmatprep.subr.bf16.mxu0 0
    %1606 = vmatpush1.bf16.msra.mxu0 0
    %1607 = vmatprep.subr.bf16.mxu0 0
    %1608 = vmatpush1.bf16.msra.mxu0 0
    %1609 = vmatprep.subr.bf16.mxu0 0
    %1610 = vmatpush1.bf16.msra.mxu0 0
    %1611 = vmatprep.subr.bf16.mxu0 0
    %1612 = vmatpush1.bf16.msra.mxu0 0
    %1613 = vmatprep.mubr.bf16.mxu0 0
    %1614 = vmatmul.mubr.bf16.gmra.mrb[0].mxu0 %v1450
    %v1615 = vpop.f32.mrb[0].mxu0
    %v1616 = vadd.f32 %v1236, %v1615
    %v1617 = vpop.f32.mrb[0].mxu0
    %v1618 = vadd.f32 %v1240, %v1617
    %v1619 = vpop.f32.mrb[0].mxu0
    %v1620 = vadd.f32 %v1236, %v1619
    %v1621 = vpop.f32.mrb[0].mxu0
    %v1622 = vadd.f32 %v1240, %v1621
    %1623 = vdwg.mxu0
    %1624 = vmatprep.subr.bf16.mxu0 %v1394
    %1625 = vmatpush1.bf16.msra.mxu0 %v1393
    %1626 = vmatprep.subr.bf16.mxu0 %v1410
    %1627 = vmatpush1.bf16.msra.mxu0 %v1409
    %1628 = vmatprep.subr.bf16.mxu0 0
    %1629 = vmatpush1.bf16.msra.mxu0 0
    %1630 = vmatprep.subr.bf16.mxu0 0
    %1631 = vmatpush1.bf16.msra.mxu0 0
    %1632 = vmatprep.subr.bf16.mxu0 0
    %1633 = vmatpush1.bf16.msra.mxu0 0
    %1634 = vmatprep.subr.bf16.mxu0 0
    %1635 = vmatpush1.bf16.msra.mxu0 0
    %1636 = vmatprep.subr.bf16.mxu0 0
    %1637 = vmatpush1.bf16.msra.mxu0 0
    %1638 = vmatprep.subr.bf16.mxu0 0
    %1639 = vmatpush1.bf16.msra.mxu0 0
    %1640 = vmatprep.subr.bf16.mxu0 0
    %1641 = vmatpush1.bf16.msra.mxu0 0
    %1642 = vmatprep.subr.bf16.mxu0 0
    %1643 = vmatpush1.bf16.msra.mxu0 0
    %1644 = vmatprep.subr.bf16.mxu0 0
    %1645 = vmatpush1.bf16.msra.mxu0 0
    %1646 = vmatprep.subr.bf16.mxu0 0
    %1647 = vmatpush1.bf16.msra.mxu0 0
    %1648 = vmatprep.subr.bf16.mxu0 0
    %1649 = vmatpush1.bf16.msra.mxu0 0
    %1650 = vmatprep.subr.bf16.mxu0 0
    %1651 = vmatpush1.bf16.msra.mxu0 0
    %1652 = vmatprep.subr.bf16.mxu0 0
    %1653 = vmatpush1.bf16.msra.mxu0 0
    %1654 = vmatprep.subr.bf16.mxu0 0
    %1655 = vmatpush1.bf16.msra.mxu0 0
    %1656 = vmatprep.mubr.bf16.mxu0 0
    %1657 = vmatmul.mubr.bf16.gmra.mrb[0].mxu0 %v1450
    %v1658 = vpop.f32.mrb[0].mxu0
    %v1659 = vadd.f32 %v1244, %v1658
    %v1660 = vpop.f32.mrb[0].mxu0
    %v1661 = vadd.f32 %v1248, %v1660
    %v1662 = vpop.f32.mrb[0].mxu0
    %v1663 = vadd.f32 %v1244, %v1662
    %v1664 = vpop.f32.mrb[0].mxu0
    %v1665 = vadd.f32 %v1248, %v1664
    %1666 = vdwg.mxu0
    %1667 = vmatprep.subr.bf16.mxu0 %v1396
    %1668 = vmatpush1.bf16.msra.mxu0 %v1395
    %1669 = vmatprep.subr.bf16.mxu0 %v1412
    %1670 = vmatpush1.bf16.msra.mxu0 %v1411
    %1671 = vmatprep.subr.bf16.mxu0 0
    %1672 = vmatpush1.bf16.msra.mxu0 0
    %1673 = vmatprep.subr.bf16.mxu0 0
    %1674 = vmatpush1.bf16.msra.mxu0 0
    %1675 = vmatprep.subr.bf16.mxu0 0
    %1676 = vmatpush1.bf16.msra.mxu0 0
    %1677 = vmatprep.subr.bf16.mxu0 0
    %1678 = vmatpush1.bf16.msra.mxu0 0
    %1679 = vmatprep.subr.bf16.mxu0 0
    %1680 = vmatpush1.bf16.msra.mxu0 0
    %1681 = vmatprep.subr.bf16.mxu0 0
    %1682 = vmatpush1.bf16.msra.mxu0 0
    %1683 = vmatprep.subr.bf16.mxu0 0
    %1684 = vmatpush1.bf16.msra.mxu0 0
    %1685 = vmatprep.subr.bf16.mxu0 0
    %1686 = vmatpush1.bf16.msra.mxu0 0
    %1687 = vmatprep.subr.bf16.mxu0 0
    %1688 = vmatpush1.bf16.msra.mxu0 0
    %1689 = vmatprep.subr.bf16.mxu0 0
    %1690 = vmatpush1.bf16.msra.mxu0 0
    %1691 = vmatprep.subr.bf16.mxu0 0
    %1692 = vmatpush1.bf16.msra.mxu0 0
    %1693 = vmatprep.subr.bf16.mxu0 0
    %1694 = vmatpush1.bf16.msra.mxu0 0
    %1695 = vmatprep.subr.bf16.mxu0 0
    %1696 = vmatpush1.bf16.msra.mxu0 0
    %1697 = vmatprep.subr.bf16.mxu0 0
    %1698 = vmatpush1.bf16.msra.mxu0 0
    %1699 = vmatprep.mubr.bf16.mxu0 0
    %1700 = vmatmul.mubr.bf16.gmra.mrb[0].mxu0 %v1450
    %v1701 = vpop.f32.mrb[0].mxu0
    %v1702 = vadd.f32 %v1252, %v1701
    %v1703 = vpop.f32.mrb[0].mxu0
    %v1704 = vadd.f32 %v1256, %v1703
    %v1705 = vpop.f32.mrb[0].mxu0
    %v1706 = vadd.f32 %v1252, %v1705
    %v1707 = vpop.f32.mrb[0].mxu0
    %v1708 = vadd.f32 %v1256, %v1707
    %1709 = vdwg.mxu0
    %1710 = vmatprep.subr.bf16.mxu0 %v1398
    %1711 = vmatpush1.bf16.msra.mxu0 %v1397
    %1712 = vmatprep.subr.bf16.mxu0 %v1414
    %1713 = vmatpush1.bf16.msra.mxu0 %v1413
    %1714 = vmatprep.subr.bf16.mxu0 0
    %1715 = vmatpush1.bf16.msra.mxu0 0
    %1716 = vmatprep.subr.bf16.mxu0 0
    %1717 = vmatpush1.bf16.msra.mxu0 0
    %1718 = vmatprep.subr.bf16.mxu0 0
    %1719 = vmatpush1.bf16.msra.mxu0 0
    %1720 = vmatprep.subr.bf16.mxu0 0
    %1721 = vmatpush1.bf16.msra.mxu0 0
    %1722 = vmatprep.subr.bf16.mxu0 0
    %1723 = vmatpush1.bf16.msra.mxu0 0
    %1724 = vmatprep.subr.bf16.mxu0 0
    %1725 = vmatpush1.bf16.msra.mxu0 0
    %1726 = vmatprep.subr.bf16.mxu0 0
    %1727 = vmatpush1.bf16.msra.mxu0 0
    %1728 = vmatprep.subr.bf16.mxu0 0
    %1729 = vmatpush1.bf16.msra.mxu0 0
    %1730 = vmatprep.subr.bf16.mxu0 0
    %1731 = vmatpush1.bf16.msra.mxu0 0
    %1732 = vmatprep.subr.bf16.mxu0 0
    %1733 = vmatpush1.bf16.msra.mxu0 0
    %1734 = vmatprep.subr.bf16.mxu0 0
    %1735 = vmatpush1.bf16.msra.mxu0 0
    %1736 = vmatprep.subr.bf16.mxu0 0
    %1737 = vmatpush1.bf16.msra.mxu0 0
    %1738 = vmatprep.subr.bf16.mxu0 0
    %1739 = vmatpush1.bf16.msra.mxu0 0
    %1740 = vmatprep.subr.bf16.mxu0 0
    %1741 = vmatpush1.bf16.msra.mxu0 0
    %1742 = vmatprep.mubr.bf16.mxu0 0
    %1743 = vmatmul.mubr.bf16.gmra.mrb[0].mxu0 %v1450
    %v1744 = vpop.f32.mrb[0].mxu0
    %v1745 = vadd.f32 %v1260, %v1744
    %v1746 = vpop.f32.mrb[0].mxu0
    %v1747 = vadd.f32 %v1264, %v1746
    %v1748 = vpop.f32.mrb[0].mxu0
    %v1749 = vadd.f32 %v1260, %v1748
    %v1750 = vpop.f32.mrb[0].mxu0
    %v1751 = vadd.f32 %v1264, %v1750
    %1752 = vdwg.mxu0
    %1753 = vmatprep.subr.bf16.mxu0 %v1400
    %1754 = vmatpush1.bf16.msra.mxu0 %v1399
    %1755 = vmatprep.subr.bf16.mxu0 %v1416
    %1756 = vmatpush1.bf16.msra.mxu0 %v1415
    %1757 = vmatprep.subr.bf16.mxu0 0
    %1758 = vmatpush1.bf16.msra.mxu0 0
    %1759 = vmatprep.subr.bf16.mxu0 0
    %1760 = vmatpush1.bf16.msra.mxu0 0
    %1761 = vmatprep.subr.bf16.mxu0 0
    %1762 = vmatpush1.bf16.msra.mxu0 0
    %1763 = vmatprep.subr.bf16.mxu0 0
    %1764 = vmatpush1.bf16.msra.mxu0 0
    %1765 = vmatprep.subr.bf16.mxu0 0
    %1766 = vmatpush1.bf16.msra.mxu0 0
    %1767 = vmatprep.subr.bf16.mxu0 0
    %1768 = vmatpush1.bf16.msra.mxu0 0
    %1769 = vmatprep.subr.bf16.mxu0 0
    %1770 = vmatpush1.bf16.msra.mxu0 0
    %1771 = vmatprep.subr.bf16.mxu0 0
    %1772 = vmatpush1.bf16.msra.mxu0 0
    %1773 = vmatprep.subr.bf16.mxu0 0
    %1774 = vmatpush1.bf16.msra.mxu0 0
    %1775 = vmatprep.subr.bf16.mxu0 0
    %1776 = vmatpush1.bf16.msra.mxu0 0
    %1777 = vmatprep.subr.bf16.mxu0 0
    %1778 = vmatpush1.bf16.msra.mxu0 0
    %1779 = vmatprep.subr.bf16.mxu0 0
    %1780 = vmatpush1.bf16.msra.mxu0 0
    %1781 = vmatprep.subr.bf16.mxu0 0
    %1782 = vmatpush1.bf16.msra.mxu0 0
    %1783 = vmatprep.subr.bf16.mxu0 0
    %1784 = vmatpush1.bf16.msra.mxu0 0
    %1785 = vmatprep.mubr.bf16.mxu0 0
    %1786 = vmatmul.mubr.bf16.gmra.mrb[0].mxu0 %v1450
    %v1787 = vpop.f32.mrb[0].mxu0
    %v1788 = vadd.f32 %v1268, %v1787
    %v1789 = vpop.f32.mrb[0].mxu0
    %v1790 = vadd.f32 %v1272, %v1789
    %v1791 = vpop.f32.mrb[0].mxu0
    %v1792 = vadd.f32 %v1268, %v1791
    %v1793 = vpop.f32.mrb[0].mxu0
    %v1794 = vadd.f32 %v1272, %v1793
    %1795 = vdwg.mxu0
    %v1796 = vmax.f32 %v1487, 0.0
    %v1797 = vmax.f32 %v1489, 0.0
    %v1798 = vmax.f32 %v1530, 0.0
    %v1799 = vmax.f32 %v1532, 0.0
    %v1800 = vmax.f32 %v1573, 0.0
    %v1801 = vmax.f32 %v1575, 0.0
    %v1802 = vmax.f32 %v1616, 0.0
    %v1803 = vmax.f32 %v1618, 0.0
    %v1804 = vmax.f32 %v1659, 0.0
    %v1805 = vmax.f32 %v1661, 0.0
    %v1806 = vmax.f32 %v1702, 0.0
    %v1807 = vmax.f32 %v1704, 0.0
    %v1808 = vmax.f32 %v1745, 0.0
    %v1809 = vmax.f32 %v1747, 0.0
    %v1810 = vmax.f32 %v1788, 0.0
    %v1811 = vmax.f32 %v1790, 0.0
    %v1812 = vmax.f32 %v1491, 0.0
    %v1813 = vmax.f32 %v1493, 0.0
    %v1814 = vmax.f32 %v1534, 0.0
    %v1815 = vmax.f32 %v1536, 0.0
    %v1816 = vmax.f32 %v1577, 0.0
    %v1817 = vmax.f32 %v1579, 0.0
    %v1818 = vmax.f32 %v1620, 0.0
    %v1819 = vmax.f32 %v1622, 0.0
    %v1820 = vmax.f32 %v1663, 0.0
    %v1821 = vmax.f32 %v1665, 0.0
    %v1822 = vmax.f32 %v1706, 0.0
    %v1823 = vmax.f32 %v1708, 0.0
    %v1824 = vmax.f32 %v1749, 0.0
    %v1825 = vmax.f32 %v1751, 0.0
    %v1826 = vmax.f32 %v1792, 0.0
    %v1827 = vmax.f32 %v1794, 0.0
    %v1828 = vpack.c.bf16 %v1812, %v1796
    %v1829 = vpack.c.bf16 %v1813, %v1797
    %v1830 = vpack.c.bf16 %v1814, %v1798
    %v1831 = vpack.c.bf16 %v1815, %v1799
    %v1832 = vpack.c.bf16 %v1816, %v1800
    %v1833 = vpack.c.bf16 %v1817, %v1801
    %v1834 = vpack.c.bf16 %v1818, %v1802
    %v1835 = vpack.c.bf16 %v1819, %v1803
    %v1836 = vpack.c.bf16 %v1820, %v1804
    %v1837 = vpack.c.bf16 %v1821, %v1805
    %v1838 = vpack.c.bf16 %v1822, %v1806
    %v1839 = vpack.c.bf16 %v1823, %v1807
    %v1840 = vpack.c.bf16 %v1824, %v1808
    %v1841 = vpack.c.bf16 %v1825, %v1809
    %v1842 = vpack.c.bf16 %v1826, %v1810
    %v1843 = vpack.c.bf16 %v1827, %v1811
    %v1844 = vld [vmem:[%s9] sm:$0xf]
    %v1845 = vld [vmem:[%s9 + $0x4] sm:$0xf]
    %v1846 = vld [vmem:[%s9 + $0x8] sm:$0xf]
    %v1847 = vld [vmem:[%s9 + $0xc] sm:$0xf]
    %v1848 = vld [vmem:[%s9 + $0x10] sm:$0xf]
    %v1849 = vld [vmem:[%s9 + $0x14] sm:$0xf]
    %v1850 = vld [vmem:[%s9 + $0x18] sm:$0xf]
    %v1851 = vld [vmem:[%s9 + $0x1c] sm:$0xf]
    %v1852 = vld [vmem:[%s9 + $0x20] sm:$0xf]
    %v1853 = vld [vmem:[%s9 + $0x24] sm:$0xf]
    %v1854 = vld [vmem:[%s9 + $0x28] sm:$0xf]
    %v1855 = vld [vmem:[%s9 + $0x2c] sm:$0xf]
    %v1856 = vld [vmem:[%s9 + $0x30] sm:$0xf]
    %v1857 = vld [vmem:[%s9 + $0x34] sm:$0xf]
    %v1858 = vld [vmem:[%s9 + $0x38] sm:$0xf]
    %v1859 = vld [vmem:[%s9 + $0x3c] sm:$0xf]
    %v1860 = vld [vmem:[%s9 + $0x40] sm:$0xf]
    %v1861 = vld [vmem:[%s9 + $0x44] sm:$0xf]
    %v1862 = vld [vmem:[%s9 + $0x48] sm:$0xf]
    %v1863 = vld [vmem:[%s9 + $0x4c] sm:$0xf]
    %v1864 = vld [vmem:[%s9 + $0x50] sm:$0xf]
    %v1865 = vld [vmem:[%s9 + $0x54] sm:$0xf]
    %v1866 = vld [vmem:[%s9 + $0x58] sm:$0xf]
    %v1867 = vld [vmem:[%s9 + $0x5c] sm:$0xf]
    %v1868 = vld [vmem:[%s9 + $0x60] sm:$0xf]
    %v1869 = vld [vmem:[%s9 + $0x64] sm:$0xf]
    %v1870 = vld [vmem:[%s9 + $0x68] sm:$0xf]
    %v1871 = vld [vmem:[%s9 + $0x6c] sm:$0xf]
    %v1872 = vld [vmem:[%s9 + $0x70] sm:$0xf]
    %v1873 = vld [vmem:[%s9 + $0x74] sm:$0xf]
    %v1874 = vld [vmem:[%s9 + $0x78] sm:$0xf]
    %v1875 = vld [vmem:[%s9 + $0x7c] sm:$0xf]
    %v1876 = vld [vmem:[%s9 + $0x80] sm:$0xf]
    %v1877 = vld [vmem:[%s9 + $0x84] sm:$0xf]
    %v1878 = vld [vmem:[%s9 + $0x88] sm:$0xf]
    %v1879 = vld [vmem:[%s9 + $0x8c] sm:$0xf]
    %v1880 = vld [vmem:[%s9 + $0x90] sm:$0xf]
    %v1881 = vld [vmem:[%s9 + $0x94] sm:$0xf]
    %v1882 = vld [vmem:[%s9 + $0x98] sm:$0xf]
    %v1883 = vld [vmem:[%s9 + $0x9c] sm:$0xf]
    %v1884 = vld [vmem:[%s9 + $0xa0] sm:$0xf]
    %v1885 = vld [vmem:[%s9 + $0xa4] sm:$0xf]
    %v1886 = vld [vmem:[%s9 + $0xa8] sm:$0xf]
    %v1887 = vld [vmem:[%s9 + $0xac] sm:$0xf]
    %v1888 = vld [vmem:[%s9 + $0xb0] sm:$0xf]
    %v1889 = vld [vmem:[%s9 + $0xb4] sm:$0xf]
    %v1890 = vld [vmem:[%s9 + $0xb8] sm:$0xf]
    %v1891 = vld [vmem:[%s9 + $0xbc] sm:$0xf]
    %v1892 = vld [vmem:[%s9 + $0xc0] sm:$0xf]
    %v1893 = vld [vmem:[%s9 + $0xc4] sm:$0xf]
    %v1894 = vld [vmem:[%s9 + $0xc8] sm:$0xf]
    %v1895 = vld [vmem:[%s9 + $0xcc] sm:$0xf]
    %v1896 = vld [vmem:[%s9 + $0xd0] sm:$0xf]
    %v1897 = vld [vmem:[%s9 + $0xd4] sm:$0xf]
    %v1898 = vld [vmem:[%s9 + $0xd8] sm:$0xf]
    %v1899 = vld [vmem:[%s9 + $0xdc] sm:$0xf]
    %v1900 = vld [vmem:[%s9 + $0xe0] sm:$0xf]
    %v1901 = vld [vmem:[%s9 + $0xe4] sm:$0xf]
    %v1902 = vld [vmem:[%s9 + $0xe8] sm:$0xf]
    %v1903 = vld [vmem:[%s9 + $0xec] sm:$0xf]
    %v1904 = vld [vmem:[%s9 + $0xf0] sm:$0xf]
    %v1905 = vld [vmem:[%s9 + $0xf4] sm:$0xf]
    %v1906 = vld [vmem:[%s9 + $0xf8] sm:$0xf]
    %v1907 = vld [vmem:[%s9 + $0xfc] sm:$0xf]
    %v1908 = vld [vmem:[%s9 + $0x100] sm:$0xf]
    %v1909 = vld [vmem:[%s9 + $0x104] sm:$0xf]
    %v1910 = vld [vmem:[%s9 + $0x108] sm:$0xf]
    %v1911 = vld [vmem:[%s9 + $0x10c] sm:$0xf]
    %v1912 = vld [vmem:[%s9 + $0x110] sm:$0xf]
    %v1913 = vld [vmem:[%s9 + $0x114] sm:$0xf]
    %v1914 = vld [vmem:[%s9 + $0x118] sm:$0xf]
    %v1915 = vld [vmem:[%s9 + $0x11c] sm:$0xf]
    %v1916 = vld [vmem:[%s9 + $0x120] sm:$0xf]
    %v1917 = vld [vmem:[%s9 + $0x124] sm:$0xf]
    %v1918 = vld [vmem:[%s9 + $0x128] sm:$0xf]
    %v1919 = vld [vmem:[%s9 + $0x12c] sm:$0xf]
    %v1920 = vld [vmem:[%s9 + $0x130] sm:$0xf]
    %v1921 = vld [vmem:[%s9 + $0x134] sm:$0xf]
    %v1922 = vld [vmem:[%s9 + $0x138] sm:$0xf]
    %v1923 = vld [vmem:[%s9 + $0x13c] sm:$0xf]
    %v1924 = vld [vmem:[%s9 + $0x140] sm:$0xf]
    %v1925 = vld [vmem:[%s9 + $0x144] sm:$0xf]
    %v1926 = vld [vmem:[%s9 + $0x148] sm:$0xf]
    %v1927 = vld [vmem:[%s9 + $0x14c] sm:$0xf]
    %v1928 = vld [vmem:[%s9 + $0x150] sm:$0xf]
    %v1929 = vld [vmem:[%s9 + $0x154] sm:$0xf]
    %v1930 = vld [vmem:[%s9 + $0x158] sm:$0xf]
    %v1931 = vld [vmem:[%s9 + $0x15c] sm:$0xf]
    %v1932 = vld [vmem:[%s9 + $0x160] sm:$0xf]
    %v1933 = vld [vmem:[%s9 + $0x164] sm:$0xf]
    %v1934 = vld [vmem:[%s9 + $0x168] sm:$0xf]
    %v1935 = vld [vmem:[%s9 + $0x16c] sm:$0xf]
    %v1936 = vld [vmem:[%s9 + $0x170] sm:$0xf]
    %v1937 = vld [vmem:[%s9 + $0x174] sm:$0xf]
    %v1938 = vld [vmem:[%s9 + $0x178] sm:$0xf]
    %v1939 = vld [vmem:[%s9 + $0x17c] sm:$0xf]
    %v1940 = vld [vmem:[%s9 + $0x180] sm:$0xf]
    %v1941 = vld [vmem:[%s9 + $0x184] sm:$0xf]
    %v1942 = vld [vmem:[%s9 + $0x188] sm:$0xf]
    %v1943 = vld [vmem:[%s9 + $0x18c] sm:$0xf]
    %v1944 = vld [vmem:[%s9 + $0x190] sm:$0xf]
    %v1945 = vld [vmem:[%s9 + $0x194] sm:$0xf]
    %v1946 = vld [vmem:[%s9 + $0x198] sm:$0xf]
    %v1947 = vld [vmem:[%s9 + $0x19c] sm:$0xf]
    %v1948 = vld [vmem:[%s9 + $0x1a0] sm:$0xf]
    %v1949 = vld [vmem:[%s9 + $0x1a4] sm:$0xf]
    %v1950 = vld [vmem:[%s9 + $0x1a8] sm:$0xf]
    %v1951 = vld [vmem:[%s9 + $0x1ac] sm:$0xf]
    %v1952 = vld [vmem:[%s9 + $0x1b0] sm:$0xf]
    %v1953 = vld [vmem:[%s9 + $0x1b4] sm:$0xf]
    %v1954 = vld [vmem:[%s9 + $0x1b8] sm:$0xf]
    %v1955 = vld [vmem:[%s9 + $0x1bc] sm:$0xf]
    %v1956 = vld [vmem:[%s9 + $0x1c0] sm:$0xf]
    %v1957 = vld [vmem:[%s9 + $0x1c4] sm:$0xf]
    %v1958 = vld [vmem:[%s9 + $0x1c8] sm:$0xf]
    %v1959 = vld [vmem:[%s9 + $0x1cc] sm:$0xf]
    %v1960 = vld [vmem:[%s9 + $0x1d0] sm:$0xf]
    %v1961 = vld [vmem:[%s9 + $0x1d4] sm:$0xf]
    %v1962 = vld [vmem:[%s9 + $0x1d8] sm:$0xf]
    %v1963 = vld [vmem:[%s9 + $0x1dc] sm:$0xf]
    %v1964 = vld [vmem:[%s9 + $0x1e0] sm:$0xf]
    %v1965 = vld [vmem:[%s9 + $0x1e4] sm:$0xf]
    %v1966 = vld [vmem:[%s9 + $0x1e8] sm:$0xf]
    %v1967 = vld [vmem:[%s9 + $0x1ec] sm:$0xf]
    %v1968 = vld [vmem:[%s9 + $0x1f0] sm:$0xf]
    %v1969 = vld [vmem:[%s9 + $0x1f4] sm:$0xf]
    %v1970 = vld [vmem:[%s9 + $0x1f8] sm:$0xf]
    %v1971 = vld [vmem:[%s9 + $0x1fc] sm:$0xf]
    %v1972 = vld [vmem:[%s9 + $0x200] sm:$0xf]
    %v1973 = vld [vmem:[%s9 + $0x204] sm:$0xf]
    %v1974 = vld [vmem:[%s9 + $0x208] sm:$0xf]
    %v1975 = vld [vmem:[%s9 + $0x20c] sm:$0xf]
    %v1976 = vld [vmem:[%s9 + $0x210] sm:$0xf]
    %v1977 = vld [vmem:[%s9 + $0x214] sm:$0xf]
    %v1978 = vld [vmem:[%s9 + $0x218] sm:$0xf]
    %v1979 = vld [vmem:[%s9 + $0x21c] sm:$0xf]
    %v1980 = vld [vmem:[%s9 + $0x220] sm:$0xf]
    %v1981 = vld [vmem:[%s9 + $0x224] sm:$0xf]
    %v1982 = vld [vmem:[%s9 + $0x228] sm:$0xf]
    %v1983 = vld [vmem:[%s9 + $0x22c] sm:$0xf]
    %v1984 = vld [vmem:[%s9 + $0x230] sm:$0xf]
    %v1985 = vld [vmem:[%s9 + $0x234] sm:$0xf]
    %v1986 = vld [vmem:[%s9 + $0x238] sm:$0xf]
    %v1987 = vld [vmem:[%s9 + $0x23c] sm:$0xf]
    %v1988 = vld [vmem:[%s9 + $0x240] sm:$0xf]
    %v1989 = vld [vmem:[%s9 + $0x244] sm:$0xf]
    %v1990 = vld [vmem:[%s9 + $0x248] sm:$0xf]
    %v1991 = vld [vmem:[%s9 + $0x24c] sm:$0xf]
    %v1992 = vld [vmem:[%s9 + $0x250] sm:$0xf]
    %v1993 = vld [vmem:[%s9 + $0x254] sm:$0xf]
    %v1994 = vld [vmem:[%s9 + $0x258] sm:$0xf]
    %v1995 = vld [vmem:[%s9 + $0x25c] sm:$0xf]
    %v1996 = vld [vmem:[%s9 + $0x260] sm:$0xf]
    %v1997 = vld [vmem:[%s9 + $0x264] sm:$0xf]
    %v1998 = vld [vmem:[%s9 + $0x268] sm:$0xf]
    %v1999 = vld [vmem:[%s9 + $0x26c] sm:$0xf]
    %v2000 = vld [vmem:[%s9 + $0x270] sm:$0xf]
    %v2001 = vld [vmem:[%s9 + $0x274] sm:$0xf]
    %v2002 = vld [vmem:[%s9 + $0x278] sm:$0xf]
    %v2003 = vld [vmem:[%s9 + $0x27c] sm:$0xf]
    %v2004 = vld [vmem:[%s9 + $0x280] sm:$0xf]
    %v2005 = vld [vmem:[%s9 + $0x284] sm:$0xf]
    %v2006 = vld [vmem:[%s9 + $0x288] sm:$0xf]
    %v2007 = vld [vmem:[%s9 + $0x28c] sm:$0xf]
    %v2008 = vld [vmem:[%s9 + $0x290] sm:$0xf]
    %v2009 = vld [vmem:[%s9 + $0x294] sm:$0xf]
    %v2010 = vld [vmem:[%s9 + $0x298] sm:$0xf]
    %v2011 = vld [vmem:[%s9 + $0x29c] sm:$0xf]
    %v2012 = vld [vmem:[%s9 + $0x2a0] sm:$0xf]
    %v2013 = vld [vmem:[%s9 + $0x2a4] sm:$0xf]
    %v2014 = vld [vmem:[%s9 + $0x2a8] sm:$0xf]
    %v2015 = vld [vmem:[%s9 + $0x2ac] sm:$0xf]
    %v2016 = vld [vmem:[%s9 + $0x2b0] sm:$0xf]
    %v2017 = vld [vmem:[%s9 + $0x2b4] sm:$0xf]
    %v2018 = vld [vmem:[%s9 + $0x2b8] sm:$0xf]
    %v2019 = vld [vmem:[%s9 + $0x2bc] sm:$0xf]
    %v2020 = vld [vmem:[%s9 + $0x2c0] sm:$0xf]
    %v2021 = vld [vmem:[%s9 + $0x2c4] sm:$0xf]
    %v2022 = vld [vmem:[%s9 + $0x2c8] sm:$0xf]
    %v2023 = vld [vmem:[%s9 + $0x2cc] sm:$0xf]
    %v2024 = vld [vmem:[%s9 + $0x2d0] sm:$0xf]
    %v2025 = vld [vmem:[%s9 + $0x2d4] sm:$0xf]
    %v2026 = vld [vmem:[%s9 + $0x2d8] sm:$0xf]
    %v2027 = vld [vmem:[%s9 + $0x2dc] sm:$0xf]
    %v2028 = vld [vmem:[%s9 + $0x2e0] sm:$0xf]
    %v2029 = vld [vmem:[%s9 + $0x2e4] sm:$0xf]
    %v2030 = vld [vmem:[%s9 + $0x2e8] sm:$0xf]
    %v2031 = vld [vmem:[%s9 + $0x2ec] sm:$0xf]
    %v2032 = vld [vmem:[%s9 + $0x2f0] sm:$0xf]
    %v2033 = vld [vmem:[%s9 + $0x2f4] sm:$0xf]
    %v2034 = vld [vmem:[%s9 + $0x2f8] sm:$0xf]
    %v2035 = vld [vmem:[%s9 + $0x2fc] sm:$0xf]
    %v2036 = vld [vmem:[%s9 + $0x300] sm:$0xf]
    %v2037 = vld [vmem:[%s9 + $0x304] sm:$0xf]
    %v2038 = vld [vmem:[%s9 + $0x308] sm:$0xf]
    %v2039 = vld [vmem:[%s9 + $0x30c] sm:$0xf]
    %v2040 = vld [vmem:[%s9 + $0x310] sm:$0xf]
    %v2041 = vld [vmem:[%s9 + $0x314] sm:$0xf]
    %v2042 = vld [vmem:[%s9 + $0x318] sm:$0xf]
    %v2043 = vld [vmem:[%s9 + $0x31c] sm:$0xf]
    %v2044 = vld [vmem:[%s9 + $0x320] sm:$0xf]
    %v2045 = vld [vmem:[%s9 + $0x324] sm:$0xf]
    %v2046 = vld [vmem:[%s9 + $0x328] sm:$0xf]
    %v2047 = vld [vmem:[%s9 + $0x32c] sm:$0xf]
    %v2048 = vld [vmem:[%s9 + $0x330] sm:$0xf]
    %v2049 = vld [vmem:[%s9 + $0x334] sm:$0xf]
    %v2050 = vld [vmem:[%s9 + $0x338] sm:$0xf]
    %v2051 = vld [vmem:[%s9 + $0x33c] sm:$0xf]
    %v2052 = vld [vmem:[%s9 + $0x340] sm:$0xf]
    %v2053 = vld [vmem:[%s9 + $0x344] sm:$0xf]
    %v2054 = vld [vmem:[%s9 + $0x348] sm:$0xf]
    %v2055 = vld [vmem:[%s9 + $0x34c] sm:$0xf]
    %v2056 = vld [vmem:[%s9 + $0x350] sm:$0xf]
    %v2057 = vld [vmem:[%s9 + $0x354] sm:$0xf]
    %v2058 = vld [vmem:[%s9 + $0x358] sm:$0xf]
    %v2059 = vld [vmem:[%s9 + $0x35c] sm:$0xf]
    %v2060 = vld [vmem:[%s9 + $0x360] sm:$0xf]
    %v2061 = vld [vmem:[%s9 + $0x364] sm:$0xf]
    %v2062 = vld [vmem:[%s9 + $0x368] sm:$0xf]
    %v2063 = vld [vmem:[%s9 + $0x36c] sm:$0xf]
    %v2064 = vld [vmem:[%s9 + $0x370] sm:$0xf]
    %v2065 = vld [vmem:[%s9 + $0x374] sm:$0xf]
    %v2066 = vld [vmem:[%s9 + $0x378] sm:$0xf]
    %v2067 = vld [vmem:[%s9 + $0x37c] sm:$0xf]
    %v2068 = vld [vmem:[%s9 + $0x380] sm:$0xf]
    %v2069 = vld [vmem:[%s9 + $0x384] sm:$0xf]
    %v2070 = vld [vmem:[%s9 + $0x388] sm:$0xf]
    %v2071 = vld [vmem:[%s9 + $0x38c] sm:$0xf]
    %v2072 = vld [vmem:[%s9 + $0x390] sm:$0xf]
    %v2073 = vld [vmem:[%s9 + $0x394] sm:$0xf]
    %v2074 = vld [vmem:[%s9 + $0x398] sm:$0xf]
    %v2075 = vld [vmem:[%s9 + $0x39c] sm:$0xf]
    %v2076 = vld [vmem:[%s9 + $0x3a0] sm:$0xf]
    %v2077 = vld [vmem:[%s9 + $0x3a4] sm:$0xf]
    %v2078 = vld [vmem:[%s9 + $0x3a8] sm:$0xf]
    %v2079 = vld [vmem:[%s9 + $0x3ac] sm:$0xf]
    %v2080 = vld [vmem:[%s9 + $0x3b0] sm:$0xf]
    %v2081 = vld [vmem:[%s9 + $0x3b4] sm:$0xf]
    %v2082 = vld [vmem:[%s9 + $0x3b8] sm:$0xf]
    %v2083 = vld [vmem:[%s9 + $0x3bc] sm:$0xf]
    %v2084 = vld [vmem:[%s9 + $0x3c0] sm:$0xf]
    %v2085 = vld [vmem:[%s9 + $0x3c4] sm:$0xf]
    %v2086 = vld [vmem:[%s9 + $0x3c8] sm:$0xf]
    %v2087 = vld [vmem:[%s9 + $0x3cc] sm:$0xf]
    %v2088 = vld [vmem:[%s9 + $0x3d0] sm:$0xf]
    %v2089 = vld [vmem:[%s9 + $0x3d4] sm:$0xf]
    %v2090 = vld [vmem:[%s9 + $0x3d8] sm:$0xf]
    %v2091 = vld [vmem:[%s9 + $0x3dc] sm:$0xf]
    %v2092 = vld [vmem:[%s9 + $0x3e0] sm:$0xf]
    %v2093 = vld [vmem:[%s9 + $0x3e4] sm:$0xf]
    %v2094 = vld [vmem:[%s9 + $0x3e8] sm:$0xf]
    %v2095 = vld [vmem:[%s9 + $0x3ec] sm:$0xf]
    %v2096 = vld [vmem:[%s9 + $0x3f0] sm:$0xf]
    %v2097 = vld [vmem:[%s9 + $0x3f4] sm:$0xf]
    %v2098 = vld [vmem:[%s9 + $0x3f8] sm:$0xf]
    %v2099 = vld [vmem:[%s9 + $0x3fc] sm:$0xf]
    %v2100 = vld [vmem:[%s10] sm:$0x1]
    %v2102 = vlaneseq
    %v2103 = vshrl.u32 %v2102, 7
    %v2104 = vsub.s32 0, %v2103
    %v2105 = vrot.slane %v2100, %v2104
    %v2363 = vunpack.c.l.b16 %v1844
    %v2364 = vunpack.c.l.b16 %v1845
    %v2365 = vunpack.c.l.b16 %v1846
    %v2366 = vunpack.c.l.b16 %v1847
    %v2367 = vunpack.c.l.b16 %v1848
    %v2368 = vunpack.c.l.b16 %v1849
    %v2369 = vunpack.c.l.b16 %v1850
    %v2370 = vunpack.c.l.b16 %v1851
    %v2371 = vunpack.c.l.b16 %v1852
    %v2372 = vunpack.c.l.b16 %v1853
    %v2373 = vunpack.c.l.b16 %v1854
    %v2374 = vunpack.c.l.b16 %v1855
    %v2375 = vunpack.c.l.b16 %v1856
    %v2376 = vunpack.c.l.b16 %v1857
    %v2377 = vunpack.c.l.b16 %v1858
    %v2378 = vunpack.c.l.b16 %v1859
    %v2379 = vunpack.c.l.b16 %v1860
    %v2380 = vunpack.c.l.b16 %v1861
    %v2381 = vunpack.c.l.b16 %v1862
    %v2382 = vunpack.c.l.b16 %v1863
    %v2383 = vunpack.c.l.b16 %v1864
    %v2384 = vunpack.c.l.b16 %v1865
    %v2385 = vunpack.c.l.b16 %v1866
    %v2386 = vunpack.c.l.b16 %v1867
    %v2387 = vunpack.c.l.b16 %v1868
    %v2388 = vunpack.c.l.b16 %v1869
    %v2389 = vunpack.c.l.b16 %v1870
    %v2390 = vunpack.c.l.b16 %v1871
    %v2391 = vunpack.c.l.b16 %v1872
    %v2392 = vunpack.c.l.b16 %v1873
    %v2393 = vunpack.c.l.b16 %v1874
    %v2394 = vunpack.c.l.b16 %v1875
    %v2395 = vunpack.c.l.b16 %v1876
    %v2396 = vunpack.c.l.b16 %v1877
    %v2397 = vunpack.c.l.b16 %v1878
    %v2398 = vunpack.c.l.b16 %v1879
    %v2399 = vunpack.c.l.b16 %v1880
    %v2400 = vunpack.c.l.b16 %v1881
    %v2401 = vunpack.c.l.b16 %v1882
    %v2402 = vunpack.c.l.b16 %v1883
    %v2403 = vunpack.c.l.b16 %v1884
    %v2404 = vunpack.c.l.b16 %v1885
    %v2405 = vunpack.c.l.b16 %v1886
    %v2406 = vunpack.c.l.b16 %v1887
    %v2407 = vunpack.c.l.b16 %v1888
    %v2408 = vunpack.c.l.b16 %v1889
    %v2409 = vunpack.c.l.b16 %v1890
    %v2410 = vunpack.c.l.b16 %v1891
    %v2411 = vunpack.c.l.b16 %v1892
    %v2412 = vunpack.c.l.b16 %v1893
    %v2413 = vunpack.c.l.b16 %v1894
    %v2414 = vunpack.c.l.b16 %v1895
    %v2415 = vunpack.c.l.b16 %v1896
    %v2416 = vunpack.c.l.b16 %v1897
    %v2417 = vunpack.c.l.b16 %v1898
    %v2418 = vunpack.c.l.b16 %v1899
    %v2419 = vunpack.c.l.b16 %v1900
    %v2420 = vunpack.c.l.b16 %v1901
    %v2421 = vunpack.c.l.b16 %v1902
    %v2422 = vunpack.c.l.b16 %v1903
    %v2423 = vunpack.c.l.b16 %v1904
    %v2424 = vunpack.c.l.b16 %v1905
    %v2425 = vunpack.c.l.b16 %v1906
    %v2426 = vunpack.c.l.b16 %v1907
    %v2427 = vunpack.c.l.b16 %v1908
    %v2428 = vunpack.c.l.b16 %v1909
    %v2429 = vunpack.c.l.b16 %v1910
    %v2430 = vunpack.c.l.b16 %v1911
    %v2431 = vunpack.c.l.b16 %v1912
    %v2432 = vunpack.c.l.b16 %v1913
    %v2433 = vunpack.c.l.b16 %v1914
    %v2434 = vunpack.c.l.b16 %v1915
    %v2435 = vunpack.c.l.b16 %v1916
    %v2436 = vunpack.c.l.b16 %v1917
    %v2437 = vunpack.c.l.b16 %v1918
    %v2438 = vunpack.c.l.b16 %v1919
    %v2439 = vunpack.c.l.b16 %v1920
    %v2440 = vunpack.c.l.b16 %v1921
    %v2441 = vunpack.c.l.b16 %v1922
    %v2442 = vunpack.c.l.b16 %v1923
    %v2443 = vunpack.c.l.b16 %v1924
    %v2444 = vunpack.c.l.b16 %v1925
    %v2445 = vunpack.c.l.b16 %v1926
    %v2446 = vunpack.c.l.b16 %v1927
    %v2447 = vunpack.c.l.b16 %v1928
    %v2448 = vunpack.c.l.b16 %v1929
    %v2449 = vunpack.c.l.b16 %v1930
    %v2450 = vunpack.c.l.b16 %v1931
    %v2451 = vunpack.c.l.b16 %v1932
    %v2452 = vunpack.c.l.b16 %v1933
    %v2453 = vunpack.c.l.b16 %v1934
    %v2454 = vunpack.c.l.b16 %v1935
    %v2455 = vunpack.c.l.b16 %v1936
    %v2456 = vunpack.c.l.b16 %v1937
    %v2457 = vunpack.c.l.b16 %v1938
    %v2458 = vunpack.c.l.b16 %v1939
    %v2459 = vunpack.c.l.b16 %v1940
    %v2460 = vunpack.c.l.b16 %v1941
    %v2461 = vunpack.c.l.b16 %v1942
    %v2462 = vunpack.c.l.b16 %v1943
    %v2463 = vunpack.c.l.b16 %v1944
    %v2464 = vunpack.c.l.b16 %v1945
    %v2465 = vunpack.c.l.b16 %v1946
    %v2466 = vunpack.c.l.b16 %v1947
    %v2467 = vunpack.c.l.b16 %v1948
    %v2468 = vunpack.c.l.b16 %v1949
    %v2469 = vunpack.c.l.b16 %v1950
    %v2470 = vunpack.c.l.b16 %v1951
    %v2471 = vunpack.c.l.b16 %v1952
    %v2472 = vunpack.c.l.b16 %v1953
    %v2473 = vunpack.c.l.b16 %v1954
    %v2474 = vunpack.c.l.b16 %v1955
    %v2475 = vunpack.c.l.b16 %v1956
    %v2476 = vunpack.c.l.b16 %v1957
    %v2477 = vunpack.c.l.b16 %v1958
    %v2478 = vunpack.c.l.b16 %v1959
    %v2479 = vunpack.c.l.b16 %v1960
    %v2480 = vunpack.c.l.b16 %v1961
    %v2481 = vunpack.c.l.b16 %v1962
    %v2482 = vunpack.c.l.b16 %v1963
    %v2483 = vunpack.c.l.b16 %v1964
    %v2484 = vunpack.c.l.b16 %v1965
    %v2485 = vunpack.c.l.b16 %v1966
    %v2486 = vunpack.c.l.b16 %v1967
    %v2487 = vunpack.c.l.b16 %v1968
    %v2488 = vunpack.c.l.b16 %v1969
    %v2489 = vunpack.c.l.b16 %v1970
    %v2490 = vunpack.c.l.b16 %v1971
    %v2491 = vunpack.c.l.b16 %v1972
    %v2492 = vunpack.c.l.b16 %v1973
    %v2493 = vunpack.c.l.b16 %v1974
    %v2494 = vunpack.c.l.b16 %v1975
    %v2495 = vunpack.c.l.b16 %v1976
    %v2496 = vunpack.c.l.b16 %v1977
    %v2497 = vunpack.c.l.b16 %v1978
    %v2498 = vunpack.c.l.b16 %v1979
    %v2499 = vunpack.c.l.b16 %v1980
    %v2500 = vunpack.c.l.b16 %v1981
    %v2501 = vunpack.c.l.b16 %v1982
    %v2502 = vunpack.c.l.b16 %v1983
    %v2503 = vunpack.c.l.b16 %v1984
    %v2504 = vunpack.c.l.b16 %v1985
    %v2505 = vunpack.c.l.b16 %v1986
    %v2506 = vunpack.c.l.b16 %v1987
    %v2507 = vunpack.c.l.b16 %v1988
    %v2508 = vunpack.c.l.b16 %v1989
    %v2509 = vunpack.c.l.b16 %v1990
    %v2510 = vunpack.c.l.b16 %v1991
    %v2511 = vunpack.c.l.b16 %v1992
    %v2512 = vunpack.c.l.b16 %v1993
    %v2513 = vunpack.c.l.b16 %v1994
    %v2514 = vunpack.c.l.b16 %v1995
    %v2515 = vunpack.c.l.b16 %v1996
    %v2516 = vunpack.c.l.b16 %v1997
    %v2517 = vunpack.c.l.b16 %v1998
    %v2518 = vunpack.c.l.b16 %v1999
    %v2519 = vunpack.c.l.b16 %v2000
    %v2520 = vunpack.c.l.b16 %v2001
    %v2521 = vunpack.c.l.b16 %v2002
    %v2522 = vunpack.c.l.b16 %v2003
    %v2523 = vunpack.c.l.b16 %v2004
    %v2524 = vunpack.c.l.b16 %v2005
    %v2525 = vunpack.c.l.b16 %v2006
    %v2526 = vunpack.c.l.b16 %v2007
    %v2527 = vunpack.c.l.b16 %v2008
    %v2528 = vunpack.c.l.b16 %v2009
    %v2529 = vunpack.c.l.b16 %v2010
    %v2530 = vunpack.c.l.b16 %v2011
    %v2531 = vunpack.c.l.b16 %v2012
    %v2532 = vunpack.c.l.b16 %v2013
    %v2533 = vunpack.c.l.b16 %v2014
    %v2534 = vunpack.c.l.b16 %v2015
    %v2535 = vunpack.c.l.b16 %v2016
    %v2536 = vunpack.c.l.b16 %v2017
    %v2537 = vunpack.c.l.b16 %v2018
    %v2538 = vunpack.c.l.b16 %v2019
    %v2539 = vunpack.c.l.b16 %v2020
    %v2540 = vunpack.c.l.b16 %v2021
    %v2541 = vunpack.c.l.b16 %v2022
    %v2542 = vunpack.c.l.b16 %v2023
    %v2543 = vunpack.c.l.b16 %v2024
    %v2544 = vunpack.c.l.b16 %v2025
    %v2545 = vunpack.c.l.b16 %v2026
    %v2546 = vunpack.c.l.b16 %v2027
    %v2547 = vunpack.c.l.b16 %v2028
    %v2548 = vunpack.c.l.b16 %v2029
    %v2549 = vunpack.c.l.b16 %v2030
    %v2550 = vunpack.c.l.b16 %v2031
    %v2551 = vunpack.c.l.b16 %v2032
    %v2552 = vunpack.c.l.b16 %v2033
    %v2553 = vunpack.c.l.b16 %v2034
    %v2554 = vunpack.c.l.b16 %v2035
    %v2555 = vunpack.c.l.b16 %v2036
    %v2556 = vunpack.c.l.b16 %v2037
    %v2557 = vunpack.c.l.b16 %v2038
    %v2558 = vunpack.c.l.b16 %v2039
    %v2559 = vunpack.c.l.b16 %v2040
    %v2560 = vunpack.c.l.b16 %v2041
    %v2561 = vunpack.c.l.b16 %v2042
    %v2562 = vunpack.c.l.b16 %v2043
    %v2563 = vunpack.c.l.b16 %v2044
    %v2564 = vunpack.c.l.b16 %v2045
    %v2565 = vunpack.c.l.b16 %v2046
    %v2566 = vunpack.c.l.b16 %v2047
    %v2567 = vunpack.c.l.b16 %v2048
    %v2568 = vunpack.c.l.b16 %v2049
    %v2569 = vunpack.c.l.b16 %v2050
    %v2570 = vunpack.c.l.b16 %v2051
    %v2571 = vunpack.c.l.b16 %v2052
    %v2572 = vunpack.c.l.b16 %v2053
    %v2573 = vunpack.c.l.b16 %v2054
    %v2574 = vunpack.c.l.b16 %v2055
    %v2575 = vunpack.c.l.b16 %v2056
    %v2576 = vunpack.c.l.b16 %v2057
    %v2577 = vunpack.c.l.b16 %v2058
    %v2578 = vunpack.c.l.b16 %v2059
    %v2579 = vunpack.c.l.b16 %v2060
    %v2580 = vunpack.c.l.b16 %v2061
    %v2581 = vunpack.c.l.b16 %v2062
    %v2582 = vunpack.c.l.b16 %v2063
    %v2583 = vunpack.c.l.b16 %v2064
    %v2584 = vunpack.c.l.b16 %v2065
    %v2585 = vunpack.c.l.b16 %v2066
    %v2586 = vunpack.c.l.b16 %v2067
    %v2587 = vunpack.c.l.b16 %v2068
    %v2588 = vunpack.c.l.b16 %v2069
    %v2589 = vunpack.c.l.b16 %v2070
    %v2590 = vunpack.c.l.b16 %v2071
    %v2591 = vunpack.c.l.b16 %v2072
    %v2592 = vunpack.c.l.b16 %v2073
    %v2593 = vunpack.c.l.b16 %v2074
    %v2594 = vunpack.c.l.b16 %v2075
    %v2595 = vunpack.c.l.b16 %v2076
    %v2596 = vunpack.c.l.b16 %v2077
    %v2597 = vunpack.c.l.b16 %v2078
    %v2598 = vunpack.c.l.b16 %v2079
    %v2599 = vunpack.c.l.b16 %v2080
    %v2600 = vunpack.c.l.b16 %v2081
    %v2601 = vunpack.c.l.b16 %v2082
    %v2602 = vunpack.c.l.b16 %v2083
    %v2603 = vunpack.c.l.b16 %v2084
    %v2604 = vunpack.c.l.b16 %v2085
    %v2605 = vunpack.c.l.b16 %v2086
    %v2606 = vunpack.c.l.b16 %v2087
    %v2607 = vunpack.c.l.b16 %v2088
    %v2608 = vunpack.c.l.b16 %v2089
    %v2609 = vunpack.c.l.b16 %v2090
    %v2610 = vunpack.c.l.b16 %v2091
    %v2611 = vunpack.c.l.b16 %v2092
    %v2612 = vunpack.c.l.b16 %v2093
    %v2613 = vunpack.c.l.b16 %v2094
    %v2614 = vunpack.c.l.b16 %v2095
    %v2615 = vunpack.c.l.b16 %v2096
    %v2616 = vunpack.c.l.b16 %v2097
    %v2617 = vunpack.c.l.b16 %v2098
    %v2618 = vunpack.c.l.b16 %v2099
    %v2619 = vpack.c.b16 %v2364, %v2363
    %v2620 = vpack.c.b16 %v2366, %v2365
    %v2621 = vpack.c.b16 %v2368, %v2367
    %v2622 = vpack.c.b16 %v2370, %v2369
    %v2623 = vpack.c.b16 %v2372, %v2371
    %v2624 = vpack.c.b16 %v2374, %v2373
    %v2625 = vpack.c.b16 %v2376, %v2375
    %v2626 = vpack.c.b16 %v2378, %v2377
    %v2627 = vpack.c.b16 %v2380, %v2379
    %v2628 = vpack.c.b16 %v2382, %v2381
    %v2629 = vpack.c.b16 %v2384, %v2383
    %v2630 = vpack.c.b16 %v2386, %v2385
    %v2631 = vpack.c.b16 %v2388, %v2387
    %v2632 = vpack.c.b16 %v2390, %v2389
    %v2633 = vpack.c.b16 %v2392, %v2391
    %v2634 = vpack.c.b16 %v2394, %v2393
    %v2635 = vpack.c.b16 %v2396, %v2395
    %v2636 = vpack.c.b16 %v2398, %v2397
    %v2637 = vpack.c.b16 %v2400, %v2399
    %v2638 = vpack.c.b16 %v2402, %v2401
    %v2639 = vpack.c.b16 %v2404, %v2403
    %v2640 = vpack.c.b16 %v2406, %v2405
    %v2641 = vpack.c.b16 %v2408, %v2407
    %v2642 = vpack.c.b16 %v2410, %v2409
    %v2643 = vpack.c.b16 %v2412, %v2411
    %v2644 = vpack.c.b16 %v2414, %v2413
    %v2645 = vpack.c.b16 %v2416, %v2415
    %v2646 = vpack.c.b16 %v2418, %v2417
    %v2647 = vpack.c.b16 %v2420, %v2419
    %v2648 = vpack.c.b16 %v2422, %v2421
    %v2649 = vpack.c.b16 %v2424, %v2423
    %v2650 = vpack.c.b16 %v2426, %v2425
    %v2651 = vpack.c.b16 %v2428, %v2427
    %v2652 = vpack.c.b16 %v2430, %v2429
    %v2653 = vpack.c.b16 %v2432, %v2431
    %v2654 = vpack.c.b16 %v2434, %v2433
    %v2655 = vpack.c.b16 %v2436, %v2435
    %v2656 = vpack.c.b16 %v2438, %v2437
    %v2657 = vpack.c.b16 %v2440, %v2439
    %v2658 = vpack.c.b16 %v2442, %v2441
    %v2659 = vpack.c.b16 %v2444, %v2443
    %v2660 = vpack.c.b16 %v2446, %v2445
    %v2661 = vpack.c.b16 %v2448, %v2447
    %v2662 = vpack.c.b16 %v2450, %v2449
    %v2663 = vpack.c.b16 %v2452, %v2451
    %v2664 = vpack.c.b16 %v2454, %v2453
    %v2665 = vpack.c.b16 %v2456, %v2455
    %v2666 = vpack.c.b16 %v2458, %v2457
    %v2667 = vpack.c.b16 %v2460, %v2459
    %v2668 = vpack.c.b16 %v2462, %v2461
    %v2669 = vpack.c.b16 %v2464, %v2463
    %v2670 = vpack.c.b16 %v2466, %v2465
    %v2671 = vpack.c.b16 %v2468, %v2467
    %v2672 = vpack.c.b16 %v2470, %v2469
    %v2673 = vpack.c.b16 %v2472, %v2471
    %v2674 = vpack.c.b16 %v2474, %v2473
    %v2675 = vpack.c.b16 %v2476, %v2475
    %v2676 = vpack.c.b16 %v2478, %v2477
    %v2677 = vpack.c.b16 %v2480, %v2479
    %v2678 = vpack.c.b16 %v2482, %v2481
    %v2679 = vpack.c.b16 %v2484, %v2483
    %v2680 = vpack.c.b16 %v2486, %v2485
    %v2681 = vpack.c.b16 %v2488, %v2487
    %v2682 = vpack.c.b16 %v2490, %v2489
    %v2683 = vpack.c.b16 %v2492, %v2491
    %v2684 = vpack.c.b16 %v2494, %v2493
    %v2685 = vpack.c.b16 %v2496, %v2495
    %v2686 = vpack.c.b16 %v2498, %v2497
    %v2687 = vpack.c.b16 %v2500, %v2499
    %v2688 = vpack.c.b16 %v2502, %v2501
    %v2689 = vpack.c.b16 %v2504, %v2503
    %v2690 = vpack.c.b16 %v2506, %v2505
    %v2691 = vpack.c.b16 %v2508, %v2507
    %v2692 = vpack.c.b16 %v2510, %v2509
    %v2693 = vpack.c.b16 %v2512, %v2511
    %v2694 = vpack.c.b16 %v2514, %v2513
    %v2695 = vpack.c.b16 %v2516, %v2515
    %v2696 = vpack.c.b16 %v2518, %v2517
    %v2697 = vpack.c.b16 %v2520, %v2519
    %v2698 = vpack.c.b16 %v2522, %v2521
    %v2699 = vpack.c.b16 %v2524, %v2523
    %v2700 = vpack.c.b16 %v2526, %v2525
    %v2701 = vpack.c.b16 %v2528, %v2527
    %v2702 = vpack.c.b16 %v2530, %v2529
    %v2703 = vpack.c.b16 %v2532, %v2531
    %v2704 = vpack.c.b16 %v2534, %v2533
    %v2705 = vpack.c.b16 %v2536, %v2535
    %v2706 = vpack.c.b16 %v2538, %v2537
    %v2707 = vpack.c.b16 %v2540, %v2539
    %v2708 = vpack.c.b16 %v2542, %v2541
    %v2709 = vpack.c.b16 %v2544, %v2543
    %v2710 = vpack.c.b16 %v2546, %v2545
    %v2711 = vpack.c.b16 %v2548, %v2547
    %v2712 = vpack.c.b16 %v2550, %v2549
    %v2713 = vpack.c.b16 %v2552, %v2551
    %v2714 = vpack.c.b16 %v2554, %v2553
    %v2715 = vpack.c.b16 %v2556, %v2555
    %v2716 = vpack.c.b16 %v2558, %v2557
    %v2717 = vpack.c.b16 %v2560, %v2559
    %v2718 = vpack.c.b16 %v2562, %v2561
    %v2719 = vpack.c.b16 %v2564, %v2563
    %v2720 = vpack.c.b16 %v2566, %v2565
    %v2721 = vpack.c.b16 %v2568, %v2567
    %v2722 = vpack.c.b16 %v2570, %v2569
    %v2723 = vpack.c.b16 %v2572, %v2571
    %v2724 = vpack.c.b16 %v2574, %v2573
    %v2725 = vpack.c.b16 %v2576, %v2575
    %v2726 = vpack.c.b16 %v2578, %v2577
    %v2727 = vpack.c.b16 %v2580, %v2579
    %v2728 = vpack.c.b16 %v2582, %v2581
    %v2729 = vpack.c.b16 %v2584, %v2583
    %v2730 = vpack.c.b16 %v2586, %v2585
    %v2731 = vpack.c.b16 %v2588, %v2587
    %v2732 = vpack.c.b16 %v2590, %v2589
    %v2733 = vpack.c.b16 %v2592, %v2591
    %v2734 = vpack.c.b16 %v2594, %v2593
    %v2735 = vpack.c.b16 %v2596, %v2595
    %v2736 = vpack.c.b16 %v2598, %v2597
    %v2737 = vpack.c.b16 %v2600, %v2599
    %v2738 = vpack.c.b16 %v2602, %v2601
    %v2739 = vpack.c.b16 %v2604, %v2603
    %v2740 = vpack.c.b16 %v2606, %v2605
    %v2741 = vpack.c.b16 %v2608, %v2607
    %v2742 = vpack.c.b16 %v2610, %v2609
    %v2743 = vpack.c.b16 %v2612, %v2611
    %v2744 = vpack.c.b16 %v2614, %v2613
    %v2745 = vpack.c.b16 %v2616, %v2615
    %v2746 = vpack.c.b16 %v2618, %v2617
    %2875 = vmatprep.subr.bf16.mxu0 0
    %2876 = vmatpush1.bf16.msra.mxu0 %v2619
    %2877 = vmatprep.subr.bf16.mxu0 0
    %2878 = vmatpush1.bf16.msra.mxu0 %v2620
    %2879 = vmatprep.subr.bf16.mxu0 0
    %2880 = vmatpush1.bf16.msra.mxu0 %v2621
    %2881 = vmatprep.subr.bf16.mxu0 0
    %2882 = vmatpush1.bf16.msra.mxu0 %v2622
    %2883 = vmatprep.subr.bf16.mxu0 0
    %2884 = vmatpush1.bf16.msra.mxu0 %v2623
    %2885 = vmatprep.subr.bf16.mxu0 0
    %2886 = vmatpush1.bf16.msra.mxu0 %v2624
    %2887 = vmatprep.subr.bf16.mxu0 0
    %2888 = vmatpush1.bf16.msra.mxu0 %v2625
    %2889 = vmatprep.subr.bf16.mxu0 0
    %2890 = vmatpush1.bf16.msra.mxu0 %v2626
    %2891 = vmatprep.subr.bf16.mxu0 0
    %2892 = vmatpush1.bf16.msra.mxu0 %v2627
    %2893 = vmatprep.subr.bf16.mxu0 0
    %2894 = vmatpush1.bf16.msra.mxu0 %v2628
    %2895 = vmatprep.subr.bf16.mxu0 0
    %2896 = vmatpush1.bf16.msra.mxu0 %v2629
    %2897 = vmatprep.subr.bf16.mxu0 0
    %2898 = vmatpush1.bf16.msra.mxu0 %v2630
    %2899 = vmatprep.subr.bf16.mxu0 0
    %2900 = vmatpush1.bf16.msra.mxu0 %v2631
    %2901 = vmatprep.subr.bf16.mxu0 0
    %2902 = vmatpush1.bf16.msra.mxu0 %v2632
    %2903 = vmatprep.subr.bf16.mxu0 0
    %2904 = vmatpush1.bf16.msra.mxu0 %v2633
    %2905 = vmatprep.subr.bf16.mxu0 0
    %2906 = vmatpush1.bf16.msra.mxu0 %v2634
    %2907 = vmatprep.mubr.bf16.mxu0 %v1829
    %2908 = vmatmul.mubr.bf16.gmra.mrb[0].mxu0 %v1828
    %v2909 = vpop.f32.mrb[0].mxu0
    %v2910 = vadd.f32 %v2105, %v2909
    %v2911 = vpop.f32.mrb[0].mxu0
    %v2912 = vpop.f32.mrb[0].mxu0
    %v2913 = vadd.f32 %v2105, %v2912
    %v2914 = vpop.f32.mrb[0].mxu0
    %2915 = vdwg.mxu0
    %2916 = vmatprep.subr.bf16.mxu0 0
    %2917 = vmatpush1.bf16.msra.mxu0 %v2635
    %2918 = vmatprep.subr.bf16.mxu0 0
    %2919 = vmatpush1.bf16.msra.mxu0 %v2636
    %2920 = vmatprep.subr.bf16.mxu0 0
    %2921 = vmatpush1.bf16.msra.mxu0 %v2637
    %2922 = vmatprep.subr.bf16.mxu0 0
    %2923 = vmatpush1.bf16.msra.mxu0 %v2638
    %2924 = vmatprep.subr.bf16.mxu0 0
    %2925 = vmatpush1.bf16.msra.mxu0 %v2639
    %2926 = vmatprep.subr.bf16.mxu0 0
    %2927 = vmatpush1.bf16.msra.mxu0 %v2640
    %2928 = vmatprep.subr.bf16.mxu0 0
    %2929 = vmatpush1.bf16.msra.mxu0 %v2641
    %2930 = vmatprep.subr.bf16.mxu0 0
    %2931 = vmatpush1.bf16.msra.mxu0 %v2642
    %2932 = vmatprep.subr.bf16.mxu0 0
    %2933 = vmatpush1.bf16.msra.mxu0 %v2643
    %2934 = vmatprep.subr.bf16.mxu0 0
    %2935 = vmatpush1.bf16.msra.mxu0 %v2644
    %2936 = vmatprep.subr.bf16.mxu0 0
    %2937 = vmatpush1.bf16.msra.mxu0 %v2645
    %2938 = vmatprep.subr.bf16.mxu0 0
    %2939 = vmatpush1.bf16.msra.mxu0 %v2646
    %2940 = vmatprep.subr.bf16.mxu0 0
    %2941 = vmatpush1.bf16.msra.mxu0 %v2647
    %2942 = vmatprep.subr.bf16.mxu0 0
    %2943 = vmatpush1.bf16.msra.mxu0 %v2648
    %2944 = vmatprep.subr.bf16.mxu0 0
    %2945 = vmatpush1.bf16.msra.mxu0 %v2649
    %2946 = vmatprep.subr.bf16.mxu0 0
    %2947 = vmatpush1.bf16.msra.mxu0 %v2650
    %2948 = vmatprep.mubr.bf16.mxu0 %v1831
    %2949 = vmatmul.mubr.bf16.gmra.mrb[0].mxu0 %v1830
    %v2950 = vpop.f32.mrb[0].mxu0
    %v2951 = vadd.f32 %v2910, %v2950
    %v2952 = vpop.f32.mrb[0].mxu0
    %v2953 = vpop.f32.mrb[0].mxu0
    %v2954 = vadd.f32 %v2913, %v2953
    %v2955 = vpop.f32.mrb[0].mxu0
    %2956 = vdwg.mxu0
    %2957 = vmatprep.subr.bf16.mxu0 0
    %2958 = vmatpush1.bf16.msra.mxu0 %v2651
    %2959 = vmatprep.subr.bf16.mxu0 0
    %2960 = vmatpush1.bf16.msra.mxu0 %v2652
    %2961 = vmatprep.subr.bf16.mxu0 0
    %2962 = vmatpush1.bf16.msra.mxu0 %v2653
    %2963 = vmatprep.subr.bf16.mxu0 0
    %2964 = vmatpush1.bf16.msra.mxu0 %v2654
    %2965 = vmatprep.subr.bf16.mxu0 0
    %2966 = vmatpush1.bf16.msra.mxu0 %v2655
    %2967 = vmatprep.subr.bf16.mxu0 0
    %2968 = vmatpush1.bf16.msra.mxu0 %v2656
    %2969 = vmatprep.subr.bf16.mxu0 0
    %2970 = vmatpush1.bf16.msra.mxu0 %v2657
    %2971 = vmatprep.subr.bf16.mxu0 0
    %2972 = vmatpush1.bf16.msra.mxu0 %v2658
    %2973 = vmatprep.subr.bf16.mxu0 0
    %2974 = vmatpush1.bf16.msra.mxu0 %v2659
    %2975 = vmatprep.subr.bf16.mxu0 0
    %2976 = vmatpush1.bf16.msra.mxu0 %v2660
    %2977 = vmatprep.subr.bf16.mxu0 0
    %2978 = vmatpush1.bf16.msra.mxu0 %v2661
    %2979 = vmatprep.subr.bf16.mxu0 0
    %2980 = vmatpush1.bf16.msra.mxu0 %v2662
    %2981 = vmatprep.subr.bf16.mxu0 0
    %2982 = vmatpush1.bf16.msra.mxu0 %v2663
    %2983 = vmatprep.subr.bf16.mxu0 0
    %2984 = vmatpush1.bf16.msra.mxu0 %v2664
    %2985 = vmatprep.subr.bf16.mxu0 0
    %2986 = vmatpush1.bf16.msra.mxu0 %v2665
    %2987 = vmatprep.subr.bf16.mxu0 0
    %2988 = vmatpush1.bf16.msra.mxu0 %v2666
    %2989 = vmatprep.mubr.bf16.mxu0 %v1833
    %2990 = vmatmul.mubr.bf16.gmra.mrb[0].mxu0 %v1832
    %v2991 = vpop.f32.mrb[0].mxu0
    %v2992 = vadd.f32 %v2951, %v2991
    %v2993 = vpop.f32.mrb[0].mxu0
    %v2994 = vpop.f32.mrb[0].mxu0
    %v2995 = vadd.f32 %v2954, %v2994
    %v2996 = vpop.f32.mrb[0].mxu0
    %2997 = vdwg.mxu0
    %2998 = vmatprep.subr.bf16.mxu0 0
    %2999 = vmatpush1.bf16.msra.mxu0 %v2667
    %3000 = vmatprep.subr.bf16.mxu0 0
    %3001 = vmatpush1.bf16.msra.mxu0 %v2668
    %3002 = vmatprep.subr.bf16.mxu0 0
    %3003 = vmatpush1.bf16.msra.mxu0 %v2669
    %3004 = vmatprep.subr.bf16.mxu0 0
    %3005 = vmatpush1.bf16.msra.mxu0 %v2670
    %3006 = vmatprep.subr.bf16.mxu0 0
    %3007 = vmatpush1.bf16.msra.mxu0 %v2671
    %3008 = vmatprep.subr.bf16.mxu0 0
    %3009 = vmatpush1.bf16.msra.mxu0 %v2672
    %3010 = vmatprep.subr.bf16.mxu0 0
    %3011 = vmatpush1.bf16.msra.mxu0 %v2673
    %3012 = vmatprep.subr.bf16.mxu0 0
    %3013 = vmatpush1.bf16.msra.mxu0 %v2674
    %3014 = vmatprep.subr.bf16.mxu0 0
    %3015 = vmatpush1.bf16.msra.mxu0 %v2675
    %3016 = vmatprep.subr.bf16.mxu0 0
    %3017 = vmatpush1.bf16.msra.mxu0 %v2676
    %3018 = vmatprep.subr.bf16.mxu0 0
    %3019 = vmatpush1.bf16.msra.mxu0 %v2677
    %3020 = vmatprep.subr.bf16.mxu0 0
    %3021 = vmatpush1.bf16.msra.mxu0 %v2678
    %3022 = vmatprep.subr.bf16.mxu0 0
    %3023 = vmatpush1.bf16.msra.mxu0 %v2679
    %3024 = vmatprep.subr.bf16.mxu0 0
    %3025 = vmatpush1.bf16.msra.mxu0 %v2680
    %3026 = vmatprep.subr.bf16.mxu0 0
    %3027 = vmatpush1.bf16.msra.mxu0 %v2681
    %3028 = vmatprep.subr.bf16.mxu0 0
    %3029 = vmatpush1.bf16.msra.mxu0 %v2682
    %3030 = vmatprep.mubr.bf16.mxu0 %v1835
    %3031 = vmatmul.mubr.bf16.gmra.mrb[0].mxu0 %v1834
    %v3032 = vpop.f32.mrb[0].mxu0
    %v3033 = vadd.f32 %v2992, %v3032
    %v3034 = vpop.f32.mrb[0].mxu0
    %v3035 = vpop.f32.mrb[0].mxu0
    %v3036 = vadd.f32 %v2995, %v3035
    %v3037 = vpop.f32.mrb[0].mxu0
    %3038 = vdwg.mxu0
    %3039 = vmatprep.subr.bf16.mxu0 0
    %3040 = vmatpush1.bf16.msra.mxu0 %v2683
    %3041 = vmatprep.subr.bf16.mxu0 0
    %3042 = vmatpush1.bf16.msra.mxu0 %v2684
    %3043 = vmatprep.subr.bf16.mxu0 0
    %3044 = vmatpush1.bf16.msra.mxu0 %v2685
    %3045 = vmatprep.subr.bf16.mxu0 0
    %3046 = vmatpush1.bf16.msra.mxu0 %v2686
    %3047 = vmatprep.subr.bf16.mxu0 0
    %3048 = vmatpush1.bf16.msra.mxu0 %v2687
    %3049 = vmatprep.subr.bf16.mxu0 0
    %3050 = vmatpush1.bf16.msra.mxu0 %v2688
    %3051 = vmatprep.subr.bf16.mxu0 0
    %3052 = vmatpush1.bf16.msra.mxu0 %v2689
    %3053 = vmatprep.subr.bf16.mxu0 0
    %3054 = vmatpush1.bf16.msra.mxu0 %v2690
    %3055 = vmatprep.subr.bf16.mxu0 0
    %3056 = vmatpush1.bf16.msra.mxu0 %v2691
    %3057 = vmatprep.subr.bf16.mxu0 0
    %3058 = vmatpush1.bf16.msra.mxu0 %v2692
    %3059 = vmatprep.subr.bf16.mxu0 0
    %3060 = vmatpush1.bf16.msra.mxu0 %v2693
    %3061 = vmatprep.subr.bf16.mxu0 0
    %3062 = vmatpush1.bf16.msra.mxu0 %v2694
    %3063 = vmatprep.subr.bf16.mxu0 0
    %3064 = vmatpush1.bf16.msra.mxu0 %v2695
    %3065 = vmatprep.subr.bf16.mxu0 0
    %3066 = vmatpush1.bf16.msra.mxu0 %v2696
    %3067 = vmatprep.subr.bf16.mxu0 0
    %3068 = vmatpush1.bf16.msra.mxu0 %v2697
    %3069 = vmatprep.subr.bf16.mxu0 0
    %3070 = vmatpush1.bf16.msra.mxu0 %v2698
    %3071 = vmatprep.mubr.bf16.mxu0 %v1837
    %3072 = vmatmul.mubr.bf16.gmra.mrb[0].mxu0 %v1836
    %v3073 = vpop.f32.mrb[0].mxu0
    %v3074 = vadd.f32 %v3033, %v3073
    %v3075 = vpop.f32.mrb[0].mxu0
    %v3076 = vpop.f32.mrb[0].mxu0
    %v3077 = vadd.f32 %v3036, %v3076
    %v3078 = vpop.f32.mrb[0].mxu0
    %3079 = vdwg.mxu0
    %3080 = vmatprep.subr.bf16.mxu0 0
    %3081 = vmatpush1.bf16.msra.mxu0 %v2699
    %3082 = vmatprep.subr.bf16.mxu0 0
    %3083 = vmatpush1.bf16.msra.mxu0 %v2700
    %3084 = vmatprep.subr.bf16.mxu0 0
    %3085 = vmatpush1.bf16.msra.mxu0 %v2701
    %3086 = vmatprep.subr.bf16.mxu0 0
    %3087 = vmatpush1.bf16.msra.mxu0 %v2702
    %3088 = vmatprep.subr.bf16.mxu0 0
    %3089 = vmatpush1.bf16.msra.mxu0 %v2703
    %3090 = vmatprep.subr.bf16.mxu0 0
    %3091 = vmatpush1.bf16.msra.mxu0 %v2704
    %3092 = vmatprep.subr.bf16.mxu0 0
    %3093 = vmatpush1.bf16.msra.mxu0 %v2705
    %3094 = vmatprep.subr.bf16.mxu0 0
    %3095 = vmatpush1.bf16.msra.mxu0 %v2706
    %3096 = vmatprep.subr.bf16.mxu0 0
    %3097 = vmatpush1.bf16.msra.mxu0 %v2707
    %3098 = vmatprep.subr.bf16.mxu0 0
    %3099 = vmatpush1.bf16.msra.mxu0 %v2708
    %3100 = vmatprep.subr.bf16.mxu0 0
    %3101 = vmatpush1.bf16.msra.mxu0 %v2709
    %3102 = vmatprep.subr.bf16.mxu0 0
    %3103 = vmatpush1.bf16.msra.mxu0 %v2710
    %3104 = vmatprep.subr.bf16.mxu0 0
    %3105 = vmatpush1.bf16.msra.mxu0 %v2711
    %3106 = vmatprep.subr.bf16.mxu0 0
    %3107 = vmatpush1.bf16.msra.mxu0 %v2712
    %3108 = vmatprep.subr.bf16.mxu0 0
    %3109 = vmatpush1.bf16.msra.mxu0 %v2713
    %3110 = vmatprep.subr.bf16.mxu0 0
    %3111 = vmatpush1.bf16.msra.mxu0 %v2714
    %3112 = vmatprep.mubr.bf16.mxu0 %v1839
    %3113 = vmatmul.mubr.bf16.gmra.mrb[0].mxu0 %v1838
    %v3114 = vpop.f32.mrb[0].mxu0
    %v3115 = vadd.f32 %v3074, %v3114
    %v3116 = vpop.f32.mrb[0].mxu0
    %v3117 = vpop.f32.mrb[0].mxu0
    %v3118 = vadd.f32 %v3077, %v3117
    %v3119 = vpop.f32.mrb[0].mxu0
    %3120 = vdwg.mxu0
    %3121 = vmatprep.subr.bf16.mxu0 0
    %3122 = vmatpush1.bf16.msra.mxu0 %v2715
    %3123 = vmatprep.subr.bf16.mxu0 0
    %3124 = vmatpush1.bf16.msra.mxu0 %v2716
    %3125 = vmatprep.subr.bf16.mxu0 0
    %3126 = vmatpush1.bf16.msra.mxu0 %v2717
    %3127 = vmatprep.subr.bf16.mxu0 0
    %3128 = vmatpush1.bf16.msra.mxu0 %v2718
    %3129 = vmatprep.subr.bf16.mxu0 0
    %3130 = vmatpush1.bf16.msra.mxu0 %v2719
    %3131 = vmatprep.subr.bf16.mxu0 0
    %3132 = vmatpush1.bf16.msra.mxu0 %v2720
    %3133 = vmatprep.subr.bf16.mxu0 0
    %3134 = vmatpush1.bf16.msra.mxu0 %v2721
    %3135 = vmatprep.subr.bf16.mxu0 0
    %3136 = vmatpush1.bf16.msra.mxu0 %v2722
    %3137 = vmatprep.subr.bf16.mxu0 0
    %3138 = vmatpush1.bf16.msra.mxu0 %v2723
    %3139 = vmatprep.subr.bf16.mxu0 0
    %3140 = vmatpush1.bf16.msra.mxu0 %v2724
    %3141 = vmatprep.subr.bf16.mxu0 0
    %3142 = vmatpush1.bf16.msra.mxu0 %v2725
    %3143 = vmatprep.subr.bf16.mxu0 0
    %3144 = vmatpush1.bf16.msra.mxu0 %v2726
    %3145 = vmatprep.subr.bf16.mxu0 0
    %3146 = vmatpush1.bf16.msra.mxu0 %v2727
    %3147 = vmatprep.subr.bf16.mxu0 0
    %3148 = vmatpush1.bf16.msra.mxu0 %v2728
    %3149 = vmatprep.subr.bf16.mxu0 0
    %3150 = vmatpush1.bf16.msra.mxu0 %v2729
    %3151 = vmatprep.subr.bf16.mxu0 0
    %3152 = vmatpush1.bf16.msra.mxu0 %v2730
    %3153 = vmatprep.mubr.bf16.mxu0 %v1841
    %3154 = vmatmul.mubr.bf16.gmra.mrb[0].mxu0 %v1840
    %v3155 = vpop.f32.mrb[0].mxu0
    %v3156 = vadd.f32 %v3115, %v3155
    %v3157 = vpop.f32.mrb[0].mxu0
    %v3158 = vpop.f32.mrb[0].mxu0
    %v3159 = vadd.f32 %v3118, %v3158
    %v3160 = vpop.f32.mrb[0].mxu0
    %3161 = vdwg.mxu0
    %3162 = vmatprep.subr.bf16.mxu0 0
    %3163 = vmatpush1.bf16.msra.mxu0 %v2731
    %3164 = vmatprep.subr.bf16.mxu0 0
    %3165 = vmatpush1.bf16.msra.mxu0 %v2732
    %3166 = vmatprep.subr.bf16.mxu0 0
    %3167 = vmatpush1.bf16.msra.mxu0 %v2733
    %3168 = vmatprep.subr.bf16.mxu0 0
    %3169 = vmatpush1.bf16.msra.mxu0 %v2734
    %3170 = vmatprep.subr.bf16.mxu0 0
    %3171 = vmatpush1.bf16.msra.mxu0 %v2735
    %3172 = vmatprep.subr.bf16.mxu0 0
    %3173 = vmatpush1.bf16.msra.mxu0 %v2736
    %3174 = vmatprep.subr.bf16.mxu0 0
    %3175 = vmatpush1.bf16.msra.mxu0 %v2737
    %3176 = vmatprep.subr.bf16.mxu0 0
    %3177 = vmatpush1.bf16.msra.mxu0 %v2738
    %3178 = vmatprep.subr.bf16.mxu0 0
    %3179 = vmatpush1.bf16.msra.mxu0 %v2739
    %3180 = vmatprep.subr.bf16.mxu0 0
    %3181 = vmatpush1.bf16.msra.mxu0 %v2740
    %3182 = vmatprep.subr.bf16.mxu0 0
    %3183 = vmatpush1.bf16.msra.mxu0 %v2741
    %3184 = vmatprep.subr.bf16.mxu0 0
    %3185 = vmatpush1.bf16.msra.mxu0 %v2742
    %3186 = vmatprep.subr.bf16.mxu0 0
    %3187 = vmatpush1.bf16.msra.mxu0 %v2743
    %3188 = vmatprep.subr.bf16.mxu0 0
    %3189 = vmatpush1.bf16.msra.mxu0 %v2744
    %3190 = vmatprep.subr.bf16.mxu0 0
    %3191 = vmatpush1.bf16.msra.mxu0 %v2745
    %3192 = vmatprep.subr.bf16.mxu0 0
    %3193 = vmatpush1.bf16.msra.mxu0 %v2746
    %3194 = vmatprep.mubr.bf16.mxu0 %v1843
    %3195 = vmatmul.mubr.bf16.gmra.mrb[0].mxu0 %v1842
    %v3196 = vpop.f32.mrb[0].mxu0
    %v3197 = vadd.f32 %v3156, %v3196
    %v3198 = vpop.f32.mrb[0].mxu0
    %v3199 = vpop.f32.mrb[0].mxu0
    %v3200 = vadd.f32 %v3159, %v3199
    %v3201 = vpop.f32.mrb[0].mxu0
    %3202 = vdwg.mxu0
    %v3203 = vadd.f32 %v1170, %v3197
    %v3204 = vadd.f32 %v1171, %v3200
    %v3205 = vsel %vm78, %v3203, 0.0
    %3206 = vadd.xlane.f32.xlu0 %v3205
    %v3207 = vpop.xlane.xlu0 %3206
    %v3208 = vsel %vm78, %v3204, 0.0
    %3209 = vadd.xlane.f32.xlu0 %v3208
    %v3210 = vpop.xlane.xlu0 %3209
    %v3211 = vmul.f32 %v3207, %v1133
    %v3212 = vmul.f32 %v3210, %v1133
    %v3213 = vsub.f32 %v3203, %v3211
    %v3214 = vsub.f32 %v3204, %v3212
    %v3215 = vmul.f32 %v3213, %v3213
    %v3216 = vmul.f32 %v3214, %v3214
    %v3217 = vsel %vm78, %v3215, 0.0
    %3218 = vadd.xlane.f32.xlu0 %v3217
    %v3219 = vpop.xlane.xlu0 %3218
    %v3220 = vsel %vm78, %v3216, 0.0
    %3221 = vadd.xlane.f32.xlu0 %v3220
    %v3222 = vpop.xlane.xlu0 %3221
    %v3223 = vmul.f32 %v3219, %v1133
    %v3224 = vmul.f32 %v3222, %v1133
    %v3225 = vadd.f32 %v3223, 1e-05
    %v3226 = vadd.f32 %v3224, 1e-05
    %v3227 = vrsqrt.pop %v3225
    %v3228 = vrsqrt.pop %v3226
    %v3229 = vmul.f32 %v3213, %v3227
    %v3230 = vmul.f32 %v3214, %v3228
    %v3231 = vld [vmem:[%s11] sm:$0x1]
    %v3233 = vlaneseq
    %v3234 = vshrl.u32 %v3233, 7
    %v3235 = vsub.s32 0, %v3234
    %v3236 = vrot.slane %v3231, %v3235
    %v3238 = vmul.f32 %v3229, %v3236
    %v3239 = vmul.f32 %v3230, %v3236
    %v3240 = vld [vmem:[%s12] sm:$0x1]
    %v3242 = vlaneseq
    %v3243 = vshrl.u32 %v3242, 7
    %v3244 = vsub.s32 0, %v3243
    %v3245 = vrot.slane %v3240, %v3244
    %v3247 = vadd.f32 %v3238, %v3245
    %v3248 = vadd.f32 %v3239, %v3245
    %v3249 = vpack.c.bf16 %v3248, %v3247
    %v3250 = vld [vmem:[%s13] sm:$0xf]
    %v3251 = vld [vmem:[%s13 + $0x4] sm:$0xf]
    %v3252 = vld [vmem:[%s13 + $0x8] sm:$0xf]
    %v3253 = vld [vmem:[%s13 + $0xc] sm:$0xf]
    %v3254 = vld [vmem:[%s14] sm:$0x1]
    %v3256 = vlaneseq
    %v3257 = vshrl.u32 %v3256, 7
    %v3258 = vsub.s32 0, %v3257
    %v3259 = vrot.slane %v3254, %v3258
    %v3265 = vunpack.c.l.b16 %v3250
    %v3266 = vunpack.c.l.b16 %v3251
    %v3267 = vunpack.c.l.b16 %v3252
    %v3268 = vunpack.c.l.b16 %v3253
    %v3269 = vpack.c.b16 %v3266, %v3265
    %v3270 = vpack.c.b16 %v3268, %v3267
    %v3274 = vsel %vm78, %v3249, 0
    %3276 = vmatprep.subr.bf16.mxu0 0
    %3277 = vmatpush1.bf16.msra.mxu0 %v3269
    %3278 = vmatprep.subr.bf16.mxu0 0
    %3279 = vmatpush1.bf16.msra.mxu0 %v3270
    %3280 = vmatprep.subr.bf16.mxu0 0
    %3281 = vmatpush1.bf16.msra.mxu0 0
    %3282 = vmatprep.subr.bf16.mxu0 0
    %3283 = vmatpush1.bf16.msra.mxu0 0
    %3284 = vmatprep.subr.bf16.mxu0 0
    %3285 = vmatpush1.bf16.msra.mxu0 0
    %3286 = vmatprep.subr.bf16.mxu0 0
    %3287 = vmatpush1.bf16.msra.mxu0 0
    %3288 = vmatprep.subr.bf16.mxu0 0
    %3289 = vmatpush1.bf16.msra.mxu0 0
    %3290 = vmatprep.subr.bf16.mxu0 0
    %3291 = vmatpush1.bf16.msra.mxu0 0
    %3292 = vmatprep.subr.bf16.mxu0 0
    %3293 = vmatpush1.bf16.msra.mxu0 0
    %3294 = vmatprep.subr.bf16.mxu0 0
    %3295 = vmatpush1.bf16.msra.mxu0 0
    %3296 = vmatprep.subr.bf16.mxu0 0
    %3297 = vmatpush1.bf16.msra.mxu0 0
    %3298 = vmatprep.subr.bf16.mxu0 0
    %3299 = vmatpush1.bf16.msra.mxu0 0
    %3300 = vmatprep.subr.bf16.mxu0 0
    %3301 = vmatpush1.bf16.msra.mxu0 0
    %3302 = vmatprep.subr.bf16.mxu0 0
    %3303 = vmatpush1.bf16.msra.mxu0 0
    %3304 = vmatprep.subr.bf16.mxu0 0
    %3305 = vmatpush1.bf16.msra.mxu0 0
    %3306 = vmatprep.subr.bf16.mxu0 0
    %3307 = vmatpush1.bf16.msra.mxu0 0
    %3308 = vmatprep.mubr.bf16.mxu0 0
    %3309 = vmatmul.mubr.bf16.gmra.mrb[0].mxu0 %v3274
    %v3310 = vpop.f32.mrb[0].mxu0
    %v3311 = vadd.f32 %v3259, %v3310
    %v3312 = vpop.f32.mrb[0].mxu0
    %v3313 = vpop.f32.mrb[0].mxu0
    %v3314 = vadd.f32 %v3259, %v3313
    %v3315 = vpop.f32.mrb[0].mxu0
    %3316 = vdwg.mxu0
    %3317 = vst [vmem:[#allocation2] sm:$0xff] %v3311
    %3318 = vst [vmem:[#allocation2 + $0x8] sm:$0xff] %v3314
    // Predicated region
    $region62: #{tpu_custom_call.1} parent=1 // pred_check
      _
    $region63: #{tpu_custom_call.1} parent=1 // pred_check_branch
      %3320 = sbr.rel (0) target = $region65
    $region64: #{tpu_custom_call.1} parent=1 // pred_region
      %s3322 = ssub.s32 256, 256
      %3323 = vsyncadd [#allocation3], %s3322
      %s3324 = sshll.u32 [#allocation2], 4
      %s3325 = int_to_ptr.vmem [resolvable:$true] %s3324
      %3330 = dma.vmem_to_hbm [thread:$0]  %s3325, 256, %s15, [#allocation3], 128, 128, 8
    $region65: #{tpu_custom_call.1} parent=1 // pred_fallthru
      _
    // Predicated region
    $region66: #{tpu_custom_call.1} parent=1 // pred_check
      _
    $region67: #{tpu_custom_call.1} parent=1 // pred_check_branch
      %3332 = sbr.rel (0) target = $region69
    $region68: #{tpu_custom_call.1} parent=1 // pred_region
      %3333 = dma.done [#allocation3], 256
    $region69: #{tpu_custom_call.1} parent=1 // pred_fallthru
      _
    %3334 = vsyncpa [#allocation3], 1

</llo_original>
